<compile_context>
chip_gen: v6e
topology: v6e:2x2x1
jax: 0.10.0
libtpu: 0.0.40
codegen_flags: <defaults>
</compile_context>

<pallas_src>
import math
import functools

import jax
import jax.numpy as jnp
from jax import lax
from jax.experimental import pallas as pl
from jax.experimental.pallas import tpu as pltpu


NEG_INF = -1e9

ENC_KEYS = ('wqkv', 'bqkv', 'wo', 'bo', 'ln1_g', 'ln1_b',
            'w1', 'b1', 'w2', 'b2', 'ln2_g', 'ln2_b')
DEC_KEYS = ('sa_wqkv', 'sa_bqkv', 'sa_wo', 'sa_bo', 'ln1_g', 'ln1_b',
            'ca_wq', 'ca_bq', 'ca_wkv', 'ca_bkv', 'ca_wo', 'ca_bo',
            'ln2_g', 'ln2_b', 'w1', 'b1', 'w2', 'b2', 'ln3_g', 'ln3_b')


# --------------------------- in-kernel helpers -----------------------------

def _mm(a, w):
    """2-D matmul with bf16 MXU operands and f32 accumulation."""
    return jnp.dot(a.astype(jnp.bfloat16), w.astype(jnp.bfloat16),
                   preferred_element_type=jnp.float32)


def _ln(x, g, b, eps=1e-5):
    mu = jnp.mean(x, axis=-1, keepdims=True)
    var = jnp.mean((x - mu) ** 2, axis=-1, keepdims=True)
    return (x - mu) * lax.rsqrt(var + eps) * g + b


def _softmax(s):
    s = s - jnp.max(s, axis=-1, keepdims=True)
    p = jnp.exp(s)
    # approx reciprocal runs on the EUP slot; swap for exact divide if
    # bit-parity with PyTorch softmax is required.
    return p * pl.reciprocal(jnp.sum(p, axis=-1, keepdims=True), approx=True)


def _mh_attn_proj(q, k, v, wo, mask, *, H, scale):
    """Multi-head attention fused with the output projection.

    q: (B, Lq, D), k/v: (B, Lk, D), wo: (D, D), mask broadcastable to
    (B, Lq, Lk).  Per head (static loop), the (B, Lq, dh) result is pushed
    through the matching dh-row block of wo and accumulated in registers --
    identical to concat(heads) @ wo, but with no scratch buffer, no
    lane-masked stores and no minor-dim concatenation.
    Returns (B*Lq, D) in f32 (before bias)."""
    B, Lq, D = q.shape
    dh = D // H
    out = None
    for h in range(H):
        sl = slice(h * dh, (h + 1) * dh)
        s = lax.dot_general(q[:, :, sl].astype(jnp.bfloat16),
                            k[:, :, sl].astype(jnp.bfloat16),
                            (((2,), (2,)), ((0,), (0,))),
                            preferred_element_type=jnp.float32)
        p = _softmax(s * scale + mask)
        o_h = lax.dot_general(p.astype(jnp.bfloat16),
                              v[:, :, sl].astype(jnp.bfloat16),
                              (((2,), (1,)), ((0,), (0,))),
                              preferred_element_type=jnp.float32)   # (B,Lq,dh)
        contrib = _mm(o_h.reshape(B * Lq, dh), wo[sl, :])           # (B*Lq, D)
        out = contrib if out is None else out + contrib
    return out


def _self_attn(x2, mask, wqkv, bqkv, wo, bo, *, B, L, D, H, scale):
    qkv = _mm(x2, wqkv) + bqkv                                  # (B*L, 3D)
    q = qkv[:, 0 * D:1 * D].reshape(B, L, D)
    k = qkv[:, 1 * D:2 * D].reshape(B, L, D)
    v = qkv[:, 2 * D:3 * D].reshape(B, L, D)
    return _mh_attn_proj(q, k, v, wo, mask, H=H, scale=scale) + bo


def _cross_attn(y2, mem2, mask, wq, bq, wkv, bkv, wo, bo,
                *, B, T, S, D, H, scale):
    q = (_mm(y2, wq) + bq).reshape(B, T, D)
    kv = _mm(mem2, wkv) + bkv                                   # (B*S, 2D)
    k = kv[:, :D].reshape(B, S, D)
    v = kv[:, D:].reshape(B, S, D)
    return _mh_attn_proj(q, k, v, wo, mask, H=H, scale=scale) + bo


def _ffn(x2, w1, b1, w2, b2):
    h = jnp.maximum(_mm(x2, w1) + b1, 0.0)
    return _mm(h, w2) + b2


# --------------------------- fused model kernel ----------------------------

def _model_kernel(*refs, B, S, T, D, H, NE, ND):
    lens_ref, x_ref, y_ref = refs[0:3]
    enc_refs = refs[3:3 + len(ENC_KEYS)]
    dec_refs = refs[3 + len(ENC_KEYS):3 + len(ENC_KEYS) + len(DEC_KEYS)]
    gen_w_ref, gen_b_ref = refs[-3], refs[-2]
    o_ref = refs[-1]

    dh = D // H
    scale = 1.0 / math.sqrt(dh)

    # ---- masks: built once per invocation from src_lengths (no HBM masks) --
    lens = lens_ref[...]                                         # (B, 1, 1) i32
    col_s = lax.broadcasted_iota(jnp.int32, (B, S, S), 2)
    enc_mask = jnp.where(col_s < lens, 0.0, NEG_INF)             # key padding
    row_t = lax.broadcasted_iota(jnp.int32, (1, T, T), 1)
    col_t = lax.broadcasted_iota(jnp.int32, (1, T, T), 2)
    causal_mask = jnp.where(row_t >= col_t, 0.0, NEG_INF)        # causal (hoisted)
    col_ts = lax.broadcasted_iota(jnp.int32, (B, T, S), 2)
    cross_mask = jnp.where(col_ts < lens, 0.0, NEG_INF)          # key padding

    # ---- encoder stack (activations stay resident; post-LN layers) --------
    x2 = x_ref[...]                                              # (B*S, D)
    for l in range(NE):
        (wqkv, bqkv, wo, bo, g1, be1,
         w1, fb1, w2, fb2, g2, be2) = [r[l] for r in enc_refs]
        a = _self_attn(x2, enc_mask, wqkv, bqkv, wo, bo,
                       B=B, L=S, D=D, H=H, scale=scale)
        x2 = _ln(x2 + a, g1, be1)
        x2 = _ln(x2 + _ffn(x2, w1, fb1, w2, fb2), g2, be2)
    mem2 = x2                                                    # (B*S, D)

    # ---- decoder stack -----------------------------------------------------
    y2 = y_ref[...]                                              # (B*T, D)
    for l in range(ND):
        (sa_wqkv, sa_bqkv, sa_wo, sa_bo, g1, be1,
         ca_wq, ca_bq, ca_wkv, ca_bkv, ca_wo, ca_bo, g2, be2,
         w1, fb1, w2, fb2, g3, be3) = [r[l] for r in dec_refs]
        a = _self_attn(y2, causal_mask, sa_wqkv, sa_bqkv, sa_wo, sa_bo,
                       B=B, L=T, D=D, H=H, scale=scale)
        y2 = _ln(y2 + a, g1, be1)
        c = _cross_attn(y2, mem2, cross_mask, ca_wq, ca_bq, ca_wkv, ca_bkv,
                        ca_wo, ca_bo, B=B, T=T, S=S, D=D, H=H, scale=scale)
        y2 = _ln(y2 + c, g2, be2)
        y2 = _ln(y2 + _ffn(y2, w1, fb1, w2, fb2), g3, be3)

    # ---- generator (fused linear head) -------------------------------------
    o_ref[...] = _mm(y2, gen_w_ref[...]) + gen_b_ref[...]


# ------------------------------- model glue ---------------------------------

def sinusoid_pe(max_len, d):
    pos = jnp.arange(max_len, dtype=jnp.float32)[:, None]
    div = jnp.exp(jnp.arange(0, d, 2, dtype=jnp.float32)
                  * (-math.log(10000.0) / d))
    pe = jnp.zeros((max_len, d), jnp.float32)
    pe = pe.at[:, 0::2].set(jnp.sin(pos * div))
    pe = pe.at[:, 1::2].set(jnp.cos(pos * div))
    return pe


def init_params(key, src_vocab, action_size, d_model, nhead, dim_ff,
                n_enc, n_dec):
    keys = iter(jax.random.split(key, 32))

    def w(shape, scale=0.02):
        return jax.random.normal(next(keys), shape, dtype=jnp.float32) * scale

    zeros = lambda s: jnp.zeros(s, jnp.float32)
    ones = lambda s: jnp.ones(s, jnp.float32)
    D, F = d_model, dim_ff

    enc = {
        'wqkv': w((n_enc, D, 3 * D)), 'bqkv': zeros((n_enc, 1, 3 * D)),
        'wo': w((n_enc, D, D)), 'bo': zeros((n_enc, 1, D)),
        'ln1_g': ones((n_enc, 1, D)), 'ln1_b': zeros((n_enc, 1, D)),
        'w1': w((n_enc, D, F)), 'b1': zeros((n_enc, 1, F)),
        'w2': w((n_enc, F, D)), 'b2': zeros((n_enc, 1, D)),
        'ln2_g': ones((n_enc, 1, D)), 'ln2_b': zeros((n_enc, 1, D)),
    }
    dec = {
        'sa_wqkv': w((n_dec, D, 3 * D)), 'sa_bqkv': zeros((n_dec, 1, 3 * D)),
        'sa_wo': w((n_dec, D, D)), 'sa_bo': zeros((n_dec, 1, D)),
        'ln1_g': ones((n_dec, 1, D)), 'ln1_b': zeros((n_dec, 1, D)),
        'ca_wq': w((n_dec, D, D)), 'ca_bq': zeros((n_dec, 1, D)),
        'ca_wkv': w((n_dec, D, 2 * D)), 'ca_bkv': zeros((n_dec, 1, 2 * D)),
        'ca_wo': w((n_dec, D, D)), 'ca_bo': zeros((n_dec, 1, D)),
        'ln2_g': ones((n_dec, 1, D)), 'ln2_b': zeros((n_dec, 1, D)),
        'w1': w((n_dec, D, F)), 'b1': zeros((n_dec, 1, F)),
        'w2': w((n_dec, F, D)), 'b2': zeros((n_dec, 1, D)),
        'ln3_g': ones((n_dec, 1, D)), 'ln3_b': zeros((n_dec, 1, D)),
    }
    return {
        'src_emb': w((src_vocab, D), 1.0),
        'tgt_emb': w((action_size, D), 1.0),
        'enc': enc, 'dec': dec,
        'gen_w': w((D, action_size)),
        'gen_b': zeros((1, action_size)),
    }


@functools.partial(jax.jit, static_argnames=('d_model', 'nhead'))
def encoder_decoder_forward(params, src, tgt, src_lengths, *, d_model, nhead):
    B, S = src.shape
    T = tgt.shape[1]
    A = params['gen_w'].shape[1]
    NE = params['enc']['wqkv'].shape[0]
    ND = params['dec']['sa_wqkv'].shape[0]

    pe = sinusoid_pe(max(S, T), d_model)
    lens = src_lengths.astype(jnp.int32).reshape(B, 1, 1)

    # Embedding gather + sinusoidal PE stay in plain JAX (gather has no cheap
    # in-kernel equivalent at this size); everything else is one fused kernel.
    x = (jnp.take(params['src_emb'], src, axis=0) * math.sqrt(d_model)
         + pe[:S][None]).reshape(B * S, d_model)
    y = (jnp.take(params['tgt_emb'], tgt, axis=0) * math.sqrt(d_model)
         + pe[:T][None]).reshape(B * T, d_model)

    kernel = functools.partial(_model_kernel, B=B, S=S, T=T, D=d_model,
                               H=nhead, NE=NE, ND=ND)
    args = ([lens, x, y]
            + [params['enc'][k] for k in ENC_KEYS]
            + [params['dec'][k] for k in DEC_KEYS]
            + [params['gen_w'], params['gen_b']])

    # Single fused launch; gridless call => every operand is a whole-array
    # VMEM block (weights single-buffered, no per-layer HBM round trips).
    pred = pl.pallas_call(
        kernel,
        out_shape=jax.ShapeDtypeStruct((B * T, A), jnp.float32),
        compiler_params=pltpu.CompilerParams(
            vmem_limit_bytes=32 * 1024 * 1024),
    )(*args)
    return pred.reshape(B, T, A)


# ------------------------------- entry point --------------------------------

if __name__ == "__main__":
    B, S, T = 2, 8, 8
    d_model, nhead, dim_ff = 32, 4, 64
    src_vocab, action_size = 20, 12
    n_enc = n_dec = 2

    key = jax.random.PRNGKey(0)
    kp, ks, kt = jax.random.split(key, 3)
    params = init_params(kp, src_vocab, action_size, d_model, nhead,
                         dim_ff, n_enc, n_dec)

    src = jax.random.randint(ks, (B, S), 0, src_vocab, dtype=jnp.int32)
    tgt = jax.random.randint(kt, (B, T), 0, action_size, dtype=jnp.int32)
    src_lengths = jnp.array([8, 5], dtype=jnp.int32)

    pred = encoder_decoder_forward(params, src, tgt, src_lengths,
                                   d_model=d_model, nhead=nhead)
    jax.block_until_ready(pred)
    assert pred.shape == (B, T, action_size)
    assert bool(jnp.all(jnp.isfinite(pred)))
    print("KERNEL_OK")
</pallas_src>

<mosaic_0001>
module attributes {stable_mosaic.version = 11 : i64} {
  func.func @_model_kernel(%arg0: memref<2x1x1xi32, #tpu.memory_space<vmem>>, %arg1: memref<16x32xf32, #tpu.memory_space<vmem>>, %arg2: memref<16x32xf32, #tpu.memory_space<vmem>>, %arg3: memref<2x32x96xf32, #tpu.memory_space<vmem>>, %arg4: memref<2x1x96xf32, #tpu.memory_space<vmem>>, %arg5: memref<2x32x32xf32, #tpu.memory_space<vmem>>, %arg6: memref<2x1x32xf32, #tpu.memory_space<vmem>>, %arg7: memref<2x1x32xf32, #tpu.memory_space<vmem>>, %arg8: memref<2x1x32xf32, #tpu.memory_space<vmem>>, %arg9: memref<2x32x64xf32, #tpu.memory_space<vmem>>, %arg10: memref<2x1x64xf32, #tpu.memory_space<vmem>>, %arg11: memref<2x64x32xf32, #tpu.memory_space<vmem>>, %arg12: memref<2x1x32xf32, #tpu.memory_space<vmem>>, %arg13: memref<2x1x32xf32, #tpu.memory_space<vmem>>, %arg14: memref<2x1x32xf32, #tpu.memory_space<vmem>>, %arg15: memref<2x32x96xf32, #tpu.memory_space<vmem>>, %arg16: memref<2x1x96xf32, #tpu.memory_space<vmem>>, %arg17: memref<2x32x32xf32, #tpu.memory_space<vmem>>, %arg18: memref<2x1x32xf32, #tpu.memory_space<vmem>>, %arg19: memref<2x1x32xf32, #tpu.memory_space<vmem>>, %arg20: memref<2x1x32xf32, #tpu.memory_space<vmem>>, %arg21: memref<2x32x32xf32, #tpu.memory_space<vmem>>, %arg22: memref<2x1x32xf32, #tpu.memory_space<vmem>>, %arg23: memref<2x32x64xf32, #tpu.memory_space<vmem>>, %arg24: memref<2x1x64xf32, #tpu.memory_space<vmem>>, %arg25: memref<2x32x32xf32, #tpu.memory_space<vmem>>, %arg26: memref<2x1x32xf32, #tpu.memory_space<vmem>>, %arg27: memref<2x1x32xf32, #tpu.memory_space<vmem>>, %arg28: memref<2x1x32xf32, #tpu.memory_space<vmem>>, %arg29: memref<2x32x64xf32, #tpu.memory_space<vmem>>, %arg30: memref<2x1x64xf32, #tpu.memory_space<vmem>>, %arg31: memref<2x64x32xf32, #tpu.memory_space<vmem>>, %arg32: memref<2x1x32xf32, #tpu.memory_space<vmem>>, %arg33: memref<2x1x32xf32, #tpu.memory_space<vmem>>, %arg34: memref<2x1x32xf32, #tpu.memory_space<vmem>>, %arg35: memref<32x12xf32, #tpu.memory_space<vmem>>, %arg36: memref<1x12xf32, #tpu.memory_space<vmem>>, %arg37: memref<16x12xf32, #tpu.memory_space<vmem>>) attributes {dimension_semantics = [], scalar_prefetch = 0 : i64, scratch_operands = 0 : i64, tpu.core_type = #tpu.core_type<tc>} {
    %c0 = arith.constant 0 : index
    %c0_0 = arith.constant 0 : index
    %c0_1 = arith.constant 0 : index
    %0 = vector.load %arg0[%c0, %c0_0, %c0_1] : memref<2x1x1xi32, #tpu.memory_space<vmem>>, vector<2x1x1xi32>
    %1 = tpu.iota {dimensions = array<i32: 2>} : vector<2x8x8xi32>
    %2 = vector.broadcast %0 : vector<2x1x1xi32> to vector<2x8x8xi32>
    %3 = arith.cmpi slt, %1, %2 : vector<2x8x8xi32>
    %cst = arith.constant 0.000000e+00 : f32
    %cst_2 = arith.constant -1.000000e+09 : f32
    %4 = vector.broadcast %cst : f32 to vector<2x8x8xf32>
    %5 = vector.broadcast %cst_2 : f32 to vector<2x8x8xf32>
    %6 = arith.select %3, %4, %5 : vector<2x8x8xi1>, vector<2x8x8xf32>
    %7 = tpu.iota {dimensions = array<i32: 1>} : vector<1x8x8xi32>
    %8 = tpu.iota {dimensions = array<i32: 2>} : vector<1x8x8xi32>
    %9 = arith.cmpi sge, %7, %8 : vector<1x8x8xi32>
    %cst_3 = arith.constant 0.000000e+00 : f32
    %cst_4 = arith.constant -1.000000e+09 : f32
    %10 = vector.broadcast %cst_3 : f32 to vector<1x8x8xf32>
    %11 = vector.broadcast %cst_4 : f32 to vector<1x8x8xf32>
    %12 = arith.select %9, %10, %11 : vector<1x8x8xi1>, vector<1x8x8xf32>
    %13 = tpu.iota {dimensions = array<i32: 2>} : vector<2x8x8xi32>
    %14 = vector.broadcast %0 : vector<2x1x1xi32> to vector<2x8x8xi32>
    %15 = arith.cmpi slt, %13, %14 : vector<2x8x8xi32>
    %cst_5 = arith.constant 0.000000e+00 : f32
    %cst_6 = arith.constant -1.000000e+09 : f32
    %16 = vector.broadcast %cst_5 : f32 to vector<2x8x8xf32>
    %17 = vector.broadcast %cst_6 : f32 to vector<2x8x8xf32>
    %18 = arith.select %15, %16, %17 : vector<2x8x8xi1>, vector<2x8x8xf32>
    %c0_7 = arith.constant 0 : index
    %c0_8 = arith.constant 0 : index
    %19 = vector.load %arg1[%c0_7, %c0_8] : memref<16x32xf32, #tpu.memory_space<vmem>>, vector<16x32xf32>
    %c0_9 = arith.constant 0 : index
    %c0_10 = arith.constant 0 : index
    %c0_11 = arith.constant 0 : index
    %20 = vector.load %arg3[%c0_9, %c0_10, %c0_11] : memref<2x32x96xf32, #tpu.memory_space<vmem>>, vector<1x32x96xf32>
    %21 = vector.shape_cast %20 : vector<1x32x96xf32> to vector<32x96xf32>
    %c0_12 = arith.constant 0 : index
    %c0_13 = arith.constant 0 : index
    %c0_14 = arith.constant 0 : index
    %22 = vector.load %arg4[%c0_12, %c0_13, %c0_14] : memref<2x1x96xf32, #tpu.memory_space<vmem>>, vector<1x1x96xf32>
    %23 = vector.shape_cast %22 : vector<1x1x96xf32> to vector<1x96xf32>
    %c0_15 = arith.constant 0 : index
    %c0_16 = arith.constant 0 : index
    %c0_17 = arith.constant 0 : index
    %24 = vector.load %arg5[%c0_15, %c0_16, %c0_17] : memref<2x32x32xf32, #tpu.memory_space<vmem>>, vector<1x32x32xf32>
    %25 = vector.shape_cast %24 : vector<1x32x32xf32> to vector<32x32xf32>
    %c0_18 = arith.constant 0 : index
    %c0_19 = arith.constant 0 : index
    %c0_20 = arith.constant 0 : index
    %26 = vector.load %arg6[%c0_18, %c0_19, %c0_20] : memref<2x1x32xf32, #tpu.memory_space<vmem>>, vector<1x1x32xf32>
    %27 = vector.shape_cast %26 : vector<1x1x32xf32> to vector<1x32xf32>
    %c0_21 = arith.constant 0 : index
    %c0_22 = arith.constant 0 : index
    %c0_23 = arith.constant 0 : index
    %28 = vector.load %arg7[%c0_21, %c0_22, %c0_23] : memref<2x1x32xf32, #tpu.memory_space<vmem>>, vector<1x1x32xf32>
    %29 = vector.shape_cast %28 : vector<1x1x32xf32> to vector<1x32xf32>
    %c0_24 = arith.constant 0 : index
    %c0_25 = arith.constant 0 : index
    %c0_26 = arith.constant 0 : index
    %30 = vector.load %arg8[%c0_24, %c0_25, %c0_26] : memref<2x1x32xf32, #tpu.memory_space<vmem>>, vector<1x1x32xf32>
    %31 = vector.shape_cast %30 : vector<1x1x32xf32> to vector<1x32xf32>
    %c0_27 = arith.constant 0 : index
    %c0_28 = arith.constant 0 : index
    %c0_29 = arith.constant 0 : index
    %32 = vector.load %arg9[%c0_27, %c0_28, %c0_29] : memref<2x32x64xf32, #tpu.memory_space<vmem>>, vector<1x32x64xf32>
    %33 = vector.shape_cast %32 : vector<1x32x64xf32> to vector<32x64xf32>
    %c0_30 = arith.constant 0 : index
    %c0_31 = arith.constant 0 : index
    %c0_32 = arith.constant 0 : index
    %34 = vector.load %arg10[%c0_30, %c0_31, %c0_32] : memref<2x1x64xf32, #tpu.memory_space<vmem>>, vector<1x1x64xf32>
    %35 = vector.shape_cast %34 : vector<1x1x64xf32> to vector<1x64xf32>
    %c0_33 = arith.constant 0 : index
    %c0_34 = arith.constant 0 : index
    %c0_35 = arith.constant 0 : index
    %36 = vector.load %arg11[%c0_33, %c0_34, %c0_35] : memref<2x64x32xf32, #tpu.memory_space<vmem>>, vector<1x64x32xf32>
    %37 = vector.shape_cast %36 : vector<1x64x32xf32> to vector<64x32xf32>
    %c0_36 = arith.constant 0 : index
    %c0_37 = arith.constant 0 : index
    %c0_38 = arith.constant 0 : index
    %38 = vector.load %arg12[%c0_36, %c0_37, %c0_38] : memref<2x1x32xf32, #tpu.memory_space<vmem>>, vector<1x1x32xf32>
    %39 = vector.shape_cast %38 : vector<1x1x32xf32> to vector<1x32xf32>
    %c0_39 = arith.constant 0 : index
    %c0_40 = arith.constant 0 : index
    %c0_41 = arith.constant 0 : index
    %40 = vector.load %arg13[%c0_39, %c0_40, %c0_41] : memref<2x1x32xf32, #tpu.memory_space<vmem>>, vector<1x1x32xf32>
    %41 = vector.shape_cast %40 : vector<1x1x32xf32> to vector<1x32xf32>
    %c0_42 = arith.constant 0 : index
    %c0_43 = arith.constant 0 : index
    %c0_44 = arith.constant 0 : index
    %42 = vector.load %arg14[%c0_42, %c0_43, %c0_44] : memref<2x1x32xf32, #tpu.memory_space<vmem>>, vector<1x1x32xf32>
    %43 = vector.shape_cast %42 : vector<1x1x32xf32> to vector<1x32xf32>
    %44 = arith.truncf %19 : vector<16x32xf32> to vector<16x32xbf16>
    %45 = arith.truncf %21 : vector<32x96xf32> to vector<32x96xbf16>
    %cst_45 = arith.constant dense<0.000000e+00> : vector<16x96xf32>
    %46 = tpu.matmul %44, %45, %cst_45 {dimension_numbers = #tpu.dot_dimension_numbers<[1], [0], [0], [1], [0, 0, 1, 1], [], []>} : vector<16x32xbf16>, vector<32x96xbf16>, vector<16x96xf32> -> vector<16x96xf32>
    %47 = vector.broadcast %23 : vector<1x96xf32> to vector<16x96xf32>
    %48 = arith.addf %46, %47 : vector<16x96xf32>
    %49 = vector.extract_strided_slice %48 {offsets = [0, 0], sizes = [16, 32], strides = [1, 1]} : vector<16x96xf32> to vector<16x32xf32>
    %50 = vector.shape_cast %49 : vector<16x32xf32> to vector<2x8x32xf32>
    %51 = vector.extract_strided_slice %48 {offsets = [0, 32], sizes = [16, 32], strides = [1, 1]} : vector<16x96xf32> to vector<16x32xf32>
    %52 = vector.shape_cast %51 : vector<16x32xf32> to vector<2x8x32xf32>
    %53 = vector.extract_strided_slice %48 {offsets = [0, 64], sizes = [16, 32], strides = [1, 1]} : vector<16x96xf32> to vector<16x32xf32>
    %54 = vector.shape_cast %53 : vector<16x32xf32> to vector<2x8x32xf32>
    %55 = vector.extract_strided_slice %50 {offsets = [0, 0, 0], sizes = [2, 8, 8], strides = [1, 1, 1]} : vector<2x8x32xf32> to vector<2x8x8xf32>
    %56 = arith.truncf %55 : vector<2x8x8xf32> to vector<2x8x8xbf16>
    %57 = vector.extract_strided_slice %52 {offsets = [0, 0, 0], sizes = [2, 8, 8], strides = [1, 1, 1]} : vector<2x8x32xf32> to vector<2x8x8xf32>
    %58 = arith.truncf %57 : vector<2x8x8xf32> to vector<2x8x8xbf16>
    %cst_46 = arith.constant dense<0.000000e+00> : vector<2x8x8xf32>
    %59 = tpu.matmul %56, %58, %cst_46 {dimension_numbers = #tpu.dot_dimension_numbers<[2], [2], [1], [1], [0, 0, 0, 1, 1, 1], [0], [0]>} : vector<2x8x8xbf16>, vector<2x8x8xbf16>, vector<2x8x8xf32> -> vector<2x8x8xf32>
    %cst_47 = arith.constant 0.353553385 : f32
    %60 = vector.broadcast %cst_47 : f32 to vector<2x8x8xf32>
    %61 = arith.mulf %59, %60 : vector<2x8x8xf32>
    %62 = arith.addf %61, %6 : vector<2x8x8xf32>
    %cst_48 = arith.constant dense<0xFF800000> : vector<2x8xf32>
    %63 = vector.multi_reduction <maximumf>, %62, %cst_48 [2] : vector<2x8x8xf32> to vector<2x8xf32>
    %64 = vector.shape_cast %63 : vector<2x8xf32> to vector<2x8x1xf32>
    %65 = vector.broadcast %64 : vector<2x8x1xf32> to vector<2x8x8xf32>
    %66 = arith.subf %62, %65 : vector<2x8x8xf32>
    %67 = math.exp %66 : vector<2x8x8xf32>
    %cst_49 = arith.constant dense<0.000000e+00> : vector<2x8xf32>
    %68 = vector.multi_reduction <add>, %67, %cst_49 [2] : vector<2x8x8xf32> to vector<2x8xf32>
    %69 = vector.shape_cast %68 : vector<2x8xf32> to vector<2x8x1xf32>
    %70 = tpu.reciprocal %69 {approx = true} : vector<2x8x1xf32> -> vector<2x8x1xf32>
    %71 = vector.broadcast %70 : vector<2x8x1xf32> to vector<2x8x8xf32>
    %72 = arith.mulf %67, %71 : vector<2x8x8xf32>
    %73 = arith.truncf %72 : vector<2x8x8xf32> to vector<2x8x8xbf16>
    %74 = vector.extract_strided_slice %54 {offsets = [0, 0, 0], sizes = [2, 8, 8], strides = [1, 1, 1]} : vector<2x8x32xf32> to vector<2x8x8xf32>
    %75 = arith.truncf %74 : vector<2x8x8xf32> to vector<2x8x8xbf16>
    %cst_50 = arith.constant dense<0.000000e+00> : vector<2x8x8xf32>
    %76 = tpu.matmul %73, %75, %cst_50 {dimension_numbers = #tpu.dot_dimension_numbers<[2], [1], [1], [2], [0, 0, 0, 1, 1, 2], [0], [0]>} : vector<2x8x8xbf16>, vector<2x8x8xbf16>, vector<2x8x8xf32> -> vector<2x8x8xf32>
    %77 = vector.shape_cast %76 : vector<2x8x8xf32> to vector<16x8xf32>
    %78 = vector.extract_strided_slice %25 {offsets = [0, 0], sizes = [8, 32], strides = [1, 1]} : vector<32x32xf32> to vector<8x32xf32>
    %79 = arith.truncf %77 : vector<16x8xf32> to vector<16x8xbf16>
    %80 = arith.truncf %78 : vector<8x32xf32> to vector<8x32xbf16>
    %cst_51 = arith.constant dense<0.000000e+00> : vector<16x32xf32>
    %81 = tpu.matmul %79, %80, %cst_51 {dimension_numbers = #tpu.dot_dimension_numbers<[1], [0], [0], [1], [0, 0, 1, 1], [], []>} : vector<16x8xbf16>, vector<8x32xbf16>, vector<16x32xf32> -> vector<16x32xf32>
    %82 = vector.extract_strided_slice %50 {offsets = [0, 0, 8], sizes = [2, 8, 8], strides = [1, 1, 1]} : vector<2x8x32xf32> to vector<2x8x8xf32>
    %83 = arith.truncf %82 : vector<2x8x8xf32> to vector<2x8x8xbf16>
    %84 = vector.extract_strided_slice %52 {offsets = [0, 0, 8], sizes = [2, 8, 8], strides = [1, 1, 1]} : vector<2x8x32xf32> to vector<2x8x8xf32>
    %85 = arith.truncf %84 : vector<2x8x8xf32> to vector<2x8x8xbf16>
    %cst_52 = arith.constant dense<0.000000e+00> : vector<2x8x8xf32>
    %86 = tpu.matmul %83, %85, %cst_52 {dimension_numbers = #tpu.dot_dimension_numbers<[2], [2], [1], [1], [0, 0, 0, 1, 1, 1], [0], [0]>} : vector<2x8x8xbf16>, vector<2x8x8xbf16>, vector<2x8x8xf32> -> vector<2x8x8xf32>
    %cst_53 = arith.constant 0.353553385 : f32
    %87 = vector.broadcast %cst_53 : f32 to vector<2x8x8xf32>
    %88 = arith.mulf %86, %87 : vector<2x8x8xf32>
    %89 = arith.addf %88, %6 : vector<2x8x8xf32>
    %cst_54 = arith.constant dense<0xFF800000> : vector<2x8xf32>
    %90 = vector.multi_reduction <maximumf>, %89, %cst_54 [2] : vector<2x8x8xf32> to vector<2x8xf32>
    %91 = vector.shape_cast %90 : vector<2x8xf32> to vector<2x8x1xf32>
    %92 = vector.broadcast %91 : vector<2x8x1xf32> to vector<2x8x8xf32>
    %93 = arith.subf %89, %92 : vector<2x8x8xf32>
    %94 = math.exp %93 : vector<2x8x8xf32>
    %cst_55 = arith.constant dense<0.000000e+00> : vector<2x8xf32>
    %95 = vector.multi_reduction <add>, %94, %cst_55 [2] : vector<2x8x8xf32> to vector<2x8xf32>
    %96 = vector.shape_cast %95 : vector<2x8xf32> to vector<2x8x1xf32>
    %97 = tpu.reciprocal %96 {approx = true} : vector<2x8x1xf32> -> vector<2x8x1xf32>
    %98 = vector.broadcast %97 : vector<2x8x1xf32> to vector<2x8x8xf32>
    %99 = arith.mulf %94, %98 : vector<2x8x8xf32>
    %100 = arith.truncf %99 : vector<2x8x8xf32> to vector<2x8x8xbf16>
    %101 = vector.extract_strided_slice %54 {offsets = [0, 0, 8], sizes = [2, 8, 8], strides = [1, 1, 1]} : vector<2x8x32xf32> to vector<2x8x8xf32>
    %102 = arith.truncf %101 : vector<2x8x8xf32> to vector<2x8x8xbf16>
    %cst_56 = arith.constant dense<0.000000e+00> : vector<2x8x8xf32>
    %103 = tpu.matmul %100, %102, %cst_56 {dimension_numbers = #tpu.dot_dimension_numbers<[2], [1], [1], [2], [0, 0, 0, 1, 1, 2], [0], [0]>} : vector<2x8x8xbf16>, vector<2x8x8xbf16>, vector<2x8x8xf32> -> vector<2x8x8xf32>
    %104 = vector.shape_cast %103 : vector<2x8x8xf32> to vector<16x8xf32>
    %105 = vector.extract_strided_slice %25 {offsets = [8, 0], sizes = [8, 32], strides = [1, 1]} : vector<32x32xf32> to vector<8x32xf32>
    %106 = arith.truncf %104 : vector<16x8xf32> to vector<16x8xbf16>
    %107 = arith.truncf %105 : vector<8x32xf32> to vector<8x32xbf16>
    %cst_57 = arith.constant dense<0.000000e+00> : vector<16x32xf32>
    %108 = tpu.matmul %106, %107, %cst_57 {dimension_numbers = #tpu.dot_dimension_numbers<[1], [0], [0], [1], [0, 0, 1, 1], [], []>} : vector<16x8xbf16>, vector<8x32xbf16>, vector<16x32xf32> -> vector<16x32xf32>
    %109 = arith.addf %81, %108 : vector<16x32xf32>
    %110 = vector.extract_strided_slice %50 {offsets = [0, 0, 16], sizes = [2, 8, 8], strides = [1, 1, 1]} : vector<2x8x32xf32> to vector<2x8x8xf32>
    %111 = arith.truncf %110 : vector<2x8x8xf32> to vector<2x8x8xbf16>
    %112 = vector.extract_strided_slice %52 {offsets = [0, 0, 16], sizes = [2, 8, 8], strides = [1, 1, 1]} : vector<2x8x32xf32> to vector<2x8x8xf32>
    %113 = arith.truncf %112 : vector<2x8x8xf32> to vector<2x8x8xbf16>
    %cst_58 = arith.constant dense<0.000000e+00> : vector<2x8x8xf32>
    %114 = tpu.matmul %111, %113, %cst_58 {dimension_numbers = #tpu.dot_dimension_numbers<[2], [2], [1], [1], [0, 0, 0, 1, 1, 1], [0], [0]>} : vector<2x8x8xbf16>, vector<2x8x8xbf16>, vector<2x8x8xf32> -> vector<2x8x8xf32>
    %cst_59 = arith.constant 0.353553385 : f32
    %115 = vector.broadcast %cst_59 : f32 to vector<2x8x8xf32>
    %116 = arith.mulf %114, %115 : vector<2x8x8xf32>
    %117 = arith.addf %116, %6 : vector<2x8x8xf32>
    %cst_60 = arith.constant dense<0xFF800000> : vector<2x8xf32>
    %118 = vector.multi_reduction <maximumf>, %117, %cst_60 [2] : vector<2x8x8xf32> to vector<2x8xf32>
    %119 = vector.shape_cast %118 : vector<2x8xf32> to vector<2x8x1xf32>
    %120 = vector.broadcast %119 : vector<2x8x1xf32> to vector<2x8x8xf32>
    %121 = arith.subf %117, %120 : vector<2x8x8xf32>
    %122 = math.exp %121 : vector<2x8x8xf32>
    %cst_61 = arith.constant dense<0.000000e+00> : vector<2x8xf32>
    %123 = vector.multi_reduction <add>, %122, %cst_61 [2] : vector<2x8x8xf32> to vector<2x8xf32>
    %124 = vector.shape_cast %123 : vector<2x8xf32> to vector<2x8x1xf32>
    %125 = tpu.reciprocal %124 {approx = true} : vector<2x8x1xf32> -> vector<2x8x1xf32>
    %126 = vector.broadcast %125 : vector<2x8x1xf32> to vector<2x8x8xf32>
    %127 = arith.mulf %122, %126 : vector<2x8x8xf32>
    %128 = arith.truncf %127 : vector<2x8x8xf32> to vector<2x8x8xbf16>
    %129 = vector.extract_strided_slice %54 {offsets = [0, 0, 16], sizes = [2, 8, 8], strides = [1, 1, 1]} : vector<2x8x32xf32> to vector<2x8x8xf32>
    %130 = arith.truncf %129 : vector<2x8x8xf32> to vector<2x8x8xbf16>
    %cst_62 = arith.constant dense<0.000000e+00> : vector<2x8x8xf32>
    %131 = tpu.matmul %128, %130, %cst_62 {dimension_numbers = #tpu.dot_dimension_numbers<[2], [1], [1], [2], [0, 0, 0, 1, 1, 2], [0], [0]>} : vector<2x8x8xbf16>, vector<2x8x8xbf16>, vector<2x8x8xf32> -> vector<2x8x8xf32>
    %132 = vector.shape_cast %131 : vector<2x8x8xf32> to vector<16x8xf32>
    %133 = vector.extract_strided_slice %25 {offsets = [16, 0], sizes = [8, 32], strides = [1, 1]} : vector<32x32xf32> to vector<8x32xf32>
    %134 = arith.truncf %132 : vector<16x8xf32> to vector<16x8xbf16>
    %135 = arith.truncf %133 : vector<8x32xf32> to vector<8x32xbf16>
    %cst_63 = arith.constant dense<0.000000e+00> : vector<16x32xf32>
    %136 = tpu.matmul %134, %135, %cst_63 {dimension_numbers = #tpu.dot_dimension_numbers<[1], [0], [0], [1], [0, 0, 1, 1], [], []>} : vector<16x8xbf16>, vector<8x32xbf16>, vector<16x32xf32> -> vector<16x32xf32>
    %137 = arith.addf %109, %136 : vector<16x32xf32>
    %138 = vector.extract_strided_slice %50 {offsets = [0, 0, 24], sizes = [2, 8, 8], strides = [1, 1, 1]} : vector<2x8x32xf32> to vector<2x8x8xf32>
    %139 = arith.truncf %138 : vector<2x8x8xf32> to vector<2x8x8xbf16>
    %140 = vector.extract_strided_slice %52 {offsets = [0, 0, 24], sizes = [2, 8, 8], strides = [1, 1, 1]} : vector<2x8x32xf32> to vector<2x8x8xf32>
    %141 = arith.truncf %140 : vector<2x8x8xf32> to vector<2x8x8xbf16>
    %cst_64 = arith.constant dense<0.000000e+00> : vector<2x8x8xf32>
    %142 = tpu.matmul %139, %141, %cst_64 {dimension_numbers = #tpu.dot_dimension_numbers<[2], [2], [1], [1], [0, 0, 0, 1, 1, 1], [0], [0]>} : vector<2x8x8xbf16>, vector<2x8x8xbf16>, vector<2x8x8xf32> -> vector<2x8x8xf32>
    %cst_65 = arith.constant 0.353553385 : f32
    %143 = vector.broadcast %cst_65 : f32 to vector<2x8x8xf32>
    %144 = arith.mulf %142, %143 : vector<2x8x8xf32>
    %145 = arith.addf %144, %6 : vector<2x8x8xf32>
    %cst_66 = arith.constant dense<0xFF800000> : vector<2x8xf32>
    %146 = vector.multi_reduction <maximumf>, %145, %cst_66 [2] : vector<2x8x8xf32> to vector<2x8xf32>
    %147 = vector.shape_cast %146 : vector<2x8xf32> to vector<2x8x1xf32>
    %148 = vector.broadcast %147 : vector<2x8x1xf32> to vector<2x8x8xf32>
    %149 = arith.subf %145, %148 : vector<2x8x8xf32>
    %150 = math.exp %149 : vector<2x8x8xf32>
    %cst_67 = arith.constant dense<0.000000e+00> : vector<2x8xf32>
    %151 = vector.multi_reduction <add>, %150, %cst_67 [2] : vector<2x8x8xf32> to vector<2x8xf32>
    %152 = vector.shape_cast %151 : vector<2x8xf32> to vector<2x8x1xf32>
    %153 = tpu.reciprocal %152 {approx = true} : vector<2x8x1xf32> -> vector<2x8x1xf32>
    %154 = vector.broadcast %153 : vector<2x8x1xf32> to vector<2x8x8xf32>
    %155 = arith.mulf %150, %154 : vector<2x8x8xf32>
    %156 = arith.truncf %155 : vector<2x8x8xf32> to vector<2x8x8xbf16>
    %157 = vector.extract_strided_slice %54 {offsets = [0, 0, 24], sizes = [2, 8, 8], strides = [1, 1, 1]} : vector<2x8x32xf32> to vector<2x8x8xf32>
    %158 = arith.truncf %157 : vector<2x8x8xf32> to vector<2x8x8xbf16>
    %cst_68 = arith.constant dense<0.000000e+00> : vector<2x8x8xf32>
    %159 = tpu.matmul %156, %158, %cst_68 {dimension_numbers = #tpu.dot_dimension_numbers<[2], [1], [1], [2], [0, 0, 0, 1, 1, 2], [0], [0]>} : vector<2x8x8xbf16>, vector<2x8x8xbf16>, vector<2x8x8xf32> -> vector<2x8x8xf32>
    %160 = vector.shape_cast %159 : vector<2x8x8xf32> to vector<16x8xf32>
    %161 = vector.extract_strided_slice %25 {offsets = [24, 0], sizes = [8, 32], strides = [1, 1]} : vector<32x32xf32> to vector<8x32xf32>
    %162 = arith.truncf %160 : vector<16x8xf32> to vector<16x8xbf16>
    %163 = arith.truncf %161 : vector<8x32xf32> to vector<8x32xbf16>
    %cst_69 = arith.constant dense<0.000000e+00> : vector<16x32xf32>
    %164 = tpu.matmul %162, %163, %cst_69 {dimension_numbers = #tpu.dot_dimension_numbers<[1], [0], [0], [1], [0, 0, 1, 1], [], []>} : vector<16x8xbf16>, vector<8x32xbf16>, vector<16x32xf32> -> vector<16x32xf32>
    %165 = arith.addf %137, %164 : vector<16x32xf32>
    %166 = vector.broadcast %27 : vector<1x32xf32> to vector<16x32xf32>
    %167 = arith.addf %165, %166 : vector<16x32xf32>
    %168 = arith.addf %19, %167 : vector<16x32xf32>
    %cst_70 = arith.constant dense<0.000000e+00> : vector<16xf32>
    %169 = vector.multi_reduction <add>, %168, %cst_70 [1] : vector<16x32xf32> to vector<16xf32>
    %170 = vector.shape_cast %169 : vector<16xf32> to vector<16x1xf32>
    %cst_71 = arith.constant 3.200000e+01 : f32
    %171 = vector.broadcast %cst_71 : f32 to vector<16x1xf32>
    %172 = arith.divf %170, %171 : vector<16x1xf32>
    %173 = vector.broadcast %172 : vector<16x1xf32> to vector<16x32xf32>
    %174 = arith.subf %168, %173 : vector<16x32xf32>
    %175 = arith.mulf %174, %174 : vector<16x32xf32>
    %cst_72 = arith.constant dense<0.000000e+00> : vector<16xf32>
    %176 = vector.multi_reduction <add>, %175, %cst_72 [1] : vector<16x32xf32> to vector<16xf32>
    %177 = vector.shape_cast %176 : vector<16xf32> to vector<16x1xf32>
    %cst_73 = arith.constant 3.200000e+01 : f32
    %178 = vector.broadcast %cst_73 : f32 to vector<16x1xf32>
    %179 = arith.divf %177, %178 : vector<16x1xf32>
    %180 = vector.broadcast %172 : vector<16x1xf32> to vector<16x32xf32>
    %181 = arith.subf %168, %180 : vector<16x32xf32>
    %cst_74 = arith.constant 9.99999974E-6 : f32
    %182 = vector.broadcast %cst_74 : f32 to vector<16x1xf32>
    %183 = arith.addf %179, %182 : vector<16x1xf32>
    %184 = math.rsqrt %183 : vector<16x1xf32>
    %185 = vector.broadcast %184 : vector<16x1xf32> to vector<16x32xf32>
    %186 = arith.mulf %181, %185 : vector<16x32xf32>
    %187 = vector.broadcast %29 : vector<1x32xf32> to vector<16x32xf32>
    %188 = arith.mulf %186, %187 : vector<16x32xf32>
    %189 = vector.broadcast %31 : vector<1x32xf32> to vector<16x32xf32>
    %190 = arith.addf %188, %189 : vector<16x32xf32>
    %191 = arith.truncf %190 : vector<16x32xf32> to vector<16x32xbf16>
    %192 = arith.truncf %33 : vector<32x64xf32> to vector<32x64xbf16>
    %cst_75 = arith.constant dense<0.000000e+00> : vector<16x64xf32>
    %193 = tpu.matmul %191, %192, %cst_75 {dimension_numbers = #tpu.dot_dimension_numbers<[1], [0], [0], [1], [0, 0, 1, 1], [], []>} : vector<16x32xbf16>, vector<32x64xbf16>, vector<16x64xf32> -> vector<16x64xf32>
    %194 = vector.broadcast %35 : vector<1x64xf32> to vector<16x64xf32>
    %195 = arith.addf %193, %194 : vector<16x64xf32>
    %cst_76 = arith.constant 0.000000e+00 : f32
    %196 = vector.broadcast %cst_76 : f32 to vector<16x64xf32>
    %197 = arith.maximumf %195, %196 : vector<16x64xf32>
    %198 = arith.truncf %197 : vector<16x64xf32> to vector<16x64xbf16>
    %199 = arith.truncf %37 : vector<64x32xf32> to vector<64x32xbf16>
    %cst_77 = arith.constant dense<0.000000e+00> : vector<16x32xf32>
    %200 = tpu.matmul %198, %199, %cst_77 {dimension_numbers = #tpu.dot_dimension_numbers<[1], [0], [0], [1], [0, 0, 1, 1], [], []>} : vector<16x64xbf16>, vector<64x32xbf16>, vector<16x32xf32> -> vector<16x32xf32>
    %201 = vector.broadcast %39 : vector<1x32xf32> to vector<16x32xf32>
    %202 = arith.addf %200, %201 : vector<16x32xf32>
    %203 = arith.addf %190, %202 : vector<16x32xf32>
    %cst_78 = arith.constant dense<0.000000e+00> : vector<16xf32>
    %204 = vector.multi_reduction <add>, %203, %cst_78 [1] : vector<16x32xf32> to vector<16xf32>
    %205 = vector.shape_cast %204 : vector<16xf32> to vector<16x1xf32>
    %cst_79 = arith.constant 3.200000e+01 : f32
    %206 = vector.broadcast %cst_79 : f32 to vector<16x1xf32>
    %207 = arith.divf %205, %206 : vector<16x1xf32>
    %208 = vector.broadcast %207 : vector<16x1xf32> to vector<16x32xf32>
    %209 = arith.subf %203, %208 : vector<16x32xf32>
    %210 = arith.mulf %209, %209 : vector<16x32xf32>
    %cst_80 = arith.constant dense<0.000000e+00> : vector<16xf32>
    %211 = vector.multi_reduction <add>, %210, %cst_80 [1] : vector<16x32xf32> to vector<16xf32>
    %212 = vector.shape_cast %211 : vector<16xf32> to vector<16x1xf32>
    %cst_81 = arith.constant 3.200000e+01 : f32
    %213 = vector.broadcast %cst_81 : f32 to vector<16x1xf32>
    %214 = arith.divf %212, %213 : vector<16x1xf32>
    %215 = vector.broadcast %207 : vector<16x1xf32> to vector<16x32xf32>
    %216 = arith.subf %203, %215 : vector<16x32xf32>
    %cst_82 = arith.constant 9.99999974E-6 : f32
    %217 = vector.broadcast %cst_82 : f32 to vector<16x1xf32>
    %218 = arith.addf %214, %217 : vector<16x1xf32>
    %219 = math.rsqrt %218 : vector<16x1xf32>
    %220 = vector.broadcast %219 : vector<16x1xf32> to vector<16x32xf32>
    %221 = arith.mulf %216, %220 : vector<16x32xf32>
    %222 = vector.broadcast %41 : vector<1x32xf32> to vector<16x32xf32>
    %223 = arith.mulf %221, %222 : vector<16x32xf32>
    %224 = vector.broadcast %43 : vector<1x32xf32> to vector<16x32xf32>
    %225 = arith.addf %223, %224 : vector<16x32xf32>
    %c1 = arith.constant 1 : index
    %c0_83 = arith.constant 0 : index
    %c0_84 = arith.constant 0 : index
    %226 = vector.load %arg3[%c1, %c0_83, %c0_84] : memref<2x32x96xf32, #tpu.memory_space<vmem>>, vector<1x32x96xf32>
    %227 = vector.shape_cast %226 : vector<1x32x96xf32> to vector<32x96xf32>
    %c1_85 = arith.constant 1 : index
    %c0_86 = arith.constant 0 : index
    %c0_87 = arith.constant 0 : index
    %228 = vector.load %arg4[%c1_85, %c0_86, %c0_87] : memref<2x1x96xf32, #tpu.memory_space<vmem>>, vector<1x1x96xf32>
    %229 = vector.shape_cast %228 : vector<1x1x96xf32> to vector<1x96xf32>
    %c1_88 = arith.constant 1 : index
    %c0_89 = arith.constant 0 : index
    %c0_90 = arith.constant 0 : index
    %230 = vector.load %arg5[%c1_88, %c0_89, %c0_90] : memref<2x32x32xf32, #tpu.memory_space<vmem>>, vector<1x32x32xf32>
    %231 = vector.shape_cast %230 : vector<1x32x32xf32> to vector<32x32xf32>
    %c1_91 = arith.constant 1 : index
    %c0_92 = arith.constant 0 : index
    %c0_93 = arith.constant 0 : index
    %232 = vector.load %arg6[%c1_91, %c0_92, %c0_93] : memref<2x1x32xf32, #tpu.memory_space<vmem>>, vector<1x1x32xf32>
    %233 = vector.shape_cast %232 : vector<1x1x32xf32> to vector<1x32xf32>
    %c1_94 = arith.constant 1 : index
    %c0_95 = arith.constant 0 : index
    %c0_96 = arith.constant 0 : index
    %234 = vector.load %arg7[%c1_94, %c0_95, %c0_96] : memref<2x1x32xf32, #tpu.memory_space<vmem>>, vector<1x1x32xf32>
    %235 = vector.shape_cast %234 : vector<1x1x32xf32> to vector<1x32xf32>
    %c1_97 = arith.constant 1 : index
    %c0_98 = arith.constant 0 : index
    %c0_99 = arith.constant 0 : index
    %236 = vector.load %arg8[%c1_97, %c0_98, %c0_99] : memref<2x1x32xf32, #tpu.memory_space<vmem>>, vector<1x1x32xf32>
    %237 = vector.shape_cast %236 : vector<1x1x32xf32> to vector<1x32xf32>
    %c1_100 = arith.constant 1 : index
    %c0_101 = arith.constant 0 : index
    %c0_102 = arith.constant 0 : index
    %238 = vector.load %arg9[%c1_100, %c0_101, %c0_102] : memref<2x32x64xf32, #tpu.memory_space<vmem>>, vector<1x32x64xf32>
    %239 = vector.shape_cast %238 : vector<1x32x64xf32> to vector<32x64xf32>
    %c1_103 = arith.constant 1 : index
    %c0_104 = arith.constant 0 : index
    %c0_105 = arith.constant 0 : index
    %240 = vector.load %arg10[%c1_103, %c0_104, %c0_105] : memref<2x1x64xf32, #tpu.memory_space<vmem>>, vector<1x1x64xf32>
    %241 = vector.shape_cast %240 : vector<1x1x64xf32> to vector<1x64xf32>
    %c1_106 = arith.constant 1 : index
    %c0_107 = arith.constant 0 : index
    %c0_108 = arith.constant 0 : index
    %242 = vector.load %arg11[%c1_106, %c0_107, %c0_108] : memref<2x64x32xf32, #tpu.memory_space<vmem>>, vector<1x64x32xf32>
    %243 = vector.shape_cast %242 : vector<1x64x32xf32> to vector<64x32xf32>
    %c1_109 = arith.constant 1 : index
    %c0_110 = arith.constant 0 : index
    %c0_111 = arith.constant 0 : index
    %244 = vector.load %arg12[%c1_109, %c0_110, %c0_111] : memref<2x1x32xf32, #tpu.memory_space<vmem>>, vector<1x1x32xf32>
    %245 = vector.shape_cast %244 : vector<1x1x32xf32> to vector<1x32xf32>
    %c1_112 = arith.constant 1 : index
    %c0_113 = arith.constant 0 : index
    %c0_114 = arith.constant 0 : index
    %246 = vector.load %arg13[%c1_112, %c0_113, %c0_114] : memref<2x1x32xf32, #tpu.memory_space<vmem>>, vector<1x1x32xf32>
    %247 = vector.shape_cast %246 : vector<1x1x32xf32> to vector<1x32xf32>
    %c1_115 = arith.constant 1 : index
    %c0_116 = arith.constant 0 : index
    %c0_117 = arith.constant 0 : index
    %248 = vector.load %arg14[%c1_115, %c0_116, %c0_117] : memref<2x1x32xf32, #tpu.memory_space<vmem>>, vector<1x1x32xf32>
    %249 = vector.shape_cast %248 : vector<1x1x32xf32> to vector<1x32xf32>
    %250 = arith.truncf %225 : vector<16x32xf32> to vector<16x32xbf16>
    %251 = arith.truncf %227 : vector<32x96xf32> to vector<32x96xbf16>
    %cst_118 = arith.constant dense<0.000000e+00> : vector<16x96xf32>
    %252 = tpu.matmul %250, %251, %cst_118 {dimension_numbers = #tpu.dot_dimension_numbers<[1], [0], [0], [1], [0, 0, 1, 1], [], []>} : vector<16x32xbf16>, vector<32x96xbf16>, vector<16x96xf32> -> vector<16x96xf32>
    %253 = vector.broadcast %229 : vector<1x96xf32> to vector<16x96xf32>
    %254 = arith.addf %252, %253 : vector<16x96xf32>
    %255 = vector.extract_strided_slice %254 {offsets = [0, 0], sizes = [16, 32], strides = [1, 1]} : vector<16x96xf32> to vector<16x32xf32>
    %256 = vector.shape_cast %255 : vector<16x32xf32> to vector<2x8x32xf32>
    %257 = vector.extract_strided_slice %254 {offsets = [0, 32], sizes = [16, 32], strides = [1, 1]} : vector<16x96xf32> to vector<16x32xf32>
    %258 = vector.shape_cast %257 : vector<16x32xf32> to vector<2x8x32xf32>
    %259 = vector.extract_strided_slice %254 {offsets = [0, 64], sizes = [16, 32], strides = [1, 1]} : vector<16x96xf32> to vector<16x32xf32>
    %260 = vector.shape_cast %259 : vector<16x32xf32> to vector<2x8x32xf32>
    %261 = vector.extract_strided_slice %256 {offsets = [0, 0, 0], sizes = [2, 8, 8], strides = [1, 1, 1]} : vector<2x8x32xf32> to vector<2x8x8xf32>
    %262 = arith.truncf %261 : vector<2x8x8xf32> to vector<2x8x8xbf16>
    %263 = vector.extract_strided_slice %258 {offsets = [0, 0, 0], sizes = [2, 8, 8], strides = [1, 1, 1]} : vector<2x8x32xf32> to vector<2x8x8xf32>
    %264 = arith.truncf %263 : vector<2x8x8xf32> to vector<2x8x8xbf16>
    %cst_119 = arith.constant dense<0.000000e+00> : vector<2x8x8xf32>
    %265 = tpu.matmul %262, %264, %cst_119 {dimension_numbers = #tpu.dot_dimension_numbers<[2], [2], [1], [1], [0, 0, 0, 1, 1, 1], [0], [0]>} : vector<2x8x8xbf16>, vector<2x8x8xbf16>, vector<2x8x8xf32> -> vector<2x8x8xf32>
    %cst_120 = arith.constant 0.353553385 : f32
    %266 = vector.broadcast %cst_120 : f32 to vector<2x8x8xf32>
    %267 = arith.mulf %265, %266 : vector<2x8x8xf32>
    %268 = arith.addf %267, %6 : vector<2x8x8xf32>
    %cst_121 = arith.constant dense<0xFF800000> : vector<2x8xf32>
    %269 = vector.multi_reduction <maximumf>, %268, %cst_121 [2] : vector<2x8x8xf32> to vector<2x8xf32>
    %270 = vector.shape_cast %269 : vector<2x8xf32> to vector<2x8x1xf32>
    %271 = vector.broadcast %270 : vector<2x8x1xf32> to vector<2x8x8xf32>
    %272 = arith.subf %268, %271 : vector<2x8x8xf32>
    %273 = math.exp %272 : vector<2x8x8xf32>
    %cst_122 = arith.constant dense<0.000000e+00> : vector<2x8xf32>
    %274 = vector.multi_reduction <add>, %273, %cst_122 [2] : vector<2x8x8xf32> to vector<2x8xf32>
    %275 = vector.shape_cast %274 : vector<2x8xf32> to vector<2x8x1xf32>
    %276 = tpu.reciprocal %275 {approx = true} : vector<2x8x1xf32> -> vector<2x8x1xf32>
    %277 = vector.broadcast %276 : vector<2x8x1xf32> to vector<2x8x8xf32>
    %278 = arith.mulf %273, %277 : vector<2x8x8xf32>
    %279 = arith.truncf %278 : vector<2x8x8xf32> to vector<2x8x8xbf16>
    %280 = vector.extract_strided_slice %260 {offsets = [0, 0, 0], sizes = [2, 8, 8], strides = [1, 1, 1]} : vector<2x8x32xf32> to vector<2x8x8xf32>
    %281 = arith.truncf %280 : vector<2x8x8xf32> to vector<2x8x8xbf16>
    %cst_123 = arith.constant dense<0.000000e+00> : vector<2x8x8xf32>
    %282 = tpu.matmul %279, %281, %cst_123 {dimension_numbers = #tpu.dot_dimension_numbers<[2], [1], [1], [2], [0, 0, 0, 1, 1, 2], [0], [0]>} : vector<2x8x8xbf16>, vector<2x8x8xbf16>, vector<2x8x8xf32> -> vector<2x8x8xf32>
    %283 = vector.shape_cast %282 : vector<2x8x8xf32> to vector<16x8xf32>
    %284 = vector.extract_strided_slice %231 {offsets = [0, 0], sizes = [8, 32], strides = [1, 1]} : vector<32x32xf32> to vector<8x32xf32>
    %285 = arith.truncf %283 : vector<16x8xf32> to vector<16x8xbf16>
    %286 = arith.truncf %284 : vector<8x32xf32> to vector<8x32xbf16>
    %cst_124 = arith.constant dense<0.000000e+00> : vector<16x32xf32>
    %287 = tpu.matmul %285, %286, %cst_124 {dimension_numbers = #tpu.dot_dimension_numbers<[1], [0], [0], [1], [0, 0, 1, 1], [], []>} : vector<16x8xbf16>, vector<8x32xbf16>, vector<16x32xf32> -> vector<16x32xf32>
    %288 = vector.extract_strided_slice %256 {offsets = [0, 0, 8], sizes = [2, 8, 8], strides = [1, 1, 1]} : vector<2x8x32xf32> to vector<2x8x8xf32>
    %289 = arith.truncf %288 : vector<2x8x8xf32> to vector<2x8x8xbf16>
    %290 = vector.extract_strided_slice %258 {offsets = [0, 0, 8], sizes = [2, 8, 8], strides = [1, 1, 1]} : vector<2x8x32xf32> to vector<2x8x8xf32>
    %291 = arith.truncf %290 : vector<2x8x8xf32> to vector<2x8x8xbf16>
    %cst_125 = arith.constant dense<0.000000e+00> : vector<2x8x8xf32>
    %292 = tpu.matmul %289, %291, %cst_125 {dimension_numbers = #tpu.dot_dimension_numbers<[2], [2], [1], [1], [0, 0, 0, 1, 1, 1], [0], [0]>} : vector<2x8x8xbf16>, vector<2x8x8xbf16>, vector<2x8x8xf32> -> vector<2x8x8xf32>
    %cst_126 = arith.constant 0.353553385 : f32
    %293 = vector.broadcast %cst_126 : f32 to vector<2x8x8xf32>
    %294 = arith.mulf %292, %293 : vector<2x8x8xf32>
    %295 = arith.addf %294, %6 : vector<2x8x8xf32>
    %cst_127 = arith.constant dense<0xFF800000> : vector<2x8xf32>
    %296 = vector.multi_reduction <maximumf>, %295, %cst_127 [2] : vector<2x8x8xf32> to vector<2x8xf32>
    %297 = vector.shape_cast %296 : vector<2x8xf32> to vector<2x8x1xf32>
    %298 = vector.broadcast %297 : vector<2x8x1xf32> to vector<2x8x8xf32>
    %299 = arith.subf %295, %298 : vector<2x8x8xf32>
    %300 = math.exp %299 : vector<2x8x8xf32>
    %cst_128 = arith.constant dense<0.000000e+00> : vector<2x8xf32>
    %301 = vector.multi_reduction <add>, %300, %cst_128 [2] : vector<2x8x8xf32> to vector<2x8xf32>
    %302 = vector.shape_cast %301 : vector<2x8xf32> to vector<2x8x1xf32>
    %303 = tpu.reciprocal %302 {approx = true} : vector<2x8x1xf32> -> vector<2x8x1xf32>
    %304 = vector.broadcast %303 : vector<2x8x1xf32> to vector<2x8x8xf32>
    %305 = arith.mulf %300, %304 : vector<2x8x8xf32>
    %306 = arith.truncf %305 : vector<2x8x8xf32> to vector<2x8x8xbf16>
    %307 = vector.extract_strided_slice %260 {offsets = [0, 0, 8], sizes = [2, 8, 8], strides = [1, 1, 1]} : vector<2x8x32xf32> to vector<2x8x8xf32>
    %308 = arith.truncf %307 : vector<2x8x8xf32> to vector<2x8x8xbf16>
    %cst_129 = arith.constant dense<0.000000e+00> : vector<2x8x8xf32>
    %309 = tpu.matmul %306, %308, %cst_129 {dimension_numbers = #tpu.dot_dimension_numbers<[2], [1], [1], [2], [0, 0, 0, 1, 1, 2], [0], [0]>} : vector<2x8x8xbf16>, vector<2x8x8xbf16>, vector<2x8x8xf32> -> vector<2x8x8xf32>
    %310 = vector.shape_cast %309 : vector<2x8x8xf32> to vector<16x8xf32>
    %311 = vector.extract_strided_slice %231 {offsets = [8, 0], sizes = [8, 32], strides = [1, 1]} : vector<32x32xf32> to vector<8x32xf32>
    %312 = arith.truncf %310 : vector<16x8xf32> to vector<16x8xbf16>
    %313 = arith.truncf %311 : vector<8x32xf32> to vector<8x32xbf16>
    %cst_130 = arith.constant dense<0.000000e+00> : vector<16x32xf32>
    %314 = tpu.matmul %312, %313, %cst_130 {dimension_numbers = #tpu.dot_dimension_numbers<[1], [0], [0], [1], [0, 0, 1, 1], [], []>} : vector<16x8xbf16>, vector<8x32xbf16>, vector<16x32xf32> -> vector<16x32xf32>
    %315 = arith.addf %287, %314 : vector<16x32xf32>
    %316 = vector.extract_strided_slice %256 {offsets = [0, 0, 16], sizes = [2, 8, 8], strides = [1, 1, 1]} : vector<2x8x32xf32> to vector<2x8x8xf32>
    %317 = arith.truncf %316 : vector<2x8x8xf32> to vector<2x8x8xbf16>
    %318 = vector.extract_strided_slice %258 {offsets = [0, 0, 16], sizes = [2, 8, 8], strides = [1, 1, 1]} : vector<2x8x32xf32> to vector<2x8x8xf32>
    %319 = arith.truncf %318 : vector<2x8x8xf32> to vector<2x8x8xbf16>
    %cst_131 = arith.constant dense<0.000000e+00> : vector<2x8x8xf32>
    %320 = tpu.matmul %317, %319, %cst_131 {dimension_numbers = #tpu.dot_dimension_numbers<[2], [2], [1], [1], [0, 0, 0, 1, 1, 1], [0], [0]>} : vector<2x8x8xbf16>, vector<2x8x8xbf16>, vector<2x8x8xf32> -> vector<2x8x8xf32>
    %cst_132 = arith.constant 0.353553385 : f32
    %321 = vector.broadcast %cst_132 : f32 to vector<2x8x8xf32>
    %322 = arith.mulf %320, %321 : vector<2x8x8xf32>
    %323 = arith.addf %322, %6 : vector<2x8x8xf32>
    %cst_133 = arith.constant dense<0xFF800000> : vector<2x8xf32>
    %324 = vector.multi_reduction <maximumf>, %323, %cst_133 [2] : vector<2x8x8xf32> to vector<2x8xf32>
    %325 = vector.shape_cast %324 : vector<2x8xf32> to vector<2x8x1xf32>
    %326 = vector.broadcast %325 : vector<2x8x1xf32> to vector<2x8x8xf32>
    %327 = arith.subf %323, %326 : vector<2x8x8xf32>
    %328 = math.exp %327 : vector<2x8x8xf32>
    %cst_134 = arith.constant dense<0.000000e+00> : vector<2x8xf32>
    %329 = vector.multi_reduction <add>, %328, %cst_134 [2] : vector<2x8x8xf32> to vector<2x8xf32>
    %330 = vector.shape_cast %329 : vector<2x8xf32> to vector<2x8x1xf32>
    %331 = tpu.reciprocal %330 {approx = true} : vector<2x8x1xf32> -> vector<2x8x1xf32>
    %332 = vector.broadcast %331 : vector<2x8x1xf32> to vector<2x8x8xf32>
    %333 = arith.mulf %328, %332 : vector<2x8x8xf32>
    %334 = arith.truncf %333 : vector<2x8x8xf32> to vector<2x8x8xbf16>
    %335 = vector.extract_strided_slice %260 {offsets = [0, 0, 16], sizes = [2, 8, 8], strides = [1, 1, 1]} : vector<2x8x32xf32> to vector<2x8x8xf32>
    %336 = arith.truncf %335 : vector<2x8x8xf32> to vector<2x8x8xbf16>
    %cst_135 = arith.constant dense<0.000000e+00> : vector<2x8x8xf32>
    %337 = tpu.matmul %334, %336, %cst_135 {dimension_numbers = #tpu.dot_dimension_numbers<[2], [1], [1], [2], [0, 0, 0, 1, 1, 2], [0], [0]>} : vector<2x8x8xbf16>, vector<2x8x8xbf16>, vector<2x8x8xf32> -> vector<2x8x8xf32>
    %338 = vector.shape_cast %337 : vector<2x8x8xf32> to vector<16x8xf32>
    %339 = vector.extract_strided_slice %231 {offsets = [16, 0], sizes = [8, 32], strides = [1, 1]} : vector<32x32xf32> to vector<8x32xf32>
    %340 = arith.truncf %338 : vector<16x8xf32> to vector<16x8xbf16>
    %341 = arith.truncf %339 : vector<8x32xf32> to vector<8x32xbf16>
    %cst_136 = arith.constant dense<0.000000e+00> : vector<16x32xf32>
    %342 = tpu.matmul %340, %341, %cst_136 {dimension_numbers = #tpu.dot_dimension_numbers<[1], [0], [0], [1], [0, 0, 1, 1], [], []>} : vector<16x8xbf16>, vector<8x32xbf16>, vector<16x32xf32> -> vector<16x32xf32>
    %343 = arith.addf %315, %342 : vector<16x32xf32>
    %344 = vector.extract_strided_slice %256 {offsets = [0, 0, 24], sizes = [2, 8, 8], strides = [1, 1, 1]} : vector<2x8x32xf32> to vector<2x8x8xf32>
    %345 = arith.truncf %344 : vector<2x8x8xf32> to vector<2x8x8xbf16>
    %346 = vector.extract_strided_slice %258 {offsets = [0, 0, 24], sizes = [2, 8, 8], strides = [1, 1, 1]} : vector<2x8x32xf32> to vector<2x8x8xf32>
    %347 = arith.truncf %346 : vector<2x8x8xf32> to vector<2x8x8xbf16>
    %cst_137 = arith.constant dense<0.000000e+00> : vector<2x8x8xf32>
    %348 = tpu.matmul %345, %347, %cst_137 {dimension_numbers = #tpu.dot_dimension_numbers<[2], [2], [1], [1], [0, 0, 0, 1, 1, 1], [0], [0]>} : vector<2x8x8xbf16>, vector<2x8x8xbf16>, vector<2x8x8xf32> -> vector<2x8x8xf32>
    %cst_138 = arith.constant 0.353553385 : f32
    %349 = vector.broadcast %cst_138 : f32 to vector<2x8x8xf32>
    %350 = arith.mulf %348, %349 : vector<2x8x8xf32>
    %351 = arith.addf %350, %6 : vector<2x8x8xf32>
    %cst_139 = arith.constant dense<0xFF800000> : vector<2x8xf32>
    %352 = vector.multi_reduction <maximumf>, %351, %cst_139 [2] : vector<2x8x8xf32> to vector<2x8xf32>
    %353 = vector.shape_cast %352 : vector<2x8xf32> to vector<2x8x1xf32>
    %354 = vector.broadcast %353 : vector<2x8x1xf32> to vector<2x8x8xf32>
    %355 = arith.subf %351, %354 : vector<2x8x8xf32>
    %356 = math.exp %355 : vector<2x8x8xf32>
    %cst_140 = arith.constant dense<0.000000e+00> : vector<2x8xf32>
    %357 = vector.multi_reduction <add>, %356, %cst_140 [2] : vector<2x8x8xf32> to vector<2x8xf32>
    %358 = vector.shape_cast %357 : vector<2x8xf32> to vector<2x8x1xf32>
    %359 = tpu.reciprocal %358 {approx = true} : vector<2x8x1xf32> -> vector<2x8x1xf32>
    %360 = vector.broadcast %359 : vector<2x8x1xf32> to vector<2x8x8xf32>
    %361 = arith.mulf %356, %360 : vector<2x8x8xf32>
    %362 = arith.truncf %361 : vector<2x8x8xf32> to vector<2x8x8xbf16>
    %363 = vector.extract_strided_slice %260 {offsets = [0, 0, 24], sizes = [2, 8, 8], strides = [1, 1, 1]} : vector<2x8x32xf32> to vector<2x8x8xf32>
    %364 = arith.truncf %363 : vector<2x8x8xf32> to vector<2x8x8xbf16>
    %cst_141 = arith.constant dense<0.000000e+00> : vector<2x8x8xf32>
    %365 = tpu.matmul %362, %364, %cst_141 {dimension_numbers = #tpu.dot_dimension_numbers<[2], [1], [1], [2], [0, 0, 0, 1, 1, 2], [0], [0]>} : vector<2x8x8xbf16>, vector<2x8x8xbf16>, vector<2x8x8xf32> -> vector<2x8x8xf32>
    %366 = vector.shape_cast %365 : vector<2x8x8xf32> to vector<16x8xf32>
    %367 = vector.extract_strided_slice %231 {offsets = [24, 0], sizes = [8, 32], strides = [1, 1]} : vector<32x32xf32> to vector<8x32xf32>
    %368 = arith.truncf %366 : vector<16x8xf32> to vector<16x8xbf16>
    %369 = arith.truncf %367 : vector<8x32xf32> to vector<8x32xbf16>
    %cst_142 = arith.constant dense<0.000000e+00> : vector<16x32xf32>
    %370 = tpu.matmul %368, %369, %cst_142 {dimension_numbers = #tpu.dot_dimension_numbers<[1], [0], [0], [1], [0, 0, 1, 1], [], []>} : vector<16x8xbf16>, vector<8x32xbf16>, vector<16x32xf32> -> vector<16x32xf32>
    %371 = arith.addf %343, %370 : vector<16x32xf32>
    %372 = vector.broadcast %233 : vector<1x32xf32> to vector<16x32xf32>
    %373 = arith.addf %371, %372 : vector<16x32xf32>
    %374 = arith.addf %225, %373 : vector<16x32xf32>
    %cst_143 = arith.constant dense<0.000000e+00> : vector<16xf32>
    %375 = vector.multi_reduction <add>, %374, %cst_143 [1] : vector<16x32xf32> to vector<16xf32>
    %376 = vector.shape_cast %375 : vector<16xf32> to vector<16x1xf32>
    %cst_144 = arith.constant 3.200000e+01 : f32
    %377 = vector.broadcast %cst_144 : f32 to vector<16x1xf32>
    %378 = arith.divf %376, %377 : vector<16x1xf32>
    %379 = vector.broadcast %378 : vector<16x1xf32> to vector<16x32xf32>
    %380 = arith.subf %374, %379 : vector<16x32xf32>
    %381 = arith.mulf %380, %380 : vector<16x32xf32>
    %cst_145 = arith.constant dense<0.000000e+00> : vector<16xf32>
    %382 = vector.multi_reduction <add>, %381, %cst_145 [1] : vector<16x32xf32> to vector<16xf32>
    %383 = vector.shape_cast %382 : vector<16xf32> to vector<16x1xf32>
    %cst_146 = arith.constant 3.200000e+01 : f32
    %384 = vector.broadcast %cst_146 : f32 to vector<16x1xf32>
    %385 = arith.divf %383, %384 : vector<16x1xf32>
    %386 = vector.broadcast %378 : vector<16x1xf32> to vector<16x32xf32>
    %387 = arith.subf %374, %386 : vector<16x32xf32>
    %cst_147 = arith.constant 9.99999974E-6 : f32
    %388 = vector.broadcast %cst_147 : f32 to vector<16x1xf32>
    %389 = arith.addf %385, %388 : vector<16x1xf32>
    %390 = math.rsqrt %389 : vector<16x1xf32>
    %391 = vector.broadcast %390 : vector<16x1xf32> to vector<16x32xf32>
    %392 = arith.mulf %387, %391 : vector<16x32xf32>
    %393 = vector.broadcast %235 : vector<1x32xf32> to vector<16x32xf32>
    %394 = arith.mulf %392, %393 : vector<16x32xf32>
    %395 = vector.broadcast %237 : vector<1x32xf32> to vector<16x32xf32>
    %396 = arith.addf %394, %395 : vector<16x32xf32>
    %397 = arith.truncf %396 : vector<16x32xf32> to vector<16x32xbf16>
    %398 = arith.truncf %239 : vector<32x64xf32> to vector<32x64xbf16>
    %cst_148 = arith.constant dense<0.000000e+00> : vector<16x64xf32>
    %399 = tpu.matmul %397, %398, %cst_148 {dimension_numbers = #tpu.dot_dimension_numbers<[1], [0], [0], [1], [0, 0, 1, 1], [], []>} : vector<16x32xbf16>, vector<32x64xbf16>, vector<16x64xf32> -> vector<16x64xf32>
    %400 = vector.broadcast %241 : vector<1x64xf32> to vector<16x64xf32>
    %401 = arith.addf %399, %400 : vector<16x64xf32>
    %cst_149 = arith.constant 0.000000e+00 : f32
    %402 = vector.broadcast %cst_149 : f32 to vector<16x64xf32>
    %403 = arith.maximumf %401, %402 : vector<16x64xf32>
    %404 = arith.truncf %403 : vector<16x64xf32> to vector<16x64xbf16>
    %405 = arith.truncf %243 : vector<64x32xf32> to vector<64x32xbf16>
    %cst_150 = arith.constant dense<0.000000e+00> : vector<16x32xf32>
    %406 = tpu.matmul %404, %405, %cst_150 {dimension_numbers = #tpu.dot_dimension_numbers<[1], [0], [0], [1], [0, 0, 1, 1], [], []>} : vector<16x64xbf16>, vector<64x32xbf16>, vector<16x32xf32> -> vector<16x32xf32>
    %407 = vector.broadcast %245 : vector<1x32xf32> to vector<16x32xf32>
    %408 = arith.addf %406, %407 : vector<16x32xf32>
    %409 = arith.addf %396, %408 : vector<16x32xf32>
    %cst_151 = arith.constant dense<0.000000e+00> : vector<16xf32>
    %410 = vector.multi_reduction <add>, %409, %cst_151 [1] : vector<16x32xf32> to vector<16xf32>
    %411 = vector.shape_cast %410 : vector<16xf32> to vector<16x1xf32>
    %cst_152 = arith.constant 3.200000e+01 : f32
    %412 = vector.broadcast %cst_152 : f32 to vector<16x1xf32>
    %413 = arith.divf %411, %412 : vector<16x1xf32>
    %414 = vector.broadcast %413 : vector<16x1xf32> to vector<16x32xf32>
    %415 = arith.subf %409, %414 : vector<16x32xf32>
    %416 = arith.mulf %415, %415 : vector<16x32xf32>
    %cst_153 = arith.constant dense<0.000000e+00> : vector<16xf32>
    %417 = vector.multi_reduction <add>, %416, %cst_153 [1] : vector<16x32xf32> to vector<16xf32>
    %418 = vector.shape_cast %417 : vector<16xf32> to vector<16x1xf32>
    %cst_154 = arith.constant 3.200000e+01 : f32
    %419 = vector.broadcast %cst_154 : f32 to vector<16x1xf32>
    %420 = arith.divf %418, %419 : vector<16x1xf32>
    %421 = vector.broadcast %413 : vector<16x1xf32> to vector<16x32xf32>
    %422 = arith.subf %409, %421 : vector<16x32xf32>
    %cst_155 = arith.constant 9.99999974E-6 : f32
    %423 = vector.broadcast %cst_155 : f32 to vector<16x1xf32>
    %424 = arith.addf %420, %423 : vector<16x1xf32>
    %425 = math.rsqrt %424 : vector<16x1xf32>
    %426 = vector.broadcast %425 : vector<16x1xf32> to vector<16x32xf32>
    %427 = arith.mulf %422, %426 : vector<16x32xf32>
    %428 = vector.broadcast %247 : vector<1x32xf32> to vector<16x32xf32>
    %429 = arith.mulf %427, %428 : vector<16x32xf32>
    %430 = vector.broadcast %249 : vector<1x32xf32> to vector<16x32xf32>
    %431 = arith.addf %429, %430 : vector<16x32xf32>
    %c0_156 = arith.constant 0 : index
    %c0_157 = arith.constant 0 : index
    %432 = vector.load %arg2[%c0_156, %c0_157] : memref<16x32xf32, #tpu.memory_space<vmem>>, vector<16x32xf32>
    %c0_158 = arith.constant 0 : index
    %c0_159 = arith.constant 0 : index
    %c0_160 = arith.constant 0 : index
    %433 = vector.load %arg15[%c0_158, %c0_159, %c0_160] : memref<2x32x96xf32, #tpu.memory_space<vmem>>, vector<1x32x96xf32>
    %434 = vector.shape_cast %433 : vector<1x32x96xf32> to vector<32x96xf32>
    %c0_161 = arith.constant 0 : index
    %c0_162 = arith.constant 0 : index
    %c0_163 = arith.constant 0 : index
    %435 = vector.load %arg16[%c0_161, %c0_162, %c0_163] : memref<2x1x96xf32, #tpu.memory_space<vmem>>, vector<1x1x96xf32>
    %436 = vector.shape_cast %435 : vector<1x1x96xf32> to vector<1x96xf32>
    %c0_164 = arith.constant 0 : index
    %c0_165 = arith.constant 0 : index
    %c0_166 = arith.constant 0 : index
    %437 = vector.load %arg17[%c0_164, %c0_165, %c0_166] : memref<2x32x32xf32, #tpu.memory_space<vmem>>, vector<1x32x32xf32>
    %438 = vector.shape_cast %437 : vector<1x32x32xf32> to vector<32x32xf32>
    %c0_167 = arith.constant 0 : index
    %c0_168 = arith.constant 0 : index
    %c0_169 = arith.constant 0 : index
    %439 = vector.load %arg18[%c0_167, %c0_168, %c0_169] : memref<2x1x32xf32, #tpu.memory_space<vmem>>, vector<1x1x32xf32>
    %440 = vector.shape_cast %439 : vector<1x1x32xf32> to vector<1x32xf32>
    %c0_170 = arith.constant 0 : index
    %c0_171 = arith.constant 0 : index
    %c0_172 = arith.constant 0 : index
    %441 = vector.load %arg19[%c0_170, %c0_171, %c0_172] : memref<2x1x32xf32, #tpu.memory_space<vmem>>, vector<1x1x32xf32>
    %442 = vector.shape_cast %441 : vector<1x1x32xf32> to vector<1x32xf32>
    %c0_173 = arith.constant 0 : index
    %c0_174 = arith.constant 0 : index
    %c0_175 = arith.constant 0 : index
    %443 = vector.load %arg20[%c0_173, %c0_174, %c0_175] : memref<2x1x32xf32, #tpu.memory_space<vmem>>, vector<1x1x32xf32>
    %444 = vector.shape_cast %443 : vector<1x1x32xf32> to vector<1x32xf32>
    %c0_176 = arith.constant 0 : index
    %c0_177 = arith.constant 0 : index
    %c0_178 = arith.constant 0 : index
    %445 = vector.load %arg21[%c0_176, %c0_177, %c0_178] : memref<2x32x32xf32, #tpu.memory_space<vmem>>, vector<1x32x32xf32>
    %446 = vector.shape_cast %445 : vector<1x32x32xf32> to vector<32x32xf32>
    %c0_179 = arith.constant 0 : index
    %c0_180 = arith.constant 0 : index
    %c0_181 = arith.constant 0 : index
    %447 = vector.load %arg22[%c0_179, %c0_180, %c0_181] : memref<2x1x32xf32, #tpu.memory_space<vmem>>, vector<1x1x32xf32>
    %448 = vector.shape_cast %447 : vector<1x1x32xf32> to vector<1x32xf32>
    %c0_182 = arith.constant 0 : index
    %c0_183 = arith.constant 0 : index
    %c0_184 = arith.constant 0 : index
    %449 = vector.load %arg23[%c0_182, %c0_183, %c0_184] : memref<2x32x64xf32, #tpu.memory_space<vmem>>, vector<1x32x64xf32>
    %450 = vector.shape_cast %449 : vector<1x32x64xf32> to vector<32x64xf32>
    %c0_185 = arith.constant 0 : index
    %c0_186 = arith.constant 0 : index
    %c0_187 = arith.constant 0 : index
    %451 = vector.load %arg24[%c0_185, %c0_186, %c0_187] : memref<2x1x64xf32, #tpu.memory_space<vmem>>, vector<1x1x64xf32>
    %452 = vector.shape_cast %451 : vector<1x1x64xf32> to vector<1x64xf32>
    %c0_188 = arith.constant 0 : index
    %c0_189 = arith.constant 0 : index
    %c0_190 = arith.constant 0 : index
    %453 = vector.load %arg25[%c0_188, %c0_189, %c0_190] : memref<2x32x32xf32, #tpu.memory_space<vmem>>, vector<1x32x32xf32>
    %454 = vector.shape_cast %453 : vector<1x32x32xf32> to vector<32x32xf32>
    %c0_191 = arith.constant 0 : index
    %c0_192 = arith.constant 0 : index
    %c0_193 = arith.constant 0 : index
    %455 = vector.load %arg26[%c0_191, %c0_192, %c0_193] : memref<2x1x32xf32, #tpu.memory_space<vmem>>, vector<1x1x32xf32>
    %456 = vector.shape_cast %455 : vector<1x1x32xf32> to vector<1x32xf32>
    %c0_194 = arith.constant 0 : index
    %c0_195 = arith.constant 0 : index
    %c0_196 = arith.constant 0 : index
    %457 = vector.load %arg27[%c0_194, %c0_195, %c0_196] : memref<2x1x32xf32, #tpu.memory_space<vmem>>, vector<1x1x32xf32>
    %458 = vector.shape_cast %457 : vector<1x1x32xf32> to vector<1x32xf32>
    %c0_197 = arith.constant 0 : index
    %c0_198 = arith.constant 0 : index
    %c0_199 = arith.constant 0 : index
    %459 = vector.load %arg28[%c0_197, %c0_198, %c0_199] : memref<2x1x32xf32, #tpu.memory_space<vmem>>, vector<1x1x32xf32>
    %460 = vector.shape_cast %459 : vector<1x1x32xf32> to vector<1x32xf32>
    %c0_200 = arith.constant 0 : index
    %c0_201 = arith.constant 0 : index
    %c0_202 = arith.constant 0 : index
    %461 = vector.load %arg29[%c0_200, %c0_201, %c0_202] : memref<2x32x64xf32, #tpu.memory_space<vmem>>, vector<1x32x64xf32>
    %462 = vector.shape_cast %461 : vector<1x32x64xf32> to vector<32x64xf32>
    %c0_203 = arith.constant 0 : index
    %c0_204 = arith.constant 0 : index
    %c0_205 = arith.constant 0 : index
    %463 = vector.load %arg30[%c0_203, %c0_204, %c0_205] : memref<2x1x64xf32, #tpu.memory_space<vmem>>, vector<1x1x64xf32>
    %464 = vector.shape_cast %463 : vector<1x1x64xf32> to vector<1x64xf32>
    %c0_206 = arith.constant 0 : index
    %c0_207 = arith.constant 0 : index
    %c0_208 = arith.constant 0 : index
    %465 = vector.load %arg31[%c0_206, %c0_207, %c0_208] : memref<2x64x32xf32, #tpu.memory_space<vmem>>, vector<1x64x32xf32>
    %466 = vector.shape_cast %465 : vector<1x64x32xf32> to vector<64x32xf32>
    %c0_209 = arith.constant 0 : index
    %c0_210 = arith.constant 0 : index
    %c0_211 = arith.constant 0 : index
    %467 = vector.load %arg32[%c0_209, %c0_210, %c0_211] : memref<2x1x32xf32, #tpu.memory_space<vmem>>, vector<1x1x32xf32>
    %468 = vector.shape_cast %467 : vector<1x1x32xf32> to vector<1x32xf32>
    %c0_212 = arith.constant 0 : index
    %c0_213 = arith.constant 0 : index
    %c0_214 = arith.constant 0 : index
    %469 = vector.load %arg33[%c0_212, %c0_213, %c0_214] : memref<2x1x32xf32, #tpu.memory_space<vmem>>, vector<1x1x32xf32>
    %470 = vector.shape_cast %469 : vector<1x1x32xf32> to vector<1x32xf32>
    %c0_215 = arith.constant 0 : index
    %c0_216 = arith.constant 0 : index
    %c0_217 = arith.constant 0 : index
    %471 = vector.load %arg34[%c0_215, %c0_216, %c0_217] : memref<2x1x32xf32, #tpu.memory_space<vmem>>, vector<1x1x32xf32>
    %472 = vector.shape_cast %471 : vector<1x1x32xf32> to vector<1x32xf32>
    %473 = arith.truncf %432 : vector<16x32xf32> to vector<16x32xbf16>
    %474 = arith.truncf %434 : vector<32x96xf32> to vector<32x96xbf16>
    %cst_218 = arith.constant dense<0.000000e+00> : vector<16x96xf32>
    %475 = tpu.matmul %473, %474, %cst_218 {dimension_numbers = #tpu.dot_dimension_numbers<[1], [0], [0], [1], [0, 0, 1, 1], [], []>} : vector<16x32xbf16>, vector<32x96xbf16>, vector<16x96xf32> -> vector<16x96xf32>
    %476 = vector.broadcast %436 : vector<1x96xf32> to vector<16x96xf32>
    %477 = arith.addf %475, %476 : vector<16x96xf32>
    %478 = vector.extract_strided_slice %477 {offsets = [0, 0], sizes = [16, 32], strides = [1, 1]} : vector<16x96xf32> to vector<16x32xf32>
    %479 = vector.shape_cast %478 : vector<16x32xf32> to vector<2x8x32xf32>
    %480 = vector.extract_strided_slice %477 {offsets = [0, 32], sizes = [16, 32], strides = [1, 1]} : vector<16x96xf32> to vector<16x32xf32>
    %481 = vector.shape_cast %480 : vector<16x32xf32> to vector<2x8x32xf32>
    %482 = vector.extract_strided_slice %477 {offsets = [0, 64], sizes = [16, 32], strides = [1, 1]} : vector<16x96xf32> to vector<16x32xf32>
    %483 = vector.shape_cast %482 : vector<16x32xf32> to vector<2x8x32xf32>
    %484 = vector.extract_strided_slice %479 {offsets = [0, 0, 0], sizes = [2, 8, 8], strides = [1, 1, 1]} : vector<2x8x32xf32> to vector<2x8x8xf32>
    %485 = arith.truncf %484 : vector<2x8x8xf32> to vector<2x8x8xbf16>
    %486 = vector.extract_strided_slice %481 {offsets = [0, 0, 0], sizes = [2, 8, 8], strides = [1, 1, 1]} : vector<2x8x32xf32> to vector<2x8x8xf32>
    %487 = arith.truncf %486 : vector<2x8x8xf32> to vector<2x8x8xbf16>
    %cst_219 = arith.constant dense<0.000000e+00> : vector<2x8x8xf32>
    %488 = tpu.matmul %485, %487, %cst_219 {dimension_numbers = #tpu.dot_dimension_numbers<[2], [2], [1], [1], [0, 0, 0, 1, 1, 1], [0], [0]>} : vector<2x8x8xbf16>, vector<2x8x8xbf16>, vector<2x8x8xf32> -> vector<2x8x8xf32>
    %cst_220 = arith.constant 0.353553385 : f32
    %489 = vector.broadcast %cst_220 : f32 to vector<2x8x8xf32>
    %490 = arith.mulf %488, %489 : vector<2x8x8xf32>
    %491 = vector.broadcast %12 : vector<1x8x8xf32> to vector<2x8x8xf32>
    %492 = arith.addf %490, %491 : vector<2x8x8xf32>
    %cst_221 = arith.constant dense<0xFF800000> : vector<2x8xf32>
    %493 = vector.multi_reduction <maximumf>, %492, %cst_221 [2] : vector<2x8x8xf32> to vector<2x8xf32>
    %494 = vector.shape_cast %493 : vector<2x8xf32> to vector<2x8x1xf32>
    %495 = vector.broadcast %494 : vector<2x8x1xf32> to vector<2x8x8xf32>
    %496 = arith.subf %492, %495 : vector<2x8x8xf32>
    %497 = math.exp %496 : vector<2x8x8xf32>
    %cst_222 = arith.constant dense<0.000000e+00> : vector<2x8xf32>
    %498 = vector.multi_reduction <add>, %497, %cst_222 [2] : vector<2x8x8xf32> to vector<2x8xf32>
    %499 = vector.shape_cast %498 : vector<2x8xf32> to vector<2x8x1xf32>
    %500 = tpu.reciprocal %499 {approx = true} : vector<2x8x1xf32> -> vector<2x8x1xf32>
    %501 = vector.broadcast %500 : vector<2x8x1xf32> to vector<2x8x8xf32>
    %502 = arith.mulf %497, %501 : vector<2x8x8xf32>
    %503 = arith.truncf %502 : vector<2x8x8xf32> to vector<2x8x8xbf16>
    %504 = vector.extract_strided_slice %483 {offsets = [0, 0, 0], sizes = [2, 8, 8], strides = [1, 1, 1]} : vector<2x8x32xf32> to vector<2x8x8xf32>
    %505 = arith.truncf %504 : vector<2x8x8xf32> to vector<2x8x8xbf16>
    %cst_223 = arith.constant dense<0.000000e+00> : vector<2x8x8xf32>
    %506 = tpu.matmul %503, %505, %cst_223 {dimension_numbers = #tpu.dot_dimension_numbers<[2], [1], [1], [2], [0, 0, 0, 1, 1, 2], [0], [0]>} : vector<2x8x8xbf16>, vector<2x8x8xbf16>, vector<2x8x8xf32> -> vector<2x8x8xf32>
    %507 = vector.shape_cast %506 : vector<2x8x8xf32> to vector<16x8xf32>
    %508 = vector.extract_strided_slice %438 {offsets = [0, 0], sizes = [8, 32], strides = [1, 1]} : vector<32x32xf32> to vector<8x32xf32>
    %509 = arith.truncf %507 : vector<16x8xf32> to vector<16x8xbf16>
    %510 = arith.truncf %508 : vector<8x32xf32> to vector<8x32xbf16>
    %cst_224 = arith.constant dense<0.000000e+00> : vector<16x32xf32>
    %511 = tpu.matmul %509, %510, %cst_224 {dimension_numbers = #tpu.dot_dimension_numbers<[1], [0], [0], [1], [0, 0, 1, 1], [], []>} : vector<16x8xbf16>, vector<8x32xbf16>, vector<16x32xf32> -> vector<16x32xf32>
    %512 = vector.extract_strided_slice %479 {offsets = [0, 0, 8], sizes = [2, 8, 8], strides = [1, 1, 1]} : vector<2x8x32xf32> to vector<2x8x8xf32>
    %513 = arith.truncf %512 : vector<2x8x8xf32> to vector<2x8x8xbf16>
    %514 = vector.extract_strided_slice %481 {offsets = [0, 0, 8], sizes = [2, 8, 8], strides = [1, 1, 1]} : vector<2x8x32xf32> to vector<2x8x8xf32>
    %515 = arith.truncf %514 : vector<2x8x8xf32> to vector<2x8x8xbf16>
    %cst_225 = arith.constant dense<0.000000e+00> : vector<2x8x8xf32>
    %516 = tpu.matmul %513, %515, %cst_225 {dimension_numbers = #tpu.dot_dimension_numbers<[2], [2], [1], [1], [0, 0, 0, 1, 1, 1], [0], [0]>} : vector<2x8x8xbf16>, vector<2x8x8xbf16>, vector<2x8x8xf32> -> vector<2x8x8xf32>
    %cst_226 = arith.constant 0.353553385 : f32
    %517 = vector.broadcast %cst_226 : f32 to vector<2x8x8xf32>
    %518 = arith.mulf %516, %517 : vector<2x8x8xf32>
    %519 = vector.broadcast %12 : vector<1x8x8xf32> to vector<2x8x8xf32>
    %520 = arith.addf %518, %519 : vector<2x8x8xf32>
    %cst_227 = arith.constant dense<0xFF800000> : vector<2x8xf32>
    %521 = vector.multi_reduction <maximumf>, %520, %cst_227 [2] : vector<2x8x8xf32> to vector<2x8xf32>
    %522 = vector.shape_cast %521 : vector<2x8xf32> to vector<2x8x1xf32>
    %523 = vector.broadcast %522 : vector<2x8x1xf32> to vector<2x8x8xf32>
    %524 = arith.subf %520, %523 : vector<2x8x8xf32>
    %525 = math.exp %524 : vector<2x8x8xf32>
    %cst_228 = arith.constant dense<0.000000e+00> : vector<2x8xf32>
    %526 = vector.multi_reduction <add>, %525, %cst_228 [2] : vector<2x8x8xf32> to vector<2x8xf32>
    %527 = vector.shape_cast %526 : vector<2x8xf32> to vector<2x8x1xf32>
    %528 = tpu.reciprocal %527 {approx = true} : vector<2x8x1xf32> -> vector<2x8x1xf32>
    %529 = vector.broadcast %528 : vector<2x8x1xf32> to vector<2x8x8xf32>
    %530 = arith.mulf %525, %529 : vector<2x8x8xf32>
    %531 = arith.truncf %530 : vector<2x8x8xf32> to vector<2x8x8xbf16>
    %532 = vector.extract_strided_slice %483 {offsets = [0, 0, 8], sizes = [2, 8, 8], strides = [1, 1, 1]} : vector<2x8x32xf32> to vector<2x8x8xf32>
    %533 = arith.truncf %532 : vector<2x8x8xf32> to vector<2x8x8xbf16>
    %cst_229 = arith.constant dense<0.000000e+00> : vector<2x8x8xf32>
    %534 = tpu.matmul %531, %533, %cst_229 {dimension_numbers = #tpu.dot_dimension_numbers<[2], [1], [1], [2], [0, 0, 0, 1, 1, 2], [0], [0]>} : vector<2x8x8xbf16>, vector<2x8x8xbf16>, vector<2x8x8xf32> -> vector<2x8x8xf32>
    %535 = vector.shape_cast %534 : vector<2x8x8xf32> to vector<16x8xf32>
    %536 = vector.extract_strided_slice %438 {offsets = [8, 0], sizes = [8, 32], strides = [1, 1]} : vector<32x32xf32> to vector<8x32xf32>
    %537 = arith.truncf %535 : vector<16x8xf32> to vector<16x8xbf16>
    %538 = arith.truncf %536 : vector<8x32xf32> to vector<8x32xbf16>
    %cst_230 = arith.constant dense<0.000000e+00> : vector<16x32xf32>
    %539 = tpu.matmul %537, %538, %cst_230 {dimension_numbers = #tpu.dot_dimension_numbers<[1], [0], [0], [1], [0, 0, 1, 1], [], []>} : vector<16x8xbf16>, vector<8x32xbf16>, vector<16x32xf32> -> vector<16x32xf32>
    %540 = arith.addf %511, %539 : vector<16x32xf32>
    %541 = vector.extract_strided_slice %479 {offsets = [0, 0, 16], sizes = [2, 8, 8], strides = [1, 1, 1]} : vector<2x8x32xf32> to vector<2x8x8xf32>
    %542 = arith.truncf %541 : vector<2x8x8xf32> to vector<2x8x8xbf16>
    %543 = vector.extract_strided_slice %481 {offsets = [0, 0, 16], sizes = [2, 8, 8], strides = [1, 1, 1]} : vector<2x8x32xf32> to vector<2x8x8xf32>
    %544 = arith.truncf %543 : vector<2x8x8xf32> to vector<2x8x8xbf16>
    %cst_231 = arith.constant dense<0.000000e+00> : vector<2x8x8xf32>
    %545 = tpu.matmul %542, %544, %cst_231 {dimension_numbers = #tpu.dot_dimension_numbers<[2], [2], [1], [1], [0, 0, 0, 1, 1, 1], [0], [0]>} : vector<2x8x8xbf16>, vector<2x8x8xbf16>, vector<2x8x8xf32> -> vector<2x8x8xf32>
    %cst_232 = arith.constant 0.353553385 : f32
    %546 = vector.broadcast %cst_232 : f32 to vector<2x8x8xf32>
    %547 = arith.mulf %545, %546 : vector<2x8x8xf32>
    %548 = vector.broadcast %12 : vector<1x8x8xf32> to vector<2x8x8xf32>
    %549 = arith.addf %547, %548 : vector<2x8x8xf32>
    %cst_233 = arith.constant dense<0xFF800000> : vector<2x8xf32>
    %550 = vector.multi_reduction <maximumf>, %549, %cst_233 [2] : vector<2x8x8xf32> to vector<2x8xf32>
    %551 = vector.shape_cast %550 : vector<2x8xf32> to vector<2x8x1xf32>
    %552 = vector.broadcast %551 : vector<2x8x1xf32> to vector<2x8x8xf32>
    %553 = arith.subf %549, %552 : vector<2x8x8xf32>
    %554 = math.exp %553 : vector<2x8x8xf32>
    %cst_234 = arith.constant dense<0.000000e+00> : vector<2x8xf32>
    %555 = vector.multi_reduction <add>, %554, %cst_234 [2] : vector<2x8x8xf32> to vector<2x8xf32>
    %556 = vector.shape_cast %555 : vector<2x8xf32> to vector<2x8x1xf32>
    %557 = tpu.reciprocal %556 {approx = true} : vector<2x8x1xf32> -> vector<2x8x1xf32>
    %558 = vector.broadcast %557 : vector<2x8x1xf32> to vector<2x8x8xf32>
    %559 = arith.mulf %554, %558 : vector<2x8x8xf32>
    %560 = arith.truncf %559 : vector<2x8x8xf32> to vector<2x8x8xbf16>
    %561 = vector.extract_strided_slice %483 {offsets = [0, 0, 16], sizes = [2, 8, 8], strides = [1, 1, 1]} : vector<2x8x32xf32> to vector<2x8x8xf32>
    %562 = arith.truncf %561 : vector<2x8x8xf32> to vector<2x8x8xbf16>
    %cst_235 = arith.constant dense<0.000000e+00> : vector<2x8x8xf32>
    %563 = tpu.matmul %560, %562, %cst_235 {dimension_numbers = #tpu.dot_dimension_numbers<[2], [1], [1], [2], [0, 0, 0, 1, 1, 2], [0], [0]>} : vector<2x8x8xbf16>, vector<2x8x8xbf16>, vector<2x8x8xf32> -> vector<2x8x8xf32>
    %564 = vector.shape_cast %563 : vector<2x8x8xf32> to vector<16x8xf32>
    %565 = vector.extract_strided_slice %438 {offsets = [16, 0], sizes = [8, 32], strides = [1, 1]} : vector<32x32xf32> to vector<8x32xf32>
    %566 = arith.truncf %564 : vector<16x8xf32> to vector<16x8xbf16>
    %567 = arith.truncf %565 : vector<8x32xf32> to vector<8x32xbf16>
    %cst_236 = arith.constant dense<0.000000e+00> : vector<16x32xf32>
    %568 = tpu.matmul %566, %567, %cst_236 {dimension_numbers = #tpu.dot_dimension_numbers<[1], [0], [0], [1], [0, 0, 1, 1], [], []>} : vector<16x8xbf16>, vector<8x32xbf16>, vector<16x32xf32> -> vector<16x32xf32>
    %569 = arith.addf %540, %568 : vector<16x32xf32>
    %570 = vector.extract_strided_slice %479 {offsets = [0, 0, 24], sizes = [2, 8, 8], strides = [1, 1, 1]} : vector<2x8x32xf32> to vector<2x8x8xf32>
    %571 = arith.truncf %570 : vector<2x8x8xf32> to vector<2x8x8xbf16>
    %572 = vector.extract_strided_slice %481 {offsets = [0, 0, 24], sizes = [2, 8, 8], strides = [1, 1, 1]} : vector<2x8x32xf32> to vector<2x8x8xf32>
    %573 = arith.truncf %572 : vector<2x8x8xf32> to vector<2x8x8xbf16>
    %cst_237 = arith.constant dense<0.000000e+00> : vector<2x8x8xf32>
    %574 = tpu.matmul %571, %573, %cst_237 {dimension_numbers = #tpu.dot_dimension_numbers<[2], [2], [1], [1], [0, 0, 0, 1, 1, 1], [0], [0]>} : vector<2x8x8xbf16>, vector<2x8x8xbf16>, vector<2x8x8xf32> -> vector<2x8x8xf32>
    %cst_238 = arith.constant 0.353553385 : f32
    %575 = vector.broadcast %cst_238 : f32 to vector<2x8x8xf32>
    %576 = arith.mulf %574, %575 : vector<2x8x8xf32>
    %577 = vector.broadcast %12 : vector<1x8x8xf32> to vector<2x8x8xf32>
    %578 = arith.addf %576, %577 : vector<2x8x8xf32>
    %cst_239 = arith.constant dense<0xFF800000> : vector<2x8xf32>
    %579 = vector.multi_reduction <maximumf>, %578, %cst_239 [2] : vector<2x8x8xf32> to vector<2x8xf32>
    %580 = vector.shape_cast %579 : vector<2x8xf32> to vector<2x8x1xf32>
    %581 = vector.broadcast %580 : vector<2x8x1xf32> to vector<2x8x8xf32>
    %582 = arith.subf %578, %581 : vector<2x8x8xf32>
    %583 = math.exp %582 : vector<2x8x8xf32>
    %cst_240 = arith.constant dense<0.000000e+00> : vector<2x8xf32>
    %584 = vector.multi_reduction <add>, %583, %cst_240 [2] : vector<2x8x8xf32> to vector<2x8xf32>
    %585 = vector.shape_cast %584 : vector<2x8xf32> to vector<2x8x1xf32>
    %586 = tpu.reciprocal %585 {approx = true} : vector<2x8x1xf32> -> vector<2x8x1xf32>
    %587 = vector.broadcast %586 : vector<2x8x1xf32> to vector<2x8x8xf32>
    %588 = arith.mulf %583, %587 : vector<2x8x8xf32>
    %589 = arith.truncf %588 : vector<2x8x8xf32> to vector<2x8x8xbf16>
    %590 = vector.extract_strided_slice %483 {offsets = [0, 0, 24], sizes = [2, 8, 8], strides = [1, 1, 1]} : vector<2x8x32xf32> to vector<2x8x8xf32>
    %591 = arith.truncf %590 : vector<2x8x8xf32> to vector<2x8x8xbf16>
    %cst_241 = arith.constant dense<0.000000e+00> : vector<2x8x8xf32>
    %592 = tpu.matmul %589, %591, %cst_241 {dimension_numbers = #tpu.dot_dimension_numbers<[2], [1], [1], [2], [0, 0, 0, 1, 1, 2], [0], [0]>} : vector<2x8x8xbf16>, vector<2x8x8xbf16>, vector<2x8x8xf32> -> vector<2x8x8xf32>
    %593 = vector.shape_cast %592 : vector<2x8x8xf32> to vector<16x8xf32>
    %594 = vector.extract_strided_slice %438 {offsets = [24, 0], sizes = [8, 32], strides = [1, 1]} : vector<32x32xf32> to vector<8x32xf32>
    %595 = arith.truncf %593 : vector<16x8xf32> to vector<16x8xbf16>
    %596 = arith.truncf %594 : vector<8x32xf32> to vector<8x32xbf16>
    %cst_242 = arith.constant dense<0.000000e+00> : vector<16x32xf32>
    %597 = tpu.matmul %595, %596, %cst_242 {dimension_numbers = #tpu.dot_dimension_numbers<[1], [0], [0], [1], [0, 0, 1, 1], [], []>} : vector<16x8xbf16>, vector<8x32xbf16>, vector<16x32xf32> -> vector<16x32xf32>
    %598 = arith.addf %569, %597 : vector<16x32xf32>
    %599 = vector.broadcast %440 : vector<1x32xf32> to vector<16x32xf32>
    %600 = arith.addf %598, %599 : vector<16x32xf32>
    %601 = arith.addf %432, %600 : vector<16x32xf32>
    %cst_243 = arith.constant dense<0.000000e+00> : vector<16xf32>
    %602 = vector.multi_reduction <add>, %601, %cst_243 [1] : vector<16x32xf32> to vector<16xf32>
    %603 = vector.shape_cast %602 : vector<16xf32> to vector<16x1xf32>
    %cst_244 = arith.constant 3.200000e+01 : f32
    %604 = vector.broadcast %cst_244 : f32 to vector<16x1xf32>
    %605 = arith.divf %603, %604 : vector<16x1xf32>
    %606 = vector.broadcast %605 : vector<16x1xf32> to vector<16x32xf32>
    %607 = arith.subf %601, %606 : vector<16x32xf32>
    %608 = arith.mulf %607, %607 : vector<16x32xf32>
    %cst_245 = arith.constant dense<0.000000e+00> : vector<16xf32>
    %609 = vector.multi_reduction <add>, %608, %cst_245 [1] : vector<16x32xf32> to vector<16xf32>
    %610 = vector.shape_cast %609 : vector<16xf32> to vector<16x1xf32>
    %cst_246 = arith.constant 3.200000e+01 : f32
    %611 = vector.broadcast %cst_246 : f32 to vector<16x1xf32>
    %612 = arith.divf %610, %611 : vector<16x1xf32>
    %613 = vector.broadcast %605 : vector<16x1xf32> to vector<16x32xf32>
    %614 = arith.subf %601, %613 : vector<16x32xf32>
    %cst_247 = arith.constant 9.99999974E-6 : f32
    %615 = vector.broadcast %cst_247 : f32 to vector<16x1xf32>
    %616 = arith.addf %612, %615 : vector<16x1xf32>
    %617 = math.rsqrt %616 : vector<16x1xf32>
    %618 = vector.broadcast %617 : vector<16x1xf32> to vector<16x32xf32>
    %619 = arith.mulf %614, %618 : vector<16x32xf32>
    %620 = vector.broadcast %442 : vector<1x32xf32> to vector<16x32xf32>
    %621 = arith.mulf %619, %620 : vector<16x32xf32>
    %622 = vector.broadcast %444 : vector<1x32xf32> to vector<16x32xf32>
    %623 = arith.addf %621, %622 : vector<16x32xf32>
    %624 = arith.truncf %623 : vector<16x32xf32> to vector<16x32xbf16>
    %625 = arith.truncf %446 : vector<32x32xf32> to vector<32x32xbf16>
    %cst_248 = arith.constant dense<0.000000e+00> : vector<16x32xf32>
    %626 = tpu.matmul %624, %625, %cst_248 {dimension_numbers = #tpu.dot_dimension_numbers<[1], [0], [0], [1], [0, 0, 1, 1], [], []>} : vector<16x32xbf16>, vector<32x32xbf16>, vector<16x32xf32> -> vector<16x32xf32>
    %627 = vector.broadcast %448 : vector<1x32xf32> to vector<16x32xf32>
    %628 = arith.addf %626, %627 : vector<16x32xf32>
    %629 = vector.shape_cast %628 : vector<16x32xf32> to vector<2x8x32xf32>
    %630 = arith.truncf %431 : vector<16x32xf32> to vector<16x32xbf16>
    %631 = arith.truncf %450 : vector<32x64xf32> to vector<32x64xbf16>
    %cst_249 = arith.constant dense<0.000000e+00> : vector<16x64xf32>
    %632 = tpu.matmul %630, %631, %cst_249 {dimension_numbers = #tpu.dot_dimension_numbers<[1], [0], [0], [1], [0, 0, 1, 1], [], []>} : vector<16x32xbf16>, vector<32x64xbf16>, vector<16x64xf32> -> vector<16x64xf32>
    %633 = vector.broadcast %452 : vector<1x64xf32> to vector<16x64xf32>
    %634 = arith.addf %632, %633 : vector<16x64xf32>
    %635 = vector.extract_strided_slice %634 {offsets = [0, 0], sizes = [16, 32], strides = [1, 1]} : vector<16x64xf32> to vector<16x32xf32>
    %636 = vector.shape_cast %635 : vector<16x32xf32> to vector<2x8x32xf32>
    %637 = vector.extract_strided_slice %634 {offsets = [0, 32], sizes = [16, 32], strides = [1, 1]} : vector<16x64xf32> to vector<16x32xf32>
    %638 = vector.shape_cast %637 : vector<16x32xf32> to vector<2x8x32xf32>
    %639 = vector.extract_strided_slice %629 {offsets = [0, 0, 0], sizes = [2, 8, 8], strides = [1, 1, 1]} : vector<2x8x32xf32> to vector<2x8x8xf32>
    %640 = arith.truncf %639 : vector<2x8x8xf32> to vector<2x8x8xbf16>
    %641 = vector.extract_strided_slice %636 {offsets = [0, 0, 0], sizes = [2, 8, 8], strides = [1, 1, 1]} : vector<2x8x32xf32> to vector<2x8x8xf32>
    %642 = arith.truncf %641 : vector<2x8x8xf32> to vector<2x8x8xbf16>
    %cst_250 = arith.constant dense<0.000000e+00> : vector<2x8x8xf32>
    %643 = tpu.matmul %640, %642, %cst_250 {dimension_numbers = #tpu.dot_dimension_numbers<[2], [2], [1], [1], [0, 0, 0, 1, 1, 1], [0], [0]>} : vector<2x8x8xbf16>, vector<2x8x8xbf16>, vector<2x8x8xf32> -> vector<2x8x8xf32>
    %cst_251 = arith.constant 0.353553385 : f32
    %644 = vector.broadcast %cst_251 : f32 to vector<2x8x8xf32>
    %645 = arith.mulf %643, %644 : vector<2x8x8xf32>
    %646 = arith.addf %645, %18 : vector<2x8x8xf32>
    %cst_252 = arith.constant dense<0xFF800000> : vector<2x8xf32>
    %647 = vector.multi_reduction <maximumf>, %646, %cst_252 [2] : vector<2x8x8xf32> to vector<2x8xf32>
    %648 = vector.shape_cast %647 : vector<2x8xf32> to vector<2x8x1xf32>
    %649 = vector.broadcast %648 : vector<2x8x1xf32> to vector<2x8x8xf32>
    %650 = arith.subf %646, %649 : vector<2x8x8xf32>
    %651 = math.exp %650 : vector<2x8x8xf32>
    %cst_253 = arith.constant dense<0.000000e+00> : vector<2x8xf32>
    %652 = vector.multi_reduction <add>, %651, %cst_253 [2] : vector<2x8x8xf32> to vector<2x8xf32>
    %653 = vector.shape_cast %652 : vector<2x8xf32> to vector<2x8x1xf32>
    %654 = tpu.reciprocal %653 {approx = true} : vector<2x8x1xf32> -> vector<2x8x1xf32>
    %655 = vector.broadcast %654 : vector<2x8x1xf32> to vector<2x8x8xf32>
    %656 = arith.mulf %651, %655 : vector<2x8x8xf32>
    %657 = arith.truncf %656 : vector<2x8x8xf32> to vector<2x8x8xbf16>
    %658 = vector.extract_strided_slice %638 {offsets = [0, 0, 0], sizes = [2, 8, 8], strides = [1, 1, 1]} : vector<2x8x32xf32> to vector<2x8x8xf32>
    %659 = arith.truncf %658 : vector<2x8x8xf32> to vector<2x8x8xbf16>
    %cst_254 = arith.constant dense<0.000000e+00> : vector<2x8x8xf32>
    %660 = tpu.matmul %657, %659, %cst_254 {dimension_numbers = #tpu.dot_dimension_numbers<[2], [1], [1], [2], [0, 0, 0, 1, 1, 2], [0], [0]>} : vector<2x8x8xbf16>, vector<2x8x8xbf16>, vector<2x8x8xf32> -> vector<2x8x8xf32>
    %661 = vector.shape_cast %660 : vector<2x8x8xf32> to vector<16x8xf32>
    %662 = vector.extract_strided_slice %454 {offsets = [0, 0], sizes = [8, 32], strides = [1, 1]} : vector<32x32xf32> to vector<8x32xf32>
    %663 = arith.truncf %661 : vector<16x8xf32> to vector<16x8xbf16>
    %664 = arith.truncf %662 : vector<8x32xf32> to vector<8x32xbf16>
    %cst_255 = arith.constant dense<0.000000e+00> : vector<16x32xf32>
    %665 = tpu.matmul %663, %664, %cst_255 {dimension_numbers = #tpu.dot_dimension_numbers<[1], [0], [0], [1], [0, 0, 1, 1], [], []>} : vector<16x8xbf16>, vector<8x32xbf16>, vector<16x32xf32> -> vector<16x32xf32>
    %666 = vector.extract_strided_slice %629 {offsets = [0, 0, 8], sizes = [2, 8, 8], strides = [1, 1, 1]} : vector<2x8x32xf32> to vector<2x8x8xf32>
    %667 = arith.truncf %666 : vector<2x8x8xf32> to vector<2x8x8xbf16>
    %668 = vector.extract_strided_slice %636 {offsets = [0, 0, 8], sizes = [2, 8, 8], strides = [1, 1, 1]} : vector<2x8x32xf32> to vector<2x8x8xf32>
    %669 = arith.truncf %668 : vector<2x8x8xf32> to vector<2x8x8xbf16>
    %cst_256 = arith.constant dense<0.000000e+00> : vector<2x8x8xf32>
    %670 = tpu.matmul %667, %669, %cst_256 {dimension_numbers = #tpu.dot_dimension_numbers<[2], [2], [1], [1], [0, 0, 0, 1, 1, 1], [0], [0]>} : vector<2x8x8xbf16>, vector<2x8x8xbf16>, vector<2x8x8xf32> -> vector<2x8x8xf32>
    %cst_257 = arith.constant 0.353553385 : f32
    %671 = vector.broadcast %cst_257 : f32 to vector<2x8x8xf32>
    %672 = arith.mulf %670, %671 : vector<2x8x8xf32>
    %673 = arith.addf %672, %18 : vector<2x8x8xf32>
    %cst_258 = arith.constant dense<0xFF800000> : vector<2x8xf32>
    %674 = vector.multi_reduction <maximumf>, %673, %cst_258 [2] : vector<2x8x8xf32> to vector<2x8xf32>
    %675 = vector.shape_cast %674 : vector<2x8xf32> to vector<2x8x1xf32>
    %676 = vector.broadcast %675 : vector<2x8x1xf32> to vector<2x8x8xf32>
    %677 = arith.subf %673, %676 : vector<2x8x8xf32>
    %678 = math.exp %677 : vector<2x8x8xf32>
    %cst_259 = arith.constant dense<0.000000e+00> : vector<2x8xf32>
    %679 = vector.multi_reduction <add>, %678, %cst_259 [2] : vector<2x8x8xf32> to vector<2x8xf32>
    %680 = vector.shape_cast %679 : vector<2x8xf32> to vector<2x8x1xf32>
    %681 = tpu.reciprocal %680 {approx = true} : vector<2x8x1xf32> -> vector<2x8x1xf32>
    %682 = vector.broadcast %681 : vector<2x8x1xf32> to vector<2x8x8xf32>
    %683 = arith.mulf %678, %682 : vector<2x8x8xf32>
    %684 = arith.truncf %683 : vector<2x8x8xf32> to vector<2x8x8xbf16>
    %685 = vector.extract_strided_slice %638 {offsets = [0, 0, 8], sizes = [2, 8, 8], strides = [1, 1, 1]} : vector<2x8x32xf32> to vector<2x8x8xf32>
    %686 = arith.truncf %685 : vector<2x8x8xf32> to vector<2x8x8xbf16>
    %cst_260 = arith.constant dense<0.000000e+00> : vector<2x8x8xf32>
    %687 = tpu.matmul %684, %686, %cst_260 {dimension_numbers = #tpu.dot_dimension_numbers<[2], [1], [1], [2], [0, 0, 0, 1, 1, 2], [0], [0]>} : vector<2x8x8xbf16>, vector<2x8x8xbf16>, vector<2x8x8xf32> -> vector<2x8x8xf32>
    %688 = vector.shape_cast %687 : vector<2x8x8xf32> to vector<16x8xf32>
    %689 = vector.extract_strided_slice %454 {offsets = [8, 0], sizes = [8, 32], strides = [1, 1]} : vector<32x32xf32> to vector<8x32xf32>
    %690 = arith.truncf %688 : vector<16x8xf32> to vector<16x8xbf16>
    %691 = arith.truncf %689 : vector<8x32xf32> to vector<8x32xbf16>
    %cst_261 = arith.constant dense<0.000000e+00> : vector<16x32xf32>
    %692 = tpu.matmul %690, %691, %cst_261 {dimension_numbers = #tpu.dot_dimension_numbers<[1], [0], [0], [1], [0, 0, 1, 1], [], []>} : vector<16x8xbf16>, vector<8x32xbf16>, vector<16x32xf32> -> vector<16x32xf32>
    %693 = arith.addf %665, %692 : vector<16x32xf32>
    %694 = vector.extract_strided_slice %629 {offsets = [0, 0, 16], sizes = [2, 8, 8], strides = [1, 1, 1]} : vector<2x8x32xf32> to vector<2x8x8xf32>
    %695 = arith.truncf %694 : vector<2x8x8xf32> to vector<2x8x8xbf16>
    %696 = vector.extract_strided_slice %636 {offsets = [0, 0, 16], sizes = [2, 8, 8], strides = [1, 1, 1]} : vector<2x8x32xf32> to vector<2x8x8xf32>
    %697 = arith.truncf %696 : vector<2x8x8xf32> to vector<2x8x8xbf16>
    %cst_262 = arith.constant dense<0.000000e+00> : vector<2x8x8xf32>
    %698 = tpu.matmul %695, %697, %cst_262 {dimension_numbers = #tpu.dot_dimension_numbers<[2], [2], [1], [1], [0, 0, 0, 1, 1, 1], [0], [0]>} : vector<2x8x8xbf16>, vector<2x8x8xbf16>, vector<2x8x8xf32> -> vector<2x8x8xf32>
    %cst_263 = arith.constant 0.353553385 : f32
    %699 = vector.broadcast %cst_263 : f32 to vector<2x8x8xf32>
    %700 = arith.mulf %698, %699 : vector<2x8x8xf32>
    %701 = arith.addf %700, %18 : vector<2x8x8xf32>
    %cst_264 = arith.constant dense<0xFF800000> : vector<2x8xf32>
    %702 = vector.multi_reduction <maximumf>, %701, %cst_264 [2] : vector<2x8x8xf32> to vector<2x8xf32>
    %703 = vector.shape_cast %702 : vector<2x8xf32> to vector<2x8x1xf32>
    %704 = vector.broadcast %703 : vector<2x8x1xf32> to vector<2x8x8xf32>
    %705 = arith.subf %701, %704 : vector<2x8x8xf32>
    %706 = math.exp %705 : vector<2x8x8xf32>
    %cst_265 = arith.constant dense<0.000000e+00> : vector<2x8xf32>
    %707 = vector.multi_reduction <add>, %706, %cst_265 [2] : vector<2x8x8xf32> to vector<2x8xf32>
    %708 = vector.shape_cast %707 : vector<2x8xf32> to vector<2x8x1xf32>
    %709 = tpu.reciprocal %708 {approx = true} : vector<2x8x1xf32> -> vector<2x8x1xf32>
    %710 = vector.broadcast %709 : vector<2x8x1xf32> to vector<2x8x8xf32>
    %711 = arith.mulf %706, %710 : vector<2x8x8xf32>
    %712 = arith.truncf %711 : vector<2x8x8xf32> to vector<2x8x8xbf16>
    %713 = vector.extract_strided_slice %638 {offsets = [0, 0, 16], sizes = [2, 8, 8], strides = [1, 1, 1]} : vector<2x8x32xf32> to vector<2x8x8xf32>
    %714 = arith.truncf %713 : vector<2x8x8xf32> to vector<2x8x8xbf16>
    %cst_266 = arith.constant dense<0.000000e+00> : vector<2x8x8xf32>
    %715 = tpu.matmul %712, %714, %cst_266 {dimension_numbers = #tpu.dot_dimension_numbers<[2], [1], [1], [2], [0, 0, 0, 1, 1, 2], [0], [0]>} : vector<2x8x8xbf16>, vector<2x8x8xbf16>, vector<2x8x8xf32> -> vector<2x8x8xf32>
    %716 = vector.shape_cast %715 : vector<2x8x8xf32> to vector<16x8xf32>
    %717 = vector.extract_strided_slice %454 {offsets = [16, 0], sizes = [8, 32], strides = [1, 1]} : vector<32x32xf32> to vector<8x32xf32>
    %718 = arith.truncf %716 : vector<16x8xf32> to vector<16x8xbf16>
    %719 = arith.truncf %717 : vector<8x32xf32> to vector<8x32xbf16>
    %cst_267 = arith.constant dense<0.000000e+00> : vector<16x32xf32>
    %720 = tpu.matmul %718, %719, %cst_267 {dimension_numbers = #tpu.dot_dimension_numbers<[1], [0], [0], [1], [0, 0, 1, 1], [], []>} : vector<16x8xbf16>, vector<8x32xbf16>, vector<16x32xf32> -> vector<16x32xf32>
    %721 = arith.addf %693, %720 : vector<16x32xf32>
    %722 = vector.extract_strided_slice %629 {offsets = [0, 0, 24], sizes = [2, 8, 8], strides = [1, 1, 1]} : vector<2x8x32xf32> to vector<2x8x8xf32>
    %723 = arith.truncf %722 : vector<2x8x8xf32> to vector<2x8x8xbf16>
    %724 = vector.extract_strided_slice %636 {offsets = [0, 0, 24], sizes = [2, 8, 8], strides = [1, 1, 1]} : vector<2x8x32xf32> to vector<2x8x8xf32>
    %725 = arith.truncf %724 : vector<2x8x8xf32> to vector<2x8x8xbf16>
    %cst_268 = arith.constant dense<0.000000e+00> : vector<2x8x8xf32>
    %726 = tpu.matmul %723, %725, %cst_268 {dimension_numbers = #tpu.dot_dimension_numbers<[2], [2], [1], [1], [0, 0, 0, 1, 1, 1], [0], [0]>} : vector<2x8x8xbf16>, vector<2x8x8xbf16>, vector<2x8x8xf32> -> vector<2x8x8xf32>
    %cst_269 = arith.constant 0.353553385 : f32
    %727 = vector.broadcast %cst_269 : f32 to vector<2x8x8xf32>
    %728 = arith.mulf %726, %727 : vector<2x8x8xf32>
    %729 = arith.addf %728, %18 : vector<2x8x8xf32>
    %cst_270 = arith.constant dense<0xFF800000> : vector<2x8xf32>
    %730 = vector.multi_reduction <maximumf>, %729, %cst_270 [2] : vector<2x8x8xf32> to vector<2x8xf32>
    %731 = vector.shape_cast %730 : vector<2x8xf32> to vector<2x8x1xf32>
    %732 = vector.broadcast %731 : vector<2x8x1xf32> to vector<2x8x8xf32>
    %733 = arith.subf %729, %732 : vector<2x8x8xf32>
    %734 = math.exp %733 : vector<2x8x8xf32>
    %cst_271 = arith.constant dense<0.000000e+00> : vector<2x8xf32>
    %735 = vector.multi_reduction <add>, %734, %cst_271 [2] : vector<2x8x8xf32> to vector<2x8xf32>
    %736 = vector.shape_cast %735 : vector<2x8xf32> to vector<2x8x1xf32>
    %737 = tpu.reciprocal %736 {approx = true} : vector<2x8x1xf32> -> vector<2x8x1xf32>
    %738 = vector.broadcast %737 : vector<2x8x1xf32> to vector<2x8x8xf32>
    %739 = arith.mulf %734, %738 : vector<2x8x8xf32>
    %740 = arith.truncf %739 : vector<2x8x8xf32> to vector<2x8x8xbf16>
    %741 = vector.extract_strided_slice %638 {offsets = [0, 0, 24], sizes = [2, 8, 8], strides = [1, 1, 1]} : vector<2x8x32xf32> to vector<2x8x8xf32>
    %742 = arith.truncf %741 : vector<2x8x8xf32> to vector<2x8x8xbf16>
    %cst_272 = arith.constant dense<0.000000e+00> : vector<2x8x8xf32>
    %743 = tpu.matmul %740, %742, %cst_272 {dimension_numbers = #tpu.dot_dimension_numbers<[2], [1], [1], [2], [0, 0, 0, 1, 1, 2], [0], [0]>} : vector<2x8x8xbf16>, vector<2x8x8xbf16>, vector<2x8x8xf32> -> vector<2x8x8xf32>
    %744 = vector.shape_cast %743 : vector<2x8x8xf32> to vector<16x8xf32>
    %745 = vector.extract_strided_slice %454 {offsets = [24, 0], sizes = [8, 32], strides = [1, 1]} : vector<32x32xf32> to vector<8x32xf32>
    %746 = arith.truncf %744 : vector<16x8xf32> to vector<16x8xbf16>
    %747 = arith.truncf %745 : vector<8x32xf32> to vector<8x32xbf16>
    %cst_273 = arith.constant dense<0.000000e+00> : vector<16x32xf32>
    %748 = tpu.matmul %746, %747, %cst_273 {dimension_numbers = #tpu.dot_dimension_numbers<[1], [0], [0], [1], [0, 0, 1, 1], [], []>} : vector<16x8xbf16>, vector<8x32xbf16>, vector<16x32xf32> -> vector<16x32xf32>
    %749 = arith.addf %721, %748 : vector<16x32xf32>
    %750 = vector.broadcast %456 : vector<1x32xf32> to vector<16x32xf32>
    %751 = arith.addf %749, %750 : vector<16x32xf32>
    %752 = arith.addf %623, %751 : vector<16x32xf32>
    %cst_274 = arith.constant dense<0.000000e+00> : vector<16xf32>
    %753 = vector.multi_reduction <add>, %752, %cst_274 [1] : vector<16x32xf32> to vector<16xf32>
    %754 = vector.shape_cast %753 : vector<16xf32> to vector<16x1xf32>
    %cst_275 = arith.constant 3.200000e+01 : f32
    %755 = vector.broadcast %cst_275 : f32 to vector<16x1xf32>
    %756 = arith.divf %754, %755 : vector<16x1xf32>
    %757 = vector.broadcast %756 : vector<16x1xf32> to vector<16x32xf32>
    %758 = arith.subf %752, %757 : vector<16x32xf32>
    %759 = arith.mulf %758, %758 : vector<16x32xf32>
    %cst_276 = arith.constant dense<0.000000e+00> : vector<16xf32>
    %760 = vector.multi_reduction <add>, %759, %cst_276 [1] : vector<16x32xf32> to vector<16xf32>
    %761 = vector.shape_cast %760 : vector<16xf32> to vector<16x1xf32>
    %cst_277 = arith.constant 3.200000e+01 : f32
    %762 = vector.broadcast %cst_277 : f32 to vector<16x1xf32>
    %763 = arith.divf %761, %762 : vector<16x1xf32>
    %764 = vector.broadcast %756 : vector<16x1xf32> to vector<16x32xf32>
    %765 = arith.subf %752, %764 : vector<16x32xf32>
    %cst_278 = arith.constant 9.99999974E-6 : f32
    %766 = vector.broadcast %cst_278 : f32 to vector<16x1xf32>
    %767 = arith.addf %763, %766 : vector<16x1xf32>
    %768 = math.rsqrt %767 : vector<16x1xf32>
    %769 = vector.broadcast %768 : vector<16x1xf32> to vector<16x32xf32>
    %770 = arith.mulf %765, %769 : vector<16x32xf32>
    %771 = vector.broadcast %458 : vector<1x32xf32> to vector<16x32xf32>
    %772 = arith.mulf %770, %771 : vector<16x32xf32>
    %773 = vector.broadcast %460 : vector<1x32xf32> to vector<16x32xf32>
    %774 = arith.addf %772, %773 : vector<16x32xf32>
    %775 = arith.truncf %774 : vector<16x32xf32> to vector<16x32xbf16>
    %776 = arith.truncf %462 : vector<32x64xf32> to vector<32x64xbf16>
    %cst_279 = arith.constant dense<0.000000e+00> : vector<16x64xf32>
    %777 = tpu.matmul %775, %776, %cst_279 {dimension_numbers = #tpu.dot_dimension_numbers<[1], [0], [0], [1], [0, 0, 1, 1], [], []>} : vector<16x32xbf16>, vector<32x64xbf16>, vector<16x64xf32> -> vector<16x64xf32>
    %778 = vector.broadcast %464 : vector<1x64xf32> to vector<16x64xf32>
    %779 = arith.addf %777, %778 : vector<16x64xf32>
    %cst_280 = arith.constant 0.000000e+00 : f32
    %780 = vector.broadcast %cst_280 : f32 to vector<16x64xf32>
    %781 = arith.maximumf %779, %780 : vector<16x64xf32>
    %782 = arith.truncf %781 : vector<16x64xf32> to vector<16x64xbf16>
    %783 = arith.truncf %466 : vector<64x32xf32> to vector<64x32xbf16>
    %cst_281 = arith.constant dense<0.000000e+00> : vector<16x32xf32>
    %784 = tpu.matmul %782, %783, %cst_281 {dimension_numbers = #tpu.dot_dimension_numbers<[1], [0], [0], [1], [0, 0, 1, 1], [], []>} : vector<16x64xbf16>, vector<64x32xbf16>, vector<16x32xf32> -> vector<16x32xf32>
    %785 = vector.broadcast %468 : vector<1x32xf32> to vector<16x32xf32>
    %786 = arith.addf %784, %785 : vector<16x32xf32>
    %787 = arith.addf %774, %786 : vector<16x32xf32>
    %cst_282 = arith.constant dense<0.000000e+00> : vector<16xf32>
    %788 = vector.multi_reduction <add>, %787, %cst_282 [1] : vector<16x32xf32> to vector<16xf32>
    %789 = vector.shape_cast %788 : vector<16xf32> to vector<16x1xf32>
    %cst_283 = arith.constant 3.200000e+01 : f32
    %790 = vector.broadcast %cst_283 : f32 to vector<16x1xf32>
    %791 = arith.divf %789, %790 : vector<16x1xf32>
    %792 = vector.broadcast %791 : vector<16x1xf32> to vector<16x32xf32>
    %793 = arith.subf %787, %792 : vector<16x32xf32>
    %794 = arith.mulf %793, %793 : vector<16x32xf32>
    %cst_284 = arith.constant dense<0.000000e+00> : vector<16xf32>
    %795 = vector.multi_reduction <add>, %794, %cst_284 [1] : vector<16x32xf32> to vector<16xf32>
    %796 = vector.shape_cast %795 : vector<16xf32> to vector<16x1xf32>
    %cst_285 = arith.constant 3.200000e+01 : f32
    %797 = vector.broadcast %cst_285 : f32 to vector<16x1xf32>
    %798 = arith.divf %796, %797 : vector<16x1xf32>
    %799 = vector.broadcast %791 : vector<16x1xf32> to vector<16x32xf32>
    %800 = arith.subf %787, %799 : vector<16x32xf32>
    %cst_286 = arith.constant 9.99999974E-6 : f32
    %801 = vector.broadcast %cst_286 : f32 to vector<16x1xf32>
    %802 = arith.addf %798, %801 : vector<16x1xf32>
    %803 = math.rsqrt %802 : vector<16x1xf32>
    %804 = vector.broadcast %803 : vector<16x1xf32> to vector<16x32xf32>
    %805 = arith.mulf %800, %804 : vector<16x32xf32>
    %806 = vector.broadcast %470 : vector<1x32xf32> to vector<16x32xf32>
    %807 = arith.mulf %805, %806 : vector<16x32xf32>
    %808 = vector.broadcast %472 : vector<1x32xf32> to vector<16x32xf32>
    %809 = arith.addf %807, %808 : vector<16x32xf32>
    %c1_287 = arith.constant 1 : index
    %c0_288 = arith.constant 0 : index
    %c0_289 = arith.constant 0 : index
    %810 = vector.load %arg15[%c1_287, %c0_288, %c0_289] : memref<2x32x96xf32, #tpu.memory_space<vmem>>, vector<1x32x96xf32>
    %811 = vector.shape_cast %810 : vector<1x32x96xf32> to vector<32x96xf32>
    %c1_290 = arith.constant 1 : index
    %c0_291 = arith.constant 0 : index
    %c0_292 = arith.constant 0 : index
    %812 = vector.load %arg16[%c1_290, %c0_291, %c0_292] : memref<2x1x96xf32, #tpu.memory_space<vmem>>, vector<1x1x96xf32>
    %813 = vector.shape_cast %812 : vector<1x1x96xf32> to vector<1x96xf32>
    %c1_293 = arith.constant 1 : index
    %c0_294 = arith.constant 0 : index
    %c0_295 = arith.constant 0 : index
    %814 = vector.load %arg17[%c1_293, %c0_294, %c0_295] : memref<2x32x32xf32, #tpu.memory_space<vmem>>, vector<1x32x32xf32>
    %815 = vector.shape_cast %814 : vector<1x32x32xf32> to vector<32x32xf32>
    %c1_296 = arith.constant 1 : index
    %c0_297 = arith.constant 0 : index
    %c0_298 = arith.constant 0 : index
    %816 = vector.load %arg18[%c1_296, %c0_297, %c0_298] : memref<2x1x32xf32, #tpu.memory_space<vmem>>, vector<1x1x32xf32>
    %817 = vector.shape_cast %816 : vector<1x1x32xf32> to vector<1x32xf32>
    %c1_299 = arith.constant 1 : index
    %c0_300 = arith.constant 0 : index
    %c0_301 = arith.constant 0 : index
    %818 = vector.load %arg19[%c1_299, %c0_300, %c0_301] : memref<2x1x32xf32, #tpu.memory_space<vmem>>, vector<1x1x32xf32>
    %819 = vector.shape_cast %818 : vector<1x1x32xf32> to vector<1x32xf32>
    %c1_302 = arith.constant 1 : index
    %c0_303 = arith.constant 0 : index
    %c0_304 = arith.constant 0 : index
    %820 = vector.load %arg20[%c1_302, %c0_303, %c0_304] : memref<2x1x32xf32, #tpu.memory_space<vmem>>, vector<1x1x32xf32>
    %821 = vector.shape_cast %820 : vector<1x1x32xf32> to vector<1x32xf32>
    %c1_305 = arith.constant 1 : index
    %c0_306 = arith.constant 0 : index
    %c0_307 = arith.constant 0 : index
    %822 = vector.load %arg21[%c1_305, %c0_306, %c0_307] : memref<2x32x32xf32, #tpu.memory_space<vmem>>, vector<1x32x32xf32>
    %823 = vector.shape_cast %822 : vector<1x32x32xf32> to vector<32x32xf32>
    %c1_308 = arith.constant 1 : index
    %c0_309 = arith.constant 0 : index
    %c0_310 = arith.constant 0 : index
    %824 = vector.load %arg22[%c1_308, %c0_309, %c0_310] : memref<2x1x32xf32, #tpu.memory_space<vmem>>, vector<1x1x32xf32>
    %825 = vector.shape_cast %824 : vector<1x1x32xf32> to vector<1x32xf32>
    %c1_311 = arith.constant 1 : index
    %c0_312 = arith.constant 0 : index
    %c0_313 = arith.constant 0 : index
    %826 = vector.load %arg23[%c1_311, %c0_312, %c0_313] : memref<2x32x64xf32, #tpu.memory_space<vmem>>, vector<1x32x64xf32>
    %827 = vector.shape_cast %826 : vector<1x32x64xf32> to vector<32x64xf32>
    %c1_314 = arith.constant 1 : index
    %c0_315 = arith.constant 0 : index
    %c0_316 = arith.constant 0 : index
    %828 = vector.load %arg24[%c1_314, %c0_315, %c0_316] : memref<2x1x64xf32, #tpu.memory_space<vmem>>, vector<1x1x64xf32>
    %829 = vector.shape_cast %828 : vector<1x1x64xf32> to vector<1x64xf32>
    %c1_317 = arith.constant 1 : index
    %c0_318 = arith.constant 0 : index
    %c0_319 = arith.constant 0 : index
    %830 = vector.load %arg25[%c1_317, %c0_318, %c0_319] : memref<2x32x32xf32, #tpu.memory_space<vmem>>, vector<1x32x32xf32>
    %831 = vector.shape_cast %830 : vector<1x32x32xf32> to vector<32x32xf32>
    %c1_320 = arith.constant 1 : index
    %c0_321 = arith.constant 0 : index
    %c0_322 = arith.constant 0 : index
    %832 = vector.load %arg26[%c1_320, %c0_321, %c0_322] : memref<2x1x32xf32, #tpu.memory_space<vmem>>, vector<1x1x32xf32>
    %833 = vector.shape_cast %832 : vector<1x1x32xf32> to vector<1x32xf32>
    %c1_323 = arith.constant 1 : index
    %c0_324 = arith.constant 0 : index
    %c0_325 = arith.constant 0 : index
    %834 = vector.load %arg27[%c1_323, %c0_324, %c0_325] : memref<2x1x32xf32, #tpu.memory_space<vmem>>, vector<1x1x32xf32>
    %835 = vector.shape_cast %834 : vector<1x1x32xf32> to vector<1x32xf32>
    %c1_326 = arith.constant 1 : index
    %c0_327 = arith.constant 0 : index
    %c0_328 = arith.constant 0 : index
    %836 = vector.load %arg28[%c1_326, %c0_327, %c0_328] : memref<2x1x32xf32, #tpu.memory_space<vmem>>, vector<1x1x32xf32>
    %837 = vector.shape_cast %836 : vector<1x1x32xf32> to vector<1x32xf32>
    %c1_329 = arith.constant 1 : index
    %c0_330 = arith.constant 0 : index
    %c0_331 = arith.constant 0 : index
    %838 = vector.load %arg29[%c1_329, %c0_330, %c0_331] : memref<2x32x64xf32, #tpu.memory_space<vmem>>, vector<1x32x64xf32>
    %839 = vector.shape_cast %838 : vector<1x32x64xf32> to vector<32x64xf32>
    %c1_332 = arith.constant 1 : index
    %c0_333 = arith.constant 0 : index
    %c0_334 = arith.constant 0 : index
    %840 = vector.load %arg30[%c1_332, %c0_333, %c0_334] : memref<2x1x64xf32, #tpu.memory_space<vmem>>, vector<1x1x64xf32>
    %841 = vector.shape_cast %840 : vector<1x1x64xf32> to vector<1x64xf32>
    %c1_335 = arith.constant 1 : index
    %c0_336 = arith.constant 0 : index
    %c0_337 = arith.constant 0 : index
    %842 = vector.load %arg31[%c1_335, %c0_336, %c0_337] : memref<2x64x32xf32, #tpu.memory_space<vmem>>, vector<1x64x32xf32>
    %843 = vector.shape_cast %842 : vector<1x64x32xf32> to vector<64x32xf32>
    %c1_338 = arith.constant 1 : index
    %c0_339 = arith.constant 0 : index
    %c0_340 = arith.constant 0 : index
    %844 = vector.load %arg32[%c1_338, %c0_339, %c0_340] : memref<2x1x32xf32, #tpu.memory_space<vmem>>, vector<1x1x32xf32>
    %845 = vector.shape_cast %844 : vector<1x1x32xf32> to vector<1x32xf32>
    %c1_341 = arith.constant 1 : index
    %c0_342 = arith.constant 0 : index
    %c0_343 = arith.constant 0 : index
    %846 = vector.load %arg33[%c1_341, %c0_342, %c0_343] : memref<2x1x32xf32, #tpu.memory_space<vmem>>, vector<1x1x32xf32>
    %847 = vector.shape_cast %846 : vector<1x1x32xf32> to vector<1x32xf32>
    %c1_344 = arith.constant 1 : index
    %c0_345 = arith.constant 0 : index
    %c0_346 = arith.constant 0 : index
    %848 = vector.load %arg34[%c1_344, %c0_345, %c0_346] : memref<2x1x32xf32, #tpu.memory_space<vmem>>, vector<1x1x32xf32>
    %849 = vector.shape_cast %848 : vector<1x1x32xf32> to vector<1x32xf32>
    %850 = arith.truncf %809 : vector<16x32xf32> to vector<16x32xbf16>
    %851 = arith.truncf %811 : vector<32x96xf32> to vector<32x96xbf16>
    %cst_347 = arith.constant dense<0.000000e+00> : vector<16x96xf32>
    %852 = tpu.matmul %850, %851, %cst_347 {dimension_numbers = #tpu.dot_dimension_numbers<[1], [0], [0], [1], [0, 0, 1, 1], [], []>} : vector<16x32xbf16>, vector<32x96xbf16>, vector<16x96xf32> -> vector<16x96xf32>
    %853 = vector.broadcast %813 : vector<1x96xf32> to vector<16x96xf32>
    %854 = arith.addf %852, %853 : vector<16x96xf32>
    %855 = vector.extract_strided_slice %854 {offsets = [0, 0], sizes = [16, 32], strides = [1, 1]} : vector<16x96xf32> to vector<16x32xf32>
    %856 = vector.shape_cast %855 : vector<16x32xf32> to vector<2x8x32xf32>
    %857 = vector.extract_strided_slice %854 {offsets = [0, 32], sizes = [16, 32], strides = [1, 1]} : vector<16x96xf32> to vector<16x32xf32>
    %858 = vector.shape_cast %857 : vector<16x32xf32> to vector<2x8x32xf32>
    %859 = vector.extract_strided_slice %854 {offsets = [0, 64], sizes = [16, 32], strides = [1, 1]} : vector<16x96xf32> to vector<16x32xf32>
    %860 = vector.shape_cast %859 : vector<16x32xf32> to vector<2x8x32xf32>
    %861 = vector.extract_strided_slice %856 {offsets = [0, 0, 0], sizes = [2, 8, 8], strides = [1, 1, 1]} : vector<2x8x32xf32> to vector<2x8x8xf32>
    %862 = arith.truncf %861 : vector<2x8x8xf32> to vector<2x8x8xbf16>
    %863 = vector.extract_strided_slice %858 {offsets = [0, 0, 0], sizes = [2, 8, 8], strides = [1, 1, 1]} : vector<2x8x32xf32> to vector<2x8x8xf32>
    %864 = arith.truncf %863 : vector<2x8x8xf32> to vector<2x8x8xbf16>
    %cst_348 = arith.constant dense<0.000000e+00> : vector<2x8x8xf32>
    %865 = tpu.matmul %862, %864, %cst_348 {dimension_numbers = #tpu.dot_dimension_numbers<[2], [2], [1], [1], [0, 0, 0, 1, 1, 1], [0], [0]>} : vector<2x8x8xbf16>, vector<2x8x8xbf16>, vector<2x8x8xf32> -> vector<2x8x8xf32>
    %cst_349 = arith.constant 0.353553385 : f32
    %866 = vector.broadcast %cst_349 : f32 to vector<2x8x8xf32>
    %867 = arith.mulf %865, %866 : vector<2x8x8xf32>
    %868 = vector.broadcast %12 : vector<1x8x8xf32> to vector<2x8x8xf32>
    %869 = arith.addf %867, %868 : vector<2x8x8xf32>
    %cst_350 = arith.constant dense<0xFF800000> : vector<2x8xf32>
    %870 = vector.multi_reduction <maximumf>, %869, %cst_350 [2] : vector<2x8x8xf32> to vector<2x8xf32>
    %871 = vector.shape_cast %870 : vector<2x8xf32> to vector<2x8x1xf32>
    %872 = vector.broadcast %871 : vector<2x8x1xf32> to vector<2x8x8xf32>
    %873 = arith.subf %869, %872 : vector<2x8x8xf32>
    %874 = math.exp %873 : vector<2x8x8xf32>
    %cst_351 = arith.constant dense<0.000000e+00> : vector<2x8xf32>
    %875 = vector.multi_reduction <add>, %874, %cst_351 [2] : vector<2x8x8xf32> to vector<2x8xf32>
    %876 = vector.shape_cast %875 : vector<2x8xf32> to vector<2x8x1xf32>
    %877 = tpu.reciprocal %876 {approx = true} : vector<2x8x1xf32> -> vector<2x8x1xf32>
    %878 = vector.broadcast %877 : vector<2x8x1xf32> to vector<2x8x8xf32>
    %879 = arith.mulf %874, %878 : vector<2x8x8xf32>
    %880 = arith.truncf %879 : vector<2x8x8xf32> to vector<2x8x8xbf16>
    %881 = vector.extract_strided_slice %860 {offsets = [0, 0, 0], sizes = [2, 8, 8], strides = [1, 1, 1]} : vector<2x8x32xf32> to vector<2x8x8xf32>
    %882 = arith.truncf %881 : vector<2x8x8xf32> to vector<2x8x8xbf16>
    %cst_352 = arith.constant dense<0.000000e+00> : vector<2x8x8xf32>
    %883 = tpu.matmul %880, %882, %cst_352 {dimension_numbers = #tpu.dot_dimension_numbers<[2], [1], [1], [2], [0, 0, 0, 1, 1, 2], [0], [0]>} : vector<2x8x8xbf16>, vector<2x8x8xbf16>, vector<2x8x8xf32> -> vector<2x8x8xf32>
    %884 = vector.shape_cast %883 : vector<2x8x8xf32> to vector<16x8xf32>
    %885 = vector.extract_strided_slice %815 {offsets = [0, 0], sizes = [8, 32], strides = [1, 1]} : vector<32x32xf32> to vector<8x32xf32>
    %886 = arith.truncf %884 : vector<16x8xf32> to vector<16x8xbf16>
    %887 = arith.truncf %885 : vector<8x32xf32> to vector<8x32xbf16>
    %cst_353 = arith.constant dense<0.000000e+00> : vector<16x32xf32>
    %888 = tpu.matmul %886, %887, %cst_353 {dimension_numbers = #tpu.dot_dimension_numbers<[1], [0], [0], [1], [0, 0, 1, 1], [], []>} : vector<16x8xbf16>, vector<8x32xbf16>, vector<16x32xf32> -> vector<16x32xf32>
    %889 = vector.extract_strided_slice %856 {offsets = [0, 0, 8], sizes = [2, 8, 8], strides = [1, 1, 1]} : vector<2x8x32xf32> to vector<2x8x8xf32>
    %890 = arith.truncf %889 : vector<2x8x8xf32> to vector<2x8x8xbf16>
    %891 = vector.extract_strided_slice %858 {offsets = [0, 0, 8], sizes = [2, 8, 8], strides = [1, 1, 1]} : vector<2x8x32xf32> to vector<2x8x8xf32>
    %892 = arith.truncf %891 : vector<2x8x8xf32> to vector<2x8x8xbf16>
    %cst_354 = arith.constant dense<0.000000e+00> : vector<2x8x8xf32>
    %893 = tpu.matmul %890, %892, %cst_354 {dimension_numbers = #tpu.dot_dimension_numbers<[2], [2], [1], [1], [0, 0, 0, 1, 1, 1], [0], [0]>} : vector<2x8x8xbf16>, vector<2x8x8xbf16>, vector<2x8x8xf32> -> vector<2x8x8xf32>
    %cst_355 = arith.constant 0.353553385 : f32
    %894 = vector.broadcast %cst_355 : f32 to vector<2x8x8xf32>
    %895 = arith.mulf %893, %894 : vector<2x8x8xf32>
    %896 = vector.broadcast %12 : vector<1x8x8xf32> to vector<2x8x8xf32>
    %897 = arith.addf %895, %896 : vector<2x8x8xf32>
    %cst_356 = arith.constant dense<0xFF800000> : vector<2x8xf32>
    %898 = vector.multi_reduction <maximumf>, %897, %cst_356 [2] : vector<2x8x8xf32> to vector<2x8xf32>
    %899 = vector.shape_cast %898 : vector<2x8xf32> to vector<2x8x1xf32>
    %900 = vector.broadcast %899 : vector<2x8x1xf32> to vector<2x8x8xf32>
    %901 = arith.subf %897, %900 : vector<2x8x8xf32>
    %902 = math.exp %901 : vector<2x8x8xf32>
    %cst_357 = arith.constant dense<0.000000e+00> : vector<2x8xf32>
    %903 = vector.multi_reduction <add>, %902, %cst_357 [2] : vector<2x8x8xf32> to vector<2x8xf32>
    %904 = vector.shape_cast %903 : vector<2x8xf32> to vector<2x8x1xf32>
    %905 = tpu.reciprocal %904 {approx = true} : vector<2x8x1xf32> -> vector<2x8x1xf32>
    %906 = vector.broadcast %905 : vector<2x8x1xf32> to vector<2x8x8xf32>
    %907 = arith.mulf %902, %906 : vector<2x8x8xf32>
    %908 = arith.truncf %907 : vector<2x8x8xf32> to vector<2x8x8xbf16>
    %909 = vector.extract_strided_slice %860 {offsets = [0, 0, 8], sizes = [2, 8, 8], strides = [1, 1, 1]} : vector<2x8x32xf32> to vector<2x8x8xf32>
    %910 = arith.truncf %909 : vector<2x8x8xf32> to vector<2x8x8xbf16>
    %cst_358 = arith.constant dense<0.000000e+00> : vector<2x8x8xf32>
    %911 = tpu.matmul %908, %910, %cst_358 {dimension_numbers = #tpu.dot_dimension_numbers<[2], [1], [1], [2], [0, 0, 0, 1, 1, 2], [0], [0]>} : vector<2x8x8xbf16>, vector<2x8x8xbf16>, vector<2x8x8xf32> -> vector<2x8x8xf32>
    %912 = vector.shape_cast %911 : vector<2x8x8xf32> to vector<16x8xf32>
    %913 = vector.extract_strided_slice %815 {offsets = [8, 0], sizes = [8, 32], strides = [1, 1]} : vector<32x32xf32> to vector<8x32xf32>
    %914 = arith.truncf %912 : vector<16x8xf32> to vector<16x8xbf16>
    %915 = arith.truncf %913 : vector<8x32xf32> to vector<8x32xbf16>
    %cst_359 = arith.constant dense<0.000000e+00> : vector<16x32xf32>
    %916 = tpu.matmul %914, %915, %cst_359 {dimension_numbers = #tpu.dot_dimension_numbers<[1], [0], [0], [1], [0, 0, 1, 1], [], []>} : vector<16x8xbf16>, vector<8x32xbf16>, vector<16x32xf32> -> vector<16x32xf32>
    %917 = arith.addf %888, %916 : vector<16x32xf32>
    %918 = vector.extract_strided_slice %856 {offsets = [0, 0, 16], sizes = [2, 8, 8], strides = [1, 1, 1]} : vector<2x8x32xf32> to vector<2x8x8xf32>
    %919 = arith.truncf %918 : vector<2x8x8xf32> to vector<2x8x8xbf16>
    %920 = vector.extract_strided_slice %858 {offsets = [0, 0, 16], sizes = [2, 8, 8], strides = [1, 1, 1]} : vector<2x8x32xf32> to vector<2x8x8xf32>
    %921 = arith.truncf %920 : vector<2x8x8xf32> to vector<2x8x8xbf16>
    %cst_360 = arith.constant dense<0.000000e+00> : vector<2x8x8xf32>
    %922 = tpu.matmul %919, %921, %cst_360 {dimension_numbers = #tpu.dot_dimension_numbers<[2], [2], [1], [1], [0, 0, 0, 1, 1, 1], [0], [0]>} : vector<2x8x8xbf16>, vector<2x8x8xbf16>, vector<2x8x8xf32> -> vector<2x8x8xf32>
    %cst_361 = arith.constant 0.353553385 : f32
    %923 = vector.broadcast %cst_361 : f32 to vector<2x8x8xf32>
    %924 = arith.mulf %922, %923 : vector<2x8x8xf32>
    %925 = vector.broadcast %12 : vector<1x8x8xf32> to vector<2x8x8xf32>
    %926 = arith.addf %924, %925 : vector<2x8x8xf32>
    %cst_362 = arith.constant dense<0xFF800000> : vector<2x8xf32>
    %927 = vector.multi_reduction <maximumf>, %926, %cst_362 [2] : vector<2x8x8xf32> to vector<2x8xf32>
    %928 = vector.shape_cast %927 : vector<2x8xf32> to vector<2x8x1xf32>
    %929 = vector.broadcast %928 : vector<2x8x1xf32> to vector<2x8x8xf32>
    %930 = arith.subf %926, %929 : vector<2x8x8xf32>
    %931 = math.exp %930 : vector<2x8x8xf32>
    %cst_363 = arith.constant dense<0.000000e+00> : vector<2x8xf32>
    %932 = vector.multi_reduction <add>, %931, %cst_363 [2] : vector<2x8x8xf32> to vector<2x8xf32>
    %933 = vector.shape_cast %932 : vector<2x8xf32> to vector<2x8x1xf32>
    %934 = tpu.reciprocal %933 {approx = true} : vector<2x8x1xf32> -> vector<2x8x1xf32>
    %935 = vector.broadcast %934 : vector<2x8x1xf32> to vector<2x8x8xf32>
    %936 = arith.mulf %931, %935 : vector<2x8x8xf32>
    %937 = arith.truncf %936 : vector<2x8x8xf32> to vector<2x8x8xbf16>
    %938 = vector.extract_strided_slice %860 {offsets = [0, 0, 16], sizes = [2, 8, 8], strides = [1, 1, 1]} : vector<2x8x32xf32> to vector<2x8x8xf32>
    %939 = arith.truncf %938 : vector<2x8x8xf32> to vector<2x8x8xbf16>
    %cst_364 = arith.constant dense<0.000000e+00> : vector<2x8x8xf32>
    %940 = tpu.matmul %937, %939, %cst_364 {dimension_numbers = #tpu.dot_dimension_numbers<[2], [1], [1], [2], [0, 0, 0, 1, 1, 2], [0], [0]>} : vector<2x8x8xbf16>, vector<2x8x8xbf16>, vector<2x8x8xf32> -> vector<2x8x8xf32>
    %941 = vector.shape_cast %940 : vector<2x8x8xf32> to vector<16x8xf32>
    %942 = vector.extract_strided_slice %815 {offsets = [16, 0], sizes = [8, 32], strides = [1, 1]} : vector<32x32xf32> to vector<8x32xf32>
    %943 = arith.truncf %941 : vector<16x8xf32> to vector<16x8xbf16>
    %944 = arith.truncf %942 : vector<8x32xf32> to vector<8x32xbf16>
    %cst_365 = arith.constant dense<0.000000e+00> : vector<16x32xf32>
    %945 = tpu.matmul %943, %944, %cst_365 {dimension_numbers = #tpu.dot_dimension_numbers<[1], [0], [0], [1], [0, 0, 1, 1], [], []>} : vector<16x8xbf16>, vector<8x32xbf16>, vector<16x32xf32> -> vector<16x32xf32>
    %946 = arith.addf %917, %945 : vector<16x32xf32>
    %947 = vector.extract_strided_slice %856 {offsets = [0, 0, 24], sizes = [2, 8, 8], strides = [1, 1, 1]} : vector<2x8x32xf32> to vector<2x8x8xf32>
    %948 = arith.truncf %947 : vector<2x8x8xf32> to vector<2x8x8xbf16>
    %949 = vector.extract_strided_slice %858 {offsets = [0, 0, 24], sizes = [2, 8, 8], strides = [1, 1, 1]} : vector<2x8x32xf32> to vector<2x8x8xf32>
    %950 = arith.truncf %949 : vector<2x8x8xf32> to vector<2x8x8xbf16>
    %cst_366 = arith.constant dense<0.000000e+00> : vector<2x8x8xf32>
    %951 = tpu.matmul %948, %950, %cst_366 {dimension_numbers = #tpu.dot_dimension_numbers<[2], [2], [1], [1], [0, 0, 0, 1, 1, 1], [0], [0]>} : vector<2x8x8xbf16>, vector<2x8x8xbf16>, vector<2x8x8xf32> -> vector<2x8x8xf32>
    %cst_367 = arith.constant 0.353553385 : f32
    %952 = vector.broadcast %cst_367 : f32 to vector<2x8x8xf32>
    %953 = arith.mulf %951, %952 : vector<2x8x8xf32>
    %954 = vector.broadcast %12 : vector<1x8x8xf32> to vector<2x8x8xf32>
    %955 = arith.addf %953, %954 : vector<2x8x8xf32>
    %cst_368 = arith.constant dense<0xFF800000> : vector<2x8xf32>
    %956 = vector.multi_reduction <maximumf>, %955, %cst_368 [2] : vector<2x8x8xf32> to vector<2x8xf32>
    %957 = vector.shape_cast %956 : vector<2x8xf32> to vector<2x8x1xf32>
    %958 = vector.broadcast %957 : vector<2x8x1xf32> to vector<2x8x8xf32>
    %959 = arith.subf %955, %958 : vector<2x8x8xf32>
    %960 = math.exp %959 : vector<2x8x8xf32>
    %cst_369 = arith.constant dense<0.000000e+00> : vector<2x8xf32>
    %961 = vector.multi_reduction <add>, %960, %cst_369 [2] : vector<2x8x8xf32> to vector<2x8xf32>
    %962 = vector.shape_cast %961 : vector<2x8xf32> to vector<2x8x1xf32>
    %963 = tpu.reciprocal %962 {approx = true} : vector<2x8x1xf32> -> vector<2x8x1xf32>
    %964 = vector.broadcast %963 : vector<2x8x1xf32> to vector<2x8x8xf32>
    %965 = arith.mulf %960, %964 : vector<2x8x8xf32>
    %966 = arith.truncf %965 : vector<2x8x8xf32> to vector<2x8x8xbf16>
    %967 = vector.extract_strided_slice %860 {offsets = [0, 0, 24], sizes = [2, 8, 8], strides = [1, 1, 1]} : vector<2x8x32xf32> to vector<2x8x8xf32>
    %968 = arith.truncf %967 : vector<2x8x8xf32> to vector<2x8x8xbf16>
    %cst_370 = arith.constant dense<0.000000e+00> : vector<2x8x8xf32>
    %969 = tpu.matmul %966, %968, %cst_370 {dimension_numbers = #tpu.dot_dimension_numbers<[2], [1], [1], [2], [0, 0, 0, 1, 1, 2], [0], [0]>} : vector<2x8x8xbf16>, vector<2x8x8xbf16>, vector<2x8x8xf32> -> vector<2x8x8xf32>
    %970 = vector.shape_cast %969 : vector<2x8x8xf32> to vector<16x8xf32>
    %971 = vector.extract_strided_slice %815 {offsets = [24, 0], sizes = [8, 32], strides = [1, 1]} : vector<32x32xf32> to vector<8x32xf32>
    %972 = arith.truncf %970 : vector<16x8xf32> to vector<16x8xbf16>
    %973 = arith.truncf %971 : vector<8x32xf32> to vector<8x32xbf16>
    %cst_371 = arith.constant dense<0.000000e+00> : vector<16x32xf32>
    %974 = tpu.matmul %972, %973, %cst_371 {dimension_numbers = #tpu.dot_dimension_numbers<[1], [0], [0], [1], [0, 0, 1, 1], [], []>} : vector<16x8xbf16>, vector<8x32xbf16>, vector<16x32xf32> -> vector<16x32xf32>
    %975 = arith.addf %946, %974 : vector<16x32xf32>
    %976 = vector.broadcast %817 : vector<1x32xf32> to vector<16x32xf32>
    %977 = arith.addf %975, %976 : vector<16x32xf32>
    %978 = arith.addf %809, %977 : vector<16x32xf32>
    %cst_372 = arith.constant dense<0.000000e+00> : vector<16xf32>
    %979 = vector.multi_reduction <add>, %978, %cst_372 [1] : vector<16x32xf32> to vector<16xf32>
    %980 = vector.shape_cast %979 : vector<16xf32> to vector<16x1xf32>
    %cst_373 = arith.constant 3.200000e+01 : f32
    %981 = vector.broadcast %cst_373 : f32 to vector<16x1xf32>
    %982 = arith.divf %980, %981 : vector<16x1xf32>
    %983 = vector.broadcast %982 : vector<16x1xf32> to vector<16x32xf32>
    %984 = arith.subf %978, %983 : vector<16x32xf32>
    %985 = arith.mulf %984, %984 : vector<16x32xf32>
    %cst_374 = arith.constant dense<0.000000e+00> : vector<16xf32>
    %986 = vector.multi_reduction <add>, %985, %cst_374 [1] : vector<16x32xf32> to vector<16xf32>
    %987 = vector.shape_cast %986 : vector<16xf32> to vector<16x1xf32>
    %cst_375 = arith.constant 3.200000e+01 : f32
    %988 = vector.broadcast %cst_375 : f32 to vector<16x1xf32>
    %989 = arith.divf %987, %988 : vector<16x1xf32>
    %990 = vector.broadcast %982 : vector<16x1xf32> to vector<16x32xf32>
    %991 = arith.subf %978, %990 : vector<16x32xf32>
    %cst_376 = arith.constant 9.99999974E-6 : f32
    %992 = vector.broadcast %cst_376 : f32 to vector<16x1xf32>
    %993 = arith.addf %989, %992 : vector<16x1xf32>
    %994 = math.rsqrt %993 : vector<16x1xf32>
    %995 = vector.broadcast %994 : vector<16x1xf32> to vector<16x32xf32>
    %996 = arith.mulf %991, %995 : vector<16x32xf32>
    %997 = vector.broadcast %819 : vector<1x32xf32> to vector<16x32xf32>
    %998 = arith.mulf %996, %997 : vector<16x32xf32>
    %999 = vector.broadcast %821 : vector<1x32xf32> to vector<16x32xf32>
    %1000 = arith.addf %998, %999 : vector<16x32xf32>
    %1001 = arith.truncf %1000 : vector<16x32xf32> to vector<16x32xbf16>
    %1002 = arith.truncf %823 : vector<32x32xf32> to vector<32x32xbf16>
    %cst_377 = arith.constant dense<0.000000e+00> : vector<16x32xf32>
    %1003 = tpu.matmul %1001, %1002, %cst_377 {dimension_numbers = #tpu.dot_dimension_numbers<[1], [0], [0], [1], [0, 0, 1, 1], [], []>} : vector<16x32xbf16>, vector<32x32xbf16>, vector<16x32xf32> -> vector<16x32xf32>
    %1004 = vector.broadcast %825 : vector<1x32xf32> to vector<16x32xf32>
    %1005 = arith.addf %1003, %1004 : vector<16x32xf32>
    %1006 = vector.shape_cast %1005 : vector<16x32xf32> to vector<2x8x32xf32>
    %1007 = arith.truncf %431 : vector<16x32xf32> to vector<16x32xbf16>
    %1008 = arith.truncf %827 : vector<32x64xf32> to vector<32x64xbf16>
    %cst_378 = arith.constant dense<0.000000e+00> : vector<16x64xf32>
    %1009 = tpu.matmul %1007, %1008, %cst_378 {dimension_numbers = #tpu.dot_dimension_numbers<[1], [0], [0], [1], [0, 0, 1, 1], [], []>} : vector<16x32xbf16>, vector<32x64xbf16>, vector<16x64xf32> -> vector<16x64xf32>
    %1010 = vector.broadcast %829 : vector<1x64xf32> to vector<16x64xf32>
    %1011 = arith.addf %1009, %1010 : vector<16x64xf32>
    %1012 = vector.extract_strided_slice %1011 {offsets = [0, 0], sizes = [16, 32], strides = [1, 1]} : vector<16x64xf32> to vector<16x32xf32>
    %1013 = vector.shape_cast %1012 : vector<16x32xf32> to vector<2x8x32xf32>
    %1014 = vector.extract_strided_slice %1011 {offsets = [0, 32], sizes = [16, 32], strides = [1, 1]} : vector<16x64xf32> to vector<16x32xf32>
    %1015 = vector.shape_cast %1014 : vector<16x32xf32> to vector<2x8x32xf32>
    %1016 = vector.extract_strided_slice %1006 {offsets = [0, 0, 0], sizes = [2, 8, 8], strides = [1, 1, 1]} : vector<2x8x32xf32> to vector<2x8x8xf32>
    %1017 = arith.truncf %1016 : vector<2x8x8xf32> to vector<2x8x8xbf16>
    %1018 = vector.extract_strided_slice %1013 {offsets = [0, 0, 0], sizes = [2, 8, 8], strides = [1, 1, 1]} : vector<2x8x32xf32> to vector<2x8x8xf32>
    %1019 = arith.truncf %1018 : vector<2x8x8xf32> to vector<2x8x8xbf16>
    %cst_379 = arith.constant dense<0.000000e+00> : vector<2x8x8xf32>
    %1020 = tpu.matmul %1017, %1019, %cst_379 {dimension_numbers = #tpu.dot_dimension_numbers<[2], [2], [1], [1], [0, 0, 0, 1, 1, 1], [0], [0]>} : vector<2x8x8xbf16>, vector<2x8x8xbf16>, vector<2x8x8xf32> -> vector<2x8x8xf32>
    %cst_380 = arith.constant 0.353553385 : f32
    %1021 = vector.broadcast %cst_380 : f32 to vector<2x8x8xf32>
    %1022 = arith.mulf %1020, %1021 : vector<2x8x8xf32>
    %1023 = arith.addf %1022, %18 : vector<2x8x8xf32>
    %cst_381 = arith.constant dense<0xFF800000> : vector<2x8xf32>
    %1024 = vector.multi_reduction <maximumf>, %1023, %cst_381 [2] : vector<2x8x8xf32> to vector<2x8xf32>
    %1025 = vector.shape_cast %1024 : vector<2x8xf32> to vector<2x8x1xf32>
    %1026 = vector.broadcast %1025 : vector<2x8x1xf32> to vector<2x8x8xf32>
    %1027 = arith.subf %1023, %1026 : vector<2x8x8xf32>
    %1028 = math.exp %1027 : vector<2x8x8xf32>
    %cst_382 = arith.constant dense<0.000000e+00> : vector<2x8xf32>
    %1029 = vector.multi_reduction <add>, %1028, %cst_382 [2] : vector<2x8x8xf32> to vector<2x8xf32>
    %1030 = vector.shape_cast %1029 : vector<2x8xf32> to vector<2x8x1xf32>
    %1031 = tpu.reciprocal %1030 {approx = true} : vector<2x8x1xf32> -> vector<2x8x1xf32>
    %1032 = vector.broadcast %1031 : vector<2x8x1xf32> to vector<2x8x8xf32>
    %1033 = arith.mulf %1028, %1032 : vector<2x8x8xf32>
    %1034 = arith.truncf %1033 : vector<2x8x8xf32> to vector<2x8x8xbf16>
    %1035 = vector.extract_strided_slice %1015 {offsets = [0, 0, 0], sizes = [2, 8, 8], strides = [1, 1, 1]} : vector<2x8x32xf32> to vector<2x8x8xf32>
    %1036 = arith.truncf %1035 : vector<2x8x8xf32> to vector<2x8x8xbf16>
    %cst_383 = arith.constant dense<0.000000e+00> : vector<2x8x8xf32>
    %1037 = tpu.matmul %1034, %1036, %cst_383 {dimension_numbers = #tpu.dot_dimension_numbers<[2], [1], [1], [2], [0, 0, 0, 1, 1, 2], [0], [0]>} : vector<2x8x8xbf16>, vector<2x8x8xbf16>, vector<2x8x8xf32> -> vector<2x8x8xf32>
    %1038 = vector.shape_cast %1037 : vector<2x8x8xf32> to vector<16x8xf32>
    %1039 = vector.extract_strided_slice %831 {offsets = [0, 0], sizes = [8, 32], strides = [1, 1]} : vector<32x32xf32> to vector<8x32xf32>
    %1040 = arith.truncf %1038 : vector<16x8xf32> to vector<16x8xbf16>
    %1041 = arith.truncf %1039 : vector<8x32xf32> to vector<8x32xbf16>
    %cst_384 = arith.constant dense<0.000000e+00> : vector<16x32xf32>
    %1042 = tpu.matmul %1040, %1041, %cst_384 {dimension_numbers = #tpu.dot_dimension_numbers<[1], [0], [0], [1], [0, 0, 1, 1], [], []>} : vector<16x8xbf16>, vector<8x32xbf16>, vector<16x32xf32> -> vector<16x32xf32>
    %1043 = vector.extract_strided_slice %1006 {offsets = [0, 0, 8], sizes = [2, 8, 8], strides = [1, 1, 1]} : vector<2x8x32xf32> to vector<2x8x8xf32>
    %1044 = arith.truncf %1043 : vector<2x8x8xf32> to vector<2x8x8xbf16>
    %1045 = vector.extract_strided_slice %1013 {offsets = [0, 0, 8], sizes = [2, 8, 8], strides = [1, 1, 1]} : vector<2x8x32xf32> to vector<2x8x8xf32>
    %1046 = arith.truncf %1045 : vector<2x8x8xf32> to vector<2x8x8xbf16>
    %cst_385 = arith.constant dense<0.000000e+00> : vector<2x8x8xf32>
    %1047 = tpu.matmul %1044, %1046, %cst_385 {dimension_numbers = #tpu.dot_dimension_numbers<[2], [2], [1], [1], [0, 0, 0, 1, 1, 1], [0], [0]>} : vector<2x8x8xbf16>, vector<2x8x8xbf16>, vector<2x8x8xf32> -> vector<2x8x8xf32>
    %cst_386 = arith.constant 0.353553385 : f32
    %1048 = vector.broadcast %cst_386 : f32 to vector<2x8x8xf32>
    %1049 = arith.mulf %1047, %1048 : vector<2x8x8xf32>
    %1050 = arith.addf %1049, %18 : vector<2x8x8xf32>
    %cst_387 = arith.constant dense<0xFF800000> : vector<2x8xf32>
    %1051 = vector.multi_reduction <maximumf>, %1050, %cst_387 [2] : vector<2x8x8xf32> to vector<2x8xf32>
    %1052 = vector.shape_cast %1051 : vector<2x8xf32> to vector<2x8x1xf32>
    %1053 = vector.broadcast %1052 : vector<2x8x1xf32> to vector<2x8x8xf32>
    %1054 = arith.subf %1050, %1053 : vector<2x8x8xf32>
    %1055 = math.exp %1054 : vector<2x8x8xf32>
    %cst_388 = arith.constant dense<0.000000e+00> : vector<2x8xf32>
    %1056 = vector.multi_reduction <add>, %1055, %cst_388 [2] : vector<2x8x8xf32> to vector<2x8xf32>
    %1057 = vector.shape_cast %1056 : vector<2x8xf32> to vector<2x8x1xf32>
    %1058 = tpu.reciprocal %1057 {approx = true} : vector<2x8x1xf32> -> vector<2x8x1xf32>
    %1059 = vector.broadcast %1058 : vector<2x8x1xf32> to vector<2x8x8xf32>
    %1060 = arith.mulf %1055, %1059 : vector<2x8x8xf32>
    %1061 = arith.truncf %1060 : vector<2x8x8xf32> to vector<2x8x8xbf16>
    %1062 = vector.extract_strided_slice %1015 {offsets = [0, 0, 8], sizes = [2, 8, 8], strides = [1, 1, 1]} : vector<2x8x32xf32> to vector<2x8x8xf32>
    %1063 = arith.truncf %1062 : vector<2x8x8xf32> to vector<2x8x8xbf16>
    %cst_389 = arith.constant dense<0.000000e+00> : vector<2x8x8xf32>
    %1064 = tpu.matmul %1061, %1063, %cst_389 {dimension_numbers = #tpu.dot_dimension_numbers<[2], [1], [1], [2], [0, 0, 0, 1, 1, 2], [0], [0]>} : vector<2x8x8xbf16>, vector<2x8x8xbf16>, vector<2x8x8xf32> -> vector<2x8x8xf32>
    %1065 = vector.shape_cast %1064 : vector<2x8x8xf32> to vector<16x8xf32>
    %1066 = vector.extract_strided_slice %831 {offsets = [8, 0], sizes = [8, 32], strides = [1, 1]} : vector<32x32xf32> to vector<8x32xf32>
    %1067 = arith.truncf %1065 : vector<16x8xf32> to vector<16x8xbf16>
    %1068 = arith.truncf %1066 : vector<8x32xf32> to vector<8x32xbf16>
    %cst_390 = arith.constant dense<0.000000e+00> : vector<16x32xf32>
    %1069 = tpu.matmul %1067, %1068, %cst_390 {dimension_numbers = #tpu.dot_dimension_numbers<[1], [0], [0], [1], [0, 0, 1, 1], [], []>} : vector<16x8xbf16>, vector<8x32xbf16>, vector<16x32xf32> -> vector<16x32xf32>
    %1070 = arith.addf %1042, %1069 : vector<16x32xf32>
    %1071 = vector.extract_strided_slice %1006 {offsets = [0, 0, 16], sizes = [2, 8, 8], strides = [1, 1, 1]} : vector<2x8x32xf32> to vector<2x8x8xf32>
    %1072 = arith.truncf %1071 : vector<2x8x8xf32> to vector<2x8x8xbf16>
    %1073 = vector.extract_strided_slice %1013 {offsets = [0, 0, 16], sizes = [2, 8, 8], strides = [1, 1, 1]} : vector<2x8x32xf32> to vector<2x8x8xf32>
    %1074 = arith.truncf %1073 : vector<2x8x8xf32> to vector<2x8x8xbf16>
    %cst_391 = arith.constant dense<0.000000e+00> : vector<2x8x8xf32>
    %1075 = tpu.matmul %1072, %1074, %cst_391 {dimension_numbers = #tpu.dot_dimension_numbers<[2], [2], [1], [1], [0, 0, 0, 1, 1, 1], [0], [0]>} : vector<2x8x8xbf16>, vector<2x8x8xbf16>, vector<2x8x8xf32> -> vector<2x8x8xf32>
    %cst_392 = arith.constant 0.353553385 : f32
    %1076 = vector.broadcast %cst_392 : f32 to vector<2x8x8xf32>
    %1077 = arith.mulf %1075, %1076 : vector<2x8x8xf32>
    %1078 = arith.addf %1077, %18 : vector<2x8x8xf32>
    %cst_393 = arith.constant dense<0xFF800000> : vector<2x8xf32>
    %1079 = vector.multi_reduction <maximumf>, %1078, %cst_393 [2] : vector<2x8x8xf32> to vector<2x8xf32>
    %1080 = vector.shape_cast %1079 : vector<2x8xf32> to vector<2x8x1xf32>
    %1081 = vector.broadcast %1080 : vector<2x8x1xf32> to vector<2x8x8xf32>
    %1082 = arith.subf %1078, %1081 : vector<2x8x8xf32>
    %1083 = math.exp %1082 : vector<2x8x8xf32>
    %cst_394 = arith.constant dense<0.000000e+00> : vector<2x8xf32>
    %1084 = vector.multi_reduction <add>, %1083, %cst_394 [2] : vector<2x8x8xf32> to vector<2x8xf32>
    %1085 = vector.shape_cast %1084 : vector<2x8xf32> to vector<2x8x1xf32>
    %1086 = tpu.reciprocal %1085 {approx = true} : vector<2x8x1xf32> -> vector<2x8x1xf32>
    %1087 = vector.broadcast %1086 : vector<2x8x1xf32> to vector<2x8x8xf32>
    %1088 = arith.mulf %1083, %1087 : vector<2x8x8xf32>
    %1089 = arith.truncf %1088 : vector<2x8x8xf32> to vector<2x8x8xbf16>
    %1090 = vector.extract_strided_slice %1015 {offsets = [0, 0, 16], sizes = [2, 8, 8], strides = [1, 1, 1]} : vector<2x8x32xf32> to vector<2x8x8xf32>
    %1091 = arith.truncf %1090 : vector<2x8x8xf32> to vector<2x8x8xbf16>
    %cst_395 = arith.constant dense<0.000000e+00> : vector<2x8x8xf32>
    %1092 = tpu.matmul %1089, %1091, %cst_395 {dimension_numbers = #tpu.dot_dimension_numbers<[2], [1], [1], [2], [0, 0, 0, 1, 1, 2], [0], [0]>} : vector<2x8x8xbf16>, vector<2x8x8xbf16>, vector<2x8x8xf32> -> vector<2x8x8xf32>
    %1093 = vector.shape_cast %1092 : vector<2x8x8xf32> to vector<16x8xf32>
    %1094 = vector.extract_strided_slice %831 {offsets = [16, 0], sizes = [8, 32], strides = [1, 1]} : vector<32x32xf32> to vector<8x32xf32>
    %1095 = arith.truncf %1093 : vector<16x8xf32> to vector<16x8xbf16>
    %1096 = arith.truncf %1094 : vector<8x32xf32> to vector<8x32xbf16>
    %cst_396 = arith.constant dense<0.000000e+00> : vector<16x32xf32>
    %1097 = tpu.matmul %1095, %1096, %cst_396 {dimension_numbers = #tpu.dot_dimension_numbers<[1], [0], [0], [1], [0, 0, 1, 1], [], []>} : vector<16x8xbf16>, vector<8x32xbf16>, vector<16x32xf32> -> vector<16x32xf32>
    %1098 = arith.addf %1070, %1097 : vector<16x32xf32>
    %1099 = vector.extract_strided_slice %1006 {offsets = [0, 0, 24], sizes = [2, 8, 8], strides = [1, 1, 1]} : vector<2x8x32xf32> to vector<2x8x8xf32>
    %1100 = arith.truncf %1099 : vector<2x8x8xf32> to vector<2x8x8xbf16>
    %1101 = vector.extract_strided_slice %1013 {offsets = [0, 0, 24], sizes = [2, 8, 8], strides = [1, 1, 1]} : vector<2x8x32xf32> to vector<2x8x8xf32>
    %1102 = arith.truncf %1101 : vector<2x8x8xf32> to vector<2x8x8xbf16>
    %cst_397 = arith.constant dense<0.000000e+00> : vector<2x8x8xf32>
    %1103 = tpu.matmul %1100, %1102, %cst_397 {dimension_numbers = #tpu.dot_dimension_numbers<[2], [2], [1], [1], [0, 0, 0, 1, 1, 1], [0], [0]>} : vector<2x8x8xbf16>, vector<2x8x8xbf16>, vector<2x8x8xf32> -> vector<2x8x8xf32>
    %cst_398 = arith.constant 0.353553385 : f32
    %1104 = vector.broadcast %cst_398 : f32 to vector<2x8x8xf32>
    %1105 = arith.mulf %1103, %1104 : vector<2x8x8xf32>
    %1106 = arith.addf %1105, %18 : vector<2x8x8xf32>
    %cst_399 = arith.constant dense<0xFF800000> : vector<2x8xf32>
    %1107 = vector.multi_reduction <maximumf>, %1106, %cst_399 [2] : vector<2x8x8xf32> to vector<2x8xf32>
    %1108 = vector.shape_cast %1107 : vector<2x8xf32> to vector<2x8x1xf32>
    %1109 = vector.broadcast %1108 : vector<2x8x1xf32> to vector<2x8x8xf32>
    %1110 = arith.subf %1106, %1109 : vector<2x8x8xf32>
    %1111 = math.exp %1110 : vector<2x8x8xf32>
    %cst_400 = arith.constant dense<0.000000e+00> : vector<2x8xf32>
    %1112 = vector.multi_reduction <add>, %1111, %cst_400 [2] : vector<2x8x8xf32> to vector<2x8xf32>
    %1113 = vector.shape_cast %1112 : vector<2x8xf32> to vector<2x8x1xf32>
    %1114 = tpu.reciprocal %1113 {approx = true} : vector<2x8x1xf32> -> vector<2x8x1xf32>
    %1115 = vector.broadcast %1114 : vector<2x8x1xf32> to vector<2x8x8xf32>
    %1116 = arith.mulf %1111, %1115 : vector<2x8x8xf32>
    %1117 = arith.truncf %1116 : vector<2x8x8xf32> to vector<2x8x8xbf16>
    %1118 = vector.extract_strided_slice %1015 {offsets = [0, 0, 24], sizes = [2, 8, 8], strides = [1, 1, 1]} : vector<2x8x32xf32> to vector<2x8x8xf32>
    %1119 = arith.truncf %1118 : vector<2x8x8xf32> to vector<2x8x8xbf16>
    %cst_401 = arith.constant dense<0.000000e+00> : vector<2x8x8xf32>
    %1120 = tpu.matmul %1117, %1119, %cst_401 {dimension_numbers = #tpu.dot_dimension_numbers<[2], [1], [1], [2], [0, 0, 0, 1, 1, 2], [0], [0]>} : vector<2x8x8xbf16>, vector<2x8x8xbf16>, vector<2x8x8xf32> -> vector<2x8x8xf32>
    %1121 = vector.shape_cast %1120 : vector<2x8x8xf32> to vector<16x8xf32>
    %1122 = vector.extract_strided_slice %831 {offsets = [24, 0], sizes = [8, 32], strides = [1, 1]} : vector<32x32xf32> to vector<8x32xf32>
    %1123 = arith.truncf %1121 : vector<16x8xf32> to vector<16x8xbf16>
    %1124 = arith.truncf %1122 : vector<8x32xf32> to vector<8x32xbf16>
    %cst_402 = arith.constant dense<0.000000e+00> : vector<16x32xf32>
    %1125 = tpu.matmul %1123, %1124, %cst_402 {dimension_numbers = #tpu.dot_dimension_numbers<[1], [0], [0], [1], [0, 0, 1, 1], [], []>} : vector<16x8xbf16>, vector<8x32xbf16>, vector<16x32xf32> -> vector<16x32xf32>
    %1126 = arith.addf %1098, %1125 : vector<16x32xf32>
    %1127 = vector.broadcast %833 : vector<1x32xf32> to vector<16x32xf32>
    %1128 = arith.addf %1126, %1127 : vector<16x32xf32>
    %1129 = arith.addf %1000, %1128 : vector<16x32xf32>
    %cst_403 = arith.constant dense<0.000000e+00> : vector<16xf32>
    %1130 = vector.multi_reduction <add>, %1129, %cst_403 [1] : vector<16x32xf32> to vector<16xf32>
    %1131 = vector.shape_cast %1130 : vector<16xf32> to vector<16x1xf32>
    %cst_404 = arith.constant 3.200000e+01 : f32
    %1132 = vector.broadcast %cst_404 : f32 to vector<16x1xf32>
    %1133 = arith.divf %1131, %1132 : vector<16x1xf32>
    %1134 = vector.broadcast %1133 : vector<16x1xf32> to vector<16x32xf32>
    %1135 = arith.subf %1129, %1134 : vector<16x32xf32>
    %1136 = arith.mulf %1135, %1135 : vector<16x32xf32>
    %cst_405 = arith.constant dense<0.000000e+00> : vector<16xf32>
    %1137 = vector.multi_reduction <add>, %1136, %cst_405 [1] : vector<16x32xf32> to vector<16xf32>
    %1138 = vector.shape_cast %1137 : vector<16xf32> to vector<16x1xf32>
    %cst_406 = arith.constant 3.200000e+01 : f32
    %1139 = vector.broadcast %cst_406 : f32 to vector<16x1xf32>
    %1140 = arith.divf %1138, %1139 : vector<16x1xf32>
    %1141 = vector.broadcast %1133 : vector<16x1xf32> to vector<16x32xf32>
    %1142 = arith.subf %1129, %1141 : vector<16x32xf32>
    %cst_407 = arith.constant 9.99999974E-6 : f32
    %1143 = vector.broadcast %cst_407 : f32 to vector<16x1xf32>
    %1144 = arith.addf %1140, %1143 : vector<16x1xf32>
    %1145 = math.rsqrt %1144 : vector<16x1xf32>
    %1146 = vector.broadcast %1145 : vector<16x1xf32> to vector<16x32xf32>
    %1147 = arith.mulf %1142, %1146 : vector<16x32xf32>
    %1148 = vector.broadcast %835 : vector<1x32xf32> to vector<16x32xf32>
    %1149 = arith.mulf %1147, %1148 : vector<16x32xf32>
    %1150 = vector.broadcast %837 : vector<1x32xf32> to vector<16x32xf32>
    %1151 = arith.addf %1149, %1150 : vector<16x32xf32>
    %1152 = arith.truncf %1151 : vector<16x32xf32> to vector<16x32xbf16>
    %1153 = arith.truncf %839 : vector<32x64xf32> to vector<32x64xbf16>
    %cst_408 = arith.constant dense<0.000000e+00> : vector<16x64xf32>
    %1154 = tpu.matmul %1152, %1153, %cst_408 {dimension_numbers = #tpu.dot_dimension_numbers<[1], [0], [0], [1], [0, 0, 1, 1], [], []>} : vector<16x32xbf16>, vector<32x64xbf16>, vector<16x64xf32> -> vector<16x64xf32>
    %1155 = vector.broadcast %841 : vector<1x64xf32> to vector<16x64xf32>
    %1156 = arith.addf %1154, %1155 : vector<16x64xf32>
    %cst_409 = arith.constant 0.000000e+00 : f32
    %1157 = vector.broadcast %cst_409 : f32 to vector<16x64xf32>
    %1158 = arith.maximumf %1156, %1157 : vector<16x64xf32>
    %1159 = arith.truncf %1158 : vector<16x64xf32> to vector<16x64xbf16>
    %1160 = arith.truncf %843 : vector<64x32xf32> to vector<64x32xbf16>
    %cst_410 = arith.constant dense<0.000000e+00> : vector<16x32xf32>
    %1161 = tpu.matmul %1159, %1160, %cst_410 {dimension_numbers = #tpu.dot_dimension_numbers<[1], [0], [0], [1], [0, 0, 1, 1], [], []>} : vector<16x64xbf16>, vector<64x32xbf16>, vector<16x32xf32> -> vector<16x32xf32>
    %1162 = vector.broadcast %845 : vector<1x32xf32> to vector<16x32xf32>
    %1163 = arith.addf %1161, %1162 : vector<16x32xf32>
    %1164 = arith.addf %1151, %1163 : vector<16x32xf32>
    %cst_411 = arith.constant dense<0.000000e+00> : vector<16xf32>
    %1165 = vector.multi_reduction <add>, %1164, %cst_411 [1] : vector<16x32xf32> to vector<16xf32>
    %1166 = vector.shape_cast %1165 : vector<16xf32> to vector<16x1xf32>
    %cst_412 = arith.constant 3.200000e+01 : f32
    %1167 = vector.broadcast %cst_412 : f32 to vector<16x1xf32>
    %1168 = arith.divf %1166, %1167 : vector<16x1xf32>
    %1169 = vector.broadcast %1168 : vector<16x1xf32> to vector<16x32xf32>
    %1170 = arith.subf %1164, %1169 : vector<16x32xf32>
    %1171 = arith.mulf %1170, %1170 : vector<16x32xf32>
    %cst_413 = arith.constant dense<0.000000e+00> : vector<16xf32>
    %1172 = vector.multi_reduction <add>, %1171, %cst_413 [1] : vector<16x32xf32> to vector<16xf32>
    %1173 = vector.shape_cast %1172 : vector<16xf32> to vector<16x1xf32>
    %cst_414 = arith.constant 3.200000e+01 : f32
    %1174 = vector.broadcast %cst_414 : f32 to vector<16x1xf32>
    %1175 = arith.divf %1173, %1174 : vector<16x1xf32>
    %1176 = vector.broadcast %1168 : vector<16x1xf32> to vector<16x32xf32>
    %1177 = arith.subf %1164, %1176 : vector<16x32xf32>
    %cst_415 = arith.constant 9.99999974E-6 : f32
    %1178 = vector.broadcast %cst_415 : f32 to vector<16x1xf32>
    %1179 = arith.addf %1175, %1178 : vector<16x1xf32>
    %1180 = math.rsqrt %1179 : vector<16x1xf32>
    %1181 = vector.broadcast %1180 : vector<16x1xf32> to vector<16x32xf32>
    %1182 = arith.mulf %1177, %1181 : vector<16x32xf32>
    %1183 = vector.broadcast %847 : vector<1x32xf32> to vector<16x32xf32>
    %1184 = arith.mulf %1182, %1183 : vector<16x32xf32>
    %1185 = vector.broadcast %849 : vector<1x32xf32> to vector<16x32xf32>
    %1186 = arith.addf %1184, %1185 : vector<16x32xf32>
    %c0_416 = arith.constant 0 : index
    %c0_417 = arith.constant 0 : index
    %1187 = vector.load %arg35[%c0_416, %c0_417] : memref<32x12xf32, #tpu.memory_space<vmem>>, vector<32x12xf32>
    %1188 = arith.truncf %1186 : vector<16x32xf32> to vector<16x32xbf16>
    %1189 = arith.truncf %1187 : vector<32x12xf32> to vector<32x12xbf16>
    %cst_418 = arith.constant dense<0.000000e+00> : vector<16x12xf32>
    %1190 = tpu.matmul %1188, %1189, %cst_418 {dimension_numbers = #tpu.dot_dimension_numbers<[1], [0], [0], [1], [0, 0, 1, 1], [], []>} : vector<16x32xbf16>, vector<32x12xbf16>, vector<16x12xf32> -> vector<16x12xf32>
    %c0_419 = arith.constant 0 : index
    %c0_420 = arith.constant 0 : index
    %1191 = vector.load %arg36[%c0_419, %c0_420] : memref<1x12xf32, #tpu.memory_space<vmem>>, vector<1x12xf32>
    %1192 = vector.broadcast %1191 : vector<1x12xf32> to vector<16x12xf32>
    %1193 = arith.addf %1190, %1192 : vector<16x12xf32>
    %c0_421 = arith.constant 0 : index
    %c0_422 = arith.constant 0 : index
    %1194 = vector.load %arg37[%c0_421, %c0_422] : memref<16x12xf32, #tpu.memory_space<vmem>>, vector<16x12xf32>
    tpu.vector_store %arg37[%c0_421, %c0_422], %1193 {strides = array<i32>} : memref<16x12xf32, #tpu.memory_space<vmem>>, vector<16x12xf32>,
    return
  }
}

</mosaic_0001>

<llo_original>
// kernel: encoder_decoder_forward.1
$region0: #{encoder_decoder_forward.1}
  #allocation0 [shape = 'u32[]', space=smem, size = 0x4, offset = 0x4, fixed_abs, tag = 'smem constant byte address 0x4 - core index']
  #allocation1 [shape = 'u32[144,128]{1,0:T(1,128)}', space=vmem, size = 0x12000, scoped, tag = 'internal scratch']
  %s0 = inlined_call_operand.smem [shape: u32[38], index: -1, kind: input, shape index: {}]
  %s1 = sld [smem:[%s0]]
  %s2 = scalar_lea.smem %s0, 1
  %s3 = sld [smem:[%s2]]
  %s4 = scalar_lea.smem %s0, 2
  %s5 = sld [smem:[%s4]]
  %s6 = scalar_lea.smem %s0, 3
  %s7 = sld [smem:[%s6]]
  %s8 = scalar_lea.smem %s0, 4
  %s9 = sld [smem:[%s8]]
  %s10 = scalar_lea.smem %s0, 5
  %s11 = sld [smem:[%s10]]
  %s12 = scalar_lea.smem %s0, 6
  %s13 = sld [smem:[%s12]]
  %s14 = scalar_lea.smem %s0, 7
  %s15 = sld [smem:[%s14]]
  %s16 = scalar_lea.smem %s0, 8
  %s17 = sld [smem:[%s16]]
  %s18 = scalar_lea.smem %s0, 9
  %s19 = sld [smem:[%s18]]
  %s20 = scalar_lea.smem %s0, 10
  %s21 = sld [smem:[%s20]]
  %s22 = scalar_lea.smem %s0, 11
  %s23 = sld [smem:[%s22]]
  %s24 = scalar_lea.smem %s0, 12
  %s25 = sld [smem:[%s24]]
  %s26 = scalar_lea.smem %s0, 13
  %s27 = sld [smem:[%s26]]
  %s28 = scalar_lea.smem %s0, 14
  %s29 = sld [smem:[%s28]]
  %s30 = scalar_lea.smem %s0, 15
  %s31 = sld [smem:[%s30]]
  %s32 = scalar_lea.smem %s0, 16
  %s33 = sld [smem:[%s32]]
  %s34 = scalar_lea.smem %s0, 17
  %s35 = sld [smem:[%s34]]
  %s36 = scalar_lea.smem %s0, 18
  %s37 = sld [smem:[%s36]]
  %s38 = scalar_lea.smem %s0, 19
  %s39 = sld [smem:[%s38]]
  %s40 = scalar_lea.smem %s0, 20
  %s41 = sld [smem:[%s40]]
  %s42 = scalar_lea.smem %s0, 21
  %s43 = sld [smem:[%s42]]
  %s44 = scalar_lea.smem %s0, 22
  %s45 = sld [smem:[%s44]]
  %s46 = scalar_lea.smem %s0, 23
  %s47 = sld [smem:[%s46]]
  %s48 = scalar_lea.smem %s0, 24
  %s49 = sld [smem:[%s48]]
  %s50 = scalar_lea.smem %s0, 25
  %s51 = sld [smem:[%s50]]
  %s52 = scalar_lea.smem %s0, 26
  %s53 = sld [smem:[%s52]]
  %s54 = scalar_lea.smem %s0, 27
  %s55 = sld [smem:[%s54]]
  %s56 = scalar_lea.smem %s0, 28
  %s57 = sld [smem:[%s56]]
  %s58 = scalar_lea.smem %s0, 29
  %s59 = sld [smem:[%s58]]
  %s60 = scalar_lea.smem %s0, 30
  %s61 = sld [smem:[%s60]]
  %s62 = scalar_lea.smem %s0, 31
  %s63 = sld [smem:[%s62]]
  %s64 = scalar_lea.smem %s0, 32
  %s65 = sld [smem:[%s64]]
  %s66 = scalar_lea.smem %s0, 33
  %s67 = sld [smem:[%s66]]
  %s68 = scalar_lea.smem %s0, 34
  %s69 = sld [smem:[%s68]]
  %s70 = scalar_lea.smem %s0, 35
  %s71 = sld [smem:[%s70]]
  %s72 = scalar_lea.smem %s0, 36
  %s73 = sld [smem:[%s72]]
  %s74 = scalar_lea.smem %s0, 37
  %s75 = sld [smem:[%s74]]
  %s76 = sld [smem:[#allocation0]]
  $region158: #{encoder_decoder_forward.1} parent=0
    _
  %s78 = ssub.s32 1, %s76
  %s79 = scalar_select 0, %s78, %s76
  $region1: #{encoder_decoder_forward.1} parent=0
    #allocation2 [shape = 'u8[8192]{0}', space=vmem, size = 0x2000, scoped, tag = 'output window, operand 0, single buffered']
    #allocation3 [shape = 's32[1]{0}', space=sflag, size = 0x4, scoped, tag = 'scoped memory for encoder_decoder_forward.1']
    %80 = vsyncpa [#allocation3], 0
    // Predicated region
    $region2: #{encoder_decoder_forward.1} parent=1 // pred_check
      _
    $region3: #{encoder_decoder_forward.1} parent=1 // pred_check_branch
      %82 = sbr.rel (0) target = $region5
    $region4: #{encoder_decoder_forward.1} parent=1 // pred_region
      _
    $region5: #{encoder_decoder_forward.1} parent=1 // pred_fallthru
      _
    // Predicated region
    $region6: #{encoder_decoder_forward.1} parent=1 // pred_check
      _
    $region7: #{encoder_decoder_forward.1} parent=1 // pred_check_branch
      %84 = sbr.rel (0) target = $region9
    $region8: #{encoder_decoder_forward.1} parent=1 // pred_region
      _
    $region9: #{encoder_decoder_forward.1} parent=1 // pred_fallthru
      _
    // Predicated region
    $region10: #{encoder_decoder_forward.1} parent=1 // pred_check
      _
    $region11: #{encoder_decoder_forward.1} parent=1 // pred_check_branch
      %86 = sbr.rel (0) target = $region13
    $region12: #{encoder_decoder_forward.1} parent=1 // pred_region
      _
    $region13: #{encoder_decoder_forward.1} parent=1 // pred_fallthru
      _
    // Predicated region
    $region14: #{encoder_decoder_forward.1} parent=1 // pred_check
      _
    $region15: #{encoder_decoder_forward.1} parent=1 // pred_check_branch
      %88 = sbr.rel (0) target = $region17
    $region16: #{encoder_decoder_forward.1} parent=1 // pred_region
      _
    $region17: #{encoder_decoder_forward.1} parent=1 // pred_fallthru
      _
    // Predicated region
    $region18: #{encoder_decoder_forward.1} parent=1 // pred_check
      _
    $region19: #{encoder_decoder_forward.1} parent=1 // pred_check_branch
      %90 = sbr.rel (0) target = $region21
    $region20: #{encoder_decoder_forward.1} parent=1 // pred_region
      _
    $region21: #{encoder_decoder_forward.1} parent=1 // pred_fallthru
      _
    // Predicated region
    $region22: #{encoder_decoder_forward.1} parent=1 // pred_check
      _
    $region23: #{encoder_decoder_forward.1} parent=1 // pred_check_branch
      %92 = sbr.rel (0) target = $region25
    $region24: #{encoder_decoder_forward.1} parent=1 // pred_region
      _
    $region25: #{encoder_decoder_forward.1} parent=1 // pred_fallthru
      _
    // Predicated region
    $region26: #{encoder_decoder_forward.1} parent=1 // pred_check
      _
    $region27: #{encoder_decoder_forward.1} parent=1 // pred_check_branch
      %94 = sbr.rel (0) target = $region29
    $region28: #{encoder_decoder_forward.1} parent=1 // pred_region
      _
    $region29: #{encoder_decoder_forward.1} parent=1 // pred_fallthru
      _
    // Predicated region
    $region30: #{encoder_decoder_forward.1} parent=1 // pred_check
      _
    $region31: #{encoder_decoder_forward.1} parent=1 // pred_check_branch
      %96 = sbr.rel (0) target = $region33
    $region32: #{encoder_decoder_forward.1} parent=1 // pred_region
      _
    $region33: #{encoder_decoder_forward.1} parent=1 // pred_fallthru
      _
    // Predicated region
    $region34: #{encoder_decoder_forward.1} parent=1 // pred_check
      _
    $region35: #{encoder_decoder_forward.1} parent=1 // pred_check_branch
      %98 = sbr.rel (0) target = $region37
    $region36: #{encoder_decoder_forward.1} parent=1 // pred_region
      _
    $region37: #{encoder_decoder_forward.1} parent=1 // pred_fallthru
      _
    // Predicated region
    $region38: #{encoder_decoder_forward.1} parent=1 // pred_check
      _
    $region39: #{encoder_decoder_forward.1} parent=1 // pred_check_branch
      %100 = sbr.rel (0) target = $region41
    $region40: #{encoder_decoder_forward.1} parent=1 // pred_region
      _
    $region41: #{encoder_decoder_forward.1} parent=1 // pred_fallthru
      _
    // Predicated region
    $region42: #{encoder_decoder_forward.1} parent=1 // pred_check
      _
    $region43: #{encoder_decoder_forward.1} parent=1 // pred_check_branch
      %102 = sbr.rel (0) target = $region45
    $region44: #{encoder_decoder_forward.1} parent=1 // pred_region
      _
    $region45: #{encoder_decoder_forward.1} parent=1 // pred_fallthru
      _
    // Predicated region
    $region46: #{encoder_decoder_forward.1} parent=1 // pred_check
      _
    $region47: #{encoder_decoder_forward.1} parent=1 // pred_check_branch
      %104 = sbr.rel (0) target = $region49
    $region48: #{encoder_decoder_forward.1} parent=1 // pred_region
      _
    $region49: #{encoder_decoder_forward.1} parent=1 // pred_fallthru
      _
    // Predicated region
    $region50: #{encoder_decoder_forward.1} parent=1 // pred_check
      _
    $region51: #{encoder_decoder_forward.1} parent=1 // pred_check_branch
      %106 = sbr.rel (0) target = $region53
    $region52: #{encoder_decoder_forward.1} parent=1 // pred_region
      _
    $region53: #{encoder_decoder_forward.1} parent=1 // pred_fallthru
      _
    // Predicated region
    $region54: #{encoder_decoder_forward.1} parent=1 // pred_check
      _
    $region55: #{encoder_decoder_forward.1} parent=1 // pred_check_branch
      %108 = sbr.rel (0) target = $region57
    $region56: #{encoder_decoder_forward.1} parent=1 // pred_region
      _
    $region57: #{encoder_decoder_forward.1} parent=1 // pred_fallthru
      _
    // Predicated region
    $region58: #{encoder_decoder_forward.1} parent=1 // pred_check
      _
    $region59: #{encoder_decoder_forward.1} parent=1 // pred_check_branch
      %110 = sbr.rel (0) target = $region61
    $region60: #{encoder_decoder_forward.1} parent=1 // pred_region
      _
    $region61: #{encoder_decoder_forward.1} parent=1 // pred_fallthru
      _
    // Predicated region
    $region62: #{encoder_decoder_forward.1} parent=1 // pred_check
      _
    $region63: #{encoder_decoder_forward.1} parent=1 // pred_check_branch
      %112 = sbr.rel (0) target = $region65
    $region64: #{encoder_decoder_forward.1} parent=1 // pred_region
      _
    $region65: #{encoder_decoder_forward.1} parent=1 // pred_fallthru
      _
    // Predicated region
    $region66: #{encoder_decoder_forward.1} parent=1 // pred_check
      _
    $region67: #{encoder_decoder_forward.1} parent=1 // pred_check_branch
      %114 = sbr.rel (0) target = $region69
    $region68: #{encoder_decoder_forward.1} parent=1 // pred_region
      _
    $region69: #{encoder_decoder_forward.1} parent=1 // pred_fallthru
      _
    // Predicated region
    $region70: #{encoder_decoder_forward.1} parent=1 // pred_check
      _
    $region71: #{encoder_decoder_forward.1} parent=1 // pred_check_branch
      %116 = sbr.rel (0) target = $region73
    $region72: #{encoder_decoder_forward.1} parent=1 // pred_region
      _
    $region73: #{encoder_decoder_forward.1} parent=1 // pred_fallthru
      _
    // Predicated region
    $region74: #{encoder_decoder_forward.1} parent=1 // pred_check
      _
    $region75: #{encoder_decoder_forward.1} parent=1 // pred_check_branch
      %118 = sbr.rel (0) target = $region77
    $region76: #{encoder_decoder_forward.1} parent=1 // pred_region
      _
    $region77: #{encoder_decoder_forward.1} parent=1 // pred_fallthru
      _
    // Predicated region
    $region78: #{encoder_decoder_forward.1} parent=1 // pred_check
      _
    $region79: #{encoder_decoder_forward.1} parent=1 // pred_check_branch
      %120 = sbr.rel (0) target = $region81
    $region80: #{encoder_decoder_forward.1} parent=1 // pred_region
      _
    $region81: #{encoder_decoder_forward.1} parent=1 // pred_fallthru
      _
    // Predicated region
    $region82: #{encoder_decoder_forward.1} parent=1 // pred_check
      _
    $region83: #{encoder_decoder_forward.1} parent=1 // pred_check_branch
      %122 = sbr.rel (0) target = $region85
    $region84: #{encoder_decoder_forward.1} parent=1 // pred_region
      _
    $region85: #{encoder_decoder_forward.1} parent=1 // pred_fallthru
      _
    // Predicated region
    $region86: #{encoder_decoder_forward.1} parent=1 // pred_check
      _
    $region87: #{encoder_decoder_forward.1} parent=1 // pred_check_branch
      %124 = sbr.rel (0) target = $region89
    $region88: #{encoder_decoder_forward.1} parent=1 // pred_region
      _
    $region89: #{encoder_decoder_forward.1} parent=1 // pred_fallthru
      _
    // Predicated region
    $region90: #{encoder_decoder_forward.1} parent=1 // pred_check
      _
    $region91: #{encoder_decoder_forward.1} parent=1 // pred_check_branch
      %126 = sbr.rel (0) target = $region93
    $region92: #{encoder_decoder_forward.1} parent=1 // pred_region
      _
    $region93: #{encoder_decoder_forward.1} parent=1 // pred_fallthru
      _
    // Predicated region
    $region94: #{encoder_decoder_forward.1} parent=1 // pred_check
      _
    $region95: #{encoder_decoder_forward.1} parent=1 // pred_check_branch
      %128 = sbr.rel (0) target = $region97
    $region96: #{encoder_decoder_forward.1} parent=1 // pred_region
      _
    $region97: #{encoder_decoder_forward.1} parent=1 // pred_fallthru
      _
    // Predicated region
    $region98: #{encoder_decoder_forward.1} parent=1 // pred_check
      _
    $region99: #{encoder_decoder_forward.1} parent=1 // pred_check_branch
      %130 = sbr.rel (0) target = $region101
    $region100: #{encoder_decoder_forward.1} parent=1 // pred_region
      _
    $region101: #{encoder_decoder_forward.1} parent=1 // pred_fallthru
      _
    // Predicated region
    $region102: #{encoder_decoder_forward.1} parent=1 // pred_check
      _
    $region103: #{encoder_decoder_forward.1} parent=1 // pred_check_branch
      %132 = sbr.rel (0) target = $region105
    $region104: #{encoder_decoder_forward.1} parent=1 // pred_region
      _
    $region105: #{encoder_decoder_forward.1} parent=1 // pred_fallthru
      _
    // Predicated region
    $region106: #{encoder_decoder_forward.1} parent=1 // pred_check
      _
    $region107: #{encoder_decoder_forward.1} parent=1 // pred_check_branch
      %134 = sbr.rel (0) target = $region109
    $region108: #{encoder_decoder_forward.1} parent=1 // pred_region
      _
    $region109: #{encoder_decoder_forward.1} parent=1 // pred_fallthru
      _
    // Predicated region
    $region110: #{encoder_decoder_forward.1} parent=1 // pred_check
      _
    $region111: #{encoder_decoder_forward.1} parent=1 // pred_check_branch
      %136 = sbr.rel (0) target = $region113
    $region112: #{encoder_decoder_forward.1} parent=1 // pred_region
      _
    $region113: #{encoder_decoder_forward.1} parent=1 // pred_fallthru
      _
    // Predicated region
    $region114: #{encoder_decoder_forward.1} parent=1 // pred_check
      _
    $region115: #{encoder_decoder_forward.1} parent=1 // pred_check_branch
      %138 = sbr.rel (0) target = $region117
    $region116: #{encoder_decoder_forward.1} parent=1 // pred_region
      _
    $region117: #{encoder_decoder_forward.1} parent=1 // pred_fallthru
      _
    // Predicated region
    $region118: #{encoder_decoder_forward.1} parent=1 // pred_check
      _
    $region119: #{encoder_decoder_forward.1} parent=1 // pred_check_branch
      %140 = sbr.rel (0) target = $region121
    $region120: #{encoder_decoder_forward.1} parent=1 // pred_region
      _
    $region121: #{encoder_decoder_forward.1} parent=1 // pred_fallthru
      _
    // Predicated region
    $region122: #{encoder_decoder_forward.1} parent=1 // pred_check
      _
    $region123: #{encoder_decoder_forward.1} parent=1 // pred_check_branch
      %142 = sbr.rel (0) target = $region125
    $region124: #{encoder_decoder_forward.1} parent=1 // pred_region
      _
    $region125: #{encoder_decoder_forward.1} parent=1 // pred_fallthru
      _
    // Predicated region
    $region126: #{encoder_decoder_forward.1} parent=1 // pred_check
      _
    $region127: #{encoder_decoder_forward.1} parent=1 // pred_check_branch
      %144 = sbr.rel (0) target = $region129
    $region128: #{encoder_decoder_forward.1} parent=1 // pred_region
      _
    $region129: #{encoder_decoder_forward.1} parent=1 // pred_fallthru
      _
    // Predicated region
    $region130: #{encoder_decoder_forward.1} parent=1 // pred_check
      _
    $region131: #{encoder_decoder_forward.1} parent=1 // pred_check_branch
      %146 = sbr.rel (0) target = $region133
    $region132: #{encoder_decoder_forward.1} parent=1 // pred_region
      _
    $region133: #{encoder_decoder_forward.1} parent=1 // pred_fallthru
      _
    // Predicated region
    $region134: #{encoder_decoder_forward.1} parent=1 // pred_check
      _
    $region135: #{encoder_decoder_forward.1} parent=1 // pred_check_branch
      %148 = sbr.rel (0) target = $region137
    $region136: #{encoder_decoder_forward.1} parent=1 // pred_region
      _
    $region137: #{encoder_decoder_forward.1} parent=1 // pred_fallthru
      _
    // Predicated region
    $region138: #{encoder_decoder_forward.1} parent=1 // pred_check
      _
    $region139: #{encoder_decoder_forward.1} parent=1 // pred_check_branch
      %150 = sbr.rel (0) target = $region141
    $region140: #{encoder_decoder_forward.1} parent=1 // pred_region
      _
    $region141: #{encoder_decoder_forward.1} parent=1 // pred_fallthru
      _
    // Predicated region
    $region142: #{encoder_decoder_forward.1} parent=1 // pred_check
      _
    $region143: #{encoder_decoder_forward.1} parent=1 // pred_check_branch
      %152 = sbr.rel (0) target = $region145
    $region144: #{encoder_decoder_forward.1} parent=1 // pred_region
      _
    $region145: #{encoder_decoder_forward.1} parent=1 // pred_fallthru
      _
    // Predicated region
    $region146: #{encoder_decoder_forward.1} parent=1 // pred_check
      _
    $region147: #{encoder_decoder_forward.1} parent=1 // pred_check_branch
      %154 = sbr.rel (0) target = $region149
    $region148: #{encoder_decoder_forward.1} parent=1 // pred_region
      _
    $region149: #{encoder_decoder_forward.1} parent=1 // pred_fallthru
      _
    %v156 = vld [vmem:[%s1] sm:$0x1]
    %v157 = vld [vmem:[%s1 + $0x1] sm:$0x1]
    %v158 = vlaneseq
    %v159 = vand.u32 %v158, 127
    %v160 = vlaneseq
    %v161 = vshrl.u32 %v160, 7
    %v162 = vsub.s32 0, %v161
    %v163 = vrot.slane %v156, %v162
    %v164 = vlaneseq
    %v165 = vshrl.u32 %v164, 7
    %v166 = vsub.s32 0, %v165
    %v167 = vrot.slane %v157, %v166
    %168 = vset.pattern.permute.xlu0 0
    %169 = vperm.xlu0 %168, %v163
    %v170 = vpop.permute.xlu0 %169
    %171 = vset.pattern.permute.xlu0 0
    %172 = vperm.xlu0 %171, %v167
    %v173 = vpop.permute.xlu0 %172
    %vm174 = vcmp.lt.s32.totalorder %v159, %v170
    %vm175 = vcmp.lt.s32.totalorder %v159, %v173
    %v176 = vsel %vm174, 0.0, -1e+09
    %v177 = vsel %vm175, 0.0, -1e+09
    %v178 = vlaneseq
    %v179 = vshrl.u32 %v178, 7
    %vm180 = vcmp.ge.s32.totalorder %v179, %v159
    %v181 = vsel %vm180, 0.0, -1e+09
    %v182 = vld [vmem:[%s3] sm:$0xff]
    %v183 = vld [vmem:[%s3 + $0x8] sm:$0xff]
    %v184 = vld [vmem:[%s7] sm:$0xff]
    %v185 = vld [vmem:[%s7 + $0x8] sm:$0xff]
    %v186 = vld [vmem:[%s7 + $0x10] sm:$0xff]
    %v187 = vld [vmem:[%s7 + $0x18] sm:$0xff]
    %v188 = vld [vmem:[%s9] sm:$0x1]
    %v189 = vld [vmem:[%s11] sm:$0xff]
    %v190 = vld [vmem:[%s11 + $0x8] sm:$0xff]
    %v191 = vld [vmem:[%s11 + $0x10] sm:$0xff]
    %v192 = vld [vmem:[%s11 + $0x18] sm:$0xff]
    %v193 = vld [vmem:[%s13] sm:$0x1]
    %v194 = vld [vmem:[%s15] sm:$0x1]
    %v195 = vld [vmem:[%s17] sm:$0x1]
    %v196 = vld [vmem:[%s19] sm:$0xff]
    %v197 = vld [vmem:[%s19 + $0x8] sm:$0xff]
    %v198 = vld [vmem:[%s19 + $0x10] sm:$0xff]
    %v199 = vld [vmem:[%s19 + $0x18] sm:$0xff]
    %v200 = vld [vmem:[%s21] sm:$0x1]
    %v201 = vld [vmem:[%s23] sm:$0xff]
    %v202 = vld [vmem:[%s23 + $0x8] sm:$0xff]
    %v203 = vld [vmem:[%s23 + $0x10] sm:$0xff]
    %v204 = vld [vmem:[%s23 + $0x18] sm:$0xff]
    %v205 = vld [vmem:[%s23 + $0x20] sm:$0xff]
    %v206 = vld [vmem:[%s23 + $0x28] sm:$0xff]
    %v207 = vld [vmem:[%s23 + $0x30] sm:$0xff]
    %v208 = vld [vmem:[%s23 + $0x38] sm:$0xff]
    %v209 = vld [vmem:[%s25] sm:$0x1]
    %v210 = vld [vmem:[%s27] sm:$0x1]
    %v211 = vld [vmem:[%s29] sm:$0x1]
    %v212 = vpack.c.bf16 %v183, %v182
    %v213 = vpack.c.bf16 %v185, %v184
    %v214 = vpack.c.bf16 %v187, %v186
    %v216 = vlaneseq
    %v217 = vshrl.u32 %v216, 7
    %v218 = vsub.s32 0, %v217
    %v219 = vrot.slane %v188, %v218
    %vm221 = vcmask 261120
    %v223 = vsel %vm221, %v212, 0
    %225 = vmatprep.subr.bf16.mxu0 0
    %226 = vmatpush1.bf16.msra.mxu0 0
    %227 = vmatprep.subr.bf16.mxu0 0
    %228 = vmatpush1.bf16.msra.mxu0 0
    %229 = vmatprep.subr.bf16.mxu0 0
    %230 = vmatpush1.bf16.msra.mxu0 0
    %231 = vmatprep.subr.bf16.mxu0 0
    %232 = vmatpush1.bf16.msra.mxu0 0
    %233 = vmatprep.subr.bf16.mxu0 0
    %234 = vmatpush1.bf16.msra.mxu0 0
    %235 = vmatprep.subr.bf16.mxu0 0
    %236 = vmatpush1.bf16.msra.mxu0 0
    %237 = vmatprep.subr.bf16.mxu0 0
    %238 = vmatpush1.bf16.msra.mxu0 %v214
    %239 = vmatprep.subr.bf16.mxu0 0
    %240 = vmatpush1.bf16.msra.mxu0 %v213
    %241 = vmatprep.subr.bf16.mxu0 0
    %242 = vmatpush2.bf16.msra.mxu0 0
    %243 = vmatprep.subr.bf16.mxu0 0
    %244 = vmatpush2.bf16.msra.mxu0 0
    %245 = vmatprep.subr.bf16.mxu0 0
    %246 = vmatpush2.bf16.msra.mxu0 0
    %247 = vmatprep.subr.bf16.mxu0 0
    %248 = vmatpush2.bf16.msra.mxu0 0
    %249 = vmatprep.subr.bf16.mxu0 0
    %250 = vmatpush2.bf16.msra.mxu0 0
    %251 = vmatprep.subr.bf16.mxu0 0
    %252 = vmatpush2.bf16.msra.mxu0 0
    %253 = vmatprep.subr.bf16.mxu0 0
    %254 = vmatpush2.bf16.msra.mxu0 0
    %255 = vmatprep.subr.bf16.mxu0 0
    %256 = vmatpush2.bf16.msra.mxu0 0
    %257 = vmatprep.mubr.bf16.mxu0 0
    %258 = vmatmul.mubr.bf16.gmra.mxu0 %v223
    %v259 = vpop.f32.mrf.mxu0
    %v260 = vadd.f32 %v219, %v259
    %v261 = vpop.f32.mrf.mxu0
    %v262 = vpop.f32.mrf.mxu0
    %v263 = vadd.f32 %v219, %v262
    %v264 = vpop.f32.mrf.mxu0
    %265 = vdwg.mxu0
    %v266 = vpack.c.bf16 %v260, %v260
    %v267 = vpack.c.bf16 %v263, %v263
    %269 = vrot.lane.b32.xlu0 %v266, 96
    %v270 = vpop.permute.xlu0 %269
    %vm271 = vcmask 64512
    %v273 = vsel %vm271, %v266, 0
    %v276 = vsel %vm271, %v270, 0
    %278 = vmatprep.subr.bf16.mxu0 0
    %279 = vmatpush1.bf16.xpose.msra.mxu0 0
    %280 = vmatprep.subr.bf16.mxu0 0
    %281 = vmatpush1.bf16.xpose.msra.mxu0 0
    %282 = vmatprep.subr.bf16.mxu0 0
    %283 = vmatpush1.bf16.xpose.msra.mxu0 0
    %284 = vmatprep.subr.bf16.mxu0 0
    %285 = vmatpush1.bf16.xpose.msra.mxu0 0
    %286 = vmatprep.subr.bf16.mxu0 0
    %287 = vmatpush1.bf16.xpose.msra.mxu0 0
    %288 = vmatprep.subr.bf16.mxu0 0
    %289 = vmatpush1.bf16.xpose.msra.mxu0 0
    %290 = vmatprep.subr.bf16.mxu0 0
    %291 = vmatpush1.bf16.xpose.msra.mxu0 0
    %292 = vmatprep.subr.bf16.mxu0 0
    %293 = vmatpush1.bf16.xpose.msra.mxu0 %v276
    %294 = vmatprep.subr.bf16.mxu0 0
    %295 = vmatpush2.bf16.xpose.msra.mxu0 0
    %296 = vmatprep.subr.bf16.mxu0 0
    %297 = vmatpush2.bf16.xpose.msra.mxu0 0
    %298 = vmatprep.subr.bf16.mxu0 0
    %299 = vmatpush2.bf16.xpose.msra.mxu0 0
    %300 = vmatprep.subr.bf16.mxu0 0
    %301 = vmatpush2.bf16.xpose.msra.mxu0 0
    %302 = vmatprep.subr.bf16.mxu0 0
    %303 = vmatpush2.bf16.xpose.msra.mxu0 0
    %304 = vmatprep.subr.bf16.mxu0 0
    %305 = vmatpush2.bf16.xpose.msra.mxu0 0
    %306 = vmatprep.subr.bf16.mxu0 0
    %307 = vmatpush2.bf16.xpose.msra.mxu0 0
    %308 = vmatprep.subr.bf16.mxu0 0
    %309 = vmatpush2.bf16.xpose.msra.mxu0 0
    %310 = vmatprep.mubr.bf16.mxu0 0
    %311 = vmatmul.mubr.bf16.gmra.mxu0 %v273
    %v312 = vpop.f32.mrf.mxu0
    %v313 = vadd.f32 0.0, %v312
    %v314 = vpop.f32.mrf.mxu0
    %v315 = vpop.f32.mrf.mxu0
    %v316 = vpop.f32.mrf.mxu0
    %317 = vdwg.mxu0
    %319 = vrot.lane.b32.xlu0 %v267, 96
    %v320 = vpop.permute.xlu0 %319
    %v322 = vsel %vm271, %v267, 0
    %v325 = vsel %vm271, %v320, 0
    %327 = vmatprep.subr.bf16.mxu0 0
    %328 = vmatpush1.bf16.xpose.msra.mxu0 0
    %329 = vmatprep.subr.bf16.mxu0 0
    %330 = vmatpush1.bf16.xpose.msra.mxu0 0
    %331 = vmatprep.subr.bf16.mxu0 0
    %332 = vmatpush1.bf16.xpose.msra.mxu0 0
    %333 = vmatprep.subr.bf16.mxu0 0
    %334 = vmatpush1.bf16.xpose.msra.mxu0 0
    %335 = vmatprep.subr.bf16.mxu0 0
    %336 = vmatpush1.bf16.xpose.msra.mxu0 0
    %337 = vmatprep.subr.bf16.mxu0 0
    %338 = vmatpush1.bf16.xpose.msra.mxu0 0
    %339 = vmatprep.subr.bf16.mxu0 0
    %340 = vmatpush1.bf16.xpose.msra.mxu0 0
    %341 = vmatprep.subr.bf16.mxu0 0
    %342 = vmatpush1.bf16.xpose.msra.mxu0 %v325
    %343 = vmatprep.subr.bf16.mxu0 0
    %344 = vmatpush2.bf16.xpose.msra.mxu0 0
    %345 = vmatprep.subr.bf16.mxu0 0
    %346 = vmatpush2.bf16.xpose.msra.mxu0 0
    %347 = vmatprep.subr.bf16.mxu0 0
    %348 = vmatpush2.bf16.xpose.msra.mxu0 0
    %349 = vmatprep.subr.bf16.mxu0 0
    %350 = vmatpush2.bf16.xpose.msra.mxu0 0
    %351 = vmatprep.subr.bf16.mxu0 0
    %352 = vmatpush2.bf16.xpose.msra.mxu0 0
    %353 = vmatprep.subr.bf16.mxu0 0
    %354 = vmatpush2.bf16.xpose.msra.mxu0 0
    %355 = vmatprep.subr.bf16.mxu0 0
    %356 = vmatpush2.bf16.xpose.msra.mxu0 0
    %357 = vmatprep.subr.bf16.mxu0 0
    %358 = vmatpush2.bf16.xpose.msra.mxu0 0
    %359 = vmatprep.mubr.bf16.mxu0 0
    %360 = vmatmul.mubr.bf16.gmra.mxu0 %v322
    %v361 = vpop.f32.mrf.mxu0
    %v362 = vadd.f32 0.0, %v361
    %v363 = vpop.f32.mrf.mxu0
    %v364 = vpop.f32.mrf.mxu0
    %v365 = vpop.f32.mrf.mxu0
    %366 = vdwg.mxu0
    %v367 = vmul.f32 %v313, 0.35355338
    %v368 = vmul.f32 %v362, 0.35355338
    %v369 = vadd.f32 %v367, %v176
    %v370 = vadd.f32 %v368, %v177
    %v371 = vsel %vm271, %v369, -inf
    %372 = vmax.xlane.f32.xlu0 %v371
    %v373 = vpop.xlane.xlu0 %372
    %v374 = vsel %vm271, %v370, -inf
    %375 = vmax.xlane.f32.xlu0 %v374
    %v376 = vpop.xlane.xlu0 %375
    %v377 = vsub.f32 %v369, %v373
    %v378 = vsub.f32 %v370, %v376
    %v379 = vmul.f32 %v377, 1.442695
    %v380 = vpow.pop %v379
    %v381 = vmul.f32 %v378, 1.442695
    %v382 = vpow.pop %v381
    %v383 = vsel %vm271, %v380, 0.0
    %384 = vadd.xlane.f32.xlu0 %v383
    %v385 = vpop.xlane.xlu0 %384
    %v386 = vsel %vm271, %v382, 0.0
    %387 = vadd.xlane.f32.xlu0 %v386
    %v388 = vpop.xlane.xlu0 %387
    %v389 = vrcp.pop %v385
    %v390 = vrcp.pop %v388
    %v391 = vmul.f32 %v380, %v389
    %v392 = vmul.f32 %v382, %v390
    %v393 = vpack.c.bf16 %v391, %v391
    %v394 = vpack.c.bf16 %v392, %v392
    %395 = vrot.lane.b32.xlu0 %v266, 64
    %v396 = vpop.permute.xlu0 %395
    %v398 = vsel %vm271, %v393, 0
    %vm400 = vcmask 1043456
    %v402 = vsel %vm400, %v396, 0
    %404 = vmatprep.subr.bf16.mxu0 0
    %405 = vmatpush1.bf16.msra.mxu0 0
    %406 = vmatprep.subr.bf16.mxu0 0
    %407 = vmatpush1.bf16.msra.mxu0 0
    %408 = vmatprep.subr.bf16.mxu0 0
    %409 = vmatpush1.bf16.msra.mxu0 0
    %410 = vmatprep.subr.bf16.mxu0 0
    %411 = vmatpush1.bf16.msra.mxu0 0
    %412 = vmatprep.subr.bf16.mxu0 0
    %413 = vmatpush1.bf16.msra.mxu0 0
    %414 = vmatprep.subr.bf16.mxu0 0
    %415 = vmatpush1.bf16.msra.mxu0 0
    %416 = vmatprep.subr.bf16.mxu0 0
    %417 = vmatpush1.bf16.msra.mxu0 0
    %418 = vmatprep.subr.bf16.mxu0 0
    %419 = vmatpush1.bf16.msra.mxu0 %v402
    %420 = vmatprep.subr.bf16.mxu0 0
    %421 = vmatpush2.bf16.msra.mxu0 0
    %422 = vmatprep.subr.bf16.mxu0 0
    %423 = vmatpush2.bf16.msra.mxu0 0
    %424 = vmatprep.subr.bf16.mxu0 0
    %425 = vmatpush2.bf16.msra.mxu0 0
    %426 = vmatprep.subr.bf16.mxu0 0
    %427 = vmatpush2.bf16.msra.mxu0 0
    %428 = vmatprep.subr.bf16.mxu0 0
    %429 = vmatpush2.bf16.msra.mxu0 0
    %430 = vmatprep.subr.bf16.mxu0 0
    %431 = vmatpush2.bf16.msra.mxu0 0
    %432 = vmatprep.subr.bf16.mxu0 0
    %433 = vmatpush2.bf16.msra.mxu0 0
    %434 = vmatprep.subr.bf16.mxu0 0
    %435 = vmatpush2.bf16.msra.mxu0 0
    %436 = vmatprep.mubr.bf16.mxu0 0
    %437 = vmatmul.mubr.bf16.gmra.mxu0 %v398
    %v438 = vpop.f32.mrf.mxu0
    %v439 = vadd.f32 0.0, %v438
    %v440 = vpop.f32.mrf.mxu0
    %v441 = vpop.f32.mrf.mxu0
    %v442 = vpop.f32.mrf.mxu0
    %443 = vdwg.mxu0
    %444 = vrot.lane.b32.xlu0 %v267, 64
    %v445 = vpop.permute.xlu0 %444
    %v447 = vsel %vm271, %v394, 0
    %v450 = vsel %vm400, %v445, 0
    %452 = vmatprep.subr.bf16.mxu0 0
    %453 = vmatpush1.bf16.msra.mxu0 0
    %454 = vmatprep.subr.bf16.mxu0 0
    %455 = vmatpush1.bf16.msra.mxu0 0
    %456 = vmatprep.subr.bf16.mxu0 0
    %457 = vmatpush1.bf16.msra.mxu0 0
    %458 = vmatprep.subr.bf16.mxu0 0
    %459 = vmatpush1.bf16.msra.mxu0 0
    %460 = vmatprep.subr.bf16.mxu0 0
    %461 = vmatpush1.bf16.msra.mxu0 0
    %462 = vmatprep.subr.bf16.mxu0 0
    %463 = vmatpush1.bf16.msra.mxu0 0
    %464 = vmatprep.subr.bf16.mxu0 0
    %465 = vmatpush1.bf16.msra.mxu0 0
    %466 = vmatprep.subr.bf16.mxu0 0
    %467 = vmatpush1.bf16.msra.mxu0 %v450
    %468 = vmatprep.subr.bf16.mxu0 0
    %469 = vmatpush2.bf16.msra.mxu0 0
    %470 = vmatprep.subr.bf16.mxu0 0
    %471 = vmatpush2.bf16.msra.mxu0 0
    %472 = vmatprep.subr.bf16.mxu0 0
    %473 = vmatpush2.bf16.msra.mxu0 0
    %474 = vmatprep.subr.bf16.mxu0 0
    %475 = vmatpush2.bf16.msra.mxu0 0
    %476 = vmatprep.subr.bf16.mxu0 0
    %477 = vmatpush2.bf16.msra.mxu0 0
    %478 = vmatprep.subr.bf16.mxu0 0
    %479 = vmatpush2.bf16.msra.mxu0 0
    %480 = vmatprep.subr.bf16.mxu0 0
    %481 = vmatpush2.bf16.msra.mxu0 0
    %482 = vmatprep.subr.bf16.mxu0 0
    %483 = vmatpush2.bf16.msra.mxu0 0
    %484 = vmatprep.mubr.bf16.mxu0 0
    %485 = vmatmul.mubr.bf16.gmra.mxu0 %v447
    %v486 = vpop.f32.mrf.mxu0
    %v487 = vadd.f32 0.0, %v486
    %v488 = vpop.f32.mrf.mxu0
    %v489 = vpop.f32.mrf.mxu0
    %v490 = vpop.f32.mrf.mxu0
    %491 = vdwg.mxu0
    %v492 = vpack.c.bf16 %v487, %v439
    %v493 = vpack.c.bf16 %v189, %v189
    %494 = vrot.lane.b32.xlu0 %v266, 120
    %v495 = vpop.permute.xlu0 %494
    %496 = vrot.lane.b32.xlu0 %v266, 88
    %v497 = vpop.permute.xlu0 %496
    %v499 = vsel %vm271, %v495, 0
    %v502 = vsel %vm271, %v497, 0
    %504 = vmatprep.subr.bf16.mxu0 0
    %505 = vmatpush1.bf16.xpose.msra.mxu0 0
    %506 = vmatprep.subr.bf16.mxu0 0
    %507 = vmatpush1.bf16.xpose.msra.mxu0 0
    %508 = vmatprep.subr.bf16.mxu0 0
    %509 = vmatpush1.bf16.xpose.msra.mxu0 0
    %510 = vmatprep.subr.bf16.mxu0 0
    %511 = vmatpush1.bf16.xpose.msra.mxu0 0
    %512 = vmatprep.subr.bf16.mxu0 0
    %513 = vmatpush1.bf16.xpose.msra.mxu0 0
    %514 = vmatprep.subr.bf16.mxu0 0
    %515 = vmatpush1.bf16.xpose.msra.mxu0 0
    %516 = vmatprep.subr.bf16.mxu0 0
    %517 = vmatpush1.bf16.xpose.msra.mxu0 0
    %518 = vmatprep.subr.bf16.mxu0 0
    %519 = vmatpush1.bf16.xpose.msra.mxu0 %v502
    %520 = vmatprep.subr.bf16.mxu0 0
    %521 = vmatpush2.bf16.xpose.msra.mxu0 0
    %522 = vmatprep.subr.bf16.mxu0 0
    %523 = vmatpush2.bf16.xpose.msra.mxu0 0
    %524 = vmatprep.subr.bf16.mxu0 0
    %525 = vmatpush2.bf16.xpose.msra.mxu0 0
    %526 = vmatprep.subr.bf16.mxu0 0
    %527 = vmatpush2.bf16.xpose.msra.mxu0 0
    %528 = vmatprep.subr.bf16.mxu0 0
    %529 = vmatpush2.bf16.xpose.msra.mxu0 0
    %530 = vmatprep.subr.bf16.mxu0 0
    %531 = vmatpush2.bf16.xpose.msra.mxu0 0
    %532 = vmatprep.subr.bf16.mxu0 0
    %533 = vmatpush2.bf16.xpose.msra.mxu0 0
    %534 = vmatprep.subr.bf16.mxu0 0
    %535 = vmatpush2.bf16.xpose.msra.mxu0 0
    %536 = vmatprep.mubr.bf16.mxu0 0
    %537 = vmatmul.mubr.bf16.gmra.mxu0 %v499
    %v538 = vpop.f32.mrf.mxu0
    %v539 = vadd.f32 0.0, %v538
    %v540 = vpop.f32.mrf.mxu0
    %v541 = vpop.f32.mrf.mxu0
    %v542 = vpop.f32.mrf.mxu0
    %543 = vdwg.mxu0
    %544 = vrot.lane.b32.xlu0 %v267, 120
    %v545 = vpop.permute.xlu0 %544
    %546 = vrot.lane.b32.xlu0 %v267, 88
    %v547 = vpop.permute.xlu0 %546
    %v549 = vsel %vm271, %v545, 0
    %v552 = vsel %vm271, %v547, 0
    %554 = vmatprep.subr.bf16.mxu0 0
    %555 = vmatpush1.bf16.xpose.msra.mxu0 0
    %556 = vmatprep.subr.bf16.mxu0 0
    %557 = vmatpush1.bf16.xpose.msra.mxu0 0
    %558 = vmatprep.subr.bf16.mxu0 0
    %559 = vmatpush1.bf16.xpose.msra.mxu0 0
    %560 = vmatprep.subr.bf16.mxu0 0
    %561 = vmatpush1.bf16.xpose.msra.mxu0 0
    %562 = vmatprep.subr.bf16.mxu0 0
    %563 = vmatpush1.bf16.xpose.msra.mxu0 0
    %564 = vmatprep.subr.bf16.mxu0 0
    %565 = vmatpush1.bf16.xpose.msra.mxu0 0
    %566 = vmatprep.subr.bf16.mxu0 0
    %567 = vmatpush1.bf16.xpose.msra.mxu0 0
    %568 = vmatprep.subr.bf16.mxu0 0
    %569 = vmatpush1.bf16.xpose.msra.mxu0 %v552
    %570 = vmatprep.subr.bf16.mxu0 0
    %571 = vmatpush2.bf16.xpose.msra.mxu0 0
    %572 = vmatprep.subr.bf16.mxu0 0
    %573 = vmatpush2.bf16.xpose.msra.mxu0 0
    %574 = vmatprep.subr.bf16.mxu0 0
    %575 = vmatpush2.bf16.xpose.msra.mxu0 0
    %576 = vmatprep.subr.bf16.mxu0 0
    %577 = vmatpush2.bf16.xpose.msra.mxu0 0
    %578 = vmatprep.subr.bf16.mxu0 0
    %579 = vmatpush2.bf16.xpose.msra.mxu0 0
    %580 = vmatprep.subr.bf16.mxu0 0
    %581 = vmatpush2.bf16.xpose.msra.mxu0 0
    %582 = vmatprep.subr.bf16.mxu0 0
    %583 = vmatpush2.bf16.xpose.msra.mxu0 0
    %584 = vmatprep.subr.bf16.mxu0 0
    %585 = vmatpush2.bf16.xpose.msra.mxu0 0
    %586 = vmatprep.mubr.bf16.mxu0 0
    %587 = vmatmul.mubr.bf16.gmra.mxu0 %v549
    %v588 = vpop.f32.mrf.mxu0
    %v589 = vadd.f32 0.0, %v588
    %v590 = vpop.f32.mrf.mxu0
    %v591 = vpop.f32.mrf.mxu0
    %v592 = vpop.f32.mrf.mxu0
    %593 = vdwg.mxu0
    %v594 = vmul.f32 %v539, 0.35355338
    %v595 = vmul.f32 %v589, 0.35355338
    %v596 = vadd.f32 %v594, %v176
    %v597 = vadd.f32 %v595, %v177
    %v598 = vsel %vm271, %v596, -inf
    %599 = vmax.xlane.f32.xlu0 %v598
    %v600 = vpop.xlane.xlu0 %599
    %v601 = vsel %vm271, %v597, -inf
    %602 = vmax.xlane.f32.xlu0 %v601
    %v603 = vpop.xlane.xlu0 %602
    %v604 = vsub.f32 %v596, %v600
    %v605 = vsub.f32 %v597, %v603
    %v606 = vmul.f32 %v604, 1.442695
    %v607 = vpow.pop %v606
    %v608 = vmul.f32 %v605, 1.442695
    %v609 = vpow.pop %v608
    %v610 = vsel %vm271, %v607, 0.0
    %611 = vadd.xlane.f32.xlu0 %v610
    %v612 = vpop.xlane.xlu0 %611
    %v613 = vsel %vm271, %v609, 0.0
    %614 = vadd.xlane.f32.xlu0 %v613
    %v615 = vpop.xlane.xlu0 %614
    %v616 = vrcp.pop %v612
    %v617 = vrcp.pop %v615
    %v618 = vmul.f32 %v607, %v616
    %v619 = vmul.f32 %v609, %v617
    %v620 = vpack.c.bf16 %v618, %v618
    %v621 = vpack.c.bf16 %v619, %v619
    %622 = vrot.lane.b32.xlu0 %v266, 56
    %v623 = vpop.permute.xlu0 %622
    %v625 = vsel %vm271, %v620, 0
    %v628 = vsel %vm400, %v623, 0
    %630 = vmatprep.subr.bf16.mxu0 0
    %631 = vmatpush1.bf16.msra.mxu0 0
    %632 = vmatprep.subr.bf16.mxu0 0
    %633 = vmatpush1.bf16.msra.mxu0 0
    %634 = vmatprep.subr.bf16.mxu0 0
    %635 = vmatpush1.bf16.msra.mxu0 0
    %636 = vmatprep.subr.bf16.mxu0 0
    %637 = vmatpush1.bf16.msra.mxu0 0
    %638 = vmatprep.subr.bf16.mxu0 0
    %639 = vmatpush1.bf16.msra.mxu0 0
    %640 = vmatprep.subr.bf16.mxu0 0
    %641 = vmatpush1.bf16.msra.mxu0 0
    %642 = vmatprep.subr.bf16.mxu0 0
    %643 = vmatpush1.bf16.msra.mxu0 0
    %644 = vmatprep.subr.bf16.mxu0 0
    %645 = vmatpush1.bf16.msra.mxu0 %v628
    %646 = vmatprep.subr.bf16.mxu0 0
    %647 = vmatpush2.bf16.msra.mxu0 0
    %648 = vmatprep.subr.bf16.mxu0 0
    %649 = vmatpush2.bf16.msra.mxu0 0
    %650 = vmatprep.subr.bf16.mxu0 0
    %651 = vmatpush2.bf16.msra.mxu0 0
    %652 = vmatprep.subr.bf16.mxu0 0
    %653 = vmatpush2.bf16.msra.mxu0 0
    %654 = vmatprep.subr.bf16.mxu0 0
    %655 = vmatpush2.bf16.msra.mxu0 0
    %656 = vmatprep.subr.bf16.mxu0 0
    %657 = vmatpush2.bf16.msra.mxu0 0
    %658 = vmatprep.subr.bf16.mxu0 0
    %659 = vmatpush2.bf16.msra.mxu0 0
    %660 = vmatprep.subr.bf16.mxu0 0
    %661 = vmatpush2.bf16.msra.mxu0 0
    %662 = vmatprep.mubr.bf16.mxu0 0
    %663 = vmatmul.mubr.bf16.gmra.mxu0 %v625
    %v664 = vpop.f32.mrf.mxu0
    %v665 = vadd.f32 0.0, %v664
    %v666 = vpop.f32.mrf.mxu0
    %v667 = vpop.f32.mrf.mxu0
    %v668 = vpop.f32.mrf.mxu0
    %669 = vdwg.mxu0
    %670 = vrot.lane.b32.xlu0 %v267, 56
    %v671 = vpop.permute.xlu0 %670
    %v673 = vsel %vm271, %v621, 0
    %v676 = vsel %vm400, %v671, 0
    %678 = vmatprep.subr.bf16.mxu0 0
    %679 = vmatpush1.bf16.msra.mxu0 0
    %680 = vmatprep.subr.bf16.mxu0 0
    %681 = vmatpush1.bf16.msra.mxu0 0
    %682 = vmatprep.subr.bf16.mxu0 0
    %683 = vmatpush1.bf16.msra.mxu0 0
    %684 = vmatprep.subr.bf16.mxu0 0
    %685 = vmatpush1.bf16.msra.mxu0 0
    %686 = vmatprep.subr.bf16.mxu0 0
    %687 = vmatpush1.bf16.msra.mxu0 0
    %688 = vmatprep.subr.bf16.mxu0 0
    %689 = vmatpush1.bf16.msra.mxu0 0
    %690 = vmatprep.subr.bf16.mxu0 0
    %691 = vmatpush1.bf16.msra.mxu0 0
    %692 = vmatprep.subr.bf16.mxu0 0
    %693 = vmatpush1.bf16.msra.mxu0 %v676
    %694 = vmatprep.subr.bf16.mxu0 0
    %695 = vmatpush2.bf16.msra.mxu0 0
    %696 = vmatprep.subr.bf16.mxu0 0
    %697 = vmatpush2.bf16.msra.mxu0 0
    %698 = vmatprep.subr.bf16.mxu0 0
    %699 = vmatpush2.bf16.msra.mxu0 0
    %700 = vmatprep.subr.bf16.mxu0 0
    %701 = vmatpush2.bf16.msra.mxu0 0
    %702 = vmatprep.subr.bf16.mxu0 0
    %703 = vmatpush2.bf16.msra.mxu0 0
    %704 = vmatprep.subr.bf16.mxu0 0
    %705 = vmatpush2.bf16.msra.mxu0 0
    %706 = vmatprep.subr.bf16.mxu0 0
    %707 = vmatpush2.bf16.msra.mxu0 0
    %708 = vmatprep.subr.bf16.mxu0 0
    %709 = vmatpush2.bf16.msra.mxu0 0
    %710 = vmatprep.mubr.bf16.mxu0 0
    %711 = vmatmul.mubr.bf16.gmra.mxu0 %v673
    %v712 = vpop.f32.mrf.mxu0
    %v713 = vadd.f32 0.0, %v712
    %v714 = vpop.f32.mrf.mxu0
    %v715 = vpop.f32.mrf.mxu0
    %v716 = vpop.f32.mrf.mxu0
    %717 = vdwg.mxu0
    %v718 = vpack.c.bf16 %v713, %v665
    %v719 = vpack.c.bf16 %v190, %v190
    %v721 = vsel %vm271, %v718, 0
    %v724 = vsel %vm400, %v719, 0
    %726 = vmatprep.subr.bf16.mxu0 0
    %727 = vmatpush1.bf16.msra.mxu0 0
    %728 = vmatprep.subr.bf16.mxu0 0
    %729 = vmatpush1.bf16.msra.mxu0 0
    %730 = vmatprep.subr.bf16.mxu0 0
    %731 = vmatpush1.bf16.msra.mxu0 0
    %732 = vmatprep.subr.bf16.mxu0 0
    %733 = vmatpush1.bf16.msra.mxu0 0
    %734 = vmatprep.subr.bf16.mxu0 0
    %735 = vmatpush1.bf16.msra.mxu0 0
    %736 = vmatprep.subr.bf16.mxu0 0
    %737 = vmatpush1.bf16.msra.mxu0 0
    %738 = vmatprep.subr.bf16.mxu0 0
    %739 = vmatpush1.bf16.msra.mxu0 0
    %740 = vmatprep.subr.bf16.mxu0 0
    %741 = vmatpush1.bf16.msra.mxu0 %v724
    %742 = vmatprep.subr.bf16.mxu0 0
    %743 = vmatpush2.bf16.msra.mxu0 0
    %744 = vmatprep.subr.bf16.mxu0 0
    %745 = vmatpush2.bf16.msra.mxu0 0
    %746 = vmatprep.subr.bf16.mxu0 0
    %747 = vmatpush2.bf16.msra.mxu0 0
    %748 = vmatprep.subr.bf16.mxu0 0
    %749 = vmatpush2.bf16.msra.mxu0 0
    %750 = vmatprep.subr.bf16.mxu0 0
    %751 = vmatpush2.bf16.msra.mxu0 0
    %752 = vmatprep.subr.bf16.mxu0 0
    %753 = vmatpush2.bf16.msra.mxu0 0
    %754 = vmatprep.subr.bf16.mxu0 0
    %755 = vmatpush2.bf16.msra.mxu0 0
    %756 = vmatprep.subr.bf16.mxu0 0
    %757 = vmatpush2.bf16.msra.mxu0 0
    %758 = vmatprep.mubr.bf16.mxu0 0
    %759 = vmatmul.mubr.bf16.gmra.mxu0 %v721
    %v760 = vpop.f32.mrf.mxu0
    %v761 = vadd.f32 0.0, %v760
    %v762 = vpop.f32.mrf.mxu0
    %v763 = vpop.f32.mrf.mxu0
    %v764 = vadd.f32 0.0, %v763
    %v765 = vpop.f32.mrf.mxu0
    %766 = vdwg.mxu0
    %v768 = vsel %vm271, %v492, 0
    %v771 = vsel %vm400, %v493, 0
    %773 = vmatprep.subr.bf16.mxu0 0
    %774 = vmatpush1.bf16.msra.mxu0 0
    %775 = vmatprep.subr.bf16.mxu0 0
    %776 = vmatpush1.bf16.msra.mxu0 0
    %777 = vmatprep.subr.bf16.mxu0 0
    %778 = vmatpush1.bf16.msra.mxu0 0
    %779 = vmatprep.subr.bf16.mxu0 0
    %780 = vmatpush1.bf16.msra.mxu0 0
    %781 = vmatprep.subr.bf16.mxu0 0
    %782 = vmatpush1.bf16.msra.mxu0 0
    %783 = vmatprep.subr.bf16.mxu0 0
    %784 = vmatpush1.bf16.msra.mxu0 0
    %785 = vmatprep.subr.bf16.mxu0 0
    %786 = vmatpush1.bf16.msra.mxu0 0
    %787 = vmatprep.subr.bf16.mxu0 0
    %788 = vmatpush1.bf16.msra.mxu0 %v771
    %789 = vmatprep.subr.bf16.mxu0 0
    %790 = vmatpush2.bf16.msra.mxu0 0
    %791 = vmatprep.subr.bf16.mxu0 0
    %792 = vmatpush2.bf16.msra.mxu0 0
    %793 = vmatprep.subr.bf16.mxu0 0
    %794 = vmatpush2.bf16.msra.mxu0 0
    %795 = vmatprep.subr.bf16.mxu0 0
    %796 = vmatpush2.bf16.msra.mxu0 0
    %797 = vmatprep.subr.bf16.mxu0 0
    %798 = vmatpush2.bf16.msra.mxu0 0
    %799 = vmatprep.subr.bf16.mxu0 0
    %800 = vmatpush2.bf16.msra.mxu0 0
    %801 = vmatprep.subr.bf16.mxu0 0
    %802 = vmatpush2.bf16.msra.mxu0 0
    %803 = vmatprep.subr.bf16.mxu0 0
    %804 = vmatpush2.bf16.msra.mxu0 0
    %805 = vmatprep.mubr.bf16.mxu0 0
    %806 = vmatmul.mubr.bf16.gmra.mxu0 %v768
    %v807 = vpop.f32.mrf.mxu0
    %v808 = vadd.f32 %v761, %v807
    %v809 = vpop.f32.mrf.mxu0
    %v810 = vpop.f32.mrf.mxu0
    %v811 = vadd.f32 %v764, %v810
    %v812 = vpop.f32.mrf.mxu0
    %813 = vdwg.mxu0
    %814 = vrot.lane.b32.xlu0 %v266, 112
    %v815 = vpop.permute.xlu0 %814
    %816 = vrot.lane.b32.xlu0 %v266, 80
    %v817 = vpop.permute.xlu0 %816
    %v819 = vsel %vm271, %v815, 0
    %v822 = vsel %vm271, %v817, 0
    %824 = vmatprep.subr.bf16.mxu0 0
    %825 = vmatpush1.bf16.xpose.msra.mxu0 0
    %826 = vmatprep.subr.bf16.mxu0 0
    %827 = vmatpush1.bf16.xpose.msra.mxu0 0
    %828 = vmatprep.subr.bf16.mxu0 0
    %829 = vmatpush1.bf16.xpose.msra.mxu0 0
    %830 = vmatprep.subr.bf16.mxu0 0
    %831 = vmatpush1.bf16.xpose.msra.mxu0 0
    %832 = vmatprep.subr.bf16.mxu0 0
    %833 = vmatpush1.bf16.xpose.msra.mxu0 0
    %834 = vmatprep.subr.bf16.mxu0 0
    %835 = vmatpush1.bf16.xpose.msra.mxu0 0
    %836 = vmatprep.subr.bf16.mxu0 0
    %837 = vmatpush1.bf16.xpose.msra.mxu0 0
    %838 = vmatprep.subr.bf16.mxu0 0
    %839 = vmatpush1.bf16.xpose.msra.mxu0 %v822
    %840 = vmatprep.subr.bf16.mxu0 0
    %841 = vmatpush2.bf16.xpose.msra.mxu0 0
    %842 = vmatprep.subr.bf16.mxu0 0
    %843 = vmatpush2.bf16.xpose.msra.mxu0 0
    %844 = vmatprep.subr.bf16.mxu0 0
    %845 = vmatpush2.bf16.xpose.msra.mxu0 0
    %846 = vmatprep.subr.bf16.mxu0 0
    %847 = vmatpush2.bf16.xpose.msra.mxu0 0
    %848 = vmatprep.subr.bf16.mxu0 0
    %849 = vmatpush2.bf16.xpose.msra.mxu0 0
    %850 = vmatprep.subr.bf16.mxu0 0
    %851 = vmatpush2.bf16.xpose.msra.mxu0 0
    %852 = vmatprep.subr.bf16.mxu0 0
    %853 = vmatpush2.bf16.xpose.msra.mxu0 0
    %854 = vmatprep.subr.bf16.mxu0 0
    %855 = vmatpush2.bf16.xpose.msra.mxu0 0
    %856 = vmatprep.mubr.bf16.mxu0 0
    %857 = vmatmul.mubr.bf16.gmra.mxu0 %v819
    %v858 = vpop.f32.mrf.mxu0
    %v859 = vadd.f32 0.0, %v858
    %v860 = vpop.f32.mrf.mxu0
    %v861 = vpop.f32.mrf.mxu0
    %v862 = vpop.f32.mrf.mxu0
    %863 = vdwg.mxu0
    %864 = vrot.lane.b32.xlu0 %v267, 112
    %v865 = vpop.permute.xlu0 %864
    %866 = vrot.lane.b32.xlu0 %v267, 80
    %v867 = vpop.permute.xlu0 %866
    %v869 = vsel %vm271, %v865, 0
    %v872 = vsel %vm271, %v867, 0
    %874 = vmatprep.subr.bf16.mxu0 0
    %875 = vmatpush1.bf16.xpose.msra.mxu0 0
    %876 = vmatprep.subr.bf16.mxu0 0
    %877 = vmatpush1.bf16.xpose.msra.mxu0 0
    %878 = vmatprep.subr.bf16.mxu0 0
    %879 = vmatpush1.bf16.xpose.msra.mxu0 0
    %880 = vmatprep.subr.bf16.mxu0 0
    %881 = vmatpush1.bf16.xpose.msra.mxu0 0
    %882 = vmatprep.subr.bf16.mxu0 0
    %883 = vmatpush1.bf16.xpose.msra.mxu0 0
    %884 = vmatprep.subr.bf16.mxu0 0
    %885 = vmatpush1.bf16.xpose.msra.mxu0 0
    %886 = vmatprep.subr.bf16.mxu0 0
    %887 = vmatpush1.bf16.xpose.msra.mxu0 0
    %888 = vmatprep.subr.bf16.mxu0 0
    %889 = vmatpush1.bf16.xpose.msra.mxu0 %v872
    %890 = vmatprep.subr.bf16.mxu0 0
    %891 = vmatpush2.bf16.xpose.msra.mxu0 0
    %892 = vmatprep.subr.bf16.mxu0 0
    %893 = vmatpush2.bf16.xpose.msra.mxu0 0
    %894 = vmatprep.subr.bf16.mxu0 0
    %895 = vmatpush2.bf16.xpose.msra.mxu0 0
    %896 = vmatprep.subr.bf16.mxu0 0
    %897 = vmatpush2.bf16.xpose.msra.mxu0 0
    %898 = vmatprep.subr.bf16.mxu0 0
    %899 = vmatpush2.bf16.xpose.msra.mxu0 0
    %900 = vmatprep.subr.bf16.mxu0 0
    %901 = vmatpush2.bf16.xpose.msra.mxu0 0
    %902 = vmatprep.subr.bf16.mxu0 0
    %903 = vmatpush2.bf16.xpose.msra.mxu0 0
    %904 = vmatprep.subr.bf16.mxu0 0
    %905 = vmatpush2.bf16.xpose.msra.mxu0 0
    %906 = vmatprep.mubr.bf16.mxu0 0
    %907 = vmatmul.mubr.bf16.gmra.mxu0 %v869
    %v908 = vpop.f32.mrf.mxu0
    %v909 = vadd.f32 0.0, %v908
    %v910 = vpop.f32.mrf.mxu0
    %v911 = vpop.f32.mrf.mxu0
    %v912 = vpop.f32.mrf.mxu0
    %913 = vdwg.mxu0
    %v914 = vmul.f32 %v859, 0.35355338
    %v915 = vmul.f32 %v909, 0.35355338
    %v916 = vadd.f32 %v914, %v176
    %v917 = vadd.f32 %v915, %v177
    %v918 = vsel %vm271, %v916, -inf
    %919 = vmax.xlane.f32.xlu0 %v918
    %v920 = vpop.xlane.xlu0 %919
    %v921 = vsel %vm271, %v917, -inf
    %922 = vmax.xlane.f32.xlu0 %v921
    %v923 = vpop.xlane.xlu0 %922
    %v924 = vsub.f32 %v916, %v920
    %v925 = vsub.f32 %v917, %v923
    %v926 = vmul.f32 %v924, 1.442695
    %v927 = vpow.pop %v926
    %v928 = vmul.f32 %v925, 1.442695
    %v929 = vpow.pop %v928
    %v930 = vsel %vm271, %v927, 0.0
    %931 = vadd.xlane.f32.xlu0 %v930
    %v932 = vpop.xlane.xlu0 %931
    %v933 = vsel %vm271, %v929, 0.0
    %934 = vadd.xlane.f32.xlu0 %v933
    %v935 = vpop.xlane.xlu0 %934
    %v936 = vrcp.pop %v932
    %v937 = vrcp.pop %v935
    %v938 = vmul.f32 %v927, %v936
    %v939 = vmul.f32 %v929, %v937
    %v940 = vpack.c.bf16 %v938, %v938
    %v941 = vpack.c.bf16 %v939, %v939
    %942 = vrot.lane.b32.xlu0 %v266, 48
    %v943 = vpop.permute.xlu0 %942
    %v945 = vsel %vm271, %v940, 0
    %v948 = vsel %vm400, %v943, 0
    %950 = vmatprep.subr.bf16.mxu0 0
    %951 = vmatpush1.bf16.msra.mxu0 0
    %952 = vmatprep.subr.bf16.mxu0 0
    %953 = vmatpush1.bf16.msra.mxu0 0
    %954 = vmatprep.subr.bf16.mxu0 0
    %955 = vmatpush1.bf16.msra.mxu0 0
    %956 = vmatprep.subr.bf16.mxu0 0
    %957 = vmatpush1.bf16.msra.mxu0 0
    %958 = vmatprep.subr.bf16.mxu0 0
    %959 = vmatpush1.bf16.msra.mxu0 0
    %960 = vmatprep.subr.bf16.mxu0 0
    %961 = vmatpush1.bf16.msra.mxu0 0
    %962 = vmatprep.subr.bf16.mxu0 0
    %963 = vmatpush1.bf16.msra.mxu0 0
    %964 = vmatprep.subr.bf16.mxu0 0
    %965 = vmatpush1.bf16.msra.mxu0 %v948
    %966 = vmatprep.subr.bf16.mxu0 0
    %967 = vmatpush2.bf16.msra.mxu0 0
    %968 = vmatprep.subr.bf16.mxu0 0
    %969 = vmatpush2.bf16.msra.mxu0 0
    %970 = vmatprep.subr.bf16.mxu0 0
    %971 = vmatpush2.bf16.msra.mxu0 0
    %972 = vmatprep.subr.bf16.mxu0 0
    %973 = vmatpush2.bf16.msra.mxu0 0
    %974 = vmatprep.subr.bf16.mxu0 0
    %975 = vmatpush2.bf16.msra.mxu0 0
    %976 = vmatprep.subr.bf16.mxu0 0
    %977 = vmatpush2.bf16.msra.mxu0 0
    %978 = vmatprep.subr.bf16.mxu0 0
    %979 = vmatpush2.bf16.msra.mxu0 0
    %980 = vmatprep.subr.bf16.mxu0 0
    %981 = vmatpush2.bf16.msra.mxu0 0
    %982 = vmatprep.mubr.bf16.mxu0 0
    %983 = vmatmul.mubr.bf16.gmra.mxu0 %v945
    %v984 = vpop.f32.mrf.mxu0
    %v985 = vadd.f32 0.0, %v984
    %v986 = vpop.f32.mrf.mxu0
    %v987 = vpop.f32.mrf.mxu0
    %v988 = vpop.f32.mrf.mxu0
    %989 = vdwg.mxu0
    %990 = vrot.lane.b32.xlu0 %v267, 48
    %v991 = vpop.permute.xlu0 %990
    %v993 = vsel %vm271, %v941, 0
    %v996 = vsel %vm400, %v991, 0
    %998 = vmatprep.subr.bf16.mxu0 0
    %999 = vmatpush1.bf16.msra.mxu0 0
    %1000 = vmatprep.subr.bf16.mxu0 0
    %1001 = vmatpush1.bf16.msra.mxu0 0
    %1002 = vmatprep.subr.bf16.mxu0 0
    %1003 = vmatpush1.bf16.msra.mxu0 0
    %1004 = vmatprep.subr.bf16.mxu0 0
    %1005 = vmatpush1.bf16.msra.mxu0 0
    %1006 = vmatprep.subr.bf16.mxu0 0
    %1007 = vmatpush1.bf16.msra.mxu0 0
    %1008 = vmatprep.subr.bf16.mxu0 0
    %1009 = vmatpush1.bf16.msra.mxu0 0
    %1010 = vmatprep.subr.bf16.mxu0 0
    %1011 = vmatpush1.bf16.msra.mxu0 0
    %1012 = vmatprep.subr.bf16.mxu0 0
    %1013 = vmatpush1.bf16.msra.mxu0 %v996
    %1014 = vmatprep.subr.bf16.mxu0 0
    %1015 = vmatpush2.bf16.msra.mxu0 0
    %1016 = vmatprep.subr.bf16.mxu0 0
    %1017 = vmatpush2.bf16.msra.mxu0 0
    %1018 = vmatprep.subr.bf16.mxu0 0
    %1019 = vmatpush2.bf16.msra.mxu0 0
    %1020 = vmatprep.subr.bf16.mxu0 0
    %1021 = vmatpush2.bf16.msra.mxu0 0
    %1022 = vmatprep.subr.bf16.mxu0 0
    %1023 = vmatpush2.bf16.msra.mxu0 0
    %1024 = vmatprep.subr.bf16.mxu0 0
    %1025 = vmatpush2.bf16.msra.mxu0 0
    %1026 = vmatprep.subr.bf16.mxu0 0
    %1027 = vmatpush2.bf16.msra.mxu0 0
    %1028 = vmatprep.subr.bf16.mxu0 0
    %1029 = vmatpush2.bf16.msra.mxu0 0
    %1030 = vmatprep.mubr.bf16.mxu0 0
    %1031 = vmatmul.mubr.bf16.gmra.mxu0 %v993
    %v1032 = vpop.f32.mrf.mxu0
    %v1033 = vadd.f32 0.0, %v1032
    %v1034 = vpop.f32.mrf.mxu0
    %v1035 = vpop.f32.mrf.mxu0
    %v1036 = vpop.f32.mrf.mxu0
    %1037 = vdwg.mxu0
    %v1038 = vpack.c.bf16 %v1033, %v985
    %v1039 = vpack.c.bf16 %v191, %v191
    %v1041 = vsel %vm271, %v1038, 0
    %v1044 = vsel %vm400, %v1039, 0
    %1046 = vmatprep.subr.bf16.mxu0 0
    %1047 = vmatpush1.bf16.msra.mxu0 0
    %1048 = vmatprep.subr.bf16.mxu0 0
    %1049 = vmatpush1.bf16.msra.mxu0 0
    %1050 = vmatprep.subr.bf16.mxu0 0
    %1051 = vmatpush1.bf16.msra.mxu0 0
    %1052 = vmatprep.subr.bf16.mxu0 0
    %1053 = vmatpush1.bf16.msra.mxu0 0
    %1054 = vmatprep.subr.bf16.mxu0 0
    %1055 = vmatpush1.bf16.msra.mxu0 0
    %1056 = vmatprep.subr.bf16.mxu0 0
    %1057 = vmatpush1.bf16.msra.mxu0 0
    %1058 = vmatprep.subr.bf16.mxu0 0
    %1059 = vmatpush1.bf16.msra.mxu0 0
    %1060 = vmatprep.subr.bf16.mxu0 0
    %1061 = vmatpush1.bf16.msra.mxu0 %v1044
    %1062 = vmatprep.subr.bf16.mxu0 0
    %1063 = vmatpush2.bf16.msra.mxu0 0
    %1064 = vmatprep.subr.bf16.mxu0 0
    %1065 = vmatpush2.bf16.msra.mxu0 0
    %1066 = vmatprep.subr.bf16.mxu0 0
    %1067 = vmatpush2.bf16.msra.mxu0 0
    %1068 = vmatprep.subr.bf16.mxu0 0
    %1069 = vmatpush2.bf16.msra.mxu0 0
    %1070 = vmatprep.subr.bf16.mxu0 0
    %1071 = vmatpush2.bf16.msra.mxu0 0
    %1072 = vmatprep.subr.bf16.mxu0 0
    %1073 = vmatpush2.bf16.msra.mxu0 0
    %1074 = vmatprep.subr.bf16.mxu0 0
    %1075 = vmatpush2.bf16.msra.mxu0 0
    %1076 = vmatprep.subr.bf16.mxu0 0
    %1077 = vmatpush2.bf16.msra.mxu0 0
    %1078 = vmatprep.mubr.bf16.mxu0 0
    %1079 = vmatmul.mubr.bf16.gmra.mxu0 %v1041
    %v1080 = vpop.f32.mrf.mxu0
    %v1081 = vadd.f32 0.0, %v1080
    %v1082 = vpop.f32.mrf.mxu0
    %v1083 = vpop.f32.mrf.mxu0
    %v1084 = vadd.f32 0.0, %v1083
    %v1085 = vpop.f32.mrf.mxu0
    %1086 = vdwg.mxu0
    %v1087 = vadd.f32 %v808, %v1081
    %v1088 = vadd.f32 %v811, %v1084
    %1089 = vrot.lane.b32.xlu0 %v266, 104
    %v1090 = vpop.permute.xlu0 %1089
    %1091 = vrot.lane.b32.xlu0 %v266, 72
    %v1092 = vpop.permute.xlu0 %1091
    %v1094 = vsel %vm271, %v1090, 0
    %v1097 = vsel %vm271, %v1092, 0
    %1099 = vmatprep.subr.bf16.mxu0 0
    %1100 = vmatpush1.bf16.xpose.msra.mxu0 0
    %1101 = vmatprep.subr.bf16.mxu0 0
    %1102 = vmatpush1.bf16.xpose.msra.mxu0 0
    %1103 = vmatprep.subr.bf16.mxu0 0
    %1104 = vmatpush1.bf16.xpose.msra.mxu0 0
    %1105 = vmatprep.subr.bf16.mxu0 0
    %1106 = vmatpush1.bf16.xpose.msra.mxu0 0
    %1107 = vmatprep.subr.bf16.mxu0 0
    %1108 = vmatpush1.bf16.xpose.msra.mxu0 0
    %1109 = vmatprep.subr.bf16.mxu0 0
    %1110 = vmatpush1.bf16.xpose.msra.mxu0 0
    %1111 = vmatprep.subr.bf16.mxu0 0
    %1112 = vmatpush1.bf16.xpose.msra.mxu0 0
    %1113 = vmatprep.subr.bf16.mxu0 0
    %1114 = vmatpush1.bf16.xpose.msra.mxu0 %v1097
    %1115 = vmatprep.subr.bf16.mxu0 0
    %1116 = vmatpush2.bf16.xpose.msra.mxu0 0
    %1117 = vmatprep.subr.bf16.mxu0 0
    %1118 = vmatpush2.bf16.xpose.msra.mxu0 0
    %1119 = vmatprep.subr.bf16.mxu0 0
    %1120 = vmatpush2.bf16.xpose.msra.mxu0 0
    %1121 = vmatprep.subr.bf16.mxu0 0
    %1122 = vmatpush2.bf16.xpose.msra.mxu0 0
    %1123 = vmatprep.subr.bf16.mxu0 0
    %1124 = vmatpush2.bf16.xpose.msra.mxu0 0
    %1125 = vmatprep.subr.bf16.mxu0 0
    %1126 = vmatpush2.bf16.xpose.msra.mxu0 0
    %1127 = vmatprep.subr.bf16.mxu0 0
    %1128 = vmatpush2.bf16.xpose.msra.mxu0 0
    %1129 = vmatprep.subr.bf16.mxu0 0
    %1130 = vmatpush2.bf16.xpose.msra.mxu0 0
    %1131 = vmatprep.mubr.bf16.mxu0 0
    %1132 = vmatmul.mubr.bf16.gmra.mxu0 %v1094
    %v1133 = vpop.f32.mrf.mxu0
    %v1134 = vadd.f32 0.0, %v1133
    %v1135 = vpop.f32.mrf.mxu0
    %v1136 = vpop.f32.mrf.mxu0
    %v1137 = vpop.f32.mrf.mxu0
    %1138 = vdwg.mxu0
    %1139 = vrot.lane.b32.xlu0 %v267, 104
    %v1140 = vpop.permute.xlu0 %1139
    %1141 = vrot.lane.b32.xlu0 %v267, 72
    %v1142 = vpop.permute.xlu0 %1141
    %v1144 = vsel %vm271, %v1140, 0
    %v1147 = vsel %vm271, %v1142, 0
    %1149 = vmatprep.subr.bf16.mxu0 0
    %1150 = vmatpush1.bf16.xpose.msra.mxu0 0
    %1151 = vmatprep.subr.bf16.mxu0 0
    %1152 = vmatpush1.bf16.xpose.msra.mxu0 0
    %1153 = vmatprep.subr.bf16.mxu0 0
    %1154 = vmatpush1.bf16.xpose.msra.mxu0 0
    %1155 = vmatprep.subr.bf16.mxu0 0
    %1156 = vmatpush1.bf16.xpose.msra.mxu0 0
    %1157 = vmatprep.subr.bf16.mxu0 0
    %1158 = vmatpush1.bf16.xpose.msra.mxu0 0
    %1159 = vmatprep.subr.bf16.mxu0 0
    %1160 = vmatpush1.bf16.xpose.msra.mxu0 0
    %1161 = vmatprep.subr.bf16.mxu0 0
    %1162 = vmatpush1.bf16.xpose.msra.mxu0 0
    %1163 = vmatprep.subr.bf16.mxu0 0
    %1164 = vmatpush1.bf16.xpose.msra.mxu0 %v1147
    %1165 = vmatprep.subr.bf16.mxu0 0
    %1166 = vmatpush2.bf16.xpose.msra.mxu0 0
    %1167 = vmatprep.subr.bf16.mxu0 0
    %1168 = vmatpush2.bf16.xpose.msra.mxu0 0
    %1169 = vmatprep.subr.bf16.mxu0 0
    %1170 = vmatpush2.bf16.xpose.msra.mxu0 0
    %1171 = vmatprep.subr.bf16.mxu0 0
    %1172 = vmatpush2.bf16.xpose.msra.mxu0 0
    %1173 = vmatprep.subr.bf16.mxu0 0
    %1174 = vmatpush2.bf16.xpose.msra.mxu0 0
    %1175 = vmatprep.subr.bf16.mxu0 0
    %1176 = vmatpush2.bf16.xpose.msra.mxu0 0
    %1177 = vmatprep.subr.bf16.mxu0 0
    %1178 = vmatpush2.bf16.xpose.msra.mxu0 0
    %1179 = vmatprep.subr.bf16.mxu0 0
    %1180 = vmatpush2.bf16.xpose.msra.mxu0 0
    %1181 = vmatprep.mubr.bf16.mxu0 0
    %1182 = vmatmul.mubr.bf16.gmra.mxu0 %v1144
    %v1183 = vpop.f32.mrf.mxu0
    %v1184 = vadd.f32 0.0, %v1183
    %v1185 = vpop.f32.mrf.mxu0
    %v1186 = vpop.f32.mrf.mxu0
    %v1187 = vpop.f32.mrf.mxu0
    %1188 = vdwg.mxu0
    %v1189 = vmul.f32 %v1134, 0.35355338
    %v1190 = vmul.f32 %v1184, 0.35355338
    %v1191 = vadd.f32 %v1189, %v176
    %v1192 = vadd.f32 %v1190, %v177
    %v1193 = vsel %vm271, %v1191, -inf
    %1194 = vmax.xlane.f32.xlu0 %v1193
    %v1195 = vpop.xlane.xlu0 %1194
    %v1196 = vsel %vm271, %v1192, -inf
    %1197 = vmax.xlane.f32.xlu0 %v1196
    %v1198 = vpop.xlane.xlu0 %1197
    %v1199 = vsub.f32 %v1191, %v1195
    %v1200 = vsub.f32 %v1192, %v1198
    %v1201 = vmul.f32 %v1199, 1.442695
    %v1202 = vpow.pop %v1201
    %v1203 = vmul.f32 %v1200, 1.442695
    %v1204 = vpow.pop %v1203
    %v1205 = vsel %vm271, %v1202, 0.0
    %1206 = vadd.xlane.f32.xlu0 %v1205
    %v1207 = vpop.xlane.xlu0 %1206
    %v1208 = vsel %vm271, %v1204, 0.0
    %1209 = vadd.xlane.f32.xlu0 %v1208
    %v1210 = vpop.xlane.xlu0 %1209
    %v1211 = vrcp.pop %v1207
    %v1212 = vrcp.pop %v1210
    %v1213 = vmul.f32 %v1202, %v1211
    %v1214 = vmul.f32 %v1204, %v1212
    %v1215 = vpack.c.bf16 %v1213, %v1213
    %v1216 = vpack.c.bf16 %v1214, %v1214
    %1217 = vrot.lane.b32.xlu0 %v266, 40
    %v1218 = vpop.permute.xlu0 %1217
    %v1220 = vsel %vm271, %v1215, 0
    %v1223 = vsel %vm400, %v1218, 0
    %1225 = vmatprep.subr.bf16.mxu0 0
    %1226 = vmatpush1.bf16.msra.mxu0 0
    %1227 = vmatprep.subr.bf16.mxu0 0
    %1228 = vmatpush1.bf16.msra.mxu0 0
    %1229 = vmatprep.subr.bf16.mxu0 0
    %1230 = vmatpush1.bf16.msra.mxu0 0
    %1231 = vmatprep.subr.bf16.mxu0 0
    %1232 = vmatpush1.bf16.msra.mxu0 0
    %1233 = vmatprep.subr.bf16.mxu0 0
    %1234 = vmatpush1.bf16.msra.mxu0 0
    %1235 = vmatprep.subr.bf16.mxu0 0
    %1236 = vmatpush1.bf16.msra.mxu0 0
    %1237 = vmatprep.subr.bf16.mxu0 0
    %1238 = vmatpush1.bf16.msra.mxu0 0
    %1239 = vmatprep.subr.bf16.mxu0 0
    %1240 = vmatpush1.bf16.msra.mxu0 %v1223
    %1241 = vmatprep.subr.bf16.mxu0 0
    %1242 = vmatpush2.bf16.msra.mxu0 0
    %1243 = vmatprep.subr.bf16.mxu0 0
    %1244 = vmatpush2.bf16.msra.mxu0 0
    %1245 = vmatprep.subr.bf16.mxu0 0
    %1246 = vmatpush2.bf16.msra.mxu0 0
    %1247 = vmatprep.subr.bf16.mxu0 0
    %1248 = vmatpush2.bf16.msra.mxu0 0
    %1249 = vmatprep.subr.bf16.mxu0 0
    %1250 = vmatpush2.bf16.msra.mxu0 0
    %1251 = vmatprep.subr.bf16.mxu0 0
    %1252 = vmatpush2.bf16.msra.mxu0 0
    %1253 = vmatprep.subr.bf16.mxu0 0
    %1254 = vmatpush2.bf16.msra.mxu0 0
    %1255 = vmatprep.subr.bf16.mxu0 0
    %1256 = vmatpush2.bf16.msra.mxu0 0
    %1257 = vmatprep.mubr.bf16.mxu0 0
    %1258 = vmatmul.mubr.bf16.gmra.mxu0 %v1220
    %v1259 = vpop.f32.mrf.mxu0
    %v1260 = vadd.f32 0.0, %v1259
    %v1261 = vpop.f32.mrf.mxu0
    %v1262 = vpop.f32.mrf.mxu0
    %v1263 = vpop.f32.mrf.mxu0
    %1264 = vdwg.mxu0
    %1265 = vrot.lane.b32.xlu0 %v267, 40
    %v1266 = vpop.permute.xlu0 %1265
    %v1268 = vsel %vm271, %v1216, 0
    %v1271 = vsel %vm400, %v1266, 0
    %1273 = vmatprep.subr.bf16.mxu0 0
    %1274 = vmatpush1.bf16.msra.mxu0 0
    %1275 = vmatprep.subr.bf16.mxu0 0
    %1276 = vmatpush1.bf16.msra.mxu0 0
    %1277 = vmatprep.subr.bf16.mxu0 0
    %1278 = vmatpush1.bf16.msra.mxu0 0
    %1279 = vmatprep.subr.bf16.mxu0 0
    %1280 = vmatpush1.bf16.msra.mxu0 0
    %1281 = vmatprep.subr.bf16.mxu0 0
    %1282 = vmatpush1.bf16.msra.mxu0 0
    %1283 = vmatprep.subr.bf16.mxu0 0
    %1284 = vmatpush1.bf16.msra.mxu0 0
    %1285 = vmatprep.subr.bf16.mxu0 0
    %1286 = vmatpush1.bf16.msra.mxu0 0
    %1287 = vmatprep.subr.bf16.mxu0 0
    %1288 = vmatpush1.bf16.msra.mxu0 %v1271
    %1289 = vmatprep.subr.bf16.mxu0 0
    %1290 = vmatpush2.bf16.msra.mxu0 0
    %1291 = vmatprep.subr.bf16.mxu0 0
    %1292 = vmatpush2.bf16.msra.mxu0 0
    %1293 = vmatprep.subr.bf16.mxu0 0
    %1294 = vmatpush2.bf16.msra.mxu0 0
    %1295 = vmatprep.subr.bf16.mxu0 0
    %1296 = vmatpush2.bf16.msra.mxu0 0
    %1297 = vmatprep.subr.bf16.mxu0 0
    %1298 = vmatpush2.bf16.msra.mxu0 0
    %1299 = vmatprep.subr.bf16.mxu0 0
    %1300 = vmatpush2.bf16.msra.mxu0 0
    %1301 = vmatprep.subr.bf16.mxu0 0
    %1302 = vmatpush2.bf16.msra.mxu0 0
    %1303 = vmatprep.subr.bf16.mxu0 0
    %1304 = vmatpush2.bf16.msra.mxu0 0
    %1305 = vmatprep.mubr.bf16.mxu0 0
    %1306 = vmatmul.mubr.bf16.gmra.mxu0 %v1268
    %v1307 = vpop.f32.mrf.mxu0
    %v1308 = vadd.f32 0.0, %v1307
    %v1309 = vpop.f32.mrf.mxu0
    %v1310 = vpop.f32.mrf.mxu0
    %v1311 = vpop.f32.mrf.mxu0
    %1312 = vdwg.mxu0
    %v1313 = vpack.c.bf16 %v1308, %v1260
    %v1314 = vpack.c.bf16 %v192, %v192
    %v1316 = vsel %vm271, %v1313, 0
    %v1319 = vsel %vm400, %v1314, 0
    %1321 = vmatprep.subr.bf16.mxu0 0
    %1322 = vmatpush1.bf16.msra.mxu0 0
    %1323 = vmatprep.subr.bf16.mxu0 0
    %1324 = vmatpush1.bf16.msra.mxu0 0
    %1325 = vmatprep.subr.bf16.mxu0 0
    %1326 = vmatpush1.bf16.msra.mxu0 0
    %1327 = vmatprep.subr.bf16.mxu0 0
    %1328 = vmatpush1.bf16.msra.mxu0 0
    %1329 = vmatprep.subr.bf16.mxu0 0
    %1330 = vmatpush1.bf16.msra.mxu0 0
    %1331 = vmatprep.subr.bf16.mxu0 0
    %1332 = vmatpush1.bf16.msra.mxu0 0
    %1333 = vmatprep.subr.bf16.mxu0 0
    %1334 = vmatpush1.bf16.msra.mxu0 0
    %1335 = vmatprep.subr.bf16.mxu0 0
    %1336 = vmatpush1.bf16.msra.mxu0 %v1319
    %1337 = vmatprep.subr.bf16.mxu0 0
    %1338 = vmatpush2.bf16.msra.mxu0 0
    %1339 = vmatprep.subr.bf16.mxu0 0
    %1340 = vmatpush2.bf16.msra.mxu0 0
    %1341 = vmatprep.subr.bf16.mxu0 0
    %1342 = vmatpush2.bf16.msra.mxu0 0
    %1343 = vmatprep.subr.bf16.mxu0 0
    %1344 = vmatpush2.bf16.msra.mxu0 0
    %1345 = vmatprep.subr.bf16.mxu0 0
    %1346 = vmatpush2.bf16.msra.mxu0 0
    %1347 = vmatprep.subr.bf16.mxu0 0
    %1348 = vmatpush2.bf16.msra.mxu0 0
    %1349 = vmatprep.subr.bf16.mxu0 0
    %1350 = vmatpush2.bf16.msra.mxu0 0
    %1351 = vmatprep.subr.bf16.mxu0 0
    %1352 = vmatpush2.bf16.msra.mxu0 0
    %1353 = vmatprep.mubr.bf16.mxu0 0
    %1354 = vmatmul.mubr.bf16.gmra.mxu0 %v1316
    %v1355 = vpop.f32.mrf.mxu0
    %v1356 = vadd.f32 0.0, %v1355
    %v1357 = vpop.f32.mrf.mxu0
    %v1358 = vpop.f32.mrf.mxu0
    %v1359 = vadd.f32 0.0, %v1358
    %v1360 = vpop.f32.mrf.mxu0
    %1361 = vdwg.mxu0
    %v1362 = vadd.f32 %v1087, %v1356
    %v1363 = vadd.f32 %v1088, %v1359
    %v1365 = vlaneseq
    %v1366 = vshrl.u32 %v1365, 7
    %v1367 = vsub.s32 0, %v1366
    %v1368 = vrot.slane %v193, %v1367
    %v1370 = vadd.f32 %v1362, %v1368
    %v1371 = vadd.f32 %v1363, %v1368
    %v1372 = vadd.f32 %v182, %v1370
    %v1373 = vadd.f32 %v183, %v1371
    %v1374 = vsel %vm221, %v1372, 0.0
    %1375 = vadd.xlane.f32.xlu0 %v1374
    %v1376 = vpop.xlane.xlu0 %1375
    %v1377 = vsel %vm221, %v1373, 0.0
    %1378 = vadd.xlane.f32.xlu0 %v1377
    %v1379 = vpop.xlane.xlu0 %1378
    %v1380 = vrcp.pop 32.0
    %v1381 = vmul.f32 %v1376, %v1380
    %v1382 = vmul.f32 %v1379, %v1380
    %v1383 = vsub.f32 %v1372, %v1381
    %v1384 = vsub.f32 %v1373, %v1382
    %v1385 = vmul.f32 %v1383, %v1383
    %v1386 = vmul.f32 %v1384, %v1384
    %v1387 = vsel %vm221, %v1385, 0.0
    %1388 = vadd.xlane.f32.xlu0 %v1387
    %v1389 = vpop.xlane.xlu0 %1388
    %v1390 = vsel %vm221, %v1386, 0.0
    %1391 = vadd.xlane.f32.xlu0 %v1390
    %v1392 = vpop.xlane.xlu0 %1391
    %v1393 = vmul.f32 %v1389, %v1380
    %v1394 = vmul.f32 %v1392, %v1380
    %v1395 = vadd.f32 %v1393, 1e-05
    %v1396 = vadd.f32 %v1394, 1e-05
    %v1397 = vrsqrt.pop %v1395
    %v1398 = vrsqrt.pop %v1396
    %v1399 = vmul.f32 %v1383, %v1397
    %v1400 = vmul.f32 %v1384, %v1398
    %v1402 = vlaneseq
    %v1403 = vshrl.u32 %v1402, 7
    %v1404 = vsub.s32 0, %v1403
    %v1405 = vrot.slane %v194, %v1404
    %v1407 = vmul.f32 %v1399, %v1405
    %v1408 = vmul.f32 %v1400, %v1405
    %v1410 = vlaneseq
    %v1411 = vshrl.u32 %v1410, 7
    %v1412 = vsub.s32 0, %v1411
    %v1413 = vrot.slane %v195, %v1412
    %v1415 = vadd.f32 %v1407, %v1413
    %v1416 = vadd.f32 %v1408, %v1413
    %v1417 = vpack.c.bf16 %v1416, %v1415
    %v1418 = vpack.c.bf16 %v197, %v196
    %v1419 = vpack.c.bf16 %v199, %v198
    %v1421 = vlaneseq
    %v1422 = vshrl.u32 %v1421, 7
    %v1423 = vsub.s32 0, %v1422
    %v1424 = vrot.slane %v200, %v1423
    %v1427 = vsel %vm221, %v1417, 0
    %1429 = vmatprep.subr.bf16.mxu0 0
    %1430 = vmatpush1.bf16.msra.mxu0 0
    %1431 = vmatprep.subr.bf16.mxu0 0
    %1432 = vmatpush1.bf16.msra.mxu0 0
    %1433 = vmatprep.subr.bf16.mxu0 0
    %1434 = vmatpush1.bf16.msra.mxu0 0
    %1435 = vmatprep.subr.bf16.mxu0 0
    %1436 = vmatpush1.bf16.msra.mxu0 0
    %1437 = vmatprep.subr.bf16.mxu0 0
    %1438 = vmatpush1.bf16.msra.mxu0 0
    %1439 = vmatprep.subr.bf16.mxu0 0
    %1440 = vmatpush1.bf16.msra.mxu0 0
    %1441 = vmatprep.subr.bf16.mxu0 0
    %1442 = vmatpush1.bf16.msra.mxu0 %v1419
    %1443 = vmatprep.subr.bf16.mxu0 0
    %1444 = vmatpush1.bf16.msra.mxu0 %v1418
    %1445 = vmatprep.subr.bf16.mxu0 0
    %1446 = vmatpush2.bf16.msra.mxu0 0
    %1447 = vmatprep.subr.bf16.mxu0 0
    %1448 = vmatpush2.bf16.msra.mxu0 0
    %1449 = vmatprep.subr.bf16.mxu0 0
    %1450 = vmatpush2.bf16.msra.mxu0 0
    %1451 = vmatprep.subr.bf16.mxu0 0
    %1452 = vmatpush2.bf16.msra.mxu0 0
    %1453 = vmatprep.subr.bf16.mxu0 0
    %1454 = vmatpush2.bf16.msra.mxu0 0
    %1455 = vmatprep.subr.bf16.mxu0 0
    %1456 = vmatpush2.bf16.msra.mxu0 0
    %1457 = vmatprep.subr.bf16.mxu0 0
    %1458 = vmatpush2.bf16.msra.mxu0 0
    %1459 = vmatprep.subr.bf16.mxu0 0
    %1460 = vmatpush2.bf16.msra.mxu0 0
    %1461 = vmatprep.mubr.bf16.mxu0 0
    %1462 = vmatmul.mubr.bf16.gmra.mxu0 %v1427
    %v1463 = vpop.f32.mrf.mxu0
    %v1464 = vadd.f32 %v1424, %v1463
    %v1465 = vpop.f32.mrf.mxu0
    %v1466 = vpop.f32.mrf.mxu0
    %v1467 = vadd.f32 %v1424, %v1466
    %v1468 = vpop.f32.mrf.mxu0
    %1469 = vdwg.mxu0
    %v1470 = vmax.f32 %v1464, 0.0
    %v1471 = vmax.f32 %v1467, 0.0
    %v1472 = vpack.c.bf16 %v1471, %v1470
    %v1473 = vpack.c.bf16 %v202, %v201
    %v1474 = vpack.c.bf16 %v204, %v203
    %v1475 = vpack.c.bf16 %v206, %v205
    %v1476 = vpack.c.bf16 %v208, %v207
    %v1478 = vlaneseq
    %v1479 = vshrl.u32 %v1478, 7
    %v1480 = vsub.s32 0, %v1479
    %v1481 = vrot.slane %v209, %v1480
    %vm1483 = vcmask 523264
    %v1485 = vsel %vm1483, %v1472, 0
    %1487 = vmatprep.subr.bf16.mxu0 0
    %1488 = vmatpush1.bf16.msra.mxu0 0
    %1489 = vmatprep.subr.bf16.mxu0 0
    %1490 = vmatpush1.bf16.msra.mxu0 0
    %1491 = vmatprep.subr.bf16.mxu0 0
    %1492 = vmatpush1.bf16.msra.mxu0 0
    %1493 = vmatprep.subr.bf16.mxu0 0
    %1494 = vmatpush1.bf16.msra.mxu0 0
    %1495 = vmatprep.subr.bf16.mxu0 0
    %1496 = vmatpush1.bf16.msra.mxu0 %v1476
    %1497 = vmatprep.subr.bf16.mxu0 0
    %1498 = vmatpush1.bf16.msra.mxu0 %v1475
    %1499 = vmatprep.subr.bf16.mxu0 0
    %1500 = vmatpush1.bf16.msra.mxu0 %v1474
    %1501 = vmatprep.subr.bf16.mxu0 0
    %1502 = vmatpush1.bf16.msra.mxu0 %v1473
    %1503 = vmatprep.subr.bf16.mxu0 0
    %1504 = vmatpush2.bf16.msra.mxu0 0
    %1505 = vmatprep.subr.bf16.mxu0 0
    %1506 = vmatpush2.bf16.msra.mxu0 0
    %1507 = vmatprep.subr.bf16.mxu0 0
    %1508 = vmatpush2.bf16.msra.mxu0 0
    %1509 = vmatprep.subr.bf16.mxu0 0
    %1510 = vmatpush2.bf16.msra.mxu0 0
    %1511 = vmatprep.subr.bf16.mxu0 0
    %1512 = vmatpush2.bf16.msra.mxu0 0
    %1513 = vmatprep.subr.bf16.mxu0 0
    %1514 = vmatpush2.bf16.msra.mxu0 0
    %1515 = vmatprep.subr.bf16.mxu0 0
    %1516 = vmatpush2.bf16.msra.mxu0 0
    %1517 = vmatprep.subr.bf16.mxu0 0
    %1518 = vmatpush2.bf16.msra.mxu0 0
    %1519 = vmatprep.mubr.bf16.mxu0 0
    %1520 = vmatmul.mubr.bf16.gmra.mxu0 %v1485
    %v1521 = vpop.f32.mrf.mxu0
    %v1522 = vadd.f32 %v1481, %v1521
    %v1523 = vpop.f32.mrf.mxu0
    %v1524 = vpop.f32.mrf.mxu0
    %v1525 = vadd.f32 %v1481, %v1524
    %v1526 = vpop.f32.mrf.mxu0
    %1527 = vdwg.mxu0
    %v1528 = vadd.f32 %v1415, %v1522
    %v1529 = vadd.f32 %v1416, %v1525
    %v1530 = vsel %vm221, %v1528, 0.0
    %1531 = vadd.xlane.f32.xlu0 %v1530
    %v1532 = vpop.xlane.xlu0 %1531
    %v1533 = vsel %vm221, %v1529, 0.0
    %1534 = vadd.xlane.f32.xlu0 %v1533
    %v1535 = vpop.xlane.xlu0 %1534
    %v1536 = vmul.f32 %v1532, %v1380
    %v1537 = vmul.f32 %v1535, %v1380
    %v1538 = vsub.f32 %v1528, %v1536
    %v1539 = vsub.f32 %v1529, %v1537
    %v1540 = vmul.f32 %v1538, %v1538
    %v1541 = vmul.f32 %v1539, %v1539
    %v1542 = vsel %vm221, %v1540, 0.0
    %1543 = vadd.xlane.f32.xlu0 %v1542
    %v1544 = vpop.xlane.xlu0 %1543
    %v1545 = vsel %vm221, %v1541, 0.0
    %1546 = vadd.xlane.f32.xlu0 %v1545
    %v1547 = vpop.xlane.xlu0 %1546
    %v1548 = vmul.f32 %v1544, %v1380
    %v1549 = vmul.f32 %v1547, %v1380
    %v1550 = vadd.f32 %v1548, 1e-05
    %v1551 = vadd.f32 %v1549, 1e-05
    %v1552 = vrsqrt.pop %v1550
    %v1553 = vrsqrt.pop %v1551
    %v1554 = vmul.f32 %v1538, %v1552
    %v1555 = vmul.f32 %v1539, %v1553
    %v1557 = vlaneseq
    %v1558 = vshrl.u32 %v1557, 7
    %v1559 = vsub.s32 0, %v1558
    %v1560 = vrot.slane %v210, %v1559
    %v1562 = vmul.f32 %v1554, %v1560
    %v1563 = vmul.f32 %v1555, %v1560
    %v1565 = vlaneseq
    %v1566 = vshrl.u32 %v1565, 7
    %v1567 = vsub.s32 0, %v1566
    %v1568 = vrot.slane %v211, %v1567
    %v1570 = vadd.f32 %v1562, %v1568
    %v1571 = vadd.f32 %v1563, %v1568
    %s1572 = scalar_lea.vmem %s7, 32
    %v1573 = vld [vmem:[%s1572] sm:$0xff]
    %v1574 = vld [vmem:[%s1572 + $0x8] sm:$0xff]
    %v1575 = vld [vmem:[%s1572 + $0x10] sm:$0xff]
    %v1576 = vld [vmem:[%s1572 + $0x18] sm:$0xff]
    %s1577 = scalar_lea.vmem %s9, 1
    %v1578 = vld [vmem:[%s1577] sm:$0x1]
    %s1579 = scalar_lea.vmem %s11, 32
    %v1580 = vld [vmem:[%s1579] sm:$0xff]
    %v1581 = vld [vmem:[%s1579 + $0x8] sm:$0xff]
    %v1582 = vld [vmem:[%s1579 + $0x10] sm:$0xff]
    %v1583 = vld [vmem:[%s1579 + $0x18] sm:$0xff]
    %s1584 = scalar_lea.vmem %s13, 1
    %v1585 = vld [vmem:[%s1584] sm:$0x1]
    %s1586 = scalar_lea.vmem %s15, 1
    %v1587 = vld [vmem:[%s1586] sm:$0x1]
    %s1588 = scalar_lea.vmem %s17, 1
    %v1589 = vld [vmem:[%s1588] sm:$0x1]
    %s1590 = scalar_lea.vmem %s19, 32
    %v1591 = vld [vmem:[%s1590] sm:$0xff]
    %v1592 = vld [vmem:[%s1590 + $0x8] sm:$0xff]
    %v1593 = vld [vmem:[%s1590 + $0x10] sm:$0xff]
    %v1594 = vld [vmem:[%s1590 + $0x18] sm:$0xff]
    %s1595 = scalar_lea.vmem %s21, 1
    %v1596 = vld [vmem:[%s1595] sm:$0x1]
    %s1597 = scalar_lea.vmem %s23, 64
    %v1598 = vld [vmem:[%s1597] sm:$0xff]
    %v1599 = vld [vmem:[%s1597 + $0x8] sm:$0xff]
    %v1600 = vld [vmem:[%s1597 + $0x10] sm:$0xff]
    %v1601 = vld [vmem:[%s1597 + $0x18] sm:$0xff]
    %v1602 = vld [vmem:[%s1597 + $0x20] sm:$0xff]
    %v1603 = vld [vmem:[%s1597 + $0x28] sm:$0xff]
    %v1604 = vld [vmem:[%s1597 + $0x30] sm:$0xff]
    %v1605 = vld [vmem:[%s1597 + $0x38] sm:$0xff]
    %s1606 = scalar_lea.vmem %s25, 1
    %v1607 = vld [vmem:[%s1606] sm:$0x1]
    %s1608 = scalar_lea.vmem %s27, 1
    %v1609 = vld [vmem:[%s1608] sm:$0x1]
    %s1610 = scalar_lea.vmem %s29, 1
    %v1611 = vld [vmem:[%s1610] sm:$0x1]
    %v1612 = vpack.c.bf16 %v1571, %v1570
    %v1613 = vpack.c.bf16 %v1574, %v1573
    %v1614 = vpack.c.bf16 %v1576, %v1575
    %v1616 = vlaneseq
    %v1617 = vshrl.u32 %v1616, 7
    %v1618 = vsub.s32 0, %v1617
    %v1619 = vrot.slane %v1578, %v1618
    %v1622 = vsel %vm221, %v1612, 0
    %1624 = vmatprep.subr.bf16.mxu0 0
    %1625 = vmatpush1.bf16.msra.mxu0 0
    %1626 = vmatprep.subr.bf16.mxu0 0
    %1627 = vmatpush1.bf16.msra.mxu0 0
    %1628 = vmatprep.subr.bf16.mxu0 0
    %1629 = vmatpush1.bf16.msra.mxu0 0
    %1630 = vmatprep.subr.bf16.mxu0 0
    %1631 = vmatpush1.bf16.msra.mxu0 0
    %1632 = vmatprep.subr.bf16.mxu0 0
    %1633 = vmatpush1.bf16.msra.mxu0 0
    %1634 = vmatprep.subr.bf16.mxu0 0
    %1635 = vmatpush1.bf16.msra.mxu0 0
    %1636 = vmatprep.subr.bf16.mxu0 0
    %1637 = vmatpush1.bf16.msra.mxu0 %v1614
    %1638 = vmatprep.subr.bf16.mxu0 0
    %1639 = vmatpush1.bf16.msra.mxu0 %v1613
    %1640 = vmatprep.subr.bf16.mxu0 0
    %1641 = vmatpush2.bf16.msra.mxu0 0
    %1642 = vmatprep.subr.bf16.mxu0 0
    %1643 = vmatpush2.bf16.msra.mxu0 0
    %1644 = vmatprep.subr.bf16.mxu0 0
    %1645 = vmatpush2.bf16.msra.mxu0 0
    %1646 = vmatprep.subr.bf16.mxu0 0
    %1647 = vmatpush2.bf16.msra.mxu0 0
    %1648 = vmatprep.subr.bf16.mxu0 0
    %1649 = vmatpush2.bf16.msra.mxu0 0
    %1650 = vmatprep.subr.bf16.mxu0 0
    %1651 = vmatpush2.bf16.msra.mxu0 0
    %1652 = vmatprep.subr.bf16.mxu0 0
    %1653 = vmatpush2.bf16.msra.mxu0 0
    %1654 = vmatprep.subr.bf16.mxu0 0
    %1655 = vmatpush2.bf16.msra.mxu0 0
    %1656 = vmatprep.mubr.bf16.mxu0 0
    %1657 = vmatmul.mubr.bf16.gmra.mxu0 %v1622
    %v1658 = vpop.f32.mrf.mxu0
    %v1659 = vadd.f32 %v1619, %v1658
    %v1660 = vpop.f32.mrf.mxu0
    %v1661 = vpop.f32.mrf.mxu0
    %v1662 = vadd.f32 %v1619, %v1661
    %v1663 = vpop.f32.mrf.mxu0
    %1664 = vdwg.mxu0
    %v1665 = vpack.c.bf16 %v1659, %v1659
    %v1666 = vpack.c.bf16 %v1662, %v1662
    %1668 = vrot.lane.b32.xlu0 %v1665, 96
    %v1669 = vpop.permute.xlu0 %1668
    %v1671 = vsel %vm271, %v1665, 0
    %v1674 = vsel %vm271, %v1669, 0
    %1676 = vmatprep.subr.bf16.mxu0 0
    %1677 = vmatpush1.bf16.xpose.msra.mxu0 0
    %1678 = vmatprep.subr.bf16.mxu0 0
    %1679 = vmatpush1.bf16.xpose.msra.mxu0 0
    %1680 = vmatprep.subr.bf16.mxu0 0
    %1681 = vmatpush1.bf16.xpose.msra.mxu0 0
    %1682 = vmatprep.subr.bf16.mxu0 0
    %1683 = vmatpush1.bf16.xpose.msra.mxu0 0
    %1684 = vmatprep.subr.bf16.mxu0 0
    %1685 = vmatpush1.bf16.xpose.msra.mxu0 0
    %1686 = vmatprep.subr.bf16.mxu0 0
    %1687 = vmatpush1.bf16.xpose.msra.mxu0 0
    %1688 = vmatprep.subr.bf16.mxu0 0
    %1689 = vmatpush1.bf16.xpose.msra.mxu0 0
    %1690 = vmatprep.subr.bf16.mxu0 0
    %1691 = vmatpush1.bf16.xpose.msra.mxu0 %v1674
    %1692 = vmatprep.subr.bf16.mxu0 0
    %1693 = vmatpush2.bf16.xpose.msra.mxu0 0
    %1694 = vmatprep.subr.bf16.mxu0 0
    %1695 = vmatpush2.bf16.xpose.msra.mxu0 0
    %1696 = vmatprep.subr.bf16.mxu0 0
    %1697 = vmatpush2.bf16.xpose.msra.mxu0 0
    %1698 = vmatprep.subr.bf16.mxu0 0
    %1699 = vmatpush2.bf16.xpose.msra.mxu0 0
    %1700 = vmatprep.subr.bf16.mxu0 0
    %1701 = vmatpush2.bf16.xpose.msra.mxu0 0
    %1702 = vmatprep.subr.bf16.mxu0 0
    %1703 = vmatpush2.bf16.xpose.msra.mxu0 0
    %1704 = vmatprep.subr.bf16.mxu0 0
    %1705 = vmatpush2.bf16.xpose.msra.mxu0 0
    %1706 = vmatprep.subr.bf16.mxu0 0
    %1707 = vmatpush2.bf16.xpose.msra.mxu0 0
    %1708 = vmatprep.mubr.bf16.mxu0 0
    %1709 = vmatmul.mubr.bf16.gmra.mxu0 %v1671
    %v1710 = vpop.f32.mrf.mxu0
    %v1711 = vadd.f32 0.0, %v1710
    %v1712 = vpop.f32.mrf.mxu0
    %v1713 = vpop.f32.mrf.mxu0
    %v1714 = vpop.f32.mrf.mxu0
    %1715 = vdwg.mxu0
    %1717 = vrot.lane.b32.xlu0 %v1666, 96
    %v1718 = vpop.permute.xlu0 %1717
    %v1720 = vsel %vm271, %v1666, 0
    %v1723 = vsel %vm271, %v1718, 0
    %1725 = vmatprep.subr.bf16.mxu0 0
    %1726 = vmatpush1.bf16.xpose.msra.mxu0 0
    %1727 = vmatprep.subr.bf16.mxu0 0
    %1728 = vmatpush1.bf16.xpose.msra.mxu0 0
    %1729 = vmatprep.subr.bf16.mxu0 0
    %1730 = vmatpush1.bf16.xpose.msra.mxu0 0
    %1731 = vmatprep.subr.bf16.mxu0 0
    %1732 = vmatpush1.bf16.xpose.msra.mxu0 0
    %1733 = vmatprep.subr.bf16.mxu0 0
    %1734 = vmatpush1.bf16.xpose.msra.mxu0 0
    %1735 = vmatprep.subr.bf16.mxu0 0
    %1736 = vmatpush1.bf16.xpose.msra.mxu0 0
    %1737 = vmatprep.subr.bf16.mxu0 0
    %1738 = vmatpush1.bf16.xpose.msra.mxu0 0
    %1739 = vmatprep.subr.bf16.mxu0 0
    %1740 = vmatpush1.bf16.xpose.msra.mxu0 %v1723
    %1741 = vmatprep.subr.bf16.mxu0 0
    %1742 = vmatpush2.bf16.xpose.msra.mxu0 0
    %1743 = vmatprep.subr.bf16.mxu0 0
    %1744 = vmatpush2.bf16.xpose.msra.mxu0 0
    %1745 = vmatprep.subr.bf16.mxu0 0
    %1746 = vmatpush2.bf16.xpose.msra.mxu0 0
    %1747 = vmatprep.subr.bf16.mxu0 0
    %1748 = vmatpush2.bf16.xpose.msra.mxu0 0
    %1749 = vmatprep.subr.bf16.mxu0 0
    %1750 = vmatpush2.bf16.xpose.msra.mxu0 0
    %1751 = vmatprep.subr.bf16.mxu0 0
    %1752 = vmatpush2.bf16.xpose.msra.mxu0 0
    %1753 = vmatprep.subr.bf16.mxu0 0
    %1754 = vmatpush2.bf16.xpose.msra.mxu0 0
    %1755 = vmatprep.subr.bf16.mxu0 0
    %1756 = vmatpush2.bf16.xpose.msra.mxu0 0
    %1757 = vmatprep.mubr.bf16.mxu0 0
    %1758 = vmatmul.mubr.bf16.gmra.mxu0 %v1720
    %v1759 = vpop.f32.mrf.mxu0
    %v1760 = vadd.f32 0.0, %v1759
    %v1761 = vpop.f32.mrf.mxu0
    %v1762 = vpop.f32.mrf.mxu0
    %v1763 = vpop.f32.mrf.mxu0
    %1764 = vdwg.mxu0
    %v1765 = vmul.f32 %v1711, 0.35355338
    %v1766 = vmul.f32 %v1760, 0.35355338
    %v1767 = vadd.f32 %v1765, %v176
    %v1768 = vadd.f32 %v1766, %v177
    %v1769 = vsel %vm271, %v1767, -inf
    %1770 = vmax.xlane.f32.xlu0 %v1769
    %v1771 = vpop.xlane.xlu0 %1770
    %v1772 = vsel %vm271, %v1768, -inf
    %1773 = vmax.xlane.f32.xlu0 %v1772
    %v1774 = vpop.xlane.xlu0 %1773
    %v1775 = vsub.f32 %v1767, %v1771
    %v1776 = vsub.f32 %v1768, %v1774
    %v1777 = vmul.f32 %v1775, 1.442695
    %v1778 = vpow.pop %v1777
    %v1779 = vmul.f32 %v1776, 1.442695
    %v1780 = vpow.pop %v1779
    %v1781 = vsel %vm271, %v1778, 0.0
    %1782 = vadd.xlane.f32.xlu0 %v1781
    %v1783 = vpop.xlane.xlu0 %1782
    %v1784 = vsel %vm271, %v1780, 0.0
    %1785 = vadd.xlane.f32.xlu0 %v1784
    %v1786 = vpop.xlane.xlu0 %1785
    %v1787 = vrcp.pop %v1783
    %v1788 = vrcp.pop %v1786
    %v1789 = vmul.f32 %v1778, %v1787
    %v1790 = vmul.f32 %v1780, %v1788
    %v1791 = vpack.c.bf16 %v1789, %v1789
    %v1792 = vpack.c.bf16 %v1790, %v1790
    %1793 = vrot.lane.b32.xlu0 %v1665, 64
    %v1794 = vpop.permute.xlu0 %1793
    %v1796 = vsel %vm271, %v1791, 0
    %v1799 = vsel %vm400, %v1794, 0
    %1801 = vmatprep.subr.bf16.mxu0 0
    %1802 = vmatpush1.bf16.msra.mxu0 0
    %1803 = vmatprep.subr.bf16.mxu0 0
    %1804 = vmatpush1.bf16.msra.mxu0 0
    %1805 = vmatprep.subr.bf16.mxu0 0
    %1806 = vmatpush1.bf16.msra.mxu0 0
    %1807 = vmatprep.subr.bf16.mxu0 0
    %1808 = vmatpush1.bf16.msra.mxu0 0
    %1809 = vmatprep.subr.bf16.mxu0 0
    %1810 = vmatpush1.bf16.msra.mxu0 0
    %1811 = vmatprep.subr.bf16.mxu0 0
    %1812 = vmatpush1.bf16.msra.mxu0 0
    %1813 = vmatprep.subr.bf16.mxu0 0
    %1814 = vmatpush1.bf16.msra.mxu0 0
    %1815 = vmatprep.subr.bf16.mxu0 0
    %1816 = vmatpush1.bf16.msra.mxu0 %v1799
    %1817 = vmatprep.subr.bf16.mxu0 0
    %1818 = vmatpush2.bf16.msra.mxu0 0
    %1819 = vmatprep.subr.bf16.mxu0 0
    %1820 = vmatpush2.bf16.msra.mxu0 0
    %1821 = vmatprep.subr.bf16.mxu0 0
    %1822 = vmatpush2.bf16.msra.mxu0 0
    %1823 = vmatprep.subr.bf16.mxu0 0
    %1824 = vmatpush2.bf16.msra.mxu0 0
    %1825 = vmatprep.subr.bf16.mxu0 0
    %1826 = vmatpush2.bf16.msra.mxu0 0
    %1827 = vmatprep.subr.bf16.mxu0 0
    %1828 = vmatpush2.bf16.msra.mxu0 0
    %1829 = vmatprep.subr.bf16.mxu0 0
    %1830 = vmatpush2.bf16.msra.mxu0 0
    %1831 = vmatprep.subr.bf16.mxu0 0
    %1832 = vmatpush2.bf16.msra.mxu0 0
    %1833 = vmatprep.mubr.bf16.mxu0 0
    %1834 = vmatmul.mubr.bf16.gmra.mxu0 %v1796
    %v1835 = vpop.f32.mrf.mxu0
    %v1836 = vadd.f32 0.0, %v1835
    %v1837 = vpop.f32.mrf.mxu0
    %v1838 = vpop.f32.mrf.mxu0
    %v1839 = vpop.f32.mrf.mxu0
    %1840 = vdwg.mxu0
    %1841 = vrot.lane.b32.xlu0 %v1666, 64
    %v1842 = vpop.permute.xlu0 %1841
    %v1844 = vsel %vm271, %v1792, 0
    %v1847 = vsel %vm400, %v1842, 0
    %1849 = vmatprep.subr.bf16.mxu0 0
    %1850 = vmatpush1.bf16.msra.mxu0 0
    %1851 = vmatprep.subr.bf16.mxu0 0
    %1852 = vmatpush1.bf16.msra.mxu0 0
    %1853 = vmatprep.subr.bf16.mxu0 0
    %1854 = vmatpush1.bf16.msra.mxu0 0
    %1855 = vmatprep.subr.bf16.mxu0 0
    %1856 = vmatpush1.bf16.msra.mxu0 0
    %1857 = vmatprep.subr.bf16.mxu0 0
    %1858 = vmatpush1.bf16.msra.mxu0 0
    %1859 = vmatprep.subr.bf16.mxu0 0
    %1860 = vmatpush1.bf16.msra.mxu0 0
    %1861 = vmatprep.subr.bf16.mxu0 0
    %1862 = vmatpush1.bf16.msra.mxu0 0
    %1863 = vmatprep.subr.bf16.mxu0 0
    %1864 = vmatpush1.bf16.msra.mxu0 %v1847
    %1865 = vmatprep.subr.bf16.mxu0 0
    %1866 = vmatpush2.bf16.msra.mxu0 0
    %1867 = vmatprep.subr.bf16.mxu0 0
    %1868 = vmatpush2.bf16.msra.mxu0 0
    %1869 = vmatprep.subr.bf16.mxu0 0
    %1870 = vmatpush2.bf16.msra.mxu0 0
    %1871 = vmatprep.subr.bf16.mxu0 0
    %1872 = vmatpush2.bf16.msra.mxu0 0
    %1873 = vmatprep.subr.bf16.mxu0 0
    %1874 = vmatpush2.bf16.msra.mxu0 0
    %1875 = vmatprep.subr.bf16.mxu0 0
    %1876 = vmatpush2.bf16.msra.mxu0 0
    %1877 = vmatprep.subr.bf16.mxu0 0
    %1878 = vmatpush2.bf16.msra.mxu0 0
    %1879 = vmatprep.subr.bf16.mxu0 0
    %1880 = vmatpush2.bf16.msra.mxu0 0
    %1881 = vmatprep.mubr.bf16.mxu0 0
    %1882 = vmatmul.mubr.bf16.gmra.mxu0 %v1844
    %v1883 = vpop.f32.mrf.mxu0
    %v1884 = vadd.f32 0.0, %v1883
    %v1885 = vpop.f32.mrf.mxu0
    %v1886 = vpop.f32.mrf.mxu0
    %v1887 = vpop.f32.mrf.mxu0
    %1888 = vdwg.mxu0
    %v1889 = vpack.c.bf16 %v1884, %v1836
    %v1890 = vpack.c.bf16 %v1580, %v1580
    %1891 = vrot.lane.b32.xlu0 %v1665, 120
    %v1892 = vpop.permute.xlu0 %1891
    %1893 = vrot.lane.b32.xlu0 %v1665, 88
    %v1894 = vpop.permute.xlu0 %1893
    %v1896 = vsel %vm271, %v1892, 0
    %v1899 = vsel %vm271, %v1894, 0
    %1901 = vmatprep.subr.bf16.mxu0 0
    %1902 = vmatpush1.bf16.xpose.msra.mxu0 0
    %1903 = vmatprep.subr.bf16.mxu0 0
    %1904 = vmatpush1.bf16.xpose.msra.mxu0 0
    %1905 = vmatprep.subr.bf16.mxu0 0
    %1906 = vmatpush1.bf16.xpose.msra.mxu0 0
    %1907 = vmatprep.subr.bf16.mxu0 0
    %1908 = vmatpush1.bf16.xpose.msra.mxu0 0
    %1909 = vmatprep.subr.bf16.mxu0 0
    %1910 = vmatpush1.bf16.xpose.msra.mxu0 0
    %1911 = vmatprep.subr.bf16.mxu0 0
    %1912 = vmatpush1.bf16.xpose.msra.mxu0 0
    %1913 = vmatprep.subr.bf16.mxu0 0
    %1914 = vmatpush1.bf16.xpose.msra.mxu0 0
    %1915 = vmatprep.subr.bf16.mxu0 0
    %1916 = vmatpush1.bf16.xpose.msra.mxu0 %v1899
    %1917 = vmatprep.subr.bf16.mxu0 0
    %1918 = vmatpush2.bf16.xpose.msra.mxu0 0
    %1919 = vmatprep.subr.bf16.mxu0 0
    %1920 = vmatpush2.bf16.xpose.msra.mxu0 0
    %1921 = vmatprep.subr.bf16.mxu0 0
    %1922 = vmatpush2.bf16.xpose.msra.mxu0 0
    %1923 = vmatprep.subr.bf16.mxu0 0
    %1924 = vmatpush2.bf16.xpose.msra.mxu0 0
    %1925 = vmatprep.subr.bf16.mxu0 0
    %1926 = vmatpush2.bf16.xpose.msra.mxu0 0
    %1927 = vmatprep.subr.bf16.mxu0 0
    %1928 = vmatpush2.bf16.xpose.msra.mxu0 0
    %1929 = vmatprep.subr.bf16.mxu0 0
    %1930 = vmatpush2.bf16.xpose.msra.mxu0 0
    %1931 = vmatprep.subr.bf16.mxu0 0
    %1932 = vmatpush2.bf16.xpose.msra.mxu0 0
    %1933 = vmatprep.mubr.bf16.mxu0 0
    %1934 = vmatmul.mubr.bf16.gmra.mxu0 %v1896
    %v1935 = vpop.f32.mrf.mxu0
    %v1936 = vadd.f32 0.0, %v1935
    %v1937 = vpop.f32.mrf.mxu0
    %v1938 = vpop.f32.mrf.mxu0
    %v1939 = vpop.f32.mrf.mxu0
    %1940 = vdwg.mxu0
    %1941 = vrot.lane.b32.xlu0 %v1666, 120
    %v1942 = vpop.permute.xlu0 %1941
    %1943 = vrot.lane.b32.xlu0 %v1666, 88
    %v1944 = vpop.permute.xlu0 %1943
    %v1946 = vsel %vm271, %v1942, 0
    %v1949 = vsel %vm271, %v1944, 0
    %1951 = vmatprep.subr.bf16.mxu0 0
    %1952 = vmatpush1.bf16.xpose.msra.mxu0 0
    %1953 = vmatprep.subr.bf16.mxu0 0
    %1954 = vmatpush1.bf16.xpose.msra.mxu0 0
    %1955 = vmatprep.subr.bf16.mxu0 0
    %1956 = vmatpush1.bf16.xpose.msra.mxu0 0
    %1957 = vmatprep.subr.bf16.mxu0 0
    %1958 = vmatpush1.bf16.xpose.msra.mxu0 0
    %1959 = vmatprep.subr.bf16.mxu0 0
    %1960 = vmatpush1.bf16.xpose.msra.mxu0 0
    %1961 = vmatprep.subr.bf16.mxu0 0
    %1962 = vmatpush1.bf16.xpose.msra.mxu0 0
    %1963 = vmatprep.subr.bf16.mxu0 0
    %1964 = vmatpush1.bf16.xpose.msra.mxu0 0
    %1965 = vmatprep.subr.bf16.mxu0 0
    %1966 = vmatpush1.bf16.xpose.msra.mxu0 %v1949
    %1967 = vmatprep.subr.bf16.mxu0 0
    %1968 = vmatpush2.bf16.xpose.msra.mxu0 0
    %1969 = vmatprep.subr.bf16.mxu0 0
    %1970 = vmatpush2.bf16.xpose.msra.mxu0 0
    %1971 = vmatprep.subr.bf16.mxu0 0
    %1972 = vmatpush2.bf16.xpose.msra.mxu0 0
    %1973 = vmatprep.subr.bf16.mxu0 0
    %1974 = vmatpush2.bf16.xpose.msra.mxu0 0
    %1975 = vmatprep.subr.bf16.mxu0 0
    %1976 = vmatpush2.bf16.xpose.msra.mxu0 0
    %1977 = vmatprep.subr.bf16.mxu0 0
    %1978 = vmatpush2.bf16.xpose.msra.mxu0 0
    %1979 = vmatprep.subr.bf16.mxu0 0
    %1980 = vmatpush2.bf16.xpose.msra.mxu0 0
    %1981 = vmatprep.subr.bf16.mxu0 0
    %1982 = vmatpush2.bf16.xpose.msra.mxu0 0
    %1983 = vmatprep.mubr.bf16.mxu0 0
    %1984 = vmatmul.mubr.bf16.gmra.mxu0 %v1946
    %v1985 = vpop.f32.mrf.mxu0
    %v1986 = vadd.f32 0.0, %v1985
    %v1987 = vpop.f32.mrf.mxu0
    %v1988 = vpop.f32.mrf.mxu0
    %v1989 = vpop.f32.mrf.mxu0
    %1990 = vdwg.mxu0
    %v1991 = vmul.f32 %v1936, 0.35355338
    %v1992 = vmul.f32 %v1986, 0.35355338
    %v1993 = vadd.f32 %v1991, %v176
    %v1994 = vadd.f32 %v1992, %v177
    %v1995 = vsel %vm271, %v1993, -inf
    %1996 = vmax.xlane.f32.xlu0 %v1995
    %v1997 = vpop.xlane.xlu0 %1996
    %v1998 = vsel %vm271, %v1994, -inf
    %1999 = vmax.xlane.f32.xlu0 %v1998
    %v2000 = vpop.xlane.xlu0 %1999
    %v2001 = vsub.f32 %v1993, %v1997
    %v2002 = vsub.f32 %v1994, %v2000
    %v2003 = vmul.f32 %v2001, 1.442695
    %v2004 = vpow.pop %v2003
    %v2005 = vmul.f32 %v2002, 1.442695
    %v2006 = vpow.pop %v2005
    %v2007 = vsel %vm271, %v2004, 0.0
    %2008 = vadd.xlane.f32.xlu0 %v2007
    %v2009 = vpop.xlane.xlu0 %2008
    %v2010 = vsel %vm271, %v2006, 0.0
    %2011 = vadd.xlane.f32.xlu0 %v2010
    %v2012 = vpop.xlane.xlu0 %2011
    %v2013 = vrcp.pop %v2009
    %v2014 = vrcp.pop %v2012
    %v2015 = vmul.f32 %v2004, %v2013
    %v2016 = vmul.f32 %v2006, %v2014
    %v2017 = vpack.c.bf16 %v2015, %v2015
    %v2018 = vpack.c.bf16 %v2016, %v2016
    %2019 = vrot.lane.b32.xlu0 %v1665, 56
    %v2020 = vpop.permute.xlu0 %2019
    %v2022 = vsel %vm271, %v2017, 0
    %v2025 = vsel %vm400, %v2020, 0
    %2027 = vmatprep.subr.bf16.mxu0 0
    %2028 = vmatpush1.bf16.msra.mxu0 0
    %2029 = vmatprep.subr.bf16.mxu0 0
    %2030 = vmatpush1.bf16.msra.mxu0 0
    %2031 = vmatprep.subr.bf16.mxu0 0
    %2032 = vmatpush1.bf16.msra.mxu0 0
    %2033 = vmatprep.subr.bf16.mxu0 0
    %2034 = vmatpush1.bf16.msra.mxu0 0
    %2035 = vmatprep.subr.bf16.mxu0 0
    %2036 = vmatpush1.bf16.msra.mxu0 0
    %2037 = vmatprep.subr.bf16.mxu0 0
    %2038 = vmatpush1.bf16.msra.mxu0 0
    %2039 = vmatprep.subr.bf16.mxu0 0
    %2040 = vmatpush1.bf16.msra.mxu0 0
    %2041 = vmatprep.subr.bf16.mxu0 0
    %2042 = vmatpush1.bf16.msra.mxu0 %v2025
    %2043 = vmatprep.subr.bf16.mxu0 0
    %2044 = vmatpush2.bf16.msra.mxu0 0
    %2045 = vmatprep.subr.bf16.mxu0 0
    %2046 = vmatpush2.bf16.msra.mxu0 0
    %2047 = vmatprep.subr.bf16.mxu0 0
    %2048 = vmatpush2.bf16.msra.mxu0 0
    %2049 = vmatprep.subr.bf16.mxu0 0
    %2050 = vmatpush2.bf16.msra.mxu0 0
    %2051 = vmatprep.subr.bf16.mxu0 0
    %2052 = vmatpush2.bf16.msra.mxu0 0
    %2053 = vmatprep.subr.bf16.mxu0 0
    %2054 = vmatpush2.bf16.msra.mxu0 0
    %2055 = vmatprep.subr.bf16.mxu0 0
    %2056 = vmatpush2.bf16.msra.mxu0 0
    %2057 = vmatprep.subr.bf16.mxu0 0
    %2058 = vmatpush2.bf16.msra.mxu0 0
    %2059 = vmatprep.mubr.bf16.mxu0 0
    %2060 = vmatmul.mubr.bf16.gmra.mxu0 %v2022
    %v2061 = vpop.f32.mrf.mxu0
    %v2062 = vadd.f32 0.0, %v2061
    %v2063 = vpop.f32.mrf.mxu0
    %v2064 = vpop.f32.mrf.mxu0
    %v2065 = vpop.f32.mrf.mxu0
    %2066 = vdwg.mxu0
    %2067 = vrot.lane.b32.xlu0 %v1666, 56
    %v2068 = vpop.permute.xlu0 %2067
    %v2070 = vsel %vm271, %v2018, 0
    %v2073 = vsel %vm400, %v2068, 0
    %2075 = vmatprep.subr.bf16.mxu0 0
    %2076 = vmatpush1.bf16.msra.mxu0 0
    %2077 = vmatprep.subr.bf16.mxu0 0
    %2078 = vmatpush1.bf16.msra.mxu0 0
    %2079 = vmatprep.subr.bf16.mxu0 0
    %2080 = vmatpush1.bf16.msra.mxu0 0
    %2081 = vmatprep.subr.bf16.mxu0 0
    %2082 = vmatpush1.bf16.msra.mxu0 0
    %2083 = vmatprep.subr.bf16.mxu0 0
    %2084 = vmatpush1.bf16.msra.mxu0 0
    %2085 = vmatprep.subr.bf16.mxu0 0
    %2086 = vmatpush1.bf16.msra.mxu0 0
    %2087 = vmatprep.subr.bf16.mxu0 0
    %2088 = vmatpush1.bf16.msra.mxu0 0
    %2089 = vmatprep.subr.bf16.mxu0 0
    %2090 = vmatpush1.bf16.msra.mxu0 %v2073
    %2091 = vmatprep.subr.bf16.mxu0 0
    %2092 = vmatpush2.bf16.msra.mxu0 0
    %2093 = vmatprep.subr.bf16.mxu0 0
    %2094 = vmatpush2.bf16.msra.mxu0 0
    %2095 = vmatprep.subr.bf16.mxu0 0
    %2096 = vmatpush2.bf16.msra.mxu0 0
    %2097 = vmatprep.subr.bf16.mxu0 0
    %2098 = vmatpush2.bf16.msra.mxu0 0
    %2099 = vmatprep.subr.bf16.mxu0 0
    %2100 = vmatpush2.bf16.msra.mxu0 0
    %2101 = vmatprep.subr.bf16.mxu0 0
    %2102 = vmatpush2.bf16.msra.mxu0 0
    %2103 = vmatprep.subr.bf16.mxu0 0
    %2104 = vmatpush2.bf16.msra.mxu0 0
    %2105 = vmatprep.subr.bf16.mxu0 0
    %2106 = vmatpush2.bf16.msra.mxu0 0
    %2107 = vmatprep.mubr.bf16.mxu0 0
    %2108 = vmatmul.mubr.bf16.gmra.mxu0 %v2070
    %v2109 = vpop.f32.mrf.mxu0
    %v2110 = vadd.f32 0.0, %v2109
    %v2111 = vpop.f32.mrf.mxu0
    %v2112 = vpop.f32.mrf.mxu0
    %v2113 = vpop.f32.mrf.mxu0
    %2114 = vdwg.mxu0
    %v2115 = vpack.c.bf16 %v2110, %v2062
    %v2116 = vpack.c.bf16 %v1581, %v1581
    %v2118 = vsel %vm271, %v2115, 0
    %v2121 = vsel %vm400, %v2116, 0
    %2123 = vmatprep.subr.bf16.mxu0 0
    %2124 = vmatpush1.bf16.msra.mxu0 0
    %2125 = vmatprep.subr.bf16.mxu0 0
    %2126 = vmatpush1.bf16.msra.mxu0 0
    %2127 = vmatprep.subr.bf16.mxu0 0
    %2128 = vmatpush1.bf16.msra.mxu0 0
    %2129 = vmatprep.subr.bf16.mxu0 0
    %2130 = vmatpush1.bf16.msra.mxu0 0
    %2131 = vmatprep.subr.bf16.mxu0 0
    %2132 = vmatpush1.bf16.msra.mxu0 0
    %2133 = vmatprep.subr.bf16.mxu0 0
    %2134 = vmatpush1.bf16.msra.mxu0 0
    %2135 = vmatprep.subr.bf16.mxu0 0
    %2136 = vmatpush1.bf16.msra.mxu0 0
    %2137 = vmatprep.subr.bf16.mxu0 0
    %2138 = vmatpush1.bf16.msra.mxu0 %v2121
    %2139 = vmatprep.subr.bf16.mxu0 0
    %2140 = vmatpush2.bf16.msra.mxu0 0
    %2141 = vmatprep.subr.bf16.mxu0 0
    %2142 = vmatpush2.bf16.msra.mxu0 0
    %2143 = vmatprep.subr.bf16.mxu0 0
    %2144 = vmatpush2.bf16.msra.mxu0 0
    %2145 = vmatprep.subr.bf16.mxu0 0
    %2146 = vmatpush2.bf16.msra.mxu0 0
    %2147 = vmatprep.subr.bf16.mxu0 0
    %2148 = vmatpush2.bf16.msra.mxu0 0
    %2149 = vmatprep.subr.bf16.mxu0 0
    %2150 = vmatpush2.bf16.msra.mxu0 0
    %2151 = vmatprep.subr.bf16.mxu0 0
    %2152 = vmatpush2.bf16.msra.mxu0 0
    %2153 = vmatprep.subr.bf16.mxu0 0
    %2154 = vmatpush2.bf16.msra.mxu0 0
    %2155 = vmatprep.mubr.bf16.mxu0 0
    %2156 = vmatmul.mubr.bf16.gmra.mxu0 %v2118
    %v2157 = vpop.f32.mrf.mxu0
    %v2158 = vadd.f32 0.0, %v2157
    %v2159 = vpop.f32.mrf.mxu0
    %v2160 = vpop.f32.mrf.mxu0
    %v2161 = vadd.f32 0.0, %v2160
    %v2162 = vpop.f32.mrf.mxu0
    %2163 = vdwg.mxu0
    %v2165 = vsel %vm271, %v1889, 0
    %v2168 = vsel %vm400, %v1890, 0
    %2170 = vmatprep.subr.bf16.mxu0 0
    %2171 = vmatpush1.bf16.msra.mxu0 0
    %2172 = vmatprep.subr.bf16.mxu0 0
    %2173 = vmatpush1.bf16.msra.mxu0 0
    %2174 = vmatprep.subr.bf16.mxu0 0
    %2175 = vmatpush1.bf16.msra.mxu0 0
    %2176 = vmatprep.subr.bf16.mxu0 0
    %2177 = vmatpush1.bf16.msra.mxu0 0
    %2178 = vmatprep.subr.bf16.mxu0 0
    %2179 = vmatpush1.bf16.msra.mxu0 0
    %2180 = vmatprep.subr.bf16.mxu0 0
    %2181 = vmatpush1.bf16.msra.mxu0 0
    %2182 = vmatprep.subr.bf16.mxu0 0
    %2183 = vmatpush1.bf16.msra.mxu0 0
    %2184 = vmatprep.subr.bf16.mxu0 0
    %2185 = vmatpush1.bf16.msra.mxu0 %v2168
    %2186 = vmatprep.subr.bf16.mxu0 0
    %2187 = vmatpush2.bf16.msra.mxu0 0
    %2188 = vmatprep.subr.bf16.mxu0 0
    %2189 = vmatpush2.bf16.msra.mxu0 0
    %2190 = vmatprep.subr.bf16.mxu0 0
    %2191 = vmatpush2.bf16.msra.mxu0 0
    %2192 = vmatprep.subr.bf16.mxu0 0
    %2193 = vmatpush2.bf16.msra.mxu0 0
    %2194 = vmatprep.subr.bf16.mxu0 0
    %2195 = vmatpush2.bf16.msra.mxu0 0
    %2196 = vmatprep.subr.bf16.mxu0 0
    %2197 = vmatpush2.bf16.msra.mxu0 0
    %2198 = vmatprep.subr.bf16.mxu0 0
    %2199 = vmatpush2.bf16.msra.mxu0 0
    %2200 = vmatprep.subr.bf16.mxu0 0
    %2201 = vmatpush2.bf16.msra.mxu0 0
    %2202 = vmatprep.mubr.bf16.mxu0 0
    %2203 = vmatmul.mubr.bf16.gmra.mxu0 %v2165
    %v2204 = vpop.f32.mrf.mxu0
    %v2205 = vadd.f32 %v2158, %v2204
    %v2206 = vpop.f32.mrf.mxu0
    %v2207 = vpop.f32.mrf.mxu0
    %v2208 = vadd.f32 %v2161, %v2207
    %v2209 = vpop.f32.mrf.mxu0
    %2210 = vdwg.mxu0
    %2211 = vrot.lane.b32.xlu0 %v1665, 112
    %v2212 = vpop.permute.xlu0 %2211
    %2213 = vrot.lane.b32.xlu0 %v1665, 80
    %v2214 = vpop.permute.xlu0 %2213
    %v2216 = vsel %vm271, %v2212, 0
    %v2219 = vsel %vm271, %v2214, 0
    %2221 = vmatprep.subr.bf16.mxu0 0
    %2222 = vmatpush1.bf16.xpose.msra.mxu0 0
    %2223 = vmatprep.subr.bf16.mxu0 0
    %2224 = vmatpush1.bf16.xpose.msra.mxu0 0
    %2225 = vmatprep.subr.bf16.mxu0 0
    %2226 = vmatpush1.bf16.xpose.msra.mxu0 0
    %2227 = vmatprep.subr.bf16.mxu0 0
    %2228 = vmatpush1.bf16.xpose.msra.mxu0 0
    %2229 = vmatprep.subr.bf16.mxu0 0
    %2230 = vmatpush1.bf16.xpose.msra.mxu0 0
    %2231 = vmatprep.subr.bf16.mxu0 0
    %2232 = vmatpush1.bf16.xpose.msra.mxu0 0
    %2233 = vmatprep.subr.bf16.mxu0 0
    %2234 = vmatpush1.bf16.xpose.msra.mxu0 0
    %2235 = vmatprep.subr.bf16.mxu0 0
    %2236 = vmatpush1.bf16.xpose.msra.mxu0 %v2219
    %2237 = vmatprep.subr.bf16.mxu0 0
    %2238 = vmatpush2.bf16.xpose.msra.mxu0 0
    %2239 = vmatprep.subr.bf16.mxu0 0
    %2240 = vmatpush2.bf16.xpose.msra.mxu0 0
    %2241 = vmatprep.subr.bf16.mxu0 0
    %2242 = vmatpush2.bf16.xpose.msra.mxu0 0
    %2243 = vmatprep.subr.bf16.mxu0 0
    %2244 = vmatpush2.bf16.xpose.msra.mxu0 0
    %2245 = vmatprep.subr.bf16.mxu0 0
    %2246 = vmatpush2.bf16.xpose.msra.mxu0 0
    %2247 = vmatprep.subr.bf16.mxu0 0
    %2248 = vmatpush2.bf16.xpose.msra.mxu0 0
    %2249 = vmatprep.subr.bf16.mxu0 0
    %2250 = vmatpush2.bf16.xpose.msra.mxu0 0
    %2251 = vmatprep.subr.bf16.mxu0 0
    %2252 = vmatpush2.bf16.xpose.msra.mxu0 0
    %2253 = vmatprep.mubr.bf16.mxu0 0
    %2254 = vmatmul.mubr.bf16.gmra.mxu0 %v2216
    %v2255 = vpop.f32.mrf.mxu0
    %v2256 = vadd.f32 0.0, %v2255
    %v2257 = vpop.f32.mrf.mxu0
    %v2258 = vpop.f32.mrf.mxu0
    %v2259 = vpop.f32.mrf.mxu0
    %2260 = vdwg.mxu0
    %2261 = vrot.lane.b32.xlu0 %v1666, 112
    %v2262 = vpop.permute.xlu0 %2261
    %2263 = vrot.lane.b32.xlu0 %v1666, 80
    %v2264 = vpop.permute.xlu0 %2263
    %v2266 = vsel %vm271, %v2262, 0
    %v2269 = vsel %vm271, %v2264, 0
    %2271 = vmatprep.subr.bf16.mxu0 0
    %2272 = vmatpush1.bf16.xpose.msra.mxu0 0
    %2273 = vmatprep.subr.bf16.mxu0 0
    %2274 = vmatpush1.bf16.xpose.msra.mxu0 0
    %2275 = vmatprep.subr.bf16.mxu0 0
    %2276 = vmatpush1.bf16.xpose.msra.mxu0 0
    %2277 = vmatprep.subr.bf16.mxu0 0
    %2278 = vmatpush1.bf16.xpose.msra.mxu0 0
    %2279 = vmatprep.subr.bf16.mxu0 0
    %2280 = vmatpush1.bf16.xpose.msra.mxu0 0
    %2281 = vmatprep.subr.bf16.mxu0 0
    %2282 = vmatpush1.bf16.xpose.msra.mxu0 0
    %2283 = vmatprep.subr.bf16.mxu0 0
    %2284 = vmatpush1.bf16.xpose.msra.mxu0 0
    %2285 = vmatprep.subr.bf16.mxu0 0
    %2286 = vmatpush1.bf16.xpose.msra.mxu0 %v2269
    %2287 = vmatprep.subr.bf16.mxu0 0
    %2288 = vmatpush2.bf16.xpose.msra.mxu0 0
    %2289 = vmatprep.subr.bf16.mxu0 0
    %2290 = vmatpush2.bf16.xpose.msra.mxu0 0
    %2291 = vmatprep.subr.bf16.mxu0 0
    %2292 = vmatpush2.bf16.xpose.msra.mxu0 0
    %2293 = vmatprep.subr.bf16.mxu0 0
    %2294 = vmatpush2.bf16.xpose.msra.mxu0 0
    %2295 = vmatprep.subr.bf16.mxu0 0
    %2296 = vmatpush2.bf16.xpose.msra.mxu0 0
    %2297 = vmatprep.subr.bf16.mxu0 0
    %2298 = vmatpush2.bf16.xpose.msra.mxu0 0
    %2299 = vmatprep.subr.bf16.mxu0 0
    %2300 = vmatpush2.bf16.xpose.msra.mxu0 0
    %2301 = vmatprep.subr.bf16.mxu0 0
    %2302 = vmatpush2.bf16.xpose.msra.mxu0 0
    %2303 = vmatprep.mubr.bf16.mxu0 0
    %2304 = vmatmul.mubr.bf16.gmra.mxu0 %v2266
    %v2305 = vpop.f32.mrf.mxu0
    %v2306 = vadd.f32 0.0, %v2305
    %v2307 = vpop.f32.mrf.mxu0
    %v2308 = vpop.f32.mrf.mxu0
    %v2309 = vpop.f32.mrf.mxu0
    %2310 = vdwg.mxu0
    %v2311 = vmul.f32 %v2256, 0.35355338
    %v2312 = vmul.f32 %v2306, 0.35355338
    %v2313 = vadd.f32 %v2311, %v176
    %v2314 = vadd.f32 %v2312, %v177
    %v2315 = vsel %vm271, %v2313, -inf
    %2316 = vmax.xlane.f32.xlu0 %v2315
    %v2317 = vpop.xlane.xlu0 %2316
    %v2318 = vsel %vm271, %v2314, -inf
    %2319 = vmax.xlane.f32.xlu0 %v2318
    %v2320 = vpop.xlane.xlu0 %2319
    %v2321 = vsub.f32 %v2313, %v2317
    %v2322 = vsub.f32 %v2314, %v2320
    %v2323 = vmul.f32 %v2321, 1.442695
    %v2324 = vpow.pop %v2323
    %v2325 = vmul.f32 %v2322, 1.442695
    %v2326 = vpow.pop %v2325
    %v2327 = vsel %vm271, %v2324, 0.0
    %2328 = vadd.xlane.f32.xlu0 %v2327
    %v2329 = vpop.xlane.xlu0 %2328
    %v2330 = vsel %vm271, %v2326, 0.0
    %2331 = vadd.xlane.f32.xlu0 %v2330
    %v2332 = vpop.xlane.xlu0 %2331
    %v2333 = vrcp.pop %v2329
    %v2334 = vrcp.pop %v2332
    %v2335 = vmul.f32 %v2324, %v2333
    %v2336 = vmul.f32 %v2326, %v2334
    %v2337 = vpack.c.bf16 %v2335, %v2335
    %v2338 = vpack.c.bf16 %v2336, %v2336
    %2339 = vrot.lane.b32.xlu0 %v1665, 48
    %v2340 = vpop.permute.xlu0 %2339
    %v2342 = vsel %vm271, %v2337, 0
    %v2345 = vsel %vm400, %v2340, 0
    %2347 = vmatprep.subr.bf16.mxu0 0
    %2348 = vmatpush1.bf16.msra.mxu0 0
    %2349 = vmatprep.subr.bf16.mxu0 0
    %2350 = vmatpush1.bf16.msra.mxu0 0
    %2351 = vmatprep.subr.bf16.mxu0 0
    %2352 = vmatpush1.bf16.msra.mxu0 0
    %2353 = vmatprep.subr.bf16.mxu0 0
    %2354 = vmatpush1.bf16.msra.mxu0 0
    %2355 = vmatprep.subr.bf16.mxu0 0
    %2356 = vmatpush1.bf16.msra.mxu0 0
    %2357 = vmatprep.subr.bf16.mxu0 0
    %2358 = vmatpush1.bf16.msra.mxu0 0
    %2359 = vmatprep.subr.bf16.mxu0 0
    %2360 = vmatpush1.bf16.msra.mxu0 0
    %2361 = vmatprep.subr.bf16.mxu0 0
    %2362 = vmatpush1.bf16.msra.mxu0 %v2345
    %2363 = vmatprep.subr.bf16.mxu0 0
    %2364 = vmatpush2.bf16.msra.mxu0 0
    %2365 = vmatprep.subr.bf16.mxu0 0
    %2366 = vmatpush2.bf16.msra.mxu0 0
    %2367 = vmatprep.subr.bf16.mxu0 0
    %2368 = vmatpush2.bf16.msra.mxu0 0
    %2369 = vmatprep.subr.bf16.mxu0 0
    %2370 = vmatpush2.bf16.msra.mxu0 0
    %2371 = vmatprep.subr.bf16.mxu0 0
    %2372 = vmatpush2.bf16.msra.mxu0 0
    %2373 = vmatprep.subr.bf16.mxu0 0
    %2374 = vmatpush2.bf16.msra.mxu0 0
    %2375 = vmatprep.subr.bf16.mxu0 0
    %2376 = vmatpush2.bf16.msra.mxu0 0
    %2377 = vmatprep.subr.bf16.mxu0 0
    %2378 = vmatpush2.bf16.msra.mxu0 0
    %2379 = vmatprep.mubr.bf16.mxu0 0
    %2380 = vmatmul.mubr.bf16.gmra.mxu0 %v2342
    %v2381 = vpop.f32.mrf.mxu0
    %v2382 = vadd.f32 0.0, %v2381
    %v2383 = vpop.f32.mrf.mxu0
    %v2384 = vpop.f32.mrf.mxu0
    %v2385 = vpop.f32.mrf.mxu0
    %2386 = vdwg.mxu0
    %2387 = vrot.lane.b32.xlu0 %v1666, 48
    %v2388 = vpop.permute.xlu0 %2387
    %v2390 = vsel %vm271, %v2338, 0
    %v2393 = vsel %vm400, %v2388, 0
    %2395 = vmatprep.subr.bf16.mxu0 0
    %2396 = vmatpush1.bf16.msra.mxu0 0
    %2397 = vmatprep.subr.bf16.mxu0 0
    %2398 = vmatpush1.bf16.msra.mxu0 0
    %2399 = vmatprep.subr.bf16.mxu0 0
    %2400 = vmatpush1.bf16.msra.mxu0 0
    %2401 = vmatprep.subr.bf16.mxu0 0
    %2402 = vmatpush1.bf16.msra.mxu0 0
    %2403 = vmatprep.subr.bf16.mxu0 0
    %2404 = vmatpush1.bf16.msra.mxu0 0
    %2405 = vmatprep.subr.bf16.mxu0 0
    %2406 = vmatpush1.bf16.msra.mxu0 0
    %2407 = vmatprep.subr.bf16.mxu0 0
    %2408 = vmatpush1.bf16.msra.mxu0 0
    %2409 = vmatprep.subr.bf16.mxu0 0
    %2410 = vmatpush1.bf16.msra.mxu0 %v2393
    %2411 = vmatprep.subr.bf16.mxu0 0
    %2412 = vmatpush2.bf16.msra.mxu0 0
    %2413 = vmatprep.subr.bf16.mxu0 0
    %2414 = vmatpush2.bf16.msra.mxu0 0
    %2415 = vmatprep.subr.bf16.mxu0 0
    %2416 = vmatpush2.bf16.msra.mxu0 0
    %2417 = vmatprep.subr.bf16.mxu0 0
    %2418 = vmatpush2.bf16.msra.mxu0 0
    %2419 = vmatprep.subr.bf16.mxu0 0
    %2420 = vmatpush2.bf16.msra.mxu0 0
    %2421 = vmatprep.subr.bf16.mxu0 0
    %2422 = vmatpush2.bf16.msra.mxu0 0
    %2423 = vmatprep.subr.bf16.mxu0 0
    %2424 = vmatpush2.bf16.msra.mxu0 0
    %2425 = vmatprep.subr.bf16.mxu0 0
    %2426 = vmatpush2.bf16.msra.mxu0 0
    %2427 = vmatprep.mubr.bf16.mxu0 0
    %2428 = vmatmul.mubr.bf16.gmra.mxu0 %v2390
    %v2429 = vpop.f32.mrf.mxu0
    %v2430 = vadd.f32 0.0, %v2429
    %v2431 = vpop.f32.mrf.mxu0
    %v2432 = vpop.f32.mrf.mxu0
    %v2433 = vpop.f32.mrf.mxu0
    %2434 = vdwg.mxu0
    %v2435 = vpack.c.bf16 %v2430, %v2382
    %v2436 = vpack.c.bf16 %v1582, %v1582
    %v2438 = vsel %vm271, %v2435, 0
    %v2441 = vsel %vm400, %v2436, 0
    %2443 = vmatprep.subr.bf16.mxu0 0
    %2444 = vmatpush1.bf16.msra.mxu0 0
    %2445 = vmatprep.subr.bf16.mxu0 0
    %2446 = vmatpush1.bf16.msra.mxu0 0
    %2447 = vmatprep.subr.bf16.mxu0 0
    %2448 = vmatpush1.bf16.msra.mxu0 0
    %2449 = vmatprep.subr.bf16.mxu0 0
    %2450 = vmatpush1.bf16.msra.mxu0 0
    %2451 = vmatprep.subr.bf16.mxu0 0
    %2452 = vmatpush1.bf16.msra.mxu0 0
    %2453 = vmatprep.subr.bf16.mxu0 0
    %2454 = vmatpush1.bf16.msra.mxu0 0
    %2455 = vmatprep.subr.bf16.mxu0 0
    %2456 = vmatpush1.bf16.msra.mxu0 0
    %2457 = vmatprep.subr.bf16.mxu0 0
    %2458 = vmatpush1.bf16.msra.mxu0 %v2441
    %2459 = vmatprep.subr.bf16.mxu0 0
    %2460 = vmatpush2.bf16.msra.mxu0 0
    %2461 = vmatprep.subr.bf16.mxu0 0
    %2462 = vmatpush2.bf16.msra.mxu0 0
    %2463 = vmatprep.subr.bf16.mxu0 0
    %2464 = vmatpush2.bf16.msra.mxu0 0
    %2465 = vmatprep.subr.bf16.mxu0 0
    %2466 = vmatpush2.bf16.msra.mxu0 0
    %2467 = vmatprep.subr.bf16.mxu0 0
    %2468 = vmatpush2.bf16.msra.mxu0 0
    %2469 = vmatprep.subr.bf16.mxu0 0
    %2470 = vmatpush2.bf16.msra.mxu0 0
    %2471 = vmatprep.subr.bf16.mxu0 0
    %2472 = vmatpush2.bf16.msra.mxu0 0
    %2473 = vmatprep.subr.bf16.mxu0 0
    %2474 = vmatpush2.bf16.msra.mxu0 0
    %2475 = vmatprep.mubr.bf16.mxu0 0
    %2476 = vmatmul.mubr.bf16.gmra.mxu0 %v2438
    %v2477 = vpop.f32.mrf.mxu0
    %v2478 = vadd.f32 0.0, %v2477
    %v2479 = vpop.f32.mrf.mxu0
    %v2480 = vpop.f32.mrf.mxu0
    %v2481 = vadd.f32 0.0, %v2480
    %v2482 = vpop.f32.mrf.mxu0
    %2483 = vdwg.mxu0
    %v2484 = vadd.f32 %v2205, %v2478
    %v2485 = vadd.f32 %v2208, %v2481
    %2486 = vrot.lane.b32.xlu0 %v1665, 104
    %v2487 = vpop.permute.xlu0 %2486
    %2488 = vrot.lane.b32.xlu0 %v1665, 72
    %v2489 = vpop.permute.xlu0 %2488
    %v2491 = vsel %vm271, %v2487, 0
    %v2494 = vsel %vm271, %v2489, 0
    %2496 = vmatprep.subr.bf16.mxu0 0
    %2497 = vmatpush1.bf16.xpose.msra.mxu0 0
    %2498 = vmatprep.subr.bf16.mxu0 0
    %2499 = vmatpush1.bf16.xpose.msra.mxu0 0
    %2500 = vmatprep.subr.bf16.mxu0 0
    %2501 = vmatpush1.bf16.xpose.msra.mxu0 0
    %2502 = vmatprep.subr.bf16.mxu0 0
    %2503 = vmatpush1.bf16.xpose.msra.mxu0 0
    %2504 = vmatprep.subr.bf16.mxu0 0
    %2505 = vmatpush1.bf16.xpose.msra.mxu0 0
    %2506 = vmatprep.subr.bf16.mxu0 0
    %2507 = vmatpush1.bf16.xpose.msra.mxu0 0
    %2508 = vmatprep.subr.bf16.mxu0 0
    %2509 = vmatpush1.bf16.xpose.msra.mxu0 0
    %2510 = vmatprep.subr.bf16.mxu0 0
    %2511 = vmatpush1.bf16.xpose.msra.mxu0 %v2494
    %2512 = vmatprep.subr.bf16.mxu0 0
    %2513 = vmatpush2.bf16.xpose.msra.mxu0 0
    %2514 = vmatprep.subr.bf16.mxu0 0
    %2515 = vmatpush2.bf16.xpose.msra.mxu0 0
    %2516 = vmatprep.subr.bf16.mxu0 0
    %2517 = vmatpush2.bf16.xpose.msra.mxu0 0
    %2518 = vmatprep.subr.bf16.mxu0 0
    %2519 = vmatpush2.bf16.xpose.msra.mxu0 0
    %2520 = vmatprep.subr.bf16.mxu0 0
    %2521 = vmatpush2.bf16.xpose.msra.mxu0 0
    %2522 = vmatprep.subr.bf16.mxu0 0
    %2523 = vmatpush2.bf16.xpose.msra.mxu0 0
    %2524 = vmatprep.subr.bf16.mxu0 0
    %2525 = vmatpush2.bf16.xpose.msra.mxu0 0
    %2526 = vmatprep.subr.bf16.mxu0 0
    %2527 = vmatpush2.bf16.xpose.msra.mxu0 0
    %2528 = vmatprep.mubr.bf16.mxu0 0
    %2529 = vmatmul.mubr.bf16.gmra.mxu0 %v2491
    %v2530 = vpop.f32.mrf.mxu0
    %v2531 = vadd.f32 0.0, %v2530
    %v2532 = vpop.f32.mrf.mxu0
    %v2533 = vpop.f32.mrf.mxu0
    %v2534 = vpop.f32.mrf.mxu0
    %2535 = vdwg.mxu0
    %2536 = vrot.lane.b32.xlu0 %v1666, 104
    %v2537 = vpop.permute.xlu0 %2536
    %2538 = vrot.lane.b32.xlu0 %v1666, 72
    %v2539 = vpop.permute.xlu0 %2538
    %v2541 = vsel %vm271, %v2537, 0
    %v2544 = vsel %vm271, %v2539, 0
    %2546 = vmatprep.subr.bf16.mxu0 0
    %2547 = vmatpush1.bf16.xpose.msra.mxu0 0
    %2548 = vmatprep.subr.bf16.mxu0 0
    %2549 = vmatpush1.bf16.xpose.msra.mxu0 0
    %2550 = vmatprep.subr.bf16.mxu0 0
    %2551 = vmatpush1.bf16.xpose.msra.mxu0 0
    %2552 = vmatprep.subr.bf16.mxu0 0
    %2553 = vmatpush1.bf16.xpose.msra.mxu0 0
    %2554 = vmatprep.subr.bf16.mxu0 0
    %2555 = vmatpush1.bf16.xpose.msra.mxu0 0
    %2556 = vmatprep.subr.bf16.mxu0 0
    %2557 = vmatpush1.bf16.xpose.msra.mxu0 0
    %2558 = vmatprep.subr.bf16.mxu0 0
    %2559 = vmatpush1.bf16.xpose.msra.mxu0 0
    %2560 = vmatprep.subr.bf16.mxu0 0
    %2561 = vmatpush1.bf16.xpose.msra.mxu0 %v2544
    %2562 = vmatprep.subr.bf16.mxu0 0
    %2563 = vmatpush2.bf16.xpose.msra.mxu0 0
    %2564 = vmatprep.subr.bf16.mxu0 0
    %2565 = vmatpush2.bf16.xpose.msra.mxu0 0
    %2566 = vmatprep.subr.bf16.mxu0 0
    %2567 = vmatpush2.bf16.xpose.msra.mxu0 0
    %2568 = vmatprep.subr.bf16.mxu0 0
    %2569 = vmatpush2.bf16.xpose.msra.mxu0 0
    %2570 = vmatprep.subr.bf16.mxu0 0
    %2571 = vmatpush2.bf16.xpose.msra.mxu0 0
    %2572 = vmatprep.subr.bf16.mxu0 0
    %2573 = vmatpush2.bf16.xpose.msra.mxu0 0
    %2574 = vmatprep.subr.bf16.mxu0 0
    %2575 = vmatpush2.bf16.xpose.msra.mxu0 0
    %2576 = vmatprep.subr.bf16.mxu0 0
    %2577 = vmatpush2.bf16.xpose.msra.mxu0 0
    %2578 = vmatprep.mubr.bf16.mxu0 0
    %2579 = vmatmul.mubr.bf16.gmra.mxu0 %v2541
    %v2580 = vpop.f32.mrf.mxu0
    %v2581 = vadd.f32 0.0, %v2580
    %v2582 = vpop.f32.mrf.mxu0
    %v2583 = vpop.f32.mrf.mxu0
    %v2584 = vpop.f32.mrf.mxu0
    %2585 = vdwg.mxu0
    %v2586 = vmul.f32 %v2531, 0.35355338
    %v2587 = vmul.f32 %v2581, 0.35355338
    %v2588 = vadd.f32 %v2586, %v176
    %v2589 = vadd.f32 %v2587, %v177
    %v2590 = vsel %vm271, %v2588, -inf
    %2591 = vmax.xlane.f32.xlu0 %v2590
    %v2592 = vpop.xlane.xlu0 %2591
    %v2593 = vsel %vm271, %v2589, -inf
    %2594 = vmax.xlane.f32.xlu0 %v2593
    %v2595 = vpop.xlane.xlu0 %2594
    %v2596 = vsub.f32 %v2588, %v2592
    %v2597 = vsub.f32 %v2589, %v2595
    %v2598 = vmul.f32 %v2596, 1.442695
    %v2599 = vpow.pop %v2598
    %v2600 = vmul.f32 %v2597, 1.442695
    %v2601 = vpow.pop %v2600
    %v2602 = vsel %vm271, %v2599, 0.0
    %2603 = vadd.xlane.f32.xlu0 %v2602
    %v2604 = vpop.xlane.xlu0 %2603
    %v2605 = vsel %vm271, %v2601, 0.0
    %2606 = vadd.xlane.f32.xlu0 %v2605
    %v2607 = vpop.xlane.xlu0 %2606
    %v2608 = vrcp.pop %v2604
    %v2609 = vrcp.pop %v2607
    %v2610 = vmul.f32 %v2599, %v2608
    %v2611 = vmul.f32 %v2601, %v2609
    %v2612 = vpack.c.bf16 %v2610, %v2610
    %v2613 = vpack.c.bf16 %v2611, %v2611
    %2614 = vrot.lane.b32.xlu0 %v1665, 40
    %v2615 = vpop.permute.xlu0 %2614
    %v2617 = vsel %vm271, %v2612, 0
    %v2620 = vsel %vm400, %v2615, 0
    %2622 = vmatprep.subr.bf16.mxu0 0
    %2623 = vmatpush1.bf16.msra.mxu0 0
    %2624 = vmatprep.subr.bf16.mxu0 0
    %2625 = vmatpush1.bf16.msra.mxu0 0
    %2626 = vmatprep.subr.bf16.mxu0 0
    %2627 = vmatpush1.bf16.msra.mxu0 0
    %2628 = vmatprep.subr.bf16.mxu0 0
    %2629 = vmatpush1.bf16.msra.mxu0 0
    %2630 = vmatprep.subr.bf16.mxu0 0
    %2631 = vmatpush1.bf16.msra.mxu0 0
    %2632 = vmatprep.subr.bf16.mxu0 0
    %2633 = vmatpush1.bf16.msra.mxu0 0
    %2634 = vmatprep.subr.bf16.mxu0 0
    %2635 = vmatpush1.bf16.msra.mxu0 0
    %2636 = vmatprep.subr.bf16.mxu0 0
    %2637 = vmatpush1.bf16.msra.mxu0 %v2620
    %2638 = vmatprep.subr.bf16.mxu0 0
    %2639 = vmatpush2.bf16.msra.mxu0 0
    %2640 = vmatprep.subr.bf16.mxu0 0
    %2641 = vmatpush2.bf16.msra.mxu0 0
    %2642 = vmatprep.subr.bf16.mxu0 0
    %2643 = vmatpush2.bf16.msra.mxu0 0
    %2644 = vmatprep.subr.bf16.mxu0 0
    %2645 = vmatpush2.bf16.msra.mxu0 0
    %2646 = vmatprep.subr.bf16.mxu0 0
    %2647 = vmatpush2.bf16.msra.mxu0 0
    %2648 = vmatprep.subr.bf16.mxu0 0
    %2649 = vmatpush2.bf16.msra.mxu0 0
    %2650 = vmatprep.subr.bf16.mxu0 0
    %2651 = vmatpush2.bf16.msra.mxu0 0
    %2652 = vmatprep.subr.bf16.mxu0 0
    %2653 = vmatpush2.bf16.msra.mxu0 0
    %2654 = vmatprep.mubr.bf16.mxu0 0
    %2655 = vmatmul.mubr.bf16.gmra.mxu0 %v2617
    %v2656 = vpop.f32.mrf.mxu0
    %v2657 = vadd.f32 0.0, %v2656
    %v2658 = vpop.f32.mrf.mxu0
    %v2659 = vpop.f32.mrf.mxu0
    %v2660 = vpop.f32.mrf.mxu0
    %2661 = vdwg.mxu0
    %2662 = vrot.lane.b32.xlu0 %v1666, 40
    %v2663 = vpop.permute.xlu0 %2662
    %v2665 = vsel %vm271, %v2613, 0
    %v2668 = vsel %vm400, %v2663, 0
    %2670 = vmatprep.subr.bf16.mxu0 0
    %2671 = vmatpush1.bf16.msra.mxu0 0
    %2672 = vmatprep.subr.bf16.mxu0 0
    %2673 = vmatpush1.bf16.msra.mxu0 0
    %2674 = vmatprep.subr.bf16.mxu0 0
    %2675 = vmatpush1.bf16.msra.mxu0 0
    %2676 = vmatprep.subr.bf16.mxu0 0
    %2677 = vmatpush1.bf16.msra.mxu0 0
    %2678 = vmatprep.subr.bf16.mxu0 0
    %2679 = vmatpush1.bf16.msra.mxu0 0
    %2680 = vmatprep.subr.bf16.mxu0 0
    %2681 = vmatpush1.bf16.msra.mxu0 0
    %2682 = vmatprep.subr.bf16.mxu0 0
    %2683 = vmatpush1.bf16.msra.mxu0 0
    %2684 = vmatprep.subr.bf16.mxu0 0
    %2685 = vmatpush1.bf16.msra.mxu0 %v2668
    %2686 = vmatprep.subr.bf16.mxu0 0
    %2687 = vmatpush2.bf16.msra.mxu0 0
    %2688 = vmatprep.subr.bf16.mxu0 0
    %2689 = vmatpush2.bf16.msra.mxu0 0
    %2690 = vmatprep.subr.bf16.mxu0 0
    %2691 = vmatpush2.bf16.msra.mxu0 0
    %2692 = vmatprep.subr.bf16.mxu0 0
    %2693 = vmatpush2.bf16.msra.mxu0 0
    %2694 = vmatprep.subr.bf16.mxu0 0
    %2695 = vmatpush2.bf16.msra.mxu0 0
    %2696 = vmatprep.subr.bf16.mxu0 0
    %2697 = vmatpush2.bf16.msra.mxu0 0
    %2698 = vmatprep.subr.bf16.mxu0 0
    %2699 = vmatpush2.bf16.msra.mxu0 0
    %2700 = vmatprep.subr.bf16.mxu0 0
    %2701 = vmatpush2.bf16.msra.mxu0 0
    %2702 = vmatprep.mubr.bf16.mxu0 0
    %2703 = vmatmul.mubr.bf16.gmra.mxu0 %v2665
    %v2704 = vpop.f32.mrf.mxu0
    %v2705 = vadd.f32 0.0, %v2704
    %v2706 = vpop.f32.mrf.mxu0
    %v2707 = vpop.f32.mrf.mxu0
    %v2708 = vpop.f32.mrf.mxu0
    %2709 = vdwg.mxu0
    %v2710 = vpack.c.bf16 %v2705, %v2657
    %v2711 = vpack.c.bf16 %v1583, %v1583
    %v2713 = vsel %vm271, %v2710, 0
    %v2716 = vsel %vm400, %v2711, 0
    %2718 = vmatprep.subr.bf16.mxu0 0
    %2719 = vmatpush1.bf16.msra.mxu0 0
    %2720 = vmatprep.subr.bf16.mxu0 0
    %2721 = vmatpush1.bf16.msra.mxu0 0
    %2722 = vmatprep.subr.bf16.mxu0 0
    %2723 = vmatpush1.bf16.msra.mxu0 0
    %2724 = vmatprep.subr.bf16.mxu0 0
    %2725 = vmatpush1.bf16.msra.mxu0 0
    %2726 = vmatprep.subr.bf16.mxu0 0
    %2727 = vmatpush1.bf16.msra.mxu0 0
    %2728 = vmatprep.subr.bf16.mxu0 0
    %2729 = vmatpush1.bf16.msra.mxu0 0
    %2730 = vmatprep.subr.bf16.mxu0 0
    %2731 = vmatpush1.bf16.msra.mxu0 0
    %2732 = vmatprep.subr.bf16.mxu0 0
    %2733 = vmatpush1.bf16.msra.mxu0 %v2716
    %2734 = vmatprep.subr.bf16.mxu0 0
    %2735 = vmatpush2.bf16.msra.mxu0 0
    %2736 = vmatprep.subr.bf16.mxu0 0
    %2737 = vmatpush2.bf16.msra.mxu0 0
    %2738 = vmatprep.subr.bf16.mxu0 0
    %2739 = vmatpush2.bf16.msra.mxu0 0
    %2740 = vmatprep.subr.bf16.mxu0 0
    %2741 = vmatpush2.bf16.msra.mxu0 0
    %2742 = vmatprep.subr.bf16.mxu0 0
    %2743 = vmatpush2.bf16.msra.mxu0 0
    %2744 = vmatprep.subr.bf16.mxu0 0
    %2745 = vmatpush2.bf16.msra.mxu0 0
    %2746 = vmatprep.subr.bf16.mxu0 0
    %2747 = vmatpush2.bf16.msra.mxu0 0
    %2748 = vmatprep.subr.bf16.mxu0 0
    %2749 = vmatpush2.bf16.msra.mxu0 0
    %2750 = vmatprep.mubr.bf16.mxu0 0
    %2751 = vmatmul.mubr.bf16.gmra.mxu0 %v2713
    %v2752 = vpop.f32.mrf.mxu0
    %v2753 = vadd.f32 0.0, %v2752
    %v2754 = vpop.f32.mrf.mxu0
    %v2755 = vpop.f32.mrf.mxu0
    %v2756 = vadd.f32 0.0, %v2755
    %v2757 = vpop.f32.mrf.mxu0
    %2758 = vdwg.mxu0
    %v2759 = vadd.f32 %v2484, %v2753
    %v2760 = vadd.f32 %v2485, %v2756
    %v2762 = vlaneseq
    %v2763 = vshrl.u32 %v2762, 7
    %v2764 = vsub.s32 0, %v2763
    %v2765 = vrot.slane %v1585, %v2764
    %v2767 = vadd.f32 %v2759, %v2765
    %v2768 = vadd.f32 %v2760, %v2765
    %v2769 = vadd.f32 %v1570, %v2767
    %v2770 = vadd.f32 %v1571, %v2768
    %v2771 = vsel %vm221, %v2769, 0.0
    %2772 = vadd.xlane.f32.xlu0 %v2771
    %v2773 = vpop.xlane.xlu0 %2772
    %v2774 = vsel %vm221, %v2770, 0.0
    %2775 = vadd.xlane.f32.xlu0 %v2774
    %v2776 = vpop.xlane.xlu0 %2775
    %v2777 = vmul.f32 %v2773, %v1380
    %v2778 = vmul.f32 %v2776, %v1380
    %v2779 = vsub.f32 %v2769, %v2777
    %v2780 = vsub.f32 %v2770, %v2778
    %v2781 = vmul.f32 %v2779, %v2779
    %v2782 = vmul.f32 %v2780, %v2780
    %v2783 = vsel %vm221, %v2781, 0.0
    %2784 = vadd.xlane.f32.xlu0 %v2783
    %v2785 = vpop.xlane.xlu0 %2784
    %v2786 = vsel %vm221, %v2782, 0.0
    %2787 = vadd.xlane.f32.xlu0 %v2786
    %v2788 = vpop.xlane.xlu0 %2787
    %v2789 = vmul.f32 %v2785, %v1380
    %v2790 = vmul.f32 %v2788, %v1380
    %v2791 = vadd.f32 %v2789, 1e-05
    %v2792 = vadd.f32 %v2790, 1e-05
    %v2793 = vrsqrt.pop %v2791
    %v2794 = vrsqrt.pop %v2792
    %v2795 = vmul.f32 %v2779, %v2793
    %v2796 = vmul.f32 %v2780, %v2794
    %v2798 = vlaneseq
    %v2799 = vshrl.u32 %v2798, 7
    %v2800 = vsub.s32 0, %v2799
    %v2801 = vrot.slane %v1587, %v2800
    %v2803 = vmul.f32 %v2795, %v2801
    %v2804 = vmul.f32 %v2796, %v2801
    %v2806 = vlaneseq
    %v2807 = vshrl.u32 %v2806, 7
    %v2808 = vsub.s32 0, %v2807
    %v2809 = vrot.slane %v1589, %v2808
    %v2811 = vadd.f32 %v2803, %v2809
    %v2812 = vadd.f32 %v2804, %v2809
    %v2813 = vpack.c.bf16 %v2812, %v2811
    %v2814 = vpack.c.bf16 %v1592, %v1591
    %v2815 = vpack.c.bf16 %v1594, %v1593
    %v2817 = vlaneseq
    %v2818 = vshrl.u32 %v2817, 7
    %v2819 = vsub.s32 0, %v2818
    %v2820 = vrot.slane %v1596, %v2819
    %v2823 = vsel %vm221, %v2813, 0
    %2825 = vmatprep.subr.bf16.mxu0 0
    %2826 = vmatpush1.bf16.msra.mxu0 0
    %2827 = vmatprep.subr.bf16.mxu0 0
    %2828 = vmatpush1.bf16.msra.mxu0 0
    %2829 = vmatprep.subr.bf16.mxu0 0
    %2830 = vmatpush1.bf16.msra.mxu0 0
    %2831 = vmatprep.subr.bf16.mxu0 0
    %2832 = vmatpush1.bf16.msra.mxu0 0
    %2833 = vmatprep.subr.bf16.mxu0 0
    %2834 = vmatpush1.bf16.msra.mxu0 0
    %2835 = vmatprep.subr.bf16.mxu0 0
    %2836 = vmatpush1.bf16.msra.mxu0 0
    %2837 = vmatprep.subr.bf16.mxu0 0
    %2838 = vmatpush1.bf16.msra.mxu0 %v2815
    %2839 = vmatprep.subr.bf16.mxu0 0
    %2840 = vmatpush1.bf16.msra.mxu0 %v2814
    %2841 = vmatprep.subr.bf16.mxu0 0
    %2842 = vmatpush2.bf16.msra.mxu0 0
    %2843 = vmatprep.subr.bf16.mxu0 0
    %2844 = vmatpush2.bf16.msra.mxu0 0
    %2845 = vmatprep.subr.bf16.mxu0 0
    %2846 = vmatpush2.bf16.msra.mxu0 0
    %2847 = vmatprep.subr.bf16.mxu0 0
    %2848 = vmatpush2.bf16.msra.mxu0 0
    %2849 = vmatprep.subr.bf16.mxu0 0
    %2850 = vmatpush2.bf16.msra.mxu0 0
    %2851 = vmatprep.subr.bf16.mxu0 0
    %2852 = vmatpush2.bf16.msra.mxu0 0
    %2853 = vmatprep.subr.bf16.mxu0 0
    %2854 = vmatpush2.bf16.msra.mxu0 0
    %2855 = vmatprep.subr.bf16.mxu0 0
    %2856 = vmatpush2.bf16.msra.mxu0 0
    %2857 = vmatprep.mubr.bf16.mxu0 0
    %2858 = vmatmul.mubr.bf16.gmra.mxu0 %v2823
    %v2859 = vpop.f32.mrf.mxu0
    %v2860 = vadd.f32 %v2820, %v2859
    %v2861 = vpop.f32.mrf.mxu0
    %v2862 = vpop.f32.mrf.mxu0
    %v2863 = vadd.f32 %v2820, %v2862
    %v2864 = vpop.f32.mrf.mxu0
    %2865 = vdwg.mxu0
    %v2866 = vmax.f32 %v2860, 0.0
    %v2867 = vmax.f32 %v2863, 0.0
    %v2868 = vpack.c.bf16 %v2867, %v2866
    %v2869 = vpack.c.bf16 %v1599, %v1598
    %v2870 = vpack.c.bf16 %v1601, %v1600
    %v2871 = vpack.c.bf16 %v1603, %v1602
    %v2872 = vpack.c.bf16 %v1605, %v1604
    %v2874 = vlaneseq
    %v2875 = vshrl.u32 %v2874, 7
    %v2876 = vsub.s32 0, %v2875
    %v2877 = vrot.slane %v1607, %v2876
    %v2880 = vsel %vm1483, %v2868, 0
    %2882 = vmatprep.subr.bf16.mxu0 0
    %2883 = vmatpush1.bf16.msra.mxu0 0
    %2884 = vmatprep.subr.bf16.mxu0 0
    %2885 = vmatpush1.bf16.msra.mxu0 0
    %2886 = vmatprep.subr.bf16.mxu0 0
    %2887 = vmatpush1.bf16.msra.mxu0 0
    %2888 = vmatprep.subr.bf16.mxu0 0
    %2889 = vmatpush1.bf16.msra.mxu0 0
    %2890 = vmatprep.subr.bf16.mxu0 0
    %2891 = vmatpush1.bf16.msra.mxu0 %v2872
    %2892 = vmatprep.subr.bf16.mxu0 0
    %2893 = vmatpush1.bf16.msra.mxu0 %v2871
    %2894 = vmatprep.subr.bf16.mxu0 0
    %2895 = vmatpush1.bf16.msra.mxu0 %v2870
    %2896 = vmatprep.subr.bf16.mxu0 0
    %2897 = vmatpush1.bf16.msra.mxu0 %v2869
    %2898 = vmatprep.subr.bf16.mxu0 0
    %2899 = vmatpush2.bf16.msra.mxu0 0
    %2900 = vmatprep.subr.bf16.mxu0 0
    %2901 = vmatpush2.bf16.msra.mxu0 0
    %2902 = vmatprep.subr.bf16.mxu0 0
    %2903 = vmatpush2.bf16.msra.mxu0 0
    %2904 = vmatprep.subr.bf16.mxu0 0
    %2905 = vmatpush2.bf16.msra.mxu0 0
    %2906 = vmatprep.subr.bf16.mxu0 0
    %2907 = vmatpush2.bf16.msra.mxu0 0
    %2908 = vmatprep.subr.bf16.mxu0 0
    %2909 = vmatpush2.bf16.msra.mxu0 0
    %2910 = vmatprep.subr.bf16.mxu0 0
    %2911 = vmatpush2.bf16.msra.mxu0 0
    %2912 = vmatprep.subr.bf16.mxu0 0
    %2913 = vmatpush2.bf16.msra.mxu0 0
    %2914 = vmatprep.mubr.bf16.mxu0 0
    %2915 = vmatmul.mubr.bf16.gmra.mxu0 %v2880
    %v2916 = vpop.f32.mrf.mxu0
    %v2917 = vadd.f32 %v2877, %v2916
    %v2918 = vpop.f32.mrf.mxu0
    %v2919 = vpop.f32.mrf.mxu0
    %v2920 = vadd.f32 %v2877, %v2919
    %v2921 = vpop.f32.mrf.mxu0
    %2922 = vdwg.mxu0
    %v2923 = vadd.f32 %v2811, %v2917
    %v2924 = vadd.f32 %v2812, %v2920
    %v2925 = vsel %vm221, %v2923, 0.0
    %2926 = vadd.xlane.f32.xlu0 %v2925
    %v2927 = vpop.xlane.xlu0 %2926
    %v2928 = vsel %vm221, %v2924, 0.0
    %2929 = vadd.xlane.f32.xlu0 %v2928
    %v2930 = vpop.xlane.xlu0 %2929
    %v2931 = vmul.f32 %v2927, %v1380
    %v2932 = vmul.f32 %v2930, %v1380
    %v2933 = vsub.f32 %v2923, %v2931
    %v2934 = vsub.f32 %v2924, %v2932
    %v2935 = vmul.f32 %v2933, %v2933
    %v2936 = vmul.f32 %v2934, %v2934
    %v2937 = vsel %vm221, %v2935, 0.0
    %2938 = vadd.xlane.f32.xlu0 %v2937
    %v2939 = vpop.xlane.xlu0 %2938
    %v2940 = vsel %vm221, %v2936, 0.0
    %2941 = vadd.xlane.f32.xlu0 %v2940
    %v2942 = vpop.xlane.xlu0 %2941
    %v2943 = vmul.f32 %v2939, %v1380
    %v2944 = vmul.f32 %v2942, %v1380
    %v2945 = vadd.f32 %v2943, 1e-05
    %v2946 = vadd.f32 %v2944, 1e-05
    %v2947 = vrsqrt.pop %v2945
    %v2948 = vrsqrt.pop %v2946
    %v2949 = vmul.f32 %v2933, %v2947
    %v2950 = vmul.f32 %v2934, %v2948
    %v2952 = vlaneseq
    %v2953 = vshrl.u32 %v2952, 7
    %v2954 = vsub.s32 0, %v2953
    %v2955 = vrot.slane %v1609, %v2954
    %v2957 = vmul.f32 %v2949, %v2955
    %v2958 = vmul.f32 %v2950, %v2955
    %v2960 = vlaneseq
    %v2961 = vshrl.u32 %v2960, 7
    %v2962 = vsub.s32 0, %v2961
    %v2963 = vrot.slane %v1611, %v2962
    %v2965 = vadd.f32 %v2957, %v2963
    %v2966 = vadd.f32 %v2958, %v2963
    %v2967 = vld [vmem:[%s5] sm:$0xff]
    %v2968 = vld [vmem:[%s5 + $0x8] sm:$0xff]
    %v2969 = vld [vmem:[%s31] sm:$0xff]
    %v2970 = vld [vmem:[%s31 + $0x8] sm:$0xff]
    %v2971 = vld [vmem:[%s31 + $0x10] sm:$0xff]
    %v2972 = vld [vmem:[%s31 + $0x18] sm:$0xff]
    %v2973 = vld [vmem:[%s33] sm:$0x1]
    %v2974 = vld [vmem:[%s35] sm:$0xff]
    %v2975 = vld [vmem:[%s35 + $0x8] sm:$0xff]
    %v2976 = vld [vmem:[%s35 + $0x10] sm:$0xff]
    %v2977 = vld [vmem:[%s35 + $0x18] sm:$0xff]
    %v2978 = vld [vmem:[%s37] sm:$0x1]
    %v2979 = vld [vmem:[%s39] sm:$0x1]
    %v2980 = vld [vmem:[%s41] sm:$0x1]
    %v2981 = vld [vmem:[%s43] sm:$0xff]
    %v2982 = vld [vmem:[%s43 + $0x8] sm:$0xff]
    %v2983 = vld [vmem:[%s43 + $0x10] sm:$0xff]
    %v2984 = vld [vmem:[%s43 + $0x18] sm:$0xff]
    %v2985 = vld [vmem:[%s45] sm:$0x1]
    %v2986 = vld [vmem:[%s47] sm:$0xff]
    %v2987 = vld [vmem:[%s47 + $0x8] sm:$0xff]
    %v2988 = vld [vmem:[%s47 + $0x10] sm:$0xff]
    %v2989 = vld [vmem:[%s47 + $0x18] sm:$0xff]
    %v2990 = vld [vmem:[%s49] sm:$0x1]
    %v2991 = vld [vmem:[%s51] sm:$0xff]
    %v2992 = vld [vmem:[%s51 + $0x8] sm:$0xff]
    %v2993 = vld [vmem:[%s51 + $0x10] sm:$0xff]
    %v2994 = vld [vmem:[%s51 + $0x18] sm:$0xff]
    %v2995 = vld [vmem:[%s53] sm:$0x1]
    %v2996 = vld [vmem:[%s55] sm:$0x1]
    %v2997 = vld [vmem:[%s57] sm:$0x1]
    %v2998 = vld [vmem:[%s59] sm:$0xff]
    %v2999 = vld [vmem:[%s59 + $0x8] sm:$0xff]
    %v3000 = vld [vmem:[%s59 + $0x10] sm:$0xff]
    %v3001 = vld [vmem:[%s59 + $0x18] sm:$0xff]
    %v3002 = vld [vmem:[%s61] sm:$0x1]
    %v3003 = vld [vmem:[%s63] sm:$0xff]
    %v3004 = vld [vmem:[%s63 + $0x8] sm:$0xff]
    %v3005 = vld [vmem:[%s63 + $0x10] sm:$0xff]
    %v3006 = vld [vmem:[%s63 + $0x18] sm:$0xff]
    %v3007 = vld [vmem:[%s63 + $0x20] sm:$0xff]
    %v3008 = vld [vmem:[%s63 + $0x28] sm:$0xff]
    %v3009 = vld [vmem:[%s63 + $0x30] sm:$0xff]
    %v3010 = vld [vmem:[%s63 + $0x38] sm:$0xff]
    %v3011 = vld [vmem:[%s65] sm:$0x1]
    %v3012 = vld [vmem:[%s67] sm:$0x1]
    %v3013 = vld [vmem:[%s69] sm:$0x1]
    %v3014 = vpack.c.bf16 %v2968, %v2967
    %v3015 = vpack.c.bf16 %v2970, %v2969
    %v3016 = vpack.c.bf16 %v2972, %v2971
    %v3018 = vlaneseq
    %v3019 = vshrl.u32 %v3018, 7
    %v3020 = vsub.s32 0, %v3019
    %v3021 = vrot.slane %v2973, %v3020
    %v3024 = vsel %vm221, %v3014, 0
    %3026 = vmatprep.subr.bf16.mxu0 0
    %3027 = vmatpush1.bf16.msra.mxu0 0
    %3028 = vmatprep.subr.bf16.mxu0 0
    %3029 = vmatpush1.bf16.msra.mxu0 0
    %3030 = vmatprep.subr.bf16.mxu0 0
    %3031 = vmatpush1.bf16.msra.mxu0 0
    %3032 = vmatprep.subr.bf16.mxu0 0
    %3033 = vmatpush1.bf16.msra.mxu0 0
    %3034 = vmatprep.subr.bf16.mxu0 0
    %3035 = vmatpush1.bf16.msra.mxu0 0
    %3036 = vmatprep.subr.bf16.mxu0 0
    %3037 = vmatpush1.bf16.msra.mxu0 0
    %3038 = vmatprep.subr.bf16.mxu0 0
    %3039 = vmatpush1.bf16.msra.mxu0 %v3016
    %3040 = vmatprep.subr.bf16.mxu0 0
    %3041 = vmatpush1.bf16.msra.mxu0 %v3015
    %3042 = vmatprep.subr.bf16.mxu0 0
    %3043 = vmatpush2.bf16.msra.mxu0 0
    %3044 = vmatprep.subr.bf16.mxu0 0
    %3045 = vmatpush2.bf16.msra.mxu0 0
    %3046 = vmatprep.subr.bf16.mxu0 0
    %3047 = vmatpush2.bf16.msra.mxu0 0
    %3048 = vmatprep.subr.bf16.mxu0 0
    %3049 = vmatpush2.bf16.msra.mxu0 0
    %3050 = vmatprep.subr.bf16.mxu0 0
    %3051 = vmatpush2.bf16.msra.mxu0 0
    %3052 = vmatprep.subr.bf16.mxu0 0
    %3053 = vmatpush2.bf16.msra.mxu0 0
    %3054 = vmatprep.subr.bf16.mxu0 0
    %3055 = vmatpush2.bf16.msra.mxu0 0
    %3056 = vmatprep.subr.bf16.mxu0 0
    %3057 = vmatpush2.bf16.msra.mxu0 0
    %3058 = vmatprep.mubr.bf16.mxu0 0
    %3059 = vmatmul.mubr.bf16.gmra.mxu0 %v3024
    %v3060 = vpop.f32.mrf.mxu0
    %v3061 = vadd.f32 %v3021, %v3060
    %v3062 = vpop.f32.mrf.mxu0
    %v3063 = vpop.f32.mrf.mxu0
    %v3064 = vadd.f32 %v3021, %v3063
    %v3065 = vpop.f32.mrf.mxu0
    %3066 = vdwg.mxu0
    %v3067 = vpack.c.bf16 %v3061, %v3061
    %v3068 = vpack.c.bf16 %v3064, %v3064
    %3070 = vrot.lane.b32.xlu0 %v3067, 96
    %v3071 = vpop.permute.xlu0 %3070
    %v3073 = vsel %vm271, %v3067, 0
    %v3076 = vsel %vm271, %v3071, 0
    %3078 = vmatprep.subr.bf16.mxu0 0
    %3079 = vmatpush1.bf16.xpose.msra.mxu0 0
    %3080 = vmatprep.subr.bf16.mxu0 0
    %3081 = vmatpush1.bf16.xpose.msra.mxu0 0
    %3082 = vmatprep.subr.bf16.mxu0 0
    %3083 = vmatpush1.bf16.xpose.msra.mxu0 0
    %3084 = vmatprep.subr.bf16.mxu0 0
    %3085 = vmatpush1.bf16.xpose.msra.mxu0 0
    %3086 = vmatprep.subr.bf16.mxu0 0
    %3087 = vmatpush1.bf16.xpose.msra.mxu0 0
    %3088 = vmatprep.subr.bf16.mxu0 0
    %3089 = vmatpush1.bf16.xpose.msra.mxu0 0
    %3090 = vmatprep.subr.bf16.mxu0 0
    %3091 = vmatpush1.bf16.xpose.msra.mxu0 0
    %3092 = vmatprep.subr.bf16.mxu0 0
    %3093 = vmatpush1.bf16.xpose.msra.mxu0 %v3076
    %3094 = vmatprep.subr.bf16.mxu0 0
    %3095 = vmatpush2.bf16.xpose.msra.mxu0 0
    %3096 = vmatprep.subr.bf16.mxu0 0
    %3097 = vmatpush2.bf16.xpose.msra.mxu0 0
    %3098 = vmatprep.subr.bf16.mxu0 0
    %3099 = vmatpush2.bf16.xpose.msra.mxu0 0
    %3100 = vmatprep.subr.bf16.mxu0 0
    %3101 = vmatpush2.bf16.xpose.msra.mxu0 0
    %3102 = vmatprep.subr.bf16.mxu0 0
    %3103 = vmatpush2.bf16.xpose.msra.mxu0 0
    %3104 = vmatprep.subr.bf16.mxu0 0
    %3105 = vmatpush2.bf16.xpose.msra.mxu0 0
    %3106 = vmatprep.subr.bf16.mxu0 0
    %3107 = vmatpush2.bf16.xpose.msra.mxu0 0
    %3108 = vmatprep.subr.bf16.mxu0 0
    %3109 = vmatpush2.bf16.xpose.msra.mxu0 0
    %3110 = vmatprep.mubr.bf16.mxu0 0
    %3111 = vmatmul.mubr.bf16.gmra.mxu0 %v3073
    %v3112 = vpop.f32.mrf.mxu0
    %v3113 = vadd.f32 0.0, %v3112
    %v3114 = vpop.f32.mrf.mxu0
    %v3115 = vpop.f32.mrf.mxu0
    %v3116 = vpop.f32.mrf.mxu0
    %3117 = vdwg.mxu0
    %3119 = vrot.lane.b32.xlu0 %v3068, 96
    %v3120 = vpop.permute.xlu0 %3119
    %v3122 = vsel %vm271, %v3068, 0
    %v3125 = vsel %vm271, %v3120, 0
    %3127 = vmatprep.subr.bf16.mxu0 0
    %3128 = vmatpush1.bf16.xpose.msra.mxu0 0
    %3129 = vmatprep.subr.bf16.mxu0 0
    %3130 = vmatpush1.bf16.xpose.msra.mxu0 0
    %3131 = vmatprep.subr.bf16.mxu0 0
    %3132 = vmatpush1.bf16.xpose.msra.mxu0 0
    %3133 = vmatprep.subr.bf16.mxu0 0
    %3134 = vmatpush1.bf16.xpose.msra.mxu0 0
    %3135 = vmatprep.subr.bf16.mxu0 0
    %3136 = vmatpush1.bf16.xpose.msra.mxu0 0
    %3137 = vmatprep.subr.bf16.mxu0 0
    %3138 = vmatpush1.bf16.xpose.msra.mxu0 0
    %3139 = vmatprep.subr.bf16.mxu0 0
    %3140 = vmatpush1.bf16.xpose.msra.mxu0 0
    %3141 = vmatprep.subr.bf16.mxu0 0
    %3142 = vmatpush1.bf16.xpose.msra.mxu0 %v3125
    %3143 = vmatprep.subr.bf16.mxu0 0
    %3144 = vmatpush2.bf16.xpose.msra.mxu0 0
    %3145 = vmatprep.subr.bf16.mxu0 0
    %3146 = vmatpush2.bf16.xpose.msra.mxu0 0
    %3147 = vmatprep.subr.bf16.mxu0 0
    %3148 = vmatpush2.bf16.xpose.msra.mxu0 0
    %3149 = vmatprep.subr.bf16.mxu0 0
    %3150 = vmatpush2.bf16.xpose.msra.mxu0 0
    %3151 = vmatprep.subr.bf16.mxu0 0
    %3152 = vmatpush2.bf16.xpose.msra.mxu0 0
    %3153 = vmatprep.subr.bf16.mxu0 0
    %3154 = vmatpush2.bf16.xpose.msra.mxu0 0
    %3155 = vmatprep.subr.bf16.mxu0 0
    %3156 = vmatpush2.bf16.xpose.msra.mxu0 0
    %3157 = vmatprep.subr.bf16.mxu0 0
    %3158 = vmatpush2.bf16.xpose.msra.mxu0 0
    %3159 = vmatprep.mubr.bf16.mxu0 0
    %3160 = vmatmul.mubr.bf16.gmra.mxu0 %v3122
    %v3161 = vpop.f32.mrf.mxu0
    %v3162 = vadd.f32 0.0, %v3161
    %v3163 = vpop.f32.mrf.mxu0
    %v3164 = vpop.f32.mrf.mxu0
    %v3165 = vpop.f32.mrf.mxu0
    %3166 = vdwg.mxu0
    %v3167 = vmul.f32 %v3113, 0.35355338
    %v3168 = vmul.f32 %v3162, 0.35355338
    %v3169 = vadd.f32 %v3167, %v181
    %v3170 = vadd.f32 %v3168, %v181
    %v3171 = vsel %vm271, %v3169, -inf
    %3172 = vmax.xlane.f32.xlu0 %v3171
    %v3173 = vpop.xlane.xlu0 %3172
    %v3174 = vsel %vm271, %v3170, -inf
    %3175 = vmax.xlane.f32.xlu0 %v3174
    %v3176 = vpop.xlane.xlu0 %3175
    %v3177 = vsub.f32 %v3169, %v3173
    %v3178 = vsub.f32 %v3170, %v3176
    %v3179 = vmul.f32 %v3177, 1.442695
    %v3180 = vpow.pop %v3179
    %v3181 = vmul.f32 %v3178, 1.442695
    %v3182 = vpow.pop %v3181
    %v3183 = vsel %vm271, %v3180, 0.0
    %3184 = vadd.xlane.f32.xlu0 %v3183
    %v3185 = vpop.xlane.xlu0 %3184
    %v3186 = vsel %vm271, %v3182, 0.0
    %3187 = vadd.xlane.f32.xlu0 %v3186
    %v3188 = vpop.xlane.xlu0 %3187
    %v3189 = vrcp.pop %v3185
    %v3190 = vrcp.pop %v3188
    %v3191 = vmul.f32 %v3180, %v3189
    %v3192 = vmul.f32 %v3182, %v3190
    %v3193 = vpack.c.bf16 %v3191, %v3191
    %v3194 = vpack.c.bf16 %v3192, %v3192
    %3195 = vrot.lane.b32.xlu0 %v3067, 64
    %v3196 = vpop.permute.xlu0 %3195
    %v3198 = vsel %vm271, %v3193, 0
    %v3201 = vsel %vm400, %v3196, 0
    %3203 = vmatprep.subr.bf16.mxu0 0
    %3204 = vmatpush1.bf16.msra.mxu0 0
    %3205 = vmatprep.subr.bf16.mxu0 0
    %3206 = vmatpush1.bf16.msra.mxu0 0
    %3207 = vmatprep.subr.bf16.mxu0 0
    %3208 = vmatpush1.bf16.msra.mxu0 0
    %3209 = vmatprep.subr.bf16.mxu0 0
    %3210 = vmatpush1.bf16.msra.mxu0 0
    %3211 = vmatprep.subr.bf16.mxu0 0
    %3212 = vmatpush1.bf16.msra.mxu0 0
    %3213 = vmatprep.subr.bf16.mxu0 0
    %3214 = vmatpush1.bf16.msra.mxu0 0
    %3215 = vmatprep.subr.bf16.mxu0 0
    %3216 = vmatpush1.bf16.msra.mxu0 0
    %3217 = vmatprep.subr.bf16.mxu0 0
    %3218 = vmatpush1.bf16.msra.mxu0 %v3201
    %3219 = vmatprep.subr.bf16.mxu0 0
    %3220 = vmatpush2.bf16.msra.mxu0 0
    %3221 = vmatprep.subr.bf16.mxu0 0
    %3222 = vmatpush2.bf16.msra.mxu0 0
    %3223 = vmatprep.subr.bf16.mxu0 0
    %3224 = vmatpush2.bf16.msra.mxu0 0
    %3225 = vmatprep.subr.bf16.mxu0 0
    %3226 = vmatpush2.bf16.msra.mxu0 0
    %3227 = vmatprep.subr.bf16.mxu0 0
    %3228 = vmatpush2.bf16.msra.mxu0 0
    %3229 = vmatprep.subr.bf16.mxu0 0
    %3230 = vmatpush2.bf16.msra.mxu0 0
    %3231 = vmatprep.subr.bf16.mxu0 0
    %3232 = vmatpush2.bf16.msra.mxu0 0
    %3233 = vmatprep.subr.bf16.mxu0 0
    %3234 = vmatpush2.bf16.msra.mxu0 0
    %3235 = vmatprep.mubr.bf16.mxu0 0
    %3236 = vmatmul.mubr.bf16.gmra.mxu0 %v3198
    %v3237 = vpop.f32.mrf.mxu0
    %v3238 = vadd.f32 0.0, %v3237
    %v3239 = vpop.f32.mrf.mxu0
    %v3240 = vpop.f32.mrf.mxu0
    %v3241 = vpop.f32.mrf.mxu0
    %3242 = vdwg.mxu0
    %3243 = vrot.lane.b32.xlu0 %v3068, 64
    %v3244 = vpop.permute.xlu0 %3243
    %v3246 = vsel %vm271, %v3194, 0
    %v3249 = vsel %vm400, %v3244, 0
    %3251 = vmatprep.subr.bf16.mxu0 0
    %3252 = vmatpush1.bf16.msra.mxu0 0
    %3253 = vmatprep.subr.bf16.mxu0 0
    %3254 = vmatpush1.bf16.msra.mxu0 0
    %3255 = vmatprep.subr.bf16.mxu0 0
    %3256 = vmatpush1.bf16.msra.mxu0 0
    %3257 = vmatprep.subr.bf16.mxu0 0
    %3258 = vmatpush1.bf16.msra.mxu0 0
    %3259 = vmatprep.subr.bf16.mxu0 0
    %3260 = vmatpush1.bf16.msra.mxu0 0
    %3261 = vmatprep.subr.bf16.mxu0 0
    %3262 = vmatpush1.bf16.msra.mxu0 0
    %3263 = vmatprep.subr.bf16.mxu0 0
    %3264 = vmatpush1.bf16.msra.mxu0 0
    %3265 = vmatprep.subr.bf16.mxu0 0
    %3266 = vmatpush1.bf16.msra.mxu0 %v3249
    %3267 = vmatprep.subr.bf16.mxu0 0
    %3268 = vmatpush2.bf16.msra.mxu0 0
    %3269 = vmatprep.subr.bf16.mxu0 0
    %3270 = vmatpush2.bf16.msra.mxu0 0
    %3271 = vmatprep.subr.bf16.mxu0 0
    %3272 = vmatpush2.bf16.msra.mxu0 0
    %3273 = vmatprep.subr.bf16.mxu0 0
    %3274 = vmatpush2.bf16.msra.mxu0 0
    %3275 = vmatprep.subr.bf16.mxu0 0
    %3276 = vmatpush2.bf16.msra.mxu0 0
    %3277 = vmatprep.subr.bf16.mxu0 0
    %3278 = vmatpush2.bf16.msra.mxu0 0
    %3279 = vmatprep.subr.bf16.mxu0 0
    %3280 = vmatpush2.bf16.msra.mxu0 0
    %3281 = vmatprep.subr.bf16.mxu0 0
    %3282 = vmatpush2.bf16.msra.mxu0 0
    %3283 = vmatprep.mubr.bf16.mxu0 0
    %3284 = vmatmul.mubr.bf16.gmra.mxu0 %v3246
    %v3285 = vpop.f32.mrf.mxu0
    %v3286 = vadd.f32 0.0, %v3285
    %v3287 = vpop.f32.mrf.mxu0
    %v3288 = vpop.f32.mrf.mxu0
    %v3289 = vpop.f32.mrf.mxu0
    %3290 = vdwg.mxu0
    %v3291 = vpack.c.bf16 %v3286, %v3238
    %v3292 = vpack.c.bf16 %v2974, %v2974
    %3293 = vrot.lane.b32.xlu0 %v3067, 120
    %v3294 = vpop.permute.xlu0 %3293
    %3295 = vrot.lane.b32.xlu0 %v3067, 88
    %v3296 = vpop.permute.xlu0 %3295
    %v3298 = vsel %vm271, %v3294, 0
    %v3301 = vsel %vm271, %v3296, 0
    %3303 = vmatprep.subr.bf16.mxu0 0
    %3304 = vmatpush1.bf16.xpose.msra.mxu0 0
    %3305 = vmatprep.subr.bf16.mxu0 0
    %3306 = vmatpush1.bf16.xpose.msra.mxu0 0
    %3307 = vmatprep.subr.bf16.mxu0 0
    %3308 = vmatpush1.bf16.xpose.msra.mxu0 0
    %3309 = vmatprep.subr.bf16.mxu0 0
    %3310 = vmatpush1.bf16.xpose.msra.mxu0 0
    %3311 = vmatprep.subr.bf16.mxu0 0
    %3312 = vmatpush1.bf16.xpose.msra.mxu0 0
    %3313 = vmatprep.subr.bf16.mxu0 0
    %3314 = vmatpush1.bf16.xpose.msra.mxu0 0
    %3315 = vmatprep.subr.bf16.mxu0 0
    %3316 = vmatpush1.bf16.xpose.msra.mxu0 0
    %3317 = vmatprep.subr.bf16.mxu0 0
    %3318 = vmatpush1.bf16.xpose.msra.mxu0 %v3301
    %3319 = vmatprep.subr.bf16.mxu0 0
    %3320 = vmatpush2.bf16.xpose.msra.mxu0 0
    %3321 = vmatprep.subr.bf16.mxu0 0
    %3322 = vmatpush2.bf16.xpose.msra.mxu0 0
    %3323 = vmatprep.subr.bf16.mxu0 0
    %3324 = vmatpush2.bf16.xpose.msra.mxu0 0
    %3325 = vmatprep.subr.bf16.mxu0 0
    %3326 = vmatpush2.bf16.xpose.msra.mxu0 0
    %3327 = vmatprep.subr.bf16.mxu0 0
    %3328 = vmatpush2.bf16.xpose.msra.mxu0 0
    %3329 = vmatprep.subr.bf16.mxu0 0
    %3330 = vmatpush2.bf16.xpose.msra.mxu0 0
    %3331 = vmatprep.subr.bf16.mxu0 0
    %3332 = vmatpush2.bf16.xpose.msra.mxu0 0
    %3333 = vmatprep.subr.bf16.mxu0 0
    %3334 = vmatpush2.bf16.xpose.msra.mxu0 0
    %3335 = vmatprep.mubr.bf16.mxu0 0
    %3336 = vmatmul.mubr.bf16.gmra.mxu0 %v3298
    %v3337 = vpop.f32.mrf.mxu0
    %v3338 = vadd.f32 0.0, %v3337
    %v3339 = vpop.f32.mrf.mxu0
    %v3340 = vpop.f32.mrf.mxu0
    %v3341 = vpop.f32.mrf.mxu0
    %3342 = vdwg.mxu0
    %3343 = vrot.lane.b32.xlu0 %v3068, 120
    %v3344 = vpop.permute.xlu0 %3343
    %3345 = vrot.lane.b32.xlu0 %v3068, 88
    %v3346 = vpop.permute.xlu0 %3345
    %v3348 = vsel %vm271, %v3344, 0
    %v3351 = vsel %vm271, %v3346, 0
    %3353 = vmatprep.subr.bf16.mxu0 0
    %3354 = vmatpush1.bf16.xpose.msra.mxu0 0
    %3355 = vmatprep.subr.bf16.mxu0 0
    %3356 = vmatpush1.bf16.xpose.msra.mxu0 0
    %3357 = vmatprep.subr.bf16.mxu0 0
    %3358 = vmatpush1.bf16.xpose.msra.mxu0 0
    %3359 = vmatprep.subr.bf16.mxu0 0
    %3360 = vmatpush1.bf16.xpose.msra.mxu0 0
    %3361 = vmatprep.subr.bf16.mxu0 0
    %3362 = vmatpush1.bf16.xpose.msra.mxu0 0
    %3363 = vmatprep.subr.bf16.mxu0 0
    %3364 = vmatpush1.bf16.xpose.msra.mxu0 0
    %3365 = vmatprep.subr.bf16.mxu0 0
    %3366 = vmatpush1.bf16.xpose.msra.mxu0 0
    %3367 = vmatprep.subr.bf16.mxu0 0
    %3368 = vmatpush1.bf16.xpose.msra.mxu0 %v3351
    %3369 = vmatprep.subr.bf16.mxu0 0
    %3370 = vmatpush2.bf16.xpose.msra.mxu0 0
    %3371 = vmatprep.subr.bf16.mxu0 0
    %3372 = vmatpush2.bf16.xpose.msra.mxu0 0
    %3373 = vmatprep.subr.bf16.mxu0 0
    %3374 = vmatpush2.bf16.xpose.msra.mxu0 0
    %3375 = vmatprep.subr.bf16.mxu0 0
    %3376 = vmatpush2.bf16.xpose.msra.mxu0 0
    %3377 = vmatprep.subr.bf16.mxu0 0
    %3378 = vmatpush2.bf16.xpose.msra.mxu0 0
    %3379 = vmatprep.subr.bf16.mxu0 0
    %3380 = vmatpush2.bf16.xpose.msra.mxu0 0
    %3381 = vmatprep.subr.bf16.mxu0 0
    %3382 = vmatpush2.bf16.xpose.msra.mxu0 0
    %3383 = vmatprep.subr.bf16.mxu0 0
    %3384 = vmatpush2.bf16.xpose.msra.mxu0 0
    %3385 = vmatprep.mubr.bf16.mxu0 0
    %3386 = vmatmul.mubr.bf16.gmra.mxu0 %v3348
    %v3387 = vpop.f32.mrf.mxu0
    %v3388 = vadd.f32 0.0, %v3387
    %v3389 = vpop.f32.mrf.mxu0
    %v3390 = vpop.f32.mrf.mxu0
    %v3391 = vpop.f32.mrf.mxu0
    %3392 = vdwg.mxu0
    %v3393 = vmul.f32 %v3338, 0.35355338
    %v3394 = vmul.f32 %v3388, 0.35355338
    %v3395 = vadd.f32 %v3393, %v181
    %v3396 = vadd.f32 %v3394, %v181
    %v3397 = vsel %vm271, %v3395, -inf
    %3398 = vmax.xlane.f32.xlu0 %v3397
    %v3399 = vpop.xlane.xlu0 %3398
    %v3400 = vsel %vm271, %v3396, -inf
    %3401 = vmax.xlane.f32.xlu0 %v3400
    %v3402 = vpop.xlane.xlu0 %3401
    %v3403 = vsub.f32 %v3395, %v3399
    %v3404 = vsub.f32 %v3396, %v3402
    %v3405 = vmul.f32 %v3403, 1.442695
    %v3406 = vpow.pop %v3405
    %v3407 = vmul.f32 %v3404, 1.442695
    %v3408 = vpow.pop %v3407
    %v3409 = vsel %vm271, %v3406, 0.0
    %3410 = vadd.xlane.f32.xlu0 %v3409
    %v3411 = vpop.xlane.xlu0 %3410
    %v3412 = vsel %vm271, %v3408, 0.0
    %3413 = vadd.xlane.f32.xlu0 %v3412
    %v3414 = vpop.xlane.xlu0 %3413
    %v3415 = vrcp.pop %v3411
    %v3416 = vrcp.pop %v3414
    %v3417 = vmul.f32 %v3406, %v3415
    %v3418 = vmul.f32 %v3408, %v3416
    %v3419 = vpack.c.bf16 %v3417, %v3417
    %v3420 = vpack.c.bf16 %v3418, %v3418
    %3421 = vrot.lane.b32.xlu0 %v3067, 56
    %v3422 = vpop.permute.xlu0 %3421
    %v3424 = vsel %vm271, %v3419, 0
    %v3427 = vsel %vm400, %v3422, 0
    %3429 = vmatprep.subr.bf16.mxu0 0
    %3430 = vmatpush1.bf16.msra.mxu0 0
    %3431 = vmatprep.subr.bf16.mxu0 0
    %3432 = vmatpush1.bf16.msra.mxu0 0
    %3433 = vmatprep.subr.bf16.mxu0 0
    %3434 = vmatpush1.bf16.msra.mxu0 0
    %3435 = vmatprep.subr.bf16.mxu0 0
    %3436 = vmatpush1.bf16.msra.mxu0 0
    %3437 = vmatprep.subr.bf16.mxu0 0
    %3438 = vmatpush1.bf16.msra.mxu0 0
    %3439 = vmatprep.subr.bf16.mxu0 0
    %3440 = vmatpush1.bf16.msra.mxu0 0
    %3441 = vmatprep.subr.bf16.mxu0 0
    %3442 = vmatpush1.bf16.msra.mxu0 0
    %3443 = vmatprep.subr.bf16.mxu0 0
    %3444 = vmatpush1.bf16.msra.mxu0 %v3427
    %3445 = vmatprep.subr.bf16.mxu0 0
    %3446 = vmatpush2.bf16.msra.mxu0 0
    %3447 = vmatprep.subr.bf16.mxu0 0
    %3448 = vmatpush2.bf16.msra.mxu0 0
    %3449 = vmatprep.subr.bf16.mxu0 0
    %3450 = vmatpush2.bf16.msra.mxu0 0
    %3451 = vmatprep.subr.bf16.mxu0 0
    %3452 = vmatpush2.bf16.msra.mxu0 0
    %3453 = vmatprep.subr.bf16.mxu0 0
    %3454 = vmatpush2.bf16.msra.mxu0 0
    %3455 = vmatprep.subr.bf16.mxu0 0
    %3456 = vmatpush2.bf16.msra.mxu0 0
    %3457 = vmatprep.subr.bf16.mxu0 0
    %3458 = vmatpush2.bf16.msra.mxu0 0
    %3459 = vmatprep.subr.bf16.mxu0 0
    %3460 = vmatpush2.bf16.msra.mxu0 0
    %3461 = vmatprep.mubr.bf16.mxu0 0
    %3462 = vmatmul.mubr.bf16.gmra.mxu0 %v3424
    %v3463 = vpop.f32.mrf.mxu0
    %v3464 = vadd.f32 0.0, %v3463
    %v3465 = vpop.f32.mrf.mxu0
    %v3466 = vpop.f32.mrf.mxu0
    %v3467 = vpop.f32.mrf.mxu0
    %3468 = vdwg.mxu0
    %3469 = vrot.lane.b32.xlu0 %v3068, 56
    %v3470 = vpop.permute.xlu0 %3469
    %v3472 = vsel %vm271, %v3420, 0
    %v3475 = vsel %vm400, %v3470, 0
    %3477 = vmatprep.subr.bf16.mxu0 0
    %3478 = vmatpush1.bf16.msra.mxu0 0
    %3479 = vmatprep.subr.bf16.mxu0 0
    %3480 = vmatpush1.bf16.msra.mxu0 0
    %3481 = vmatprep.subr.bf16.mxu0 0
    %3482 = vmatpush1.bf16.msra.mxu0 0
    %3483 = vmatprep.subr.bf16.mxu0 0
    %3484 = vmatpush1.bf16.msra.mxu0 0
    %3485 = vmatprep.subr.bf16.mxu0 0
    %3486 = vmatpush1.bf16.msra.mxu0 0
    %3487 = vmatprep.subr.bf16.mxu0 0
    %3488 = vmatpush1.bf16.msra.mxu0 0
    %3489 = vmatprep.subr.bf16.mxu0 0
    %3490 = vmatpush1.bf16.msra.mxu0 0
    %3491 = vmatprep.subr.bf16.mxu0 0
    %3492 = vmatpush1.bf16.msra.mxu0 %v3475
    %3493 = vmatprep.subr.bf16.mxu0 0
    %3494 = vmatpush2.bf16.msra.mxu0 0
    %3495 = vmatprep.subr.bf16.mxu0 0
    %3496 = vmatpush2.bf16.msra.mxu0 0
    %3497 = vmatprep.subr.bf16.mxu0 0
    %3498 = vmatpush2.bf16.msra.mxu0 0
    %3499 = vmatprep.subr.bf16.mxu0 0
    %3500 = vmatpush2.bf16.msra.mxu0 0
    %3501 = vmatprep.subr.bf16.mxu0 0
    %3502 = vmatpush2.bf16.msra.mxu0 0
    %3503 = vmatprep.subr.bf16.mxu0 0
    %3504 = vmatpush2.bf16.msra.mxu0 0
    %3505 = vmatprep.subr.bf16.mxu0 0
    %3506 = vmatpush2.bf16.msra.mxu0 0
    %3507 = vmatprep.subr.bf16.mxu0 0
    %3508 = vmatpush2.bf16.msra.mxu0 0
    %3509 = vmatprep.mubr.bf16.mxu0 0
    %3510 = vmatmul.mubr.bf16.gmra.mxu0 %v3472
    %v3511 = vpop.f32.mrf.mxu0
    %v3512 = vadd.f32 0.0, %v3511
    %v3513 = vpop.f32.mrf.mxu0
    %v3514 = vpop.f32.mrf.mxu0
    %v3515 = vpop.f32.mrf.mxu0
    %3516 = vdwg.mxu0
    %v3517 = vpack.c.bf16 %v3512, %v3464
    %v3518 = vpack.c.bf16 %v2975, %v2975
    %v3520 = vsel %vm271, %v3517, 0
    %v3523 = vsel %vm400, %v3518, 0
    %3525 = vmatprep.subr.bf16.mxu0 0
    %3526 = vmatpush1.bf16.msra.mxu0 0
    %3527 = vmatprep.subr.bf16.mxu0 0
    %3528 = vmatpush1.bf16.msra.mxu0 0
    %3529 = vmatprep.subr.bf16.mxu0 0
    %3530 = vmatpush1.bf16.msra.mxu0 0
    %3531 = vmatprep.subr.bf16.mxu0 0
    %3532 = vmatpush1.bf16.msra.mxu0 0
    %3533 = vmatprep.subr.bf16.mxu0 0
    %3534 = vmatpush1.bf16.msra.mxu0 0
    %3535 = vmatprep.subr.bf16.mxu0 0
    %3536 = vmatpush1.bf16.msra.mxu0 0
    %3537 = vmatprep.subr.bf16.mxu0 0
    %3538 = vmatpush1.bf16.msra.mxu0 0
    %3539 = vmatprep.subr.bf16.mxu0 0
    %3540 = vmatpush1.bf16.msra.mxu0 %v3523
    %3541 = vmatprep.subr.bf16.mxu0 0
    %3542 = vmatpush2.bf16.msra.mxu0 0
    %3543 = vmatprep.subr.bf16.mxu0 0
    %3544 = vmatpush2.bf16.msra.mxu0 0
    %3545 = vmatprep.subr.bf16.mxu0 0
    %3546 = vmatpush2.bf16.msra.mxu0 0
    %3547 = vmatprep.subr.bf16.mxu0 0
    %3548 = vmatpush2.bf16.msra.mxu0 0
    %3549 = vmatprep.subr.bf16.mxu0 0
    %3550 = vmatpush2.bf16.msra.mxu0 0
    %3551 = vmatprep.subr.bf16.mxu0 0
    %3552 = vmatpush2.bf16.msra.mxu0 0
    %3553 = vmatprep.subr.bf16.mxu0 0
    %3554 = vmatpush2.bf16.msra.mxu0 0
    %3555 = vmatprep.subr.bf16.mxu0 0
    %3556 = vmatpush2.bf16.msra.mxu0 0
    %3557 = vmatprep.mubr.bf16.mxu0 0
    %3558 = vmatmul.mubr.bf16.gmra.mxu0 %v3520
    %v3559 = vpop.f32.mrf.mxu0
    %v3560 = vadd.f32 0.0, %v3559
    %v3561 = vpop.f32.mrf.mxu0
    %v3562 = vpop.f32.mrf.mxu0
    %v3563 = vadd.f32 0.0, %v3562
    %v3564 = vpop.f32.mrf.mxu0
    %3565 = vdwg.mxu0
    %v3567 = vsel %vm271, %v3291, 0
    %v3570 = vsel %vm400, %v3292, 0
    %3572 = vmatprep.subr.bf16.mxu0 0
    %3573 = vmatpush1.bf16.msra.mxu0 0
    %3574 = vmatprep.subr.bf16.mxu0 0
    %3575 = vmatpush1.bf16.msra.mxu0 0
    %3576 = vmatprep.subr.bf16.mxu0 0
    %3577 = vmatpush1.bf16.msra.mxu0 0
    %3578 = vmatprep.subr.bf16.mxu0 0
    %3579 = vmatpush1.bf16.msra.mxu0 0
    %3580 = vmatprep.subr.bf16.mxu0 0
    %3581 = vmatpush1.bf16.msra.mxu0 0
    %3582 = vmatprep.subr.bf16.mxu0 0
    %3583 = vmatpush1.bf16.msra.mxu0 0
    %3584 = vmatprep.subr.bf16.mxu0 0
    %3585 = vmatpush1.bf16.msra.mxu0 0
    %3586 = vmatprep.subr.bf16.mxu0 0
    %3587 = vmatpush1.bf16.msra.mxu0 %v3570
    %3588 = vmatprep.subr.bf16.mxu0 0
    %3589 = vmatpush2.bf16.msra.mxu0 0
    %3590 = vmatprep.subr.bf16.mxu0 0
    %3591 = vmatpush2.bf16.msra.mxu0 0
    %3592 = vmatprep.subr.bf16.mxu0 0
    %3593 = vmatpush2.bf16.msra.mxu0 0
    %3594 = vmatprep.subr.bf16.mxu0 0
    %3595 = vmatpush2.bf16.msra.mxu0 0
    %3596 = vmatprep.subr.bf16.mxu0 0
    %3597 = vmatpush2.bf16.msra.mxu0 0
    %3598 = vmatprep.subr.bf16.mxu0 0
    %3599 = vmatpush2.bf16.msra.mxu0 0
    %3600 = vmatprep.subr.bf16.mxu0 0
    %3601 = vmatpush2.bf16.msra.mxu0 0
    %3602 = vmatprep.subr.bf16.mxu0 0
    %3603 = vmatpush2.bf16.msra.mxu0 0
    %3604 = vmatprep.mubr.bf16.mxu0 0
    %3605 = vmatmul.mubr.bf16.gmra.mxu0 %v3567
    %v3606 = vpop.f32.mrf.mxu0
    %v3607 = vadd.f32 %v3560, %v3606
    %v3608 = vpop.f32.mrf.mxu0
    %v3609 = vpop.f32.mrf.mxu0
    %v3610 = vadd.f32 %v3563, %v3609
    %v3611 = vpop.f32.mrf.mxu0
    %3612 = vdwg.mxu0
    %3613 = vrot.lane.b32.xlu0 %v3067, 112
    %v3614 = vpop.permute.xlu0 %3613
    %3615 = vrot.lane.b32.xlu0 %v3067, 80
    %v3616 = vpop.permute.xlu0 %3615
    %v3618 = vsel %vm271, %v3614, 0
    %v3621 = vsel %vm271, %v3616, 0
    %3623 = vmatprep.subr.bf16.mxu0 0
    %3624 = vmatpush1.bf16.xpose.msra.mxu0 0
    %3625 = vmatprep.subr.bf16.mxu0 0
    %3626 = vmatpush1.bf16.xpose.msra.mxu0 0
    %3627 = vmatprep.subr.bf16.mxu0 0
    %3628 = vmatpush1.bf16.xpose.msra.mxu0 0
    %3629 = vmatprep.subr.bf16.mxu0 0
    %3630 = vmatpush1.bf16.xpose.msra.mxu0 0
    %3631 = vmatprep.subr.bf16.mxu0 0
    %3632 = vmatpush1.bf16.xpose.msra.mxu0 0
    %3633 = vmatprep.subr.bf16.mxu0 0
    %3634 = vmatpush1.bf16.xpose.msra.mxu0 0
    %3635 = vmatprep.subr.bf16.mxu0 0
    %3636 = vmatpush1.bf16.xpose.msra.mxu0 0
    %3637 = vmatprep.subr.bf16.mxu0 0
    %3638 = vmatpush1.bf16.xpose.msra.mxu0 %v3621
    %3639 = vmatprep.subr.bf16.mxu0 0
    %3640 = vmatpush2.bf16.xpose.msra.mxu0 0
    %3641 = vmatprep.subr.bf16.mxu0 0
    %3642 = vmatpush2.bf16.xpose.msra.mxu0 0
    %3643 = vmatprep.subr.bf16.mxu0 0
    %3644 = vmatpush2.bf16.xpose.msra.mxu0 0
    %3645 = vmatprep.subr.bf16.mxu0 0
    %3646 = vmatpush2.bf16.xpose.msra.mxu0 0
    %3647 = vmatprep.subr.bf16.mxu0 0
    %3648 = vmatpush2.bf16.xpose.msra.mxu0 0
    %3649 = vmatprep.subr.bf16.mxu0 0
    %3650 = vmatpush2.bf16.xpose.msra.mxu0 0
    %3651 = vmatprep.subr.bf16.mxu0 0
    %3652 = vmatpush2.bf16.xpose.msra.mxu0 0
    %3653 = vmatprep.subr.bf16.mxu0 0
    %3654 = vmatpush2.bf16.xpose.msra.mxu0 0
    %3655 = vmatprep.mubr.bf16.mxu0 0
    %3656 = vmatmul.mubr.bf16.gmra.mxu0 %v3618
    %v3657 = vpop.f32.mrf.mxu0
    %v3658 = vadd.f32 0.0, %v3657
    %v3659 = vpop.f32.mrf.mxu0
    %v3660 = vpop.f32.mrf.mxu0
    %v3661 = vpop.f32.mrf.mxu0
    %3662 = vdwg.mxu0
    %3663 = vrot.lane.b32.xlu0 %v3068, 112
    %v3664 = vpop.permute.xlu0 %3663
    %3665 = vrot.lane.b32.xlu0 %v3068, 80
    %v3666 = vpop.permute.xlu0 %3665
    %v3668 = vsel %vm271, %v3664, 0
    %v3671 = vsel %vm271, %v3666, 0
    %3673 = vmatprep.subr.bf16.mxu0 0
    %3674 = vmatpush1.bf16.xpose.msra.mxu0 0
    %3675 = vmatprep.subr.bf16.mxu0 0
    %3676 = vmatpush1.bf16.xpose.msra.mxu0 0
    %3677 = vmatprep.subr.bf16.mxu0 0
    %3678 = vmatpush1.bf16.xpose.msra.mxu0 0
    %3679 = vmatprep.subr.bf16.mxu0 0
    %3680 = vmatpush1.bf16.xpose.msra.mxu0 0
    %3681 = vmatprep.subr.bf16.mxu0 0
    %3682 = vmatpush1.bf16.xpose.msra.mxu0 0
    %3683 = vmatprep.subr.bf16.mxu0 0
    %3684 = vmatpush1.bf16.xpose.msra.mxu0 0
    %3685 = vmatprep.subr.bf16.mxu0 0
    %3686 = vmatpush1.bf16.xpose.msra.mxu0 0
    %3687 = vmatprep.subr.bf16.mxu0 0
    %3688 = vmatpush1.bf16.xpose.msra.mxu0 %v3671
    %3689 = vmatprep.subr.bf16.mxu0 0
    %3690 = vmatpush2.bf16.xpose.msra.mxu0 0
    %3691 = vmatprep.subr.bf16.mxu0 0
    %3692 = vmatpush2.bf16.xpose.msra.mxu0 0
    %3693 = vmatprep.subr.bf16.mxu0 0
    %3694 = vmatpush2.bf16.xpose.msra.mxu0 0
    %3695 = vmatprep.subr.bf16.mxu0 0
    %3696 = vmatpush2.bf16.xpose.msra.mxu0 0
    %3697 = vmatprep.subr.bf16.mxu0 0
    %3698 = vmatpush2.bf16.xpose.msra.mxu0 0
    %3699 = vmatprep.subr.bf16.mxu0 0
    %3700 = vmatpush2.bf16.xpose.msra.mxu0 0
    %3701 = vmatprep.subr.bf16.mxu0 0
    %3702 = vmatpush2.bf16.xpose.msra.mxu0 0
    %3703 = vmatprep.subr.bf16.mxu0 0
    %3704 = vmatpush2.bf16.xpose.msra.mxu0 0
    %3705 = vmatprep.mubr.bf16.mxu0 0
    %3706 = vmatmul.mubr.bf16.gmra.mxu0 %v3668
    %v3707 = vpop.f32.mrf.mxu0
    %v3708 = vadd.f32 0.0, %v3707
    %v3709 = vpop.f32.mrf.mxu0
    %v3710 = vpop.f32.mrf.mxu0
    %v3711 = vpop.f32.mrf.mxu0
    %3712 = vdwg.mxu0
    %v3713 = vmul.f32 %v3658, 0.35355338
    %v3714 = vmul.f32 %v3708, 0.35355338
    %v3715 = vadd.f32 %v3713, %v181
    %v3716 = vadd.f32 %v3714, %v181
    %v3717 = vsel %vm271, %v3715, -inf
    %3718 = vmax.xlane.f32.xlu0 %v3717
    %v3719 = vpop.xlane.xlu0 %3718
    %v3720 = vsel %vm271, %v3716, -inf
    %3721 = vmax.xlane.f32.xlu0 %v3720
    %v3722 = vpop.xlane.xlu0 %3721
    %v3723 = vsub.f32 %v3715, %v3719
    %v3724 = vsub.f32 %v3716, %v3722
    %v3725 = vmul.f32 %v3723, 1.442695
    %v3726 = vpow.pop %v3725
    %v3727 = vmul.f32 %v3724, 1.442695
    %v3728 = vpow.pop %v3727
    %v3729 = vsel %vm271, %v3726, 0.0
    %3730 = vadd.xlane.f32.xlu0 %v3729
    %v3731 = vpop.xlane.xlu0 %3730
    %v3732 = vsel %vm271, %v3728, 0.0
    %3733 = vadd.xlane.f32.xlu0 %v3732
    %v3734 = vpop.xlane.xlu0 %3733
    %v3735 = vrcp.pop %v3731
    %v3736 = vrcp.pop %v3734
    %v3737 = vmul.f32 %v3726, %v3735
    %v3738 = vmul.f32 %v3728, %v3736
    %v3739 = vpack.c.bf16 %v3737, %v3737
    %v3740 = vpack.c.bf16 %v3738, %v3738
    %3741 = vrot.lane.b32.xlu0 %v3067, 48
    %v3742 = vpop.permute.xlu0 %3741
    %v3744 = vsel %vm271, %v3739, 0
    %v3747 = vsel %vm400, %v3742, 0
    %3749 = vmatprep.subr.bf16.mxu0 0
    %3750 = vmatpush1.bf16.msra.mxu0 0
    %3751 = vmatprep.subr.bf16.mxu0 0
    %3752 = vmatpush1.bf16.msra.mxu0 0
    %3753 = vmatprep.subr.bf16.mxu0 0
    %3754 = vmatpush1.bf16.msra.mxu0 0
    %3755 = vmatprep.subr.bf16.mxu0 0
    %3756 = vmatpush1.bf16.msra.mxu0 0
    %3757 = vmatprep.subr.bf16.mxu0 0
    %3758 = vmatpush1.bf16.msra.mxu0 0
    %3759 = vmatprep.subr.bf16.mxu0 0
    %3760 = vmatpush1.bf16.msra.mxu0 0
    %3761 = vmatprep.subr.bf16.mxu0 0
    %3762 = vmatpush1.bf16.msra.mxu0 0
    %3763 = vmatprep.subr.bf16.mxu0 0
    %3764 = vmatpush1.bf16.msra.mxu0 %v3747
    %3765 = vmatprep.subr.bf16.mxu0 0
    %3766 = vmatpush2.bf16.msra.mxu0 0
    %3767 = vmatprep.subr.bf16.mxu0 0
    %3768 = vmatpush2.bf16.msra.mxu0 0
    %3769 = vmatprep.subr.bf16.mxu0 0
    %3770 = vmatpush2.bf16.msra.mxu0 0
    %3771 = vmatprep.subr.bf16.mxu0 0
    %3772 = vmatpush2.bf16.msra.mxu0 0
    %3773 = vmatprep.subr.bf16.mxu0 0
    %3774 = vmatpush2.bf16.msra.mxu0 0
    %3775 = vmatprep.subr.bf16.mxu0 0
    %3776 = vmatpush2.bf16.msra.mxu0 0
    %3777 = vmatprep.subr.bf16.mxu0 0
    %3778 = vmatpush2.bf16.msra.mxu0 0
    %3779 = vmatprep.subr.bf16.mxu0 0
    %3780 = vmatpush2.bf16.msra.mxu0 0
    %3781 = vmatprep.mubr.bf16.mxu0 0
    %3782 = vmatmul.mubr.bf16.gmra.mxu0 %v3744
    %v3783 = vpop.f32.mrf.mxu0
    %v3784 = vadd.f32 0.0, %v3783
    %v3785 = vpop.f32.mrf.mxu0
    %v3786 = vpop.f32.mrf.mxu0
    %v3787 = vpop.f32.mrf.mxu0
    %3788 = vdwg.mxu0
    %3789 = vrot.lane.b32.xlu0 %v3068, 48
    %v3790 = vpop.permute.xlu0 %3789
    %v3792 = vsel %vm271, %v3740, 0
    %v3795 = vsel %vm400, %v3790, 0
    %3797 = vmatprep.subr.bf16.mxu0 0
    %3798 = vmatpush1.bf16.msra.mxu0 0
    %3799 = vmatprep.subr.bf16.mxu0 0
    %3800 = vmatpush1.bf16.msra.mxu0 0
    %3801 = vmatprep.subr.bf16.mxu0 0
    %3802 = vmatpush1.bf16.msra.mxu0 0
    %3803 = vmatprep.subr.bf16.mxu0 0
    %3804 = vmatpush1.bf16.msra.mxu0 0
    %3805 = vmatprep.subr.bf16.mxu0 0
    %3806 = vmatpush1.bf16.msra.mxu0 0
    %3807 = vmatprep.subr.bf16.mxu0 0
    %3808 = vmatpush1.bf16.msra.mxu0 0
    %3809 = vmatprep.subr.bf16.mxu0 0
    %3810 = vmatpush1.bf16.msra.mxu0 0
    %3811 = vmatprep.subr.bf16.mxu0 0
    %3812 = vmatpush1.bf16.msra.mxu0 %v3795
    %3813 = vmatprep.subr.bf16.mxu0 0
    %3814 = vmatpush2.bf16.msra.mxu0 0
    %3815 = vmatprep.subr.bf16.mxu0 0
    %3816 = vmatpush2.bf16.msra.mxu0 0
    %3817 = vmatprep.subr.bf16.mxu0 0
    %3818 = vmatpush2.bf16.msra.mxu0 0
    %3819 = vmatprep.subr.bf16.mxu0 0
    %3820 = vmatpush2.bf16.msra.mxu0 0
    %3821 = vmatprep.subr.bf16.mxu0 0
    %3822 = vmatpush2.bf16.msra.mxu0 0
    %3823 = vmatprep.subr.bf16.mxu0 0
    %3824 = vmatpush2.bf16.msra.mxu0 0
    %3825 = vmatprep.subr.bf16.mxu0 0
    %3826 = vmatpush2.bf16.msra.mxu0 0
    %3827 = vmatprep.subr.bf16.mxu0 0
    %3828 = vmatpush2.bf16.msra.mxu0 0
    %3829 = vmatprep.mubr.bf16.mxu0 0
    %3830 = vmatmul.mubr.bf16.gmra.mxu0 %v3792
    %v3831 = vpop.f32.mrf.mxu0
    %v3832 = vadd.f32 0.0, %v3831
    %v3833 = vpop.f32.mrf.mxu0
    %v3834 = vpop.f32.mrf.mxu0
    %v3835 = vpop.f32.mrf.mxu0
    %3836 = vdwg.mxu0
    %v3837 = vpack.c.bf16 %v3832, %v3784
    %v3838 = vpack.c.bf16 %v2976, %v2976
    %v3840 = vsel %vm271, %v3837, 0
    %v3843 = vsel %vm400, %v3838, 0
    %3845 = vmatprep.subr.bf16.mxu0 0
    %3846 = vmatpush1.bf16.msra.mxu0 0
    %3847 = vmatprep.subr.bf16.mxu0 0
    %3848 = vmatpush1.bf16.msra.mxu0 0
    %3849 = vmatprep.subr.bf16.mxu0 0
    %3850 = vmatpush1.bf16.msra.mxu0 0
    %3851 = vmatprep.subr.bf16.mxu0 0
    %3852 = vmatpush1.bf16.msra.mxu0 0
    %3853 = vmatprep.subr.bf16.mxu0 0
    %3854 = vmatpush1.bf16.msra.mxu0 0
    %3855 = vmatprep.subr.bf16.mxu0 0
    %3856 = vmatpush1.bf16.msra.mxu0 0
    %3857 = vmatprep.subr.bf16.mxu0 0
    %3858 = vmatpush1.bf16.msra.mxu0 0
    %3859 = vmatprep.subr.bf16.mxu0 0
    %3860 = vmatpush1.bf16.msra.mxu0 %v3843
    %3861 = vmatprep.subr.bf16.mxu0 0
    %3862 = vmatpush2.bf16.msra.mxu0 0
    %3863 = vmatprep.subr.bf16.mxu0 0
    %3864 = vmatpush2.bf16.msra.mxu0 0
    %3865 = vmatprep.subr.bf16.mxu0 0
    %3866 = vmatpush2.bf16.msra.mxu0 0
    %3867 = vmatprep.subr.bf16.mxu0 0
    %3868 = vmatpush2.bf16.msra.mxu0 0
    %3869 = vmatprep.subr.bf16.mxu0 0
    %3870 = vmatpush2.bf16.msra.mxu0 0
    %3871 = vmatprep.subr.bf16.mxu0 0
    %3872 = vmatpush2.bf16.msra.mxu0 0
    %3873 = vmatprep.subr.bf16.mxu0 0
    %3874 = vmatpush2.bf16.msra.mxu0 0
    %3875 = vmatprep.subr.bf16.mxu0 0
    %3876 = vmatpush2.bf16.msra.mxu0 0
    %3877 = vmatprep.mubr.bf16.mxu0 0
    %3878 = vmatmul.mubr.bf16.gmra.mxu0 %v3840
    %v3879 = vpop.f32.mrf.mxu0
    %v3880 = vadd.f32 0.0, %v3879
    %v3881 = vpop.f32.mrf.mxu0
    %v3882 = vpop.f32.mrf.mxu0
    %v3883 = vadd.f32 0.0, %v3882
    %v3884 = vpop.f32.mrf.mxu0
    %3885 = vdwg.mxu0
    %v3886 = vadd.f32 %v3607, %v3880
    %v3887 = vadd.f32 %v3610, %v3883
    %3888 = vrot.lane.b32.xlu0 %v3067, 104
    %v3889 = vpop.permute.xlu0 %3888
    %3890 = vrot.lane.b32.xlu0 %v3067, 72
    %v3891 = vpop.permute.xlu0 %3890
    %v3893 = vsel %vm271, %v3889, 0
    %v3896 = vsel %vm271, %v3891, 0
    %3898 = vmatprep.subr.bf16.mxu0 0
    %3899 = vmatpush1.bf16.xpose.msra.mxu0 0
    %3900 = vmatprep.subr.bf16.mxu0 0
    %3901 = vmatpush1.bf16.xpose.msra.mxu0 0
    %3902 = vmatprep.subr.bf16.mxu0 0
    %3903 = vmatpush1.bf16.xpose.msra.mxu0 0
    %3904 = vmatprep.subr.bf16.mxu0 0
    %3905 = vmatpush1.bf16.xpose.msra.mxu0 0
    %3906 = vmatprep.subr.bf16.mxu0 0
    %3907 = vmatpush1.bf16.xpose.msra.mxu0 0
    %3908 = vmatprep.subr.bf16.mxu0 0
    %3909 = vmatpush1.bf16.xpose.msra.mxu0 0
    %3910 = vmatprep.subr.bf16.mxu0 0
    %3911 = vmatpush1.bf16.xpose.msra.mxu0 0
    %3912 = vmatprep.subr.bf16.mxu0 0
    %3913 = vmatpush1.bf16.xpose.msra.mxu0 %v3896
    %3914 = vmatprep.subr.bf16.mxu0 0
    %3915 = vmatpush2.bf16.xpose.msra.mxu0 0
    %3916 = vmatprep.subr.bf16.mxu0 0
    %3917 = vmatpush2.bf16.xpose.msra.mxu0 0
    %3918 = vmatprep.subr.bf16.mxu0 0
    %3919 = vmatpush2.bf16.xpose.msra.mxu0 0
    %3920 = vmatprep.subr.bf16.mxu0 0
    %3921 = vmatpush2.bf16.xpose.msra.mxu0 0
    %3922 = vmatprep.subr.bf16.mxu0 0
    %3923 = vmatpush2.bf16.xpose.msra.mxu0 0
    %3924 = vmatprep.subr.bf16.mxu0 0
    %3925 = vmatpush2.bf16.xpose.msra.mxu0 0
    %3926 = vmatprep.subr.bf16.mxu0 0
    %3927 = vmatpush2.bf16.xpose.msra.mxu0 0
    %3928 = vmatprep.subr.bf16.mxu0 0
    %3929 = vmatpush2.bf16.xpose.msra.mxu0 0
    %3930 = vmatprep.mubr.bf16.mxu0 0
    %3931 = vmatmul.mubr.bf16.gmra.mxu0 %v3893
    %v3932 = vpop.f32.mrf.mxu0
    %v3933 = vadd.f32 0.0, %v3932
    %v3934 = vpop.f32.mrf.mxu0
    %v3935 = vpop.f32.mrf.mxu0
    %v3936 = vpop.f32.mrf.mxu0
    %3937 = vdwg.mxu0
    %3938 = vrot.lane.b32.xlu0 %v3068, 104
    %v3939 = vpop.permute.xlu0 %3938
    %3940 = vrot.lane.b32.xlu0 %v3068, 72
    %v3941 = vpop.permute.xlu0 %3940
    %v3943 = vsel %vm271, %v3939, 0
    %v3946 = vsel %vm271, %v3941, 0
    %3948 = vmatprep.subr.bf16.mxu0 0
    %3949 = vmatpush1.bf16.xpose.msra.mxu0 0
    %3950 = vmatprep.subr.bf16.mxu0 0
    %3951 = vmatpush1.bf16.xpose.msra.mxu0 0
    %3952 = vmatprep.subr.bf16.mxu0 0
    %3953 = vmatpush1.bf16.xpose.msra.mxu0 0
    %3954 = vmatprep.subr.bf16.mxu0 0
    %3955 = vmatpush1.bf16.xpose.msra.mxu0 0
    %3956 = vmatprep.subr.bf16.mxu0 0
    %3957 = vmatpush1.bf16.xpose.msra.mxu0 0
    %3958 = vmatprep.subr.bf16.mxu0 0
    %3959 = vmatpush1.bf16.xpose.msra.mxu0 0
    %3960 = vmatprep.subr.bf16.mxu0 0
    %3961 = vmatpush1.bf16.xpose.msra.mxu0 0
    %3962 = vmatprep.subr.bf16.mxu0 0
    %3963 = vmatpush1.bf16.xpose.msra.mxu0 %v3946
    %3964 = vmatprep.subr.bf16.mxu0 0
    %3965 = vmatpush2.bf16.xpose.msra.mxu0 0
    %3966 = vmatprep.subr.bf16.mxu0 0
    %3967 = vmatpush2.bf16.xpose.msra.mxu0 0
    %3968 = vmatprep.subr.bf16.mxu0 0
    %3969 = vmatpush2.bf16.xpose.msra.mxu0 0
    %3970 = vmatprep.subr.bf16.mxu0 0
    %3971 = vmatpush2.bf16.xpose.msra.mxu0 0
    %3972 = vmatprep.subr.bf16.mxu0 0
    %3973 = vmatpush2.bf16.xpose.msra.mxu0 0
    %3974 = vmatprep.subr.bf16.mxu0 0
    %3975 = vmatpush2.bf16.xpose.msra.mxu0 0
    %3976 = vmatprep.subr.bf16.mxu0 0
    %3977 = vmatpush2.bf16.xpose.msra.mxu0 0
    %3978 = vmatprep.subr.bf16.mxu0 0
    %3979 = vmatpush2.bf16.xpose.msra.mxu0 0
    %3980 = vmatprep.mubr.bf16.mxu0 0
    %3981 = vmatmul.mubr.bf16.gmra.mxu0 %v3943
    %v3982 = vpop.f32.mrf.mxu0
    %v3983 = vadd.f32 0.0, %v3982
    %v3984 = vpop.f32.mrf.mxu0
    %v3985 = vpop.f32.mrf.mxu0
    %v3986 = vpop.f32.mrf.mxu0
    %3987 = vdwg.mxu0
    %v3988 = vmul.f32 %v3933, 0.35355338
    %v3989 = vmul.f32 %v3983, 0.35355338
    %v3990 = vadd.f32 %v3988, %v181
    %v3991 = vadd.f32 %v3989, %v181
    %v3992 = vsel %vm271, %v3990, -inf
    %3993 = vmax.xlane.f32.xlu0 %v3992
    %v3994 = vpop.xlane.xlu0 %3993
    %v3995 = vsel %vm271, %v3991, -inf
    %3996 = vmax.xlane.f32.xlu0 %v3995
    %v3997 = vpop.xlane.xlu0 %3996
    %v3998 = vsub.f32 %v3990, %v3994
    %v3999 = vsub.f32 %v3991, %v3997
    %v4000 = vmul.f32 %v3998, 1.442695
    %v4001 = vpow.pop %v4000
    %v4002 = vmul.f32 %v3999, 1.442695
    %v4003 = vpow.pop %v4002
    %v4004 = vsel %vm271, %v4001, 0.0
    %4005 = vadd.xlane.f32.xlu0 %v4004
    %v4006 = vpop.xlane.xlu0 %4005
    %v4007 = vsel %vm271, %v4003, 0.0
    %4008 = vadd.xlane.f32.xlu0 %v4007
    %v4009 = vpop.xlane.xlu0 %4008
    %v4010 = vrcp.pop %v4006
    %v4011 = vrcp.pop %v4009
    %v4012 = vmul.f32 %v4001, %v4010
    %v4013 = vmul.f32 %v4003, %v4011
    %v4014 = vpack.c.bf16 %v4012, %v4012
    %v4015 = vpack.c.bf16 %v4013, %v4013
    %4016 = vrot.lane.b32.xlu0 %v3067, 40
    %v4017 = vpop.permute.xlu0 %4016
    %v4019 = vsel %vm271, %v4014, 0
    %v4022 = vsel %vm400, %v4017, 0
    %4024 = vmatprep.subr.bf16.mxu0 0
    %4025 = vmatpush1.bf16.msra.mxu0 0
    %4026 = vmatprep.subr.bf16.mxu0 0
    %4027 = vmatpush1.bf16.msra.mxu0 0
    %4028 = vmatprep.subr.bf16.mxu0 0
    %4029 = vmatpush1.bf16.msra.mxu0 0
    %4030 = vmatprep.subr.bf16.mxu0 0
    %4031 = vmatpush1.bf16.msra.mxu0 0
    %4032 = vmatprep.subr.bf16.mxu0 0
    %4033 = vmatpush1.bf16.msra.mxu0 0
    %4034 = vmatprep.subr.bf16.mxu0 0
    %4035 = vmatpush1.bf16.msra.mxu0 0
    %4036 = vmatprep.subr.bf16.mxu0 0
    %4037 = vmatpush1.bf16.msra.mxu0 0
    %4038 = vmatprep.subr.bf16.mxu0 0
    %4039 = vmatpush1.bf16.msra.mxu0 %v4022
    %4040 = vmatprep.subr.bf16.mxu0 0
    %4041 = vmatpush2.bf16.msra.mxu0 0
    %4042 = vmatprep.subr.bf16.mxu0 0
    %4043 = vmatpush2.bf16.msra.mxu0 0
    %4044 = vmatprep.subr.bf16.mxu0 0
    %4045 = vmatpush2.bf16.msra.mxu0 0
    %4046 = vmatprep.subr.bf16.mxu0 0
    %4047 = vmatpush2.bf16.msra.mxu0 0
    %4048 = vmatprep.subr.bf16.mxu0 0
    %4049 = vmatpush2.bf16.msra.mxu0 0
    %4050 = vmatprep.subr.bf16.mxu0 0
    %4051 = vmatpush2.bf16.msra.mxu0 0
    %4052 = vmatprep.subr.bf16.mxu0 0
    %4053 = vmatpush2.bf16.msra.mxu0 0
    %4054 = vmatprep.subr.bf16.mxu0 0
    %4055 = vmatpush2.bf16.msra.mxu0 0
    %4056 = vmatprep.mubr.bf16.mxu0 0
    %4057 = vmatmul.mubr.bf16.gmra.mxu0 %v4019
    %v4058 = vpop.f32.mrf.mxu0
    %v4059 = vadd.f32 0.0, %v4058
    %v4060 = vpop.f32.mrf.mxu0
    %v4061 = vpop.f32.mrf.mxu0
    %v4062 = vpop.f32.mrf.mxu0
    %4063 = vdwg.mxu0
    %4064 = vrot.lane.b32.xlu0 %v3068, 40
    %v4065 = vpop.permute.xlu0 %4064
    %v4067 = vsel %vm271, %v4015, 0
    %v4070 = vsel %vm400, %v4065, 0
    %4072 = vmatprep.subr.bf16.mxu0 0
    %4073 = vmatpush1.bf16.msra.mxu0 0
    %4074 = vmatprep.subr.bf16.mxu0 0
    %4075 = vmatpush1.bf16.msra.mxu0 0
    %4076 = vmatprep.subr.bf16.mxu0 0
    %4077 = vmatpush1.bf16.msra.mxu0 0
    %4078 = vmatprep.subr.bf16.mxu0 0
    %4079 = vmatpush1.bf16.msra.mxu0 0
    %4080 = vmatprep.subr.bf16.mxu0 0
    %4081 = vmatpush1.bf16.msra.mxu0 0
    %4082 = vmatprep.subr.bf16.mxu0 0
    %4083 = vmatpush1.bf16.msra.mxu0 0
    %4084 = vmatprep.subr.bf16.mxu0 0
    %4085 = vmatpush1.bf16.msra.mxu0 0
    %4086 = vmatprep.subr.bf16.mxu0 0
    %4087 = vmatpush1.bf16.msra.mxu0 %v4070
    %4088 = vmatprep.subr.bf16.mxu0 0
    %4089 = vmatpush2.bf16.msra.mxu0 0
    %4090 = vmatprep.subr.bf16.mxu0 0
    %4091 = vmatpush2.bf16.msra.mxu0 0
    %4092 = vmatprep.subr.bf16.mxu0 0
    %4093 = vmatpush2.bf16.msra.mxu0 0
    %4094 = vmatprep.subr.bf16.mxu0 0
    %4095 = vmatpush2.bf16.msra.mxu0 0
    %4096 = vmatprep.subr.bf16.mxu0 0
    %4097 = vmatpush2.bf16.msra.mxu0 0
    %4098 = vmatprep.subr.bf16.mxu0 0
    %4099 = vmatpush2.bf16.msra.mxu0 0
    %4100 = vmatprep.subr.bf16.mxu0 0
    %4101 = vmatpush2.bf16.msra.mxu0 0
    %4102 = vmatprep.subr.bf16.mxu0 0
    %4103 = vmatpush2.bf16.msra.mxu0 0
    %4104 = vmatprep.mubr.bf16.mxu0 0
    %4105 = vmatmul.mubr.bf16.gmra.mxu0 %v4067
    %v4106 = vpop.f32.mrf.mxu0
    %v4107 = vadd.f32 0.0, %v4106
    %v4108 = vpop.f32.mrf.mxu0
    %v4109 = vpop.f32.mrf.mxu0
    %v4110 = vpop.f32.mrf.mxu0
    %4111 = vdwg.mxu0
    %v4112 = vpack.c.bf16 %v4107, %v4059
    %v4113 = vpack.c.bf16 %v2977, %v2977
    %v4115 = vsel %vm271, %v4112, 0
    %v4118 = vsel %vm400, %v4113, 0
    %4120 = vmatprep.subr.bf16.mxu0 0
    %4121 = vmatpush1.bf16.msra.mxu0 0
    %4122 = vmatprep.subr.bf16.mxu0 0
    %4123 = vmatpush1.bf16.msra.mxu0 0
    %4124 = vmatprep.subr.bf16.mxu0 0
    %4125 = vmatpush1.bf16.msra.mxu0 0
    %4126 = vmatprep.subr.bf16.mxu0 0
    %4127 = vmatpush1.bf16.msra.mxu0 0
    %4128 = vmatprep.subr.bf16.mxu0 0
    %4129 = vmatpush1.bf16.msra.mxu0 0
    %4130 = vmatprep.subr.bf16.mxu0 0
    %4131 = vmatpush1.bf16.msra.mxu0 0
    %4132 = vmatprep.subr.bf16.mxu0 0
    %4133 = vmatpush1.bf16.msra.mxu0 0
    %4134 = vmatprep.subr.bf16.mxu0 0
    %4135 = vmatpush1.bf16.msra.mxu0 %v4118
    %4136 = vmatprep.subr.bf16.mxu0 0
    %4137 = vmatpush2.bf16.msra.mxu0 0
    %4138 = vmatprep.subr.bf16.mxu0 0
    %4139 = vmatpush2.bf16.msra.mxu0 0
    %4140 = vmatprep.subr.bf16.mxu0 0
    %4141 = vmatpush2.bf16.msra.mxu0 0
    %4142 = vmatprep.subr.bf16.mxu0 0
    %4143 = vmatpush2.bf16.msra.mxu0 0
    %4144 = vmatprep.subr.bf16.mxu0 0
    %4145 = vmatpush2.bf16.msra.mxu0 0
    %4146 = vmatprep.subr.bf16.mxu0 0
    %4147 = vmatpush2.bf16.msra.mxu0 0
    %4148 = vmatprep.subr.bf16.mxu0 0
    %4149 = vmatpush2.bf16.msra.mxu0 0
    %4150 = vmatprep.subr.bf16.mxu0 0
    %4151 = vmatpush2.bf16.msra.mxu0 0
    %4152 = vmatprep.mubr.bf16.mxu0 0
    %4153 = vmatmul.mubr.bf16.gmra.mxu0 %v4115
    %v4154 = vpop.f32.mrf.mxu0
    %v4155 = vadd.f32 0.0, %v4154
    %v4156 = vpop.f32.mrf.mxu0
    %v4157 = vpop.f32.mrf.mxu0
    %v4158 = vadd.f32 0.0, %v4157
    %v4159 = vpop.f32.mrf.mxu0
    %4160 = vdwg.mxu0
    %v4161 = vadd.f32 %v3886, %v4155
    %v4162 = vadd.f32 %v3887, %v4158
    %v4164 = vlaneseq
    %v4165 = vshrl.u32 %v4164, 7
    %v4166 = vsub.s32 0, %v4165
    %v4167 = vrot.slane %v2978, %v4166
    %v4169 = vadd.f32 %v4161, %v4167
    %v4170 = vadd.f32 %v4162, %v4167
    %v4171 = vadd.f32 %v2967, %v4169
    %v4172 = vadd.f32 %v2968, %v4170
    %v4173 = vsel %vm221, %v4171, 0.0
    %4174 = vadd.xlane.f32.xlu0 %v4173
    %v4175 = vpop.xlane.xlu0 %4174
    %v4176 = vsel %vm221, %v4172, 0.0
    %4177 = vadd.xlane.f32.xlu0 %v4176
    %v4178 = vpop.xlane.xlu0 %4177
    %v4179 = vmul.f32 %v4175, %v1380
    %v4180 = vmul.f32 %v4178, %v1380
    %v4181 = vsub.f32 %v4171, %v4179
    %v4182 = vsub.f32 %v4172, %v4180
    %v4183 = vmul.f32 %v4181, %v4181
    %v4184 = vmul.f32 %v4182, %v4182
    %v4185 = vsel %vm221, %v4183, 0.0
    %4186 = vadd.xlane.f32.xlu0 %v4185
    %v4187 = vpop.xlane.xlu0 %4186
    %v4188 = vsel %vm221, %v4184, 0.0
    %4189 = vadd.xlane.f32.xlu0 %v4188
    %v4190 = vpop.xlane.xlu0 %4189
    %v4191 = vmul.f32 %v4187, %v1380
    %v4192 = vmul.f32 %v4190, %v1380
    %v4193 = vadd.f32 %v4191, 1e-05
    %v4194 = vadd.f32 %v4192, 1e-05
    %v4195 = vrsqrt.pop %v4193
    %v4196 = vrsqrt.pop %v4194
    %v4197 = vmul.f32 %v4181, %v4195
    %v4198 = vmul.f32 %v4182, %v4196
    %v4200 = vlaneseq
    %v4201 = vshrl.u32 %v4200, 7
    %v4202 = vsub.s32 0, %v4201
    %v4203 = vrot.slane %v2979, %v4202
    %v4205 = vmul.f32 %v4197, %v4203
    %v4206 = vmul.f32 %v4198, %v4203
    %v4208 = vlaneseq
    %v4209 = vshrl.u32 %v4208, 7
    %v4210 = vsub.s32 0, %v4209
    %v4211 = vrot.slane %v2980, %v4210
    %v4213 = vadd.f32 %v4205, %v4211
    %v4214 = vadd.f32 %v4206, %v4211
    %v4215 = vpack.c.bf16 %v4214, %v4213
    %v4216 = vpack.c.bf16 %v2982, %v2981
    %v4217 = vpack.c.bf16 %v2984, %v2983
    %v4219 = vlaneseq
    %v4220 = vshrl.u32 %v4219, 7
    %v4221 = vsub.s32 0, %v4220
    %v4222 = vrot.slane %v2985, %v4221
    %v4225 = vsel %vm221, %v4215, 0
    %4227 = vmatprep.subr.bf16.mxu0 0
    %4228 = vmatpush1.bf16.msra.mxu0 0
    %4229 = vmatprep.subr.bf16.mxu0 0
    %4230 = vmatpush1.bf16.msra.mxu0 0
    %4231 = vmatprep.subr.bf16.mxu0 0
    %4232 = vmatpush1.bf16.msra.mxu0 0
    %4233 = vmatprep.subr.bf16.mxu0 0
    %4234 = vmatpush1.bf16.msra.mxu0 0
    %4235 = vmatprep.subr.bf16.mxu0 0
    %4236 = vmatpush1.bf16.msra.mxu0 0
    %4237 = vmatprep.subr.bf16.mxu0 0
    %4238 = vmatpush1.bf16.msra.mxu0 0
    %4239 = vmatprep.subr.bf16.mxu0 0
    %4240 = vmatpush1.bf16.msra.mxu0 %v4217
    %4241 = vmatprep.subr.bf16.mxu0 0
    %4242 = vmatpush1.bf16.msra.mxu0 %v4216
    %4243 = vmatprep.subr.bf16.mxu0 0
    %4244 = vmatpush2.bf16.msra.mxu0 0
    %4245 = vmatprep.subr.bf16.mxu0 0
    %4246 = vmatpush2.bf16.msra.mxu0 0
    %4247 = vmatprep.subr.bf16.mxu0 0
    %4248 = vmatpush2.bf16.msra.mxu0 0
    %4249 = vmatprep.subr.bf16.mxu0 0
    %4250 = vmatpush2.bf16.msra.mxu0 0
    %4251 = vmatprep.subr.bf16.mxu0 0
    %4252 = vmatpush2.bf16.msra.mxu0 0
    %4253 = vmatprep.subr.bf16.mxu0 0
    %4254 = vmatpush2.bf16.msra.mxu0 0
    %4255 = vmatprep.subr.bf16.mxu0 0
    %4256 = vmatpush2.bf16.msra.mxu0 0
    %4257 = vmatprep.subr.bf16.mxu0 0
    %4258 = vmatpush2.bf16.msra.mxu0 0
    %4259 = vmatprep.mubr.bf16.mxu0 0
    %4260 = vmatmul.mubr.bf16.gmra.mxu0 %v4225
    %v4261 = vpop.f32.mrf.mxu0
    %v4262 = vadd.f32 %v4222, %v4261
    %v4263 = vpop.f32.mrf.mxu0
    %v4264 = vpop.f32.mrf.mxu0
    %v4265 = vadd.f32 %v4222, %v4264
    %v4266 = vpop.f32.mrf.mxu0
    %4267 = vdwg.mxu0
    %v4268 = vpack.c.bf16 %v2966, %v2965
    %v4269 = vpack.c.bf16 %v2987, %v2986
    %v4270 = vpack.c.bf16 %v2989, %v2988
    %v4272 = vlaneseq
    %v4273 = vshrl.u32 %v4272, 7
    %v4274 = vsub.s32 0, %v4273
    %v4275 = vrot.slane %v2990, %v4274
    %v4278 = vsel %vm221, %v4268, 0
    %4280 = vmatprep.subr.bf16.mxu0 0
    %4281 = vmatpush1.bf16.msra.mxu0 0
    %4282 = vmatprep.subr.bf16.mxu0 0
    %4283 = vmatpush1.bf16.msra.mxu0 0
    %4284 = vmatprep.subr.bf16.mxu0 0
    %4285 = vmatpush1.bf16.msra.mxu0 0
    %4286 = vmatprep.subr.bf16.mxu0 0
    %4287 = vmatpush1.bf16.msra.mxu0 0
    %4288 = vmatprep.subr.bf16.mxu0 0
    %4289 = vmatpush1.bf16.msra.mxu0 0
    %4290 = vmatprep.subr.bf16.mxu0 0
    %4291 = vmatpush1.bf16.msra.mxu0 0
    %4292 = vmatprep.subr.bf16.mxu0 0
    %4293 = vmatpush1.bf16.msra.mxu0 %v4270
    %4294 = vmatprep.subr.bf16.mxu0 0
    %4295 = vmatpush1.bf16.msra.mxu0 %v4269
    %4296 = vmatprep.subr.bf16.mxu0 0
    %4297 = vmatpush2.bf16.msra.mxu0 0
    %4298 = vmatprep.subr.bf16.mxu0 0
    %4299 = vmatpush2.bf16.msra.mxu0 0
    %4300 = vmatprep.subr.bf16.mxu0 0
    %4301 = vmatpush2.bf16.msra.mxu0 0
    %4302 = vmatprep.subr.bf16.mxu0 0
    %4303 = vmatpush2.bf16.msra.mxu0 0
    %4304 = vmatprep.subr.bf16.mxu0 0
    %4305 = vmatpush2.bf16.msra.mxu0 0
    %4306 = vmatprep.subr.bf16.mxu0 0
    %4307 = vmatpush2.bf16.msra.mxu0 0
    %4308 = vmatprep.subr.bf16.mxu0 0
    %4309 = vmatpush2.bf16.msra.mxu0 0
    %4310 = vmatprep.subr.bf16.mxu0 0
    %4311 = vmatpush2.bf16.msra.mxu0 0
    %4312 = vmatprep.mubr.bf16.mxu0 0
    %4313 = vmatmul.mubr.bf16.gmra.mxu0 %v4278
    %v4314 = vpop.f32.mrf.mxu0
    %v4315 = vadd.f32 %v4275, %v4314
    %v4316 = vpop.f32.mrf.mxu0
    %v4317 = vpop.f32.mrf.mxu0
    %v4318 = vadd.f32 %v4275, %v4317
    %v4319 = vpop.f32.mrf.mxu0
    %4320 = vdwg.mxu0
    %v4321 = vpack.c.bf16 %v4262, %v4262
    %v4322 = vpack.c.bf16 %v4265, %v4265
    %v4323 = vpack.c.bf16 %v4315, %v4315
    %v4324 = vpack.c.bf16 %v4318, %v4318
    %v4326 = vsel %vm271, %v4321, 0
    %v4329 = vsel %vm271, %v4323, 0
    %4331 = vmatprep.subr.bf16.mxu0 0
    %4332 = vmatpush1.bf16.xpose.msra.mxu0 0
    %4333 = vmatprep.subr.bf16.mxu0 0
    %4334 = vmatpush1.bf16.xpose.msra.mxu0 0
    %4335 = vmatprep.subr.bf16.mxu0 0
    %4336 = vmatpush1.bf16.xpose.msra.mxu0 0
    %4337 = vmatprep.subr.bf16.mxu0 0
    %4338 = vmatpush1.bf16.xpose.msra.mxu0 0
    %4339 = vmatprep.subr.bf16.mxu0 0
    %4340 = vmatpush1.bf16.xpose.msra.mxu0 0
    %4341 = vmatprep.subr.bf16.mxu0 0
    %4342 = vmatpush1.bf16.xpose.msra.mxu0 0
    %4343 = vmatprep.subr.bf16.mxu0 0
    %4344 = vmatpush1.bf16.xpose.msra.mxu0 0
    %4345 = vmatprep.subr.bf16.mxu0 0
    %4346 = vmatpush1.bf16.xpose.msra.mxu0 %v4329
    %4347 = vmatprep.subr.bf16.mxu0 0
    %4348 = vmatpush2.bf16.xpose.msra.mxu0 0
    %4349 = vmatprep.subr.bf16.mxu0 0
    %4350 = vmatpush2.bf16.xpose.msra.mxu0 0
    %4351 = vmatprep.subr.bf16.mxu0 0
    %4352 = vmatpush2.bf16.xpose.msra.mxu0 0
    %4353 = vmatprep.subr.bf16.mxu0 0
    %4354 = vmatpush2.bf16.xpose.msra.mxu0 0
    %4355 = vmatprep.subr.bf16.mxu0 0
    %4356 = vmatpush2.bf16.xpose.msra.mxu0 0
    %4357 = vmatprep.subr.bf16.mxu0 0
    %4358 = vmatpush2.bf16.xpose.msra.mxu0 0
    %4359 = vmatprep.subr.bf16.mxu0 0
    %4360 = vmatpush2.bf16.xpose.msra.mxu0 0
    %4361 = vmatprep.subr.bf16.mxu0 0
    %4362 = vmatpush2.bf16.xpose.msra.mxu0 0
    %4363 = vmatprep.mubr.bf16.mxu0 0
    %4364 = vmatmul.mubr.bf16.gmra.mxu0 %v4326
    %v4365 = vpop.f32.mrf.mxu0
    %v4366 = vadd.f32 0.0, %v4365
    %v4367 = vpop.f32.mrf.mxu0
    %v4368 = vpop.f32.mrf.mxu0
    %v4369 = vpop.f32.mrf.mxu0
    %4370 = vdwg.mxu0
    %v4372 = vsel %vm271, %v4322, 0
    %v4375 = vsel %vm271, %v4324, 0
    %4377 = vmatprep.subr.bf16.mxu0 0
    %4378 = vmatpush1.bf16.xpose.msra.mxu0 0
    %4379 = vmatprep.subr.bf16.mxu0 0
    %4380 = vmatpush1.bf16.xpose.msra.mxu0 0
    %4381 = vmatprep.subr.bf16.mxu0 0
    %4382 = vmatpush1.bf16.xpose.msra.mxu0 0
    %4383 = vmatprep.subr.bf16.mxu0 0
    %4384 = vmatpush1.bf16.xpose.msra.mxu0 0
    %4385 = vmatprep.subr.bf16.mxu0 0
    %4386 = vmatpush1.bf16.xpose.msra.mxu0 0
    %4387 = vmatprep.subr.bf16.mxu0 0
    %4388 = vmatpush1.bf16.xpose.msra.mxu0 0
    %4389 = vmatprep.subr.bf16.mxu0 0
    %4390 = vmatpush1.bf16.xpose.msra.mxu0 0
    %4391 = vmatprep.subr.bf16.mxu0 0
    %4392 = vmatpush1.bf16.xpose.msra.mxu0 %v4375
    %4393 = vmatprep.subr.bf16.mxu0 0
    %4394 = vmatpush2.bf16.xpose.msra.mxu0 0
    %4395 = vmatprep.subr.bf16.mxu0 0
    %4396 = vmatpush2.bf16.xpose.msra.mxu0 0
    %4397 = vmatprep.subr.bf16.mxu0 0
    %4398 = vmatpush2.bf16.xpose.msra.mxu0 0
    %4399 = vmatprep.subr.bf16.mxu0 0
    %4400 = vmatpush2.bf16.xpose.msra.mxu0 0
    %4401 = vmatprep.subr.bf16.mxu0 0
    %4402 = vmatpush2.bf16.xpose.msra.mxu0 0
    %4403 = vmatprep.subr.bf16.mxu0 0
    %4404 = vmatpush2.bf16.xpose.msra.mxu0 0
    %4405 = vmatprep.subr.bf16.mxu0 0
    %4406 = vmatpush2.bf16.xpose.msra.mxu0 0
    %4407 = vmatprep.subr.bf16.mxu0 0
    %4408 = vmatpush2.bf16.xpose.msra.mxu0 0
    %4409 = vmatprep.mubr.bf16.mxu0 0
    %4410 = vmatmul.mubr.bf16.gmra.mxu0 %v4372
    %v4411 = vpop.f32.mrf.mxu0
    %v4412 = vadd.f32 0.0, %v4411
    %v4413 = vpop.f32.mrf.mxu0
    %v4414 = vpop.f32.mrf.mxu0
    %v4415 = vpop.f32.mrf.mxu0
    %4416 = vdwg.mxu0
    %v4417 = vmul.f32 %v4366, 0.35355338
    %v4418 = vmul.f32 %v4412, 0.35355338
    %v4419 = vadd.f32 %v4417, %v176
    %v4420 = vadd.f32 %v4418, %v177
    %v4421 = vsel %vm271, %v4419, -inf
    %4422 = vmax.xlane.f32.xlu0 %v4421
    %v4423 = vpop.xlane.xlu0 %4422
    %v4424 = vsel %vm271, %v4420, -inf
    %4425 = vmax.xlane.f32.xlu0 %v4424
    %v4426 = vpop.xlane.xlu0 %4425
    %v4427 = vsub.f32 %v4419, %v4423
    %v4428 = vsub.f32 %v4420, %v4426
    %v4429 = vmul.f32 %v4427, 1.442695
    %v4430 = vpow.pop %v4429
    %v4431 = vmul.f32 %v4428, 1.442695
    %v4432 = vpow.pop %v4431
    %v4433 = vsel %vm271, %v4430, 0.0
    %4434 = vadd.xlane.f32.xlu0 %v4433
    %v4435 = vpop.xlane.xlu0 %4434
    %v4436 = vsel %vm271, %v4432, 0.0
    %4437 = vadd.xlane.f32.xlu0 %v4436
    %v4438 = vpop.xlane.xlu0 %4437
    %v4439 = vrcp.pop %v4435
    %v4440 = vrcp.pop %v4438
    %v4441 = vmul.f32 %v4430, %v4439
    %v4442 = vmul.f32 %v4432, %v4440
    %v4443 = vpack.c.bf16 %v4441, %v4441
    %v4444 = vpack.c.bf16 %v4442, %v4442
    %4446 = vrot.lane.b32.xlu0 %v4323, 96
    %v4447 = vpop.permute.xlu0 %4446
    %v4449 = vsel %vm271, %v4443, 0
    %v4452 = vsel %vm400, %v4447, 0
    %4454 = vmatprep.subr.bf16.mxu0 0
    %4455 = vmatpush1.bf16.msra.mxu0 0
    %4456 = vmatprep.subr.bf16.mxu0 0
    %4457 = vmatpush1.bf16.msra.mxu0 0
    %4458 = vmatprep.subr.bf16.mxu0 0
    %4459 = vmatpush1.bf16.msra.mxu0 0
    %4460 = vmatprep.subr.bf16.mxu0 0
    %4461 = vmatpush1.bf16.msra.mxu0 0
    %4462 = vmatprep.subr.bf16.mxu0 0
    %4463 = vmatpush1.bf16.msra.mxu0 0
    %4464 = vmatprep.subr.bf16.mxu0 0
    %4465 = vmatpush1.bf16.msra.mxu0 0
    %4466 = vmatprep.subr.bf16.mxu0 0
    %4467 = vmatpush1.bf16.msra.mxu0 0
    %4468 = vmatprep.subr.bf16.mxu0 0
    %4469 = vmatpush1.bf16.msra.mxu0 %v4452
    %4470 = vmatprep.subr.bf16.mxu0 0
    %4471 = vmatpush2.bf16.msra.mxu0 0
    %4472 = vmatprep.subr.bf16.mxu0 0
    %4473 = vmatpush2.bf16.msra.mxu0 0
    %4474 = vmatprep.subr.bf16.mxu0 0
    %4475 = vmatpush2.bf16.msra.mxu0 0
    %4476 = vmatprep.subr.bf16.mxu0 0
    %4477 = vmatpush2.bf16.msra.mxu0 0
    %4478 = vmatprep.subr.bf16.mxu0 0
    %4479 = vmatpush2.bf16.msra.mxu0 0
    %4480 = vmatprep.subr.bf16.mxu0 0
    %4481 = vmatpush2.bf16.msra.mxu0 0
    %4482 = vmatprep.subr.bf16.mxu0 0
    %4483 = vmatpush2.bf16.msra.mxu0 0
    %4484 = vmatprep.subr.bf16.mxu0 0
    %4485 = vmatpush2.bf16.msra.mxu0 0
    %4486 = vmatprep.mubr.bf16.mxu0 0
    %4487 = vmatmul.mubr.bf16.gmra.mxu0 %v4449
    %v4488 = vpop.f32.mrf.mxu0
    %v4489 = vadd.f32 0.0, %v4488
    %v4490 = vpop.f32.mrf.mxu0
    %v4491 = vpop.f32.mrf.mxu0
    %v4492 = vpop.f32.mrf.mxu0
    %4493 = vdwg.mxu0
    %4495 = vrot.lane.b32.xlu0 %v4324, 96
    %v4496 = vpop.permute.xlu0 %4495
    %v4498 = vsel %vm271, %v4444, 0
    %v4501 = vsel %vm400, %v4496, 0
    %4503 = vmatprep.subr.bf16.mxu0 0
    %4504 = vmatpush1.bf16.msra.mxu0 0
    %4505 = vmatprep.subr.bf16.mxu0 0
    %4506 = vmatpush1.bf16.msra.mxu0 0
    %4507 = vmatprep.subr.bf16.mxu0 0
    %4508 = vmatpush1.bf16.msra.mxu0 0
    %4509 = vmatprep.subr.bf16.mxu0 0
    %4510 = vmatpush1.bf16.msra.mxu0 0
    %4511 = vmatprep.subr.bf16.mxu0 0
    %4512 = vmatpush1.bf16.msra.mxu0 0
    %4513 = vmatprep.subr.bf16.mxu0 0
    %4514 = vmatpush1.bf16.msra.mxu0 0
    %4515 = vmatprep.subr.bf16.mxu0 0
    %4516 = vmatpush1.bf16.msra.mxu0 0
    %4517 = vmatprep.subr.bf16.mxu0 0
    %4518 = vmatpush1.bf16.msra.mxu0 %v4501
    %4519 = vmatprep.subr.bf16.mxu0 0
    %4520 = vmatpush2.bf16.msra.mxu0 0
    %4521 = vmatprep.subr.bf16.mxu0 0
    %4522 = vmatpush2.bf16.msra.mxu0 0
    %4523 = vmatprep.subr.bf16.mxu0 0
    %4524 = vmatpush2.bf16.msra.mxu0 0
    %4525 = vmatprep.subr.bf16.mxu0 0
    %4526 = vmatpush2.bf16.msra.mxu0 0
    %4527 = vmatprep.subr.bf16.mxu0 0
    %4528 = vmatpush2.bf16.msra.mxu0 0
    %4529 = vmatprep.subr.bf16.mxu0 0
    %4530 = vmatpush2.bf16.msra.mxu0 0
    %4531 = vmatprep.subr.bf16.mxu0 0
    %4532 = vmatpush2.bf16.msra.mxu0 0
    %4533 = vmatprep.subr.bf16.mxu0 0
    %4534 = vmatpush2.bf16.msra.mxu0 0
    %4535 = vmatprep.mubr.bf16.mxu0 0
    %4536 = vmatmul.mubr.bf16.gmra.mxu0 %v4498
    %v4537 = vpop.f32.mrf.mxu0
    %v4538 = vadd.f32 0.0, %v4537
    %v4539 = vpop.f32.mrf.mxu0
    %v4540 = vpop.f32.mrf.mxu0
    %v4541 = vpop.f32.mrf.mxu0
    %4542 = vdwg.mxu0
    %v4543 = vpack.c.bf16 %v4538, %v4489
    %v4544 = vpack.c.bf16 %v2991, %v2991
    %4546 = vrot.lane.b32.xlu0 %v4321, 120
    %v4547 = vpop.permute.xlu0 %4546
    %4548 = vrot.lane.b32.xlu0 %v4323, 120
    %v4549 = vpop.permute.xlu0 %4548
    %v4551 = vsel %vm271, %v4547, 0
    %v4554 = vsel %vm271, %v4549, 0
    %4556 = vmatprep.subr.bf16.mxu0 0
    %4557 = vmatpush1.bf16.xpose.msra.mxu0 0
    %4558 = vmatprep.subr.bf16.mxu0 0
    %4559 = vmatpush1.bf16.xpose.msra.mxu0 0
    %4560 = vmatprep.subr.bf16.mxu0 0
    %4561 = vmatpush1.bf16.xpose.msra.mxu0 0
    %4562 = vmatprep.subr.bf16.mxu0 0
    %4563 = vmatpush1.bf16.xpose.msra.mxu0 0
    %4564 = vmatprep.subr.bf16.mxu0 0
    %4565 = vmatpush1.bf16.xpose.msra.mxu0 0
    %4566 = vmatprep.subr.bf16.mxu0 0
    %4567 = vmatpush1.bf16.xpose.msra.mxu0 0
    %4568 = vmatprep.subr.bf16.mxu0 0
    %4569 = vmatpush1.bf16.xpose.msra.mxu0 0
    %4570 = vmatprep.subr.bf16.mxu0 0
    %4571 = vmatpush1.bf16.xpose.msra.mxu0 %v4554
    %4572 = vmatprep.subr.bf16.mxu0 0
    %4573 = vmatpush2.bf16.xpose.msra.mxu0 0
    %4574 = vmatprep.subr.bf16.mxu0 0
    %4575 = vmatpush2.bf16.xpose.msra.mxu0 0
    %4576 = vmatprep.subr.bf16.mxu0 0
    %4577 = vmatpush2.bf16.xpose.msra.mxu0 0
    %4578 = vmatprep.subr.bf16.mxu0 0
    %4579 = vmatpush2.bf16.xpose.msra.mxu0 0
    %4580 = vmatprep.subr.bf16.mxu0 0
    %4581 = vmatpush2.bf16.xpose.msra.mxu0 0
    %4582 = vmatprep.subr.bf16.mxu0 0
    %4583 = vmatpush2.bf16.xpose.msra.mxu0 0
    %4584 = vmatprep.subr.bf16.mxu0 0
    %4585 = vmatpush2.bf16.xpose.msra.mxu0 0
    %4586 = vmatprep.subr.bf16.mxu0 0
    %4587 = vmatpush2.bf16.xpose.msra.mxu0 0
    %4588 = vmatprep.mubr.bf16.mxu0 0
    %4589 = vmatmul.mubr.bf16.gmra.mxu0 %v4551
    %v4590 = vpop.f32.mrf.mxu0
    %v4591 = vadd.f32 0.0, %v4590
    %v4592 = vpop.f32.mrf.mxu0
    %v4593 = vpop.f32.mrf.mxu0
    %v4594 = vpop.f32.mrf.mxu0
    %4595 = vdwg.mxu0
    %4597 = vrot.lane.b32.xlu0 %v4322, 120
    %v4598 = vpop.permute.xlu0 %4597
    %4599 = vrot.lane.b32.xlu0 %v4324, 120
    %v4600 = vpop.permute.xlu0 %4599
    %v4602 = vsel %vm271, %v4598, 0
    %v4605 = vsel %vm271, %v4600, 0
    %4607 = vmatprep.subr.bf16.mxu0 0
    %4608 = vmatpush1.bf16.xpose.msra.mxu0 0
    %4609 = vmatprep.subr.bf16.mxu0 0
    %4610 = vmatpush1.bf16.xpose.msra.mxu0 0
    %4611 = vmatprep.subr.bf16.mxu0 0
    %4612 = vmatpush1.bf16.xpose.msra.mxu0 0
    %4613 = vmatprep.subr.bf16.mxu0 0
    %4614 = vmatpush1.bf16.xpose.msra.mxu0 0
    %4615 = vmatprep.subr.bf16.mxu0 0
    %4616 = vmatpush1.bf16.xpose.msra.mxu0 0
    %4617 = vmatprep.subr.bf16.mxu0 0
    %4618 = vmatpush1.bf16.xpose.msra.mxu0 0
    %4619 = vmatprep.subr.bf16.mxu0 0
    %4620 = vmatpush1.bf16.xpose.msra.mxu0 0
    %4621 = vmatprep.subr.bf16.mxu0 0
    %4622 = vmatpush1.bf16.xpose.msra.mxu0 %v4605
    %4623 = vmatprep.subr.bf16.mxu0 0
    %4624 = vmatpush2.bf16.xpose.msra.mxu0 0
    %4625 = vmatprep.subr.bf16.mxu0 0
    %4626 = vmatpush2.bf16.xpose.msra.mxu0 0
    %4627 = vmatprep.subr.bf16.mxu0 0
    %4628 = vmatpush2.bf16.xpose.msra.mxu0 0
    %4629 = vmatprep.subr.bf16.mxu0 0
    %4630 = vmatpush2.bf16.xpose.msra.mxu0 0
    %4631 = vmatprep.subr.bf16.mxu0 0
    %4632 = vmatpush2.bf16.xpose.msra.mxu0 0
    %4633 = vmatprep.subr.bf16.mxu0 0
    %4634 = vmatpush2.bf16.xpose.msra.mxu0 0
    %4635 = vmatprep.subr.bf16.mxu0 0
    %4636 = vmatpush2.bf16.xpose.msra.mxu0 0
    %4637 = vmatprep.subr.bf16.mxu0 0
    %4638 = vmatpush2.bf16.xpose.msra.mxu0 0
    %4639 = vmatprep.mubr.bf16.mxu0 0
    %4640 = vmatmul.mubr.bf16.gmra.mxu0 %v4602
    %v4641 = vpop.f32.mrf.mxu0
    %v4642 = vadd.f32 0.0, %v4641
    %v4643 = vpop.f32.mrf.mxu0
    %v4644 = vpop.f32.mrf.mxu0
    %v4645 = vpop.f32.mrf.mxu0
    %4646 = vdwg.mxu0
    %v4647 = vmul.f32 %v4591, 0.35355338
    %v4648 = vmul.f32 %v4642, 0.35355338
    %v4649 = vadd.f32 %v4647, %v176
    %v4650 = vadd.f32 %v4648, %v177
    %v4651 = vsel %vm271, %v4649, -inf
    %4652 = vmax.xlane.f32.xlu0 %v4651
    %v4653 = vpop.xlane.xlu0 %4652
    %v4654 = vsel %vm271, %v4650, -inf
    %4655 = vmax.xlane.f32.xlu0 %v4654
    %v4656 = vpop.xlane.xlu0 %4655
    %v4657 = vsub.f32 %v4649, %v4653
    %v4658 = vsub.f32 %v4650, %v4656
    %v4659 = vmul.f32 %v4657, 1.442695
    %v4660 = vpow.pop %v4659
    %v4661 = vmul.f32 %v4658, 1.442695
    %v4662 = vpow.pop %v4661
    %v4663 = vsel %vm271, %v4660, 0.0
    %4664 = vadd.xlane.f32.xlu0 %v4663
    %v4665 = vpop.xlane.xlu0 %4664
    %v4666 = vsel %vm271, %v4662, 0.0
    %4667 = vadd.xlane.f32.xlu0 %v4666
    %v4668 = vpop.xlane.xlu0 %4667
    %v4669 = vrcp.pop %v4665
    %v4670 = vrcp.pop %v4668
    %v4671 = vmul.f32 %v4660, %v4669
    %v4672 = vmul.f32 %v4662, %v4670
    %v4673 = vpack.c.bf16 %v4671, %v4671
    %v4674 = vpack.c.bf16 %v4672, %v4672
    %4675 = vrot.lane.b32.xlu0 %v4323, 88
    %v4676 = vpop.permute.xlu0 %4675
    %v4678 = vsel %vm271, %v4673, 0
    %v4681 = vsel %vm400, %v4676, 0
    %4683 = vmatprep.subr.bf16.mxu0 0
    %4684 = vmatpush1.bf16.msra.mxu0 0
    %4685 = vmatprep.subr.bf16.mxu0 0
    %4686 = vmatpush1.bf16.msra.mxu0 0
    %4687 = vmatprep.subr.bf16.mxu0 0
    %4688 = vmatpush1.bf16.msra.mxu0 0
    %4689 = vmatprep.subr.bf16.mxu0 0
    %4690 = vmatpush1.bf16.msra.mxu0 0
    %4691 = vmatprep.subr.bf16.mxu0 0
    %4692 = vmatpush1.bf16.msra.mxu0 0
    %4693 = vmatprep.subr.bf16.mxu0 0
    %4694 = vmatpush1.bf16.msra.mxu0 0
    %4695 = vmatprep.subr.bf16.mxu0 0
    %4696 = vmatpush1.bf16.msra.mxu0 0
    %4697 = vmatprep.subr.bf16.mxu0 0
    %4698 = vmatpush1.bf16.msra.mxu0 %v4681
    %4699 = vmatprep.subr.bf16.mxu0 0
    %4700 = vmatpush2.bf16.msra.mxu0 0
    %4701 = vmatprep.subr.bf16.mxu0 0
    %4702 = vmatpush2.bf16.msra.mxu0 0
    %4703 = vmatprep.subr.bf16.mxu0 0
    %4704 = vmatpush2.bf16.msra.mxu0 0
    %4705 = vmatprep.subr.bf16.mxu0 0
    %4706 = vmatpush2.bf16.msra.mxu0 0
    %4707 = vmatprep.subr.bf16.mxu0 0
    %4708 = vmatpush2.bf16.msra.mxu0 0
    %4709 = vmatprep.subr.bf16.mxu0 0
    %4710 = vmatpush2.bf16.msra.mxu0 0
    %4711 = vmatprep.subr.bf16.mxu0 0
    %4712 = vmatpush2.bf16.msra.mxu0 0
    %4713 = vmatprep.subr.bf16.mxu0 0
    %4714 = vmatpush2.bf16.msra.mxu0 0
    %4715 = vmatprep.mubr.bf16.mxu0 0
    %4716 = vmatmul.mubr.bf16.gmra.mxu0 %v4678
    %v4717 = vpop.f32.mrf.mxu0
    %v4718 = vadd.f32 0.0, %v4717
    %v4719 = vpop.f32.mrf.mxu0
    %v4720 = vpop.f32.mrf.mxu0
    %v4721 = vpop.f32.mrf.mxu0
    %4722 = vdwg.mxu0
    %4723 = vrot.lane.b32.xlu0 %v4324, 88
    %v4724 = vpop.permute.xlu0 %4723
    %v4726 = vsel %vm271, %v4674, 0
    %v4729 = vsel %vm400, %v4724, 0
    %4731 = vmatprep.subr.bf16.mxu0 0
    %4732 = vmatpush1.bf16.msra.mxu0 0
    %4733 = vmatprep.subr.bf16.mxu0 0
    %4734 = vmatpush1.bf16.msra.mxu0 0
    %4735 = vmatprep.subr.bf16.mxu0 0
    %4736 = vmatpush1.bf16.msra.mxu0 0
    %4737 = vmatprep.subr.bf16.mxu0 0
    %4738 = vmatpush1.bf16.msra.mxu0 0
    %4739 = vmatprep.subr.bf16.mxu0 0
    %4740 = vmatpush1.bf16.msra.mxu0 0
    %4741 = vmatprep.subr.bf16.mxu0 0
    %4742 = vmatpush1.bf16.msra.mxu0 0
    %4743 = vmatprep.subr.bf16.mxu0 0
    %4744 = vmatpush1.bf16.msra.mxu0 0
    %4745 = vmatprep.subr.bf16.mxu0 0
    %4746 = vmatpush1.bf16.msra.mxu0 %v4729
    %4747 = vmatprep.subr.bf16.mxu0 0
    %4748 = vmatpush2.bf16.msra.mxu0 0
    %4749 = vmatprep.subr.bf16.mxu0 0
    %4750 = vmatpush2.bf16.msra.mxu0 0
    %4751 = vmatprep.subr.bf16.mxu0 0
    %4752 = vmatpush2.bf16.msra.mxu0 0
    %4753 = vmatprep.subr.bf16.mxu0 0
    %4754 = vmatpush2.bf16.msra.mxu0 0
    %4755 = vmatprep.subr.bf16.mxu0 0
    %4756 = vmatpush2.bf16.msra.mxu0 0
    %4757 = vmatprep.subr.bf16.mxu0 0
    %4758 = vmatpush2.bf16.msra.mxu0 0
    %4759 = vmatprep.subr.bf16.mxu0 0
    %4760 = vmatpush2.bf16.msra.mxu0 0
    %4761 = vmatprep.subr.bf16.mxu0 0
    %4762 = vmatpush2.bf16.msra.mxu0 0
    %4763 = vmatprep.mubr.bf16.mxu0 0
    %4764 = vmatmul.mubr.bf16.gmra.mxu0 %v4726
    %v4765 = vpop.f32.mrf.mxu0
    %v4766 = vadd.f32 0.0, %v4765
    %v4767 = vpop.f32.mrf.mxu0
    %v4768 = vpop.f32.mrf.mxu0
    %v4769 = vpop.f32.mrf.mxu0
    %4770 = vdwg.mxu0
    %v4771 = vpack.c.bf16 %v4766, %v4718
    %v4772 = vpack.c.bf16 %v2992, %v2992
    %v4774 = vsel %vm271, %v4771, 0
    %v4777 = vsel %vm400, %v4772, 0
    %4779 = vmatprep.subr.bf16.mxu0 0
    %4780 = vmatpush1.bf16.msra.mxu0 0
    %4781 = vmatprep.subr.bf16.mxu0 0
    %4782 = vmatpush1.bf16.msra.mxu0 0
    %4783 = vmatprep.subr.bf16.mxu0 0
    %4784 = vmatpush1.bf16.msra.mxu0 0
    %4785 = vmatprep.subr.bf16.mxu0 0
    %4786 = vmatpush1.bf16.msra.mxu0 0
    %4787 = vmatprep.subr.bf16.mxu0 0
    %4788 = vmatpush1.bf16.msra.mxu0 0
    %4789 = vmatprep.subr.bf16.mxu0 0
    %4790 = vmatpush1.bf16.msra.mxu0 0
    %4791 = vmatprep.subr.bf16.mxu0 0
    %4792 = vmatpush1.bf16.msra.mxu0 0
    %4793 = vmatprep.subr.bf16.mxu0 0
    %4794 = vmatpush1.bf16.msra.mxu0 %v4777
    %4795 = vmatprep.subr.bf16.mxu0 0
    %4796 = vmatpush2.bf16.msra.mxu0 0
    %4797 = vmatprep.subr.bf16.mxu0 0
    %4798 = vmatpush2.bf16.msra.mxu0 0
    %4799 = vmatprep.subr.bf16.mxu0 0
    %4800 = vmatpush2.bf16.msra.mxu0 0
    %4801 = vmatprep.subr.bf16.mxu0 0
    %4802 = vmatpush2.bf16.msra.mxu0 0
    %4803 = vmatprep.subr.bf16.mxu0 0
    %4804 = vmatpush2.bf16.msra.mxu0 0
    %4805 = vmatprep.subr.bf16.mxu0 0
    %4806 = vmatpush2.bf16.msra.mxu0 0
    %4807 = vmatprep.subr.bf16.mxu0 0
    %4808 = vmatpush2.bf16.msra.mxu0 0
    %4809 = vmatprep.subr.bf16.mxu0 0
    %4810 = vmatpush2.bf16.msra.mxu0 0
    %4811 = vmatprep.mubr.bf16.mxu0 0
    %4812 = vmatmul.mubr.bf16.gmra.mxu0 %v4774
    %v4813 = vpop.f32.mrf.mxu0
    %v4814 = vadd.f32 0.0, %v4813
    %v4815 = vpop.f32.mrf.mxu0
    %v4816 = vpop.f32.mrf.mxu0
    %v4817 = vadd.f32 0.0, %v4816
    %v4818 = vpop.f32.mrf.mxu0
    %4819 = vdwg.mxu0
    %v4821 = vsel %vm271, %v4543, 0
    %v4824 = vsel %vm400, %v4544, 0
    %4826 = vmatprep.subr.bf16.mxu0 0
    %4827 = vmatpush1.bf16.msra.mxu0 0
    %4828 = vmatprep.subr.bf16.mxu0 0
    %4829 = vmatpush1.bf16.msra.mxu0 0
    %4830 = vmatprep.subr.bf16.mxu0 0
    %4831 = vmatpush1.bf16.msra.mxu0 0
    %4832 = vmatprep.subr.bf16.mxu0 0
    %4833 = vmatpush1.bf16.msra.mxu0 0
    %4834 = vmatprep.subr.bf16.mxu0 0
    %4835 = vmatpush1.bf16.msra.mxu0 0
    %4836 = vmatprep.subr.bf16.mxu0 0
    %4837 = vmatpush1.bf16.msra.mxu0 0
    %4838 = vmatprep.subr.bf16.mxu0 0
    %4839 = vmatpush1.bf16.msra.mxu0 0
    %4840 = vmatprep.subr.bf16.mxu0 0
    %4841 = vmatpush1.bf16.msra.mxu0 %v4824
    %4842 = vmatprep.subr.bf16.mxu0 0
    %4843 = vmatpush2.bf16.msra.mxu0 0
    %4844 = vmatprep.subr.bf16.mxu0 0
    %4845 = vmatpush2.bf16.msra.mxu0 0
    %4846 = vmatprep.subr.bf16.mxu0 0
    %4847 = vmatpush2.bf16.msra.mxu0 0
    %4848 = vmatprep.subr.bf16.mxu0 0
    %4849 = vmatpush2.bf16.msra.mxu0 0
    %4850 = vmatprep.subr.bf16.mxu0 0
    %4851 = vmatpush2.bf16.msra.mxu0 0
    %4852 = vmatprep.subr.bf16.mxu0 0
    %4853 = vmatpush2.bf16.msra.mxu0 0
    %4854 = vmatprep.subr.bf16.mxu0 0
    %4855 = vmatpush2.bf16.msra.mxu0 0
    %4856 = vmatprep.subr.bf16.mxu0 0
    %4857 = vmatpush2.bf16.msra.mxu0 0
    %4858 = vmatprep.mubr.bf16.mxu0 0
    %4859 = vmatmul.mubr.bf16.gmra.mxu0 %v4821
    %v4860 = vpop.f32.mrf.mxu0
    %v4861 = vadd.f32 %v4814, %v4860
    %v4862 = vpop.f32.mrf.mxu0
    %v4863 = vpop.f32.mrf.mxu0
    %v4864 = vadd.f32 %v4817, %v4863
    %v4865 = vpop.f32.mrf.mxu0
    %4866 = vdwg.mxu0
    %4867 = vrot.lane.b32.xlu0 %v4321, 112
    %v4868 = vpop.permute.xlu0 %4867
    %4869 = vrot.lane.b32.xlu0 %v4323, 112
    %v4870 = vpop.permute.xlu0 %4869
    %v4872 = vsel %vm271, %v4868, 0
    %v4875 = vsel %vm271, %v4870, 0
    %4877 = vmatprep.subr.bf16.mxu0 0
    %4878 = vmatpush1.bf16.xpose.msra.mxu0 0
    %4879 = vmatprep.subr.bf16.mxu0 0
    %4880 = vmatpush1.bf16.xpose.msra.mxu0 0
    %4881 = vmatprep.subr.bf16.mxu0 0
    %4882 = vmatpush1.bf16.xpose.msra.mxu0 0
    %4883 = vmatprep.subr.bf16.mxu0 0
    %4884 = vmatpush1.bf16.xpose.msra.mxu0 0
    %4885 = vmatprep.subr.bf16.mxu0 0
    %4886 = vmatpush1.bf16.xpose.msra.mxu0 0
    %4887 = vmatprep.subr.bf16.mxu0 0
    %4888 = vmatpush1.bf16.xpose.msra.mxu0 0
    %4889 = vmatprep.subr.bf16.mxu0 0
    %4890 = vmatpush1.bf16.xpose.msra.mxu0 0
    %4891 = vmatprep.subr.bf16.mxu0 0
    %4892 = vmatpush1.bf16.xpose.msra.mxu0 %v4875
    %4893 = vmatprep.subr.bf16.mxu0 0
    %4894 = vmatpush2.bf16.xpose.msra.mxu0 0
    %4895 = vmatprep.subr.bf16.mxu0 0
    %4896 = vmatpush2.bf16.xpose.msra.mxu0 0
    %4897 = vmatprep.subr.bf16.mxu0 0
    %4898 = vmatpush2.bf16.xpose.msra.mxu0 0
    %4899 = vmatprep.subr.bf16.mxu0 0
    %4900 = vmatpush2.bf16.xpose.msra.mxu0 0
    %4901 = vmatprep.subr.bf16.mxu0 0
    %4902 = vmatpush2.bf16.xpose.msra.mxu0 0
    %4903 = vmatprep.subr.bf16.mxu0 0
    %4904 = vmatpush2.bf16.xpose.msra.mxu0 0
    %4905 = vmatprep.subr.bf16.mxu0 0
    %4906 = vmatpush2.bf16.xpose.msra.mxu0 0
    %4907 = vmatprep.subr.bf16.mxu0 0
    %4908 = vmatpush2.bf16.xpose.msra.mxu0 0
    %4909 = vmatprep.mubr.bf16.mxu0 0
    %4910 = vmatmul.mubr.bf16.gmra.mxu0 %v4872
    %v4911 = vpop.f32.mrf.mxu0
    %v4912 = vadd.f32 0.0, %v4911
    %v4913 = vpop.f32.mrf.mxu0
    %v4914 = vpop.f32.mrf.mxu0
    %v4915 = vpop.f32.mrf.mxu0
    %4916 = vdwg.mxu0
    %4917 = vrot.lane.b32.xlu0 %v4322, 112
    %v4918 = vpop.permute.xlu0 %4917
    %4919 = vrot.lane.b32.xlu0 %v4324, 112
    %v4920 = vpop.permute.xlu0 %4919
    %v4922 = vsel %vm271, %v4918, 0
    %v4925 = vsel %vm271, %v4920, 0
    %4927 = vmatprep.subr.bf16.mxu0 0
    %4928 = vmatpush1.bf16.xpose.msra.mxu0 0
    %4929 = vmatprep.subr.bf16.mxu0 0
    %4930 = vmatpush1.bf16.xpose.msra.mxu0 0
    %4931 = vmatprep.subr.bf16.mxu0 0
    %4932 = vmatpush1.bf16.xpose.msra.mxu0 0
    %4933 = vmatprep.subr.bf16.mxu0 0
    %4934 = vmatpush1.bf16.xpose.msra.mxu0 0
    %4935 = vmatprep.subr.bf16.mxu0 0
    %4936 = vmatpush1.bf16.xpose.msra.mxu0 0
    %4937 = vmatprep.subr.bf16.mxu0 0
    %4938 = vmatpush1.bf16.xpose.msra.mxu0 0
    %4939 = vmatprep.subr.bf16.mxu0 0
    %4940 = vmatpush1.bf16.xpose.msra.mxu0 0
    %4941 = vmatprep.subr.bf16.mxu0 0
    %4942 = vmatpush1.bf16.xpose.msra.mxu0 %v4925
    %4943 = vmatprep.subr.bf16.mxu0 0
    %4944 = vmatpush2.bf16.xpose.msra.mxu0 0
    %4945 = vmatprep.subr.bf16.mxu0 0
    %4946 = vmatpush2.bf16.xpose.msra.mxu0 0
    %4947 = vmatprep.subr.bf16.mxu0 0
    %4948 = vmatpush2.bf16.xpose.msra.mxu0 0
    %4949 = vmatprep.subr.bf16.mxu0 0
    %4950 = vmatpush2.bf16.xpose.msra.mxu0 0
    %4951 = vmatprep.subr.bf16.mxu0 0
    %4952 = vmatpush2.bf16.xpose.msra.mxu0 0
    %4953 = vmatprep.subr.bf16.mxu0 0
    %4954 = vmatpush2.bf16.xpose.msra.mxu0 0
    %4955 = vmatprep.subr.bf16.mxu0 0
    %4956 = vmatpush2.bf16.xpose.msra.mxu0 0
    %4957 = vmatprep.subr.bf16.mxu0 0
    %4958 = vmatpush2.bf16.xpose.msra.mxu0 0
    %4959 = vmatprep.mubr.bf16.mxu0 0
    %4960 = vmatmul.mubr.bf16.gmra.mxu0 %v4922
    %v4961 = vpop.f32.mrf.mxu0
    %v4962 = vadd.f32 0.0, %v4961
    %v4963 = vpop.f32.mrf.mxu0
    %v4964 = vpop.f32.mrf.mxu0
    %v4965 = vpop.f32.mrf.mxu0
    %4966 = vdwg.mxu0
    %v4967 = vmul.f32 %v4912, 0.35355338
    %v4968 = vmul.f32 %v4962, 0.35355338
    %v4969 = vadd.f32 %v4967, %v176
    %v4970 = vadd.f32 %v4968, %v177
    %v4971 = vsel %vm271, %v4969, -inf
    %4972 = vmax.xlane.f32.xlu0 %v4971
    %v4973 = vpop.xlane.xlu0 %4972
    %v4974 = vsel %vm271, %v4970, -inf
    %4975 = vmax.xlane.f32.xlu0 %v4974
    %v4976 = vpop.xlane.xlu0 %4975
    %v4977 = vsub.f32 %v4969, %v4973
    %v4978 = vsub.f32 %v4970, %v4976
    %v4979 = vmul.f32 %v4977, 1.442695
    %v4980 = vpow.pop %v4979
    %v4981 = vmul.f32 %v4978, 1.442695
    %v4982 = vpow.pop %v4981
    %v4983 = vsel %vm271, %v4980, 0.0
    %4984 = vadd.xlane.f32.xlu0 %v4983
    %v4985 = vpop.xlane.xlu0 %4984
    %v4986 = vsel %vm271, %v4982, 0.0
    %4987 = vadd.xlane.f32.xlu0 %v4986
    %v4988 = vpop.xlane.xlu0 %4987
    %v4989 = vrcp.pop %v4985
    %v4990 = vrcp.pop %v4988
    %v4991 = vmul.f32 %v4980, %v4989
    %v4992 = vmul.f32 %v4982, %v4990
    %v4993 = vpack.c.bf16 %v4991, %v4991
    %v4994 = vpack.c.bf16 %v4992, %v4992
    %4995 = vrot.lane.b32.xlu0 %v4323, 80
    %v4996 = vpop.permute.xlu0 %4995
    %v4998 = vsel %vm271, %v4993, 0
    %v5001 = vsel %vm400, %v4996, 0
    %5003 = vmatprep.subr.bf16.mxu0 0
    %5004 = vmatpush1.bf16.msra.mxu0 0
    %5005 = vmatprep.subr.bf16.mxu0 0
    %5006 = vmatpush1.bf16.msra.mxu0 0
    %5007 = vmatprep.subr.bf16.mxu0 0
    %5008 = vmatpush1.bf16.msra.mxu0 0
    %5009 = vmatprep.subr.bf16.mxu0 0
    %5010 = vmatpush1.bf16.msra.mxu0 0
    %5011 = vmatprep.subr.bf16.mxu0 0
    %5012 = vmatpush1.bf16.msra.mxu0 0
    %5013 = vmatprep.subr.bf16.mxu0 0
    %5014 = vmatpush1.bf16.msra.mxu0 0
    %5015 = vmatprep.subr.bf16.mxu0 0
    %5016 = vmatpush1.bf16.msra.mxu0 0
    %5017 = vmatprep.subr.bf16.mxu0 0
    %5018 = vmatpush1.bf16.msra.mxu0 %v5001
    %5019 = vmatprep.subr.bf16.mxu0 0
    %5020 = vmatpush2.bf16.msra.mxu0 0
    %5021 = vmatprep.subr.bf16.mxu0 0
    %5022 = vmatpush2.bf16.msra.mxu0 0
    %5023 = vmatprep.subr.bf16.mxu0 0
    %5024 = vmatpush2.bf16.msra.mxu0 0
    %5025 = vmatprep.subr.bf16.mxu0 0
    %5026 = vmatpush2.bf16.msra.mxu0 0
    %5027 = vmatprep.subr.bf16.mxu0 0
    %5028 = vmatpush2.bf16.msra.mxu0 0
    %5029 = vmatprep.subr.bf16.mxu0 0
    %5030 = vmatpush2.bf16.msra.mxu0 0
    %5031 = vmatprep.subr.bf16.mxu0 0
    %5032 = vmatpush2.bf16.msra.mxu0 0
    %5033 = vmatprep.subr.bf16.mxu0 0
    %5034 = vmatpush2.bf16.msra.mxu0 0
    %5035 = vmatprep.mubr.bf16.mxu0 0
    %5036 = vmatmul.mubr.bf16.gmra.mxu0 %v4998
    %v5037 = vpop.f32.mrf.mxu0
    %v5038 = vadd.f32 0.0, %v5037
    %v5039 = vpop.f32.mrf.mxu0
    %v5040 = vpop.f32.mrf.mxu0
    %v5041 = vpop.f32.mrf.mxu0
    %5042 = vdwg.mxu0
    %5043 = vrot.lane.b32.xlu0 %v4324, 80
    %v5044 = vpop.permute.xlu0 %5043
    %v5046 = vsel %vm271, %v4994, 0
    %v5049 = vsel %vm400, %v5044, 0
    %5051 = vmatprep.subr.bf16.mxu0 0
    %5052 = vmatpush1.bf16.msra.mxu0 0
    %5053 = vmatprep.subr.bf16.mxu0 0
    %5054 = vmatpush1.bf16.msra.mxu0 0
    %5055 = vmatprep.subr.bf16.mxu0 0
    %5056 = vmatpush1.bf16.msra.mxu0 0
    %5057 = vmatprep.subr.bf16.mxu0 0
    %5058 = vmatpush1.bf16.msra.mxu0 0
    %5059 = vmatprep.subr.bf16.mxu0 0
    %5060 = vmatpush1.bf16.msra.mxu0 0
    %5061 = vmatprep.subr.bf16.mxu0 0
    %5062 = vmatpush1.bf16.msra.mxu0 0
    %5063 = vmatprep.subr.bf16.mxu0 0
    %5064 = vmatpush1.bf16.msra.mxu0 0
    %5065 = vmatprep.subr.bf16.mxu0 0
    %5066 = vmatpush1.bf16.msra.mxu0 %v5049
    %5067 = vmatprep.subr.bf16.mxu0 0
    %5068 = vmatpush2.bf16.msra.mxu0 0
    %5069 = vmatprep.subr.bf16.mxu0 0
    %5070 = vmatpush2.bf16.msra.mxu0 0
    %5071 = vmatprep.subr.bf16.mxu0 0
    %5072 = vmatpush2.bf16.msra.mxu0 0
    %5073 = vmatprep.subr.bf16.mxu0 0
    %5074 = vmatpush2.bf16.msra.mxu0 0
    %5075 = vmatprep.subr.bf16.mxu0 0
    %5076 = vmatpush2.bf16.msra.mxu0 0
    %5077 = vmatprep.subr.bf16.mxu0 0
    %5078 = vmatpush2.bf16.msra.mxu0 0
    %5079 = vmatprep.subr.bf16.mxu0 0
    %5080 = vmatpush2.bf16.msra.mxu0 0
    %5081 = vmatprep.subr.bf16.mxu0 0
    %5082 = vmatpush2.bf16.msra.mxu0 0
    %5083 = vmatprep.mubr.bf16.mxu0 0
    %5084 = vmatmul.mubr.bf16.gmra.mxu0 %v5046
    %v5085 = vpop.f32.mrf.mxu0
    %v5086 = vadd.f32 0.0, %v5085
    %v5087 = vpop.f32.mrf.mxu0
    %v5088 = vpop.f32.mrf.mxu0
    %v5089 = vpop.f32.mrf.mxu0
    %5090 = vdwg.mxu0
    %v5091 = vpack.c.bf16 %v5086, %v5038
    %v5092 = vpack.c.bf16 %v2993, %v2993
    %v5094 = vsel %vm271, %v5091, 0
    %v5097 = vsel %vm400, %v5092, 0
    %5099 = vmatprep.subr.bf16.mxu0 0
    %5100 = vmatpush1.bf16.msra.mxu0 0
    %5101 = vmatprep.subr.bf16.mxu0 0
    %5102 = vmatpush1.bf16.msra.mxu0 0
    %5103 = vmatprep.subr.bf16.mxu0 0
    %5104 = vmatpush1.bf16.msra.mxu0 0
    %5105 = vmatprep.subr.bf16.mxu0 0
    %5106 = vmatpush1.bf16.msra.mxu0 0
    %5107 = vmatprep.subr.bf16.mxu0 0
    %5108 = vmatpush1.bf16.msra.mxu0 0
    %5109 = vmatprep.subr.bf16.mxu0 0
    %5110 = vmatpush1.bf16.msra.mxu0 0
    %5111 = vmatprep.subr.bf16.mxu0 0
    %5112 = vmatpush1.bf16.msra.mxu0 0
    %5113 = vmatprep.subr.bf16.mxu0 0
    %5114 = vmatpush1.bf16.msra.mxu0 %v5097
    %5115 = vmatprep.subr.bf16.mxu0 0
    %5116 = vmatpush2.bf16.msra.mxu0 0
    %5117 = vmatprep.subr.bf16.mxu0 0
    %5118 = vmatpush2.bf16.msra.mxu0 0
    %5119 = vmatprep.subr.bf16.mxu0 0
    %5120 = vmatpush2.bf16.msra.mxu0 0
    %5121 = vmatprep.subr.bf16.mxu0 0
    %5122 = vmatpush2.bf16.msra.mxu0 0
    %5123 = vmatprep.subr.bf16.mxu0 0
    %5124 = vmatpush2.bf16.msra.mxu0 0
    %5125 = vmatprep.subr.bf16.mxu0 0
    %5126 = vmatpush2.bf16.msra.mxu0 0
    %5127 = vmatprep.subr.bf16.mxu0 0
    %5128 = vmatpush2.bf16.msra.mxu0 0
    %5129 = vmatprep.subr.bf16.mxu0 0
    %5130 = vmatpush2.bf16.msra.mxu0 0
    %5131 = vmatprep.mubr.bf16.mxu0 0
    %5132 = vmatmul.mubr.bf16.gmra.mxu0 %v5094
    %v5133 = vpop.f32.mrf.mxu0
    %v5134 = vadd.f32 0.0, %v5133
    %v5135 = vpop.f32.mrf.mxu0
    %v5136 = vpop.f32.mrf.mxu0
    %v5137 = vadd.f32 0.0, %v5136
    %v5138 = vpop.f32.mrf.mxu0
    %5139 = vdwg.mxu0
    %v5140 = vadd.f32 %v4861, %v5134
    %v5141 = vadd.f32 %v4864, %v5137
    %5142 = vrot.lane.b32.xlu0 %v4321, 104
    %v5143 = vpop.permute.xlu0 %5142
    %5144 = vrot.lane.b32.xlu0 %v4323, 104
    %v5145 = vpop.permute.xlu0 %5144
    %v5147 = vsel %vm271, %v5143, 0
    %v5150 = vsel %vm271, %v5145, 0
    %5152 = vmatprep.subr.bf16.mxu0 0
    %5153 = vmatpush1.bf16.xpose.msra.mxu0 0
    %5154 = vmatprep.subr.bf16.mxu0 0
    %5155 = vmatpush1.bf16.xpose.msra.mxu0 0
    %5156 = vmatprep.subr.bf16.mxu0 0
    %5157 = vmatpush1.bf16.xpose.msra.mxu0 0
    %5158 = vmatprep.subr.bf16.mxu0 0
    %5159 = vmatpush1.bf16.xpose.msra.mxu0 0
    %5160 = vmatprep.subr.bf16.mxu0 0
    %5161 = vmatpush1.bf16.xpose.msra.mxu0 0
    %5162 = vmatprep.subr.bf16.mxu0 0
    %5163 = vmatpush1.bf16.xpose.msra.mxu0 0
    %5164 = vmatprep.subr.bf16.mxu0 0
    %5165 = vmatpush1.bf16.xpose.msra.mxu0 0
    %5166 = vmatprep.subr.bf16.mxu0 0
    %5167 = vmatpush1.bf16.xpose.msra.mxu0 %v5150
    %5168 = vmatprep.subr.bf16.mxu0 0
    %5169 = vmatpush2.bf16.xpose.msra.mxu0 0
    %5170 = vmatprep.subr.bf16.mxu0 0
    %5171 = vmatpush2.bf16.xpose.msra.mxu0 0
    %5172 = vmatprep.subr.bf16.mxu0 0
    %5173 = vmatpush2.bf16.xpose.msra.mxu0 0
    %5174 = vmatprep.subr.bf16.mxu0 0
    %5175 = vmatpush2.bf16.xpose.msra.mxu0 0
    %5176 = vmatprep.subr.bf16.mxu0 0
    %5177 = vmatpush2.bf16.xpose.msra.mxu0 0
    %5178 = vmatprep.subr.bf16.mxu0 0
    %5179 = vmatpush2.bf16.xpose.msra.mxu0 0
    %5180 = vmatprep.subr.bf16.mxu0 0
    %5181 = vmatpush2.bf16.xpose.msra.mxu0 0
    %5182 = vmatprep.subr.bf16.mxu0 0
    %5183 = vmatpush2.bf16.xpose.msra.mxu0 0
    %5184 = vmatprep.mubr.bf16.mxu0 0
    %5185 = vmatmul.mubr.bf16.gmra.mxu0 %v5147
    %v5186 = vpop.f32.mrf.mxu0
    %v5187 = vadd.f32 0.0, %v5186
    %v5188 = vpop.f32.mrf.mxu0
    %v5189 = vpop.f32.mrf.mxu0
    %v5190 = vpop.f32.mrf.mxu0
    %5191 = vdwg.mxu0
    %5192 = vrot.lane.b32.xlu0 %v4322, 104
    %v5193 = vpop.permute.xlu0 %5192
    %5194 = vrot.lane.b32.xlu0 %v4324, 104
    %v5195 = vpop.permute.xlu0 %5194
    %v5197 = vsel %vm271, %v5193, 0
    %v5200 = vsel %vm271, %v5195, 0
    %5202 = vmatprep.subr.bf16.mxu0 0
    %5203 = vmatpush1.bf16.xpose.msra.mxu0 0
    %5204 = vmatprep.subr.bf16.mxu0 0
    %5205 = vmatpush1.bf16.xpose.msra.mxu0 0
    %5206 = vmatprep.subr.bf16.mxu0 0
    %5207 = vmatpush1.bf16.xpose.msra.mxu0 0
    %5208 = vmatprep.subr.bf16.mxu0 0
    %5209 = vmatpush1.bf16.xpose.msra.mxu0 0
    %5210 = vmatprep.subr.bf16.mxu0 0
    %5211 = vmatpush1.bf16.xpose.msra.mxu0 0
    %5212 = vmatprep.subr.bf16.mxu0 0
    %5213 = vmatpush1.bf16.xpose.msra.mxu0 0
    %5214 = vmatprep.subr.bf16.mxu0 0
    %5215 = vmatpush1.bf16.xpose.msra.mxu0 0
    %5216 = vmatprep.subr.bf16.mxu0 0
    %5217 = vmatpush1.bf16.xpose.msra.mxu0 %v5200
    %5218 = vmatprep.subr.bf16.mxu0 0
    %5219 = vmatpush2.bf16.xpose.msra.mxu0 0
    %5220 = vmatprep.subr.bf16.mxu0 0
    %5221 = vmatpush2.bf16.xpose.msra.mxu0 0
    %5222 = vmatprep.subr.bf16.mxu0 0
    %5223 = vmatpush2.bf16.xpose.msra.mxu0 0
    %5224 = vmatprep.subr.bf16.mxu0 0
    %5225 = vmatpush2.bf16.xpose.msra.mxu0 0
    %5226 = vmatprep.subr.bf16.mxu0 0
    %5227 = vmatpush2.bf16.xpose.msra.mxu0 0
    %5228 = vmatprep.subr.bf16.mxu0 0
    %5229 = vmatpush2.bf16.xpose.msra.mxu0 0
    %5230 = vmatprep.subr.bf16.mxu0 0
    %5231 = vmatpush2.bf16.xpose.msra.mxu0 0
    %5232 = vmatprep.subr.bf16.mxu0 0
    %5233 = vmatpush2.bf16.xpose.msra.mxu0 0
    %5234 = vmatprep.mubr.bf16.mxu0 0
    %5235 = vmatmul.mubr.bf16.gmra.mxu0 %v5197
    %v5236 = vpop.f32.mrf.mxu0
    %v5237 = vadd.f32 0.0, %v5236
    %v5238 = vpop.f32.mrf.mxu0
    %v5239 = vpop.f32.mrf.mxu0
    %v5240 = vpop.f32.mrf.mxu0
    %5241 = vdwg.mxu0
    %v5242 = vmul.f32 %v5187, 0.35355338
    %v5243 = vmul.f32 %v5237, 0.35355338
    %v5244 = vadd.f32 %v5242, %v176
    %v5245 = vadd.f32 %v5243, %v177
    %v5246 = vsel %vm271, %v5244, -inf
    %5247 = vmax.xlane.f32.xlu0 %v5246
    %v5248 = vpop.xlane.xlu0 %5247
    %v5249 = vsel %vm271, %v5245, -inf
    %5250 = vmax.xlane.f32.xlu0 %v5249
    %v5251 = vpop.xlane.xlu0 %5250
    %v5252 = vsub.f32 %v5244, %v5248
    %v5253 = vsub.f32 %v5245, %v5251
    %v5254 = vmul.f32 %v5252, 1.442695
    %v5255 = vpow.pop %v5254
    %v5256 = vmul.f32 %v5253, 1.442695
    %v5257 = vpow.pop %v5256
    %v5258 = vsel %vm271, %v5255, 0.0
    %5259 = vadd.xlane.f32.xlu0 %v5258
    %v5260 = vpop.xlane.xlu0 %5259
    %v5261 = vsel %vm271, %v5257, 0.0
    %5262 = vadd.xlane.f32.xlu0 %v5261
    %v5263 = vpop.xlane.xlu0 %5262
    %v5264 = vrcp.pop %v5260
    %v5265 = vrcp.pop %v5263
    %v5266 = vmul.f32 %v5255, %v5264
    %v5267 = vmul.f32 %v5257, %v5265
    %v5268 = vpack.c.bf16 %v5266, %v5266
    %v5269 = vpack.c.bf16 %v5267, %v5267
    %5270 = vrot.lane.b32.xlu0 %v4323, 72
    %v5271 = vpop.permute.xlu0 %5270
    %v5273 = vsel %vm271, %v5268, 0
    %v5276 = vsel %vm400, %v5271, 0
    %5278 = vmatprep.subr.bf16.mxu0 0
    %5279 = vmatpush1.bf16.msra.mxu0 0
    %5280 = vmatprep.subr.bf16.mxu0 0
    %5281 = vmatpush1.bf16.msra.mxu0 0
    %5282 = vmatprep.subr.bf16.mxu0 0
    %5283 = vmatpush1.bf16.msra.mxu0 0
    %5284 = vmatprep.subr.bf16.mxu0 0
    %5285 = vmatpush1.bf16.msra.mxu0 0
    %5286 = vmatprep.subr.bf16.mxu0 0
    %5287 = vmatpush1.bf16.msra.mxu0 0
    %5288 = vmatprep.subr.bf16.mxu0 0
    %5289 = vmatpush1.bf16.msra.mxu0 0
    %5290 = vmatprep.subr.bf16.mxu0 0
    %5291 = vmatpush1.bf16.msra.mxu0 0
    %5292 = vmatprep.subr.bf16.mxu0 0
    %5293 = vmatpush1.bf16.msra.mxu0 %v5276
    %5294 = vmatprep.subr.bf16.mxu0 0
    %5295 = vmatpush2.bf16.msra.mxu0 0
    %5296 = vmatprep.subr.bf16.mxu0 0
    %5297 = vmatpush2.bf16.msra.mxu0 0
    %5298 = vmatprep.subr.bf16.mxu0 0
    %5299 = vmatpush2.bf16.msra.mxu0 0
    %5300 = vmatprep.subr.bf16.mxu0 0
    %5301 = vmatpush2.bf16.msra.mxu0 0
    %5302 = vmatprep.subr.bf16.mxu0 0
    %5303 = vmatpush2.bf16.msra.mxu0 0
    %5304 = vmatprep.subr.bf16.mxu0 0
    %5305 = vmatpush2.bf16.msra.mxu0 0
    %5306 = vmatprep.subr.bf16.mxu0 0
    %5307 = vmatpush2.bf16.msra.mxu0 0
    %5308 = vmatprep.subr.bf16.mxu0 0
    %5309 = vmatpush2.bf16.msra.mxu0 0
    %5310 = vmatprep.mubr.bf16.mxu0 0
    %5311 = vmatmul.mubr.bf16.gmra.mxu0 %v5273
    %v5312 = vpop.f32.mrf.mxu0
    %v5313 = vadd.f32 0.0, %v5312
    %v5314 = vpop.f32.mrf.mxu0
    %v5315 = vpop.f32.mrf.mxu0
    %v5316 = vpop.f32.mrf.mxu0
    %5317 = vdwg.mxu0
    %5318 = vrot.lane.b32.xlu0 %v4324, 72
    %v5319 = vpop.permute.xlu0 %5318
    %v5321 = vsel %vm271, %v5269, 0
    %v5324 = vsel %vm400, %v5319, 0
    %5326 = vmatprep.subr.bf16.mxu0 0
    %5327 = vmatpush1.bf16.msra.mxu0 0
    %5328 = vmatprep.subr.bf16.mxu0 0
    %5329 = vmatpush1.bf16.msra.mxu0 0
    %5330 = vmatprep.subr.bf16.mxu0 0
    %5331 = vmatpush1.bf16.msra.mxu0 0
    %5332 = vmatprep.subr.bf16.mxu0 0
    %5333 = vmatpush1.bf16.msra.mxu0 0
    %5334 = vmatprep.subr.bf16.mxu0 0
    %5335 = vmatpush1.bf16.msra.mxu0 0
    %5336 = vmatprep.subr.bf16.mxu0 0
    %5337 = vmatpush1.bf16.msra.mxu0 0
    %5338 = vmatprep.subr.bf16.mxu0 0
    %5339 = vmatpush1.bf16.msra.mxu0 0
    %5340 = vmatprep.subr.bf16.mxu0 0
    %5341 = vmatpush1.bf16.msra.mxu0 %v5324
    %5342 = vmatprep.subr.bf16.mxu0 0
    %5343 = vmatpush2.bf16.msra.mxu0 0
    %5344 = vmatprep.subr.bf16.mxu0 0
    %5345 = vmatpush2.bf16.msra.mxu0 0
    %5346 = vmatprep.subr.bf16.mxu0 0
    %5347 = vmatpush2.bf16.msra.mxu0 0
    %5348 = vmatprep.subr.bf16.mxu0 0
    %5349 = vmatpush2.bf16.msra.mxu0 0
    %5350 = vmatprep.subr.bf16.mxu0 0
    %5351 = vmatpush2.bf16.msra.mxu0 0
    %5352 = vmatprep.subr.bf16.mxu0 0
    %5353 = vmatpush2.bf16.msra.mxu0 0
    %5354 = vmatprep.subr.bf16.mxu0 0
    %5355 = vmatpush2.bf16.msra.mxu0 0
    %5356 = vmatprep.subr.bf16.mxu0 0
    %5357 = vmatpush2.bf16.msra.mxu0 0
    %5358 = vmatprep.mubr.bf16.mxu0 0
    %5359 = vmatmul.mubr.bf16.gmra.mxu0 %v5321
    %v5360 = vpop.f32.mrf.mxu0
    %v5361 = vadd.f32 0.0, %v5360
    %v5362 = vpop.f32.mrf.mxu0
    %v5363 = vpop.f32.mrf.mxu0
    %v5364 = vpop.f32.mrf.mxu0
    %5365 = vdwg.mxu0
    %v5366 = vpack.c.bf16 %v5361, %v5313
    %v5367 = vpack.c.bf16 %v2994, %v2994
    %v5369 = vsel %vm271, %v5366, 0
    %v5372 = vsel %vm400, %v5367, 0
    %5374 = vmatprep.subr.bf16.mxu0 0
    %5375 = vmatpush1.bf16.msra.mxu0 0
    %5376 = vmatprep.subr.bf16.mxu0 0
    %5377 = vmatpush1.bf16.msra.mxu0 0
    %5378 = vmatprep.subr.bf16.mxu0 0
    %5379 = vmatpush1.bf16.msra.mxu0 0
    %5380 = vmatprep.subr.bf16.mxu0 0
    %5381 = vmatpush1.bf16.msra.mxu0 0
    %5382 = vmatprep.subr.bf16.mxu0 0
    %5383 = vmatpush1.bf16.msra.mxu0 0
    %5384 = vmatprep.subr.bf16.mxu0 0
    %5385 = vmatpush1.bf16.msra.mxu0 0
    %5386 = vmatprep.subr.bf16.mxu0 0
    %5387 = vmatpush1.bf16.msra.mxu0 0
    %5388 = vmatprep.subr.bf16.mxu0 0
    %5389 = vmatpush1.bf16.msra.mxu0 %v5372
    %5390 = vmatprep.subr.bf16.mxu0 0
    %5391 = vmatpush2.bf16.msra.mxu0 0
    %5392 = vmatprep.subr.bf16.mxu0 0
    %5393 = vmatpush2.bf16.msra.mxu0 0
    %5394 = vmatprep.subr.bf16.mxu0 0
    %5395 = vmatpush2.bf16.msra.mxu0 0
    %5396 = vmatprep.subr.bf16.mxu0 0
    %5397 = vmatpush2.bf16.msra.mxu0 0
    %5398 = vmatprep.subr.bf16.mxu0 0
    %5399 = vmatpush2.bf16.msra.mxu0 0
    %5400 = vmatprep.subr.bf16.mxu0 0
    %5401 = vmatpush2.bf16.msra.mxu0 0
    %5402 = vmatprep.subr.bf16.mxu0 0
    %5403 = vmatpush2.bf16.msra.mxu0 0
    %5404 = vmatprep.subr.bf16.mxu0 0
    %5405 = vmatpush2.bf16.msra.mxu0 0
    %5406 = vmatprep.mubr.bf16.mxu0 0
    %5407 = vmatmul.mubr.bf16.gmra.mxu0 %v5369
    %v5408 = vpop.f32.mrf.mxu0
    %v5409 = vadd.f32 0.0, %v5408
    %v5410 = vpop.f32.mrf.mxu0
    %v5411 = vpop.f32.mrf.mxu0
    %v5412 = vadd.f32 0.0, %v5411
    %v5413 = vpop.f32.mrf.mxu0
    %5414 = vdwg.mxu0
    %v5415 = vadd.f32 %v5140, %v5409
    %v5416 = vadd.f32 %v5141, %v5412
    %v5418 = vlaneseq
    %v5419 = vshrl.u32 %v5418, 7
    %v5420 = vsub.s32 0, %v5419
    %v5421 = vrot.slane %v2995, %v5420
    %v5423 = vadd.f32 %v5415, %v5421
    %v5424 = vadd.f32 %v5416, %v5421
    %v5425 = vadd.f32 %v4213, %v5423
    %v5426 = vadd.f32 %v4214, %v5424
    %v5427 = vsel %vm221, %v5425, 0.0
    %5428 = vadd.xlane.f32.xlu0 %v5427
    %v5429 = vpop.xlane.xlu0 %5428
    %v5430 = vsel %vm221, %v5426, 0.0
    %5431 = vadd.xlane.f32.xlu0 %v5430
    %v5432 = vpop.xlane.xlu0 %5431
    %v5433 = vmul.f32 %v5429, %v1380
    %v5434 = vmul.f32 %v5432, %v1380
    %v5435 = vsub.f32 %v5425, %v5433
    %v5436 = vsub.f32 %v5426, %v5434
    %v5437 = vmul.f32 %v5435, %v5435
    %v5438 = vmul.f32 %v5436, %v5436
    %v5439 = vsel %vm221, %v5437, 0.0
    %5440 = vadd.xlane.f32.xlu0 %v5439
    %v5441 = vpop.xlane.xlu0 %5440
    %v5442 = vsel %vm221, %v5438, 0.0
    %5443 = vadd.xlane.f32.xlu0 %v5442
    %v5444 = vpop.xlane.xlu0 %5443
    %v5445 = vmul.f32 %v5441, %v1380
    %v5446 = vmul.f32 %v5444, %v1380
    %v5447 = vadd.f32 %v5445, 1e-05
    %v5448 = vadd.f32 %v5446, 1e-05
    %v5449 = vrsqrt.pop %v5447
    %v5450 = vrsqrt.pop %v5448
    %v5451 = vmul.f32 %v5435, %v5449
    %v5452 = vmul.f32 %v5436, %v5450
    %v5454 = vlaneseq
    %v5455 = vshrl.u32 %v5454, 7
    %v5456 = vsub.s32 0, %v5455
    %v5457 = vrot.slane %v2996, %v5456
    %v5459 = vmul.f32 %v5451, %v5457
    %v5460 = vmul.f32 %v5452, %v5457
    %v5462 = vlaneseq
    %v5463 = vshrl.u32 %v5462, 7
    %v5464 = vsub.s32 0, %v5463
    %v5465 = vrot.slane %v2997, %v5464
    %v5467 = vadd.f32 %v5459, %v5465
    %v5468 = vadd.f32 %v5460, %v5465
    %v5469 = vpack.c.bf16 %v5468, %v5467
    %v5470 = vpack.c.bf16 %v2999, %v2998
    %v5471 = vpack.c.bf16 %v3001, %v3000
    %v5473 = vlaneseq
    %v5474 = vshrl.u32 %v5473, 7
    %v5475 = vsub.s32 0, %v5474
    %v5476 = vrot.slane %v3002, %v5475
    %v5479 = vsel %vm221, %v5469, 0
    %5481 = vmatprep.subr.bf16.mxu0 0
    %5482 = vmatpush1.bf16.msra.mxu0 0
    %5483 = vmatprep.subr.bf16.mxu0 0
    %5484 = vmatpush1.bf16.msra.mxu0 0
    %5485 = vmatprep.subr.bf16.mxu0 0
    %5486 = vmatpush1.bf16.msra.mxu0 0
    %5487 = vmatprep.subr.bf16.mxu0 0
    %5488 = vmatpush1.bf16.msra.mxu0 0
    %5489 = vmatprep.subr.bf16.mxu0 0
    %5490 = vmatpush1.bf16.msra.mxu0 0
    %5491 = vmatprep.subr.bf16.mxu0 0
    %5492 = vmatpush1.bf16.msra.mxu0 0
    %5493 = vmatprep.subr.bf16.mxu0 0
    %5494 = vmatpush1.bf16.msra.mxu0 %v5471
    %5495 = vmatprep.subr.bf16.mxu0 0
    %5496 = vmatpush1.bf16.msra.mxu0 %v5470
    %5497 = vmatprep.subr.bf16.mxu0 0
    %5498 = vmatpush2.bf16.msra.mxu0 0
    %5499 = vmatprep.subr.bf16.mxu0 0
    %5500 = vmatpush2.bf16.msra.mxu0 0
    %5501 = vmatprep.subr.bf16.mxu0 0
    %5502 = vmatpush2.bf16.msra.mxu0 0
    %5503 = vmatprep.subr.bf16.mxu0 0
    %5504 = vmatpush2.bf16.msra.mxu0 0
    %5505 = vmatprep.subr.bf16.mxu0 0
    %5506 = vmatpush2.bf16.msra.mxu0 0
    %5507 = vmatprep.subr.bf16.mxu0 0
    %5508 = vmatpush2.bf16.msra.mxu0 0
    %5509 = vmatprep.subr.bf16.mxu0 0
    %5510 = vmatpush2.bf16.msra.mxu0 0
    %5511 = vmatprep.subr.bf16.mxu0 0
    %5512 = vmatpush2.bf16.msra.mxu0 0
    %5513 = vmatprep.mubr.bf16.mxu0 0
    %5514 = vmatmul.mubr.bf16.gmra.mxu0 %v5479
    %v5515 = vpop.f32.mrf.mxu0
    %v5516 = vadd.f32 %v5476, %v5515
    %v5517 = vpop.f32.mrf.mxu0
    %v5518 = vpop.f32.mrf.mxu0
    %v5519 = vadd.f32 %v5476, %v5518
    %v5520 = vpop.f32.mrf.mxu0
    %5521 = vdwg.mxu0
    %v5522 = vmax.f32 %v5516, 0.0
    %v5523 = vmax.f32 %v5519, 0.0
    %v5524 = vpack.c.bf16 %v5523, %v5522
    %v5525 = vpack.c.bf16 %v3004, %v3003
    %v5526 = vpack.c.bf16 %v3006, %v3005
    %v5527 = vpack.c.bf16 %v3008, %v3007
    %v5528 = vpack.c.bf16 %v3010, %v3009
    %v5530 = vlaneseq
    %v5531 = vshrl.u32 %v5530, 7
    %v5532 = vsub.s32 0, %v5531
    %v5533 = vrot.slane %v3011, %v5532
    %v5536 = vsel %vm1483, %v5524, 0
    %5538 = vmatprep.subr.bf16.mxu0 0
    %5539 = vmatpush1.bf16.msra.mxu0 0
    %5540 = vmatprep.subr.bf16.mxu0 0
    %5541 = vmatpush1.bf16.msra.mxu0 0
    %5542 = vmatprep.subr.bf16.mxu0 0
    %5543 = vmatpush1.bf16.msra.mxu0 0
    %5544 = vmatprep.subr.bf16.mxu0 0
    %5545 = vmatpush1.bf16.msra.mxu0 0
    %5546 = vmatprep.subr.bf16.mxu0 0
    %5547 = vmatpush1.bf16.msra.mxu0 %v5528
    %5548 = vmatprep.subr.bf16.mxu0 0
    %5549 = vmatpush1.bf16.msra.mxu0 %v5527
    %5550 = vmatprep.subr.bf16.mxu0 0
    %5551 = vmatpush1.bf16.msra.mxu0 %v5526
    %5552 = vmatprep.subr.bf16.mxu0 0
    %5553 = vmatpush1.bf16.msra.mxu0 %v5525
    %5554 = vmatprep.subr.bf16.mxu0 0
    %5555 = vmatpush2.bf16.msra.mxu0 0
    %5556 = vmatprep.subr.bf16.mxu0 0
    %5557 = vmatpush2.bf16.msra.mxu0 0
    %5558 = vmatprep.subr.bf16.mxu0 0
    %5559 = vmatpush2.bf16.msra.mxu0 0
    %5560 = vmatprep.subr.bf16.mxu0 0
    %5561 = vmatpush2.bf16.msra.mxu0 0
    %5562 = vmatprep.subr.bf16.mxu0 0
    %5563 = vmatpush2.bf16.msra.mxu0 0
    %5564 = vmatprep.subr.bf16.mxu0 0
    %5565 = vmatpush2.bf16.msra.mxu0 0
    %5566 = vmatprep.subr.bf16.mxu0 0
    %5567 = vmatpush2.bf16.msra.mxu0 0
    %5568 = vmatprep.subr.bf16.mxu0 0
    %5569 = vmatpush2.bf16.msra.mxu0 0
    %5570 = vmatprep.mubr.bf16.mxu0 0
    %5571 = vmatmul.mubr.bf16.gmra.mxu0 %v5536
    %v5572 = vpop.f32.mrf.mxu0
    %v5573 = vadd.f32 %v5533, %v5572
    %v5574 = vpop.f32.mrf.mxu0
    %v5575 = vpop.f32.mrf.mxu0
    %v5576 = vadd.f32 %v5533, %v5575
    %v5577 = vpop.f32.mrf.mxu0
    %5578 = vdwg.mxu0
    %v5579 = vadd.f32 %v5467, %v5573
    %v5580 = vadd.f32 %v5468, %v5576
    %v5581 = vsel %vm221, %v5579, 0.0
    %5582 = vadd.xlane.f32.xlu0 %v5581
    %v5583 = vpop.xlane.xlu0 %5582
    %v5584 = vsel %vm221, %v5580, 0.0
    %5585 = vadd.xlane.f32.xlu0 %v5584
    %v5586 = vpop.xlane.xlu0 %5585
    %v5587 = vmul.f32 %v5583, %v1380
    %v5588 = vmul.f32 %v5586, %v1380
    %v5589 = vsub.f32 %v5579, %v5587
    %v5590 = vsub.f32 %v5580, %v5588
    %v5591 = vmul.f32 %v5589, %v5589
    %v5592 = vmul.f32 %v5590, %v5590
    %v5593 = vsel %vm221, %v5591, 0.0
    %5594 = vadd.xlane.f32.xlu0 %v5593
    %v5595 = vpop.xlane.xlu0 %5594
    %v5596 = vsel %vm221, %v5592, 0.0
    %5597 = vadd.xlane.f32.xlu0 %v5596
    %v5598 = vpop.xlane.xlu0 %5597
    %v5599 = vmul.f32 %v5595, %v1380
    %v5600 = vmul.f32 %v5598, %v1380
    %v5601 = vadd.f32 %v5599, 1e-05
    %v5602 = vadd.f32 %v5600, 1e-05
    %v5603 = vrsqrt.pop %v5601
    %v5604 = vrsqrt.pop %v5602
    %v5605 = vmul.f32 %v5589, %v5603
    %v5606 = vmul.f32 %v5590, %v5604
    %v5608 = vlaneseq
    %v5609 = vshrl.u32 %v5608, 7
    %v5610 = vsub.s32 0, %v5609
    %v5611 = vrot.slane %v3012, %v5610
    %v5613 = vmul.f32 %v5605, %v5611
    %v5614 = vmul.f32 %v5606, %v5611
    %v5616 = vlaneseq
    %v5617 = vshrl.u32 %v5616, 7
    %v5618 = vsub.s32 0, %v5617
    %v5619 = vrot.slane %v3013, %v5618
    %v5621 = vadd.f32 %v5613, %v5619
    %v5622 = vadd.f32 %v5614, %v5619
    %s5623 = scalar_lea.vmem %s31, 32
    %v5624 = vld [vmem:[%s5623] sm:$0xff]
    %v5625 = vld [vmem:[%s5623 + $0x8] sm:$0xff]
    %v5626 = vld [vmem:[%s5623 + $0x10] sm:$0xff]
    %v5627 = vld [vmem:[%s5623 + $0x18] sm:$0xff]
    %s5628 = scalar_lea.vmem %s33, 1
    %v5629 = vld [vmem:[%s5628] sm:$0x1]
    %s5630 = scalar_lea.vmem %s35, 32
    %v5631 = vld [vmem:[%s5630] sm:$0xff]
    %v5632 = vld [vmem:[%s5630 + $0x8] sm:$0xff]
    %v5633 = vld [vmem:[%s5630 + $0x10] sm:$0xff]
    %v5634 = vld [vmem:[%s5630 + $0x18] sm:$0xff]
    %s5635 = scalar_lea.vmem %s37, 1
    %v5636 = vld [vmem:[%s5635] sm:$0x1]
    %s5637 = scalar_lea.vmem %s39, 1
    %v5638 = vld [vmem:[%s5637] sm:$0x1]
    %s5639 = scalar_lea.vmem %s41, 1
    %v5640 = vld [vmem:[%s5639] sm:$0x1]
    %s5641 = scalar_lea.vmem %s43, 32
    %v5642 = vld [vmem:[%s5641] sm:$0xff]
    %v5643 = vld [vmem:[%s5641 + $0x8] sm:$0xff]
    %v5644 = vld [vmem:[%s5641 + $0x10] sm:$0xff]
    %v5645 = vld [vmem:[%s5641 + $0x18] sm:$0xff]
    %s5646 = scalar_lea.vmem %s45, 1
    %v5647 = vld [vmem:[%s5646] sm:$0x1]
    %s5648 = scalar_lea.vmem %s47, 32
    %v5649 = vld [vmem:[%s5648] sm:$0xff]
    %v5650 = vld [vmem:[%s5648 + $0x8] sm:$0xff]
    %v5651 = vld [vmem:[%s5648 + $0x10] sm:$0xff]
    %v5652 = vld [vmem:[%s5648 + $0x18] sm:$0xff]
    %s5653 = scalar_lea.vmem %s49, 1
    %v5654 = vld [vmem:[%s5653] sm:$0x1]
    %s5655 = scalar_lea.vmem %s51, 32
    %v5656 = vld [vmem:[%s5655] sm:$0xff]
    %v5657 = vld [vmem:[%s5655 + $0x8] sm:$0xff]
    %v5658 = vld [vmem:[%s5655 + $0x10] sm:$0xff]
    %v5659 = vld [vmem:[%s5655 + $0x18] sm:$0xff]
    %s5660 = scalar_lea.vmem %s53, 1
    %v5661 = vld [vmem:[%s5660] sm:$0x1]
    %s5662 = scalar_lea.vmem %s55, 1
    %v5663 = vld [vmem:[%s5662] sm:$0x1]
    %s5664 = scalar_lea.vmem %s57, 1
    %v5665 = vld [vmem:[%s5664] sm:$0x1]
    %s5666 = scalar_lea.vmem %s59, 32
    %v5667 = vld [vmem:[%s5666] sm:$0xff]
    %v5668 = vld [vmem:[%s5666 + $0x8] sm:$0xff]
    %v5669 = vld [vmem:[%s5666 + $0x10] sm:$0xff]
    %v5670 = vld [vmem:[%s5666 + $0x18] sm:$0xff]
    %s5671 = scalar_lea.vmem %s61, 1
    %v5672 = vld [vmem:[%s5671] sm:$0x1]
    %s5673 = scalar_lea.vmem %s63, 64
    %v5674 = vld [vmem:[%s5673] sm:$0xff]
    %v5675 = vld [vmem:[%s5673 + $0x8] sm:$0xff]
    %v5676 = vld [vmem:[%s5673 + $0x10] sm:$0xff]
    %v5677 = vld [vmem:[%s5673 + $0x18] sm:$0xff]
    %v5678 = vld [vmem:[%s5673 + $0x20] sm:$0xff]
    %v5679 = vld [vmem:[%s5673 + $0x28] sm:$0xff]
    %v5680 = vld [vmem:[%s5673 + $0x30] sm:$0xff]
    %v5681 = vld [vmem:[%s5673 + $0x38] sm:$0xff]
    %s5682 = scalar_lea.vmem %s65, 1
    %v5683 = vld [vmem:[%s5682] sm:$0x1]
    %s5684 = scalar_lea.vmem %s67, 1
    %v5685 = vld [vmem:[%s5684] sm:$0x1]
    %s5686 = scalar_lea.vmem %s69, 1
    %v5687 = vld [vmem:[%s5686] sm:$0x1]
    %v5688 = vpack.c.bf16 %v5622, %v5621
    %v5689 = vpack.c.bf16 %v5625, %v5624
    %v5690 = vpack.c.bf16 %v5627, %v5626
    %v5692 = vlaneseq
    %v5693 = vshrl.u32 %v5692, 7
    %v5694 = vsub.s32 0, %v5693
    %v5695 = vrot.slane %v5629, %v5694
    %v5698 = vsel %vm221, %v5688, 0
    %5700 = vmatprep.subr.bf16.mxu0 0
    %5701 = vmatpush1.bf16.msra.mxu0 0
    %5702 = vmatprep.subr.bf16.mxu0 0
    %5703 = vmatpush1.bf16.msra.mxu0 0
    %5704 = vmatprep.subr.bf16.mxu0 0
    %5705 = vmatpush1.bf16.msra.mxu0 0
    %5706 = vmatprep.subr.bf16.mxu0 0
    %5707 = vmatpush1.bf16.msra.mxu0 0
    %5708 = vmatprep.subr.bf16.mxu0 0
    %5709 = vmatpush1.bf16.msra.mxu0 0
    %5710 = vmatprep.subr.bf16.mxu0 0
    %5711 = vmatpush1.bf16.msra.mxu0 0
    %5712 = vmatprep.subr.bf16.mxu0 0
    %5713 = vmatpush1.bf16.msra.mxu0 %v5690
    %5714 = vmatprep.subr.bf16.mxu0 0
    %5715 = vmatpush1.bf16.msra.mxu0 %v5689
    %5716 = vmatprep.subr.bf16.mxu0 0
    %5717 = vmatpush2.bf16.msra.mxu0 0
    %5718 = vmatprep.subr.bf16.mxu0 0
    %5719 = vmatpush2.bf16.msra.mxu0 0
    %5720 = vmatprep.subr.bf16.mxu0 0
    %5721 = vmatpush2.bf16.msra.mxu0 0
    %5722 = vmatprep.subr.bf16.mxu0 0
    %5723 = vmatpush2.bf16.msra.mxu0 0
    %5724 = vmatprep.subr.bf16.mxu0 0
    %5725 = vmatpush2.bf16.msra.mxu0 0
    %5726 = vmatprep.subr.bf16.mxu0 0
    %5727 = vmatpush2.bf16.msra.mxu0 0
    %5728 = vmatprep.subr.bf16.mxu0 0
    %5729 = vmatpush2.bf16.msra.mxu0 0
    %5730 = vmatprep.subr.bf16.mxu0 0
    %5731 = vmatpush2.bf16.msra.mxu0 0
    %5732 = vmatprep.mubr.bf16.mxu0 0
    %5733 = vmatmul.mubr.bf16.gmra.mxu0 %v5698
    %v5734 = vpop.f32.mrf.mxu0
    %v5735 = vadd.f32 %v5695, %v5734
    %v5736 = vpop.f32.mrf.mxu0
    %v5737 = vpop.f32.mrf.mxu0
    %v5738 = vadd.f32 %v5695, %v5737
    %v5739 = vpop.f32.mrf.mxu0
    %5740 = vdwg.mxu0
    %v5741 = vpack.c.bf16 %v5735, %v5735
    %v5742 = vpack.c.bf16 %v5738, %v5738
    %5744 = vrot.lane.b32.xlu0 %v5741, 96
    %v5745 = vpop.permute.xlu0 %5744
    %v5747 = vsel %vm271, %v5741, 0
    %v5750 = vsel %vm271, %v5745, 0
    %5752 = vmatprep.subr.bf16.mxu0 0
    %5753 = vmatpush1.bf16.xpose.msra.mxu0 0
    %5754 = vmatprep.subr.bf16.mxu0 0
    %5755 = vmatpush1.bf16.xpose.msra.mxu0 0
    %5756 = vmatprep.subr.bf16.mxu0 0
    %5757 = vmatpush1.bf16.xpose.msra.mxu0 0
    %5758 = vmatprep.subr.bf16.mxu0 0
    %5759 = vmatpush1.bf16.xpose.msra.mxu0 0
    %5760 = vmatprep.subr.bf16.mxu0 0
    %5761 = vmatpush1.bf16.xpose.msra.mxu0 0
    %5762 = vmatprep.subr.bf16.mxu0 0
    %5763 = vmatpush1.bf16.xpose.msra.mxu0 0
    %5764 = vmatprep.subr.bf16.mxu0 0
    %5765 = vmatpush1.bf16.xpose.msra.mxu0 0
    %5766 = vmatprep.subr.bf16.mxu0 0
    %5767 = vmatpush1.bf16.xpose.msra.mxu0 %v5750
    %5768 = vmatprep.subr.bf16.mxu0 0
    %5769 = vmatpush2.bf16.xpose.msra.mxu0 0
    %5770 = vmatprep.subr.bf16.mxu0 0
    %5771 = vmatpush2.bf16.xpose.msra.mxu0 0
    %5772 = vmatprep.subr.bf16.mxu0 0
    %5773 = vmatpush2.bf16.xpose.msra.mxu0 0
    %5774 = vmatprep.subr.bf16.mxu0 0
    %5775 = vmatpush2.bf16.xpose.msra.mxu0 0
    %5776 = vmatprep.subr.bf16.mxu0 0
    %5777 = vmatpush2.bf16.xpose.msra.mxu0 0
    %5778 = vmatprep.subr.bf16.mxu0 0
    %5779 = vmatpush2.bf16.xpose.msra.mxu0 0
    %5780 = vmatprep.subr.bf16.mxu0 0
    %5781 = vmatpush2.bf16.xpose.msra.mxu0 0
    %5782 = vmatprep.subr.bf16.mxu0 0
    %5783 = vmatpush2.bf16.xpose.msra.mxu0 0
    %5784 = vmatprep.mubr.bf16.mxu0 0
    %5785 = vmatmul.mubr.bf16.gmra.mxu0 %v5747
    %v5786 = vpop.f32.mrf.mxu0
    %v5787 = vadd.f32 0.0, %v5786
    %v5788 = vpop.f32.mrf.mxu0
    %v5789 = vpop.f32.mrf.mxu0
    %v5790 = vpop.f32.mrf.mxu0
    %5791 = vdwg.mxu0
    %5793 = vrot.lane.b32.xlu0 %v5742, 96
    %v5794 = vpop.permute.xlu0 %5793
    %v5796 = vsel %vm271, %v5742, 0
    %v5799 = vsel %vm271, %v5794, 0
    %5801 = vmatprep.subr.bf16.mxu0 0
    %5802 = vmatpush1.bf16.xpose.msra.mxu0 0
    %5803 = vmatprep.subr.bf16.mxu0 0
    %5804 = vmatpush1.bf16.xpose.msra.mxu0 0
    %5805 = vmatprep.subr.bf16.mxu0 0
    %5806 = vmatpush1.bf16.xpose.msra.mxu0 0
    %5807 = vmatprep.subr.bf16.mxu0 0
    %5808 = vmatpush1.bf16.xpose.msra.mxu0 0
    %5809 = vmatprep.subr.bf16.mxu0 0
    %5810 = vmatpush1.bf16.xpose.msra.mxu0 0
    %5811 = vmatprep.subr.bf16.mxu0 0
    %5812 = vmatpush1.bf16.xpose.msra.mxu0 0
    %5813 = vmatprep.subr.bf16.mxu0 0
    %5814 = vmatpush1.bf16.xpose.msra.mxu0 0
    %5815 = vmatprep.subr.bf16.mxu0 0
    %5816 = vmatpush1.bf16.xpose.msra.mxu0 %v5799
    %5817 = vmatprep.subr.bf16.mxu0 0
    %5818 = vmatpush2.bf16.xpose.msra.mxu0 0
    %5819 = vmatprep.subr.bf16.mxu0 0
    %5820 = vmatpush2.bf16.xpose.msra.mxu0 0
    %5821 = vmatprep.subr.bf16.mxu0 0
    %5822 = vmatpush2.bf16.xpose.msra.mxu0 0
    %5823 = vmatprep.subr.bf16.mxu0 0
    %5824 = vmatpush2.bf16.xpose.msra.mxu0 0
    %5825 = vmatprep.subr.bf16.mxu0 0
    %5826 = vmatpush2.bf16.xpose.msra.mxu0 0
    %5827 = vmatprep.subr.bf16.mxu0 0
    %5828 = vmatpush2.bf16.xpose.msra.mxu0 0
    %5829 = vmatprep.subr.bf16.mxu0 0
    %5830 = vmatpush2.bf16.xpose.msra.mxu0 0
    %5831 = vmatprep.subr.bf16.mxu0 0
    %5832 = vmatpush2.bf16.xpose.msra.mxu0 0
    %5833 = vmatprep.mubr.bf16.mxu0 0
    %5834 = vmatmul.mubr.bf16.gmra.mxu0 %v5796
    %v5835 = vpop.f32.mrf.mxu0
    %v5836 = vadd.f32 0.0, %v5835
    %v5837 = vpop.f32.mrf.mxu0
    %v5838 = vpop.f32.mrf.mxu0
    %v5839 = vpop.f32.mrf.mxu0
    %5840 = vdwg.mxu0
    %v5841 = vmul.f32 %v5787, 0.35355338
    %v5842 = vmul.f32 %v5836, 0.35355338
    %v5843 = vadd.f32 %v5841, %v181
    %v5844 = vadd.f32 %v5842, %v181
    %v5845 = vsel %vm271, %v5843, -inf
    %5846 = vmax.xlane.f32.xlu0 %v5845
    %v5847 = vpop.xlane.xlu0 %5846
    %v5848 = vsel %vm271, %v5844, -inf
    %5849 = vmax.xlane.f32.xlu0 %v5848
    %v5850 = vpop.xlane.xlu0 %5849
    %v5851 = vsub.f32 %v5843, %v5847
    %v5852 = vsub.f32 %v5844, %v5850
    %v5853 = vmul.f32 %v5851, 1.442695
    %v5854 = vpow.pop %v5853
    %v5855 = vmul.f32 %v5852, 1.442695
    %v5856 = vpow.pop %v5855
    %v5857 = vsel %vm271, %v5854, 0.0
    %5858 = vadd.xlane.f32.xlu0 %v5857
    %v5859 = vpop.xlane.xlu0 %5858
    %v5860 = vsel %vm271, %v5856, 0.0
    %5861 = vadd.xlane.f32.xlu0 %v5860
    %v5862 = vpop.xlane.xlu0 %5861
    %v5863 = vrcp.pop %v5859
    %v5864 = vrcp.pop %v5862
    %v5865 = vmul.f32 %v5854, %v5863
    %v5866 = vmul.f32 %v5856, %v5864
    %v5867 = vpack.c.bf16 %v5865, %v5865
    %v5868 = vpack.c.bf16 %v5866, %v5866
    %5869 = vrot.lane.b32.xlu0 %v5741, 64
    %v5870 = vpop.permute.xlu0 %5869
    %v5872 = vsel %vm271, %v5867, 0
    %v5875 = vsel %vm400, %v5870, 0
    %5877 = vmatprep.subr.bf16.mxu0 0
    %5878 = vmatpush1.bf16.msra.mxu0 0
    %5879 = vmatprep.subr.bf16.mxu0 0
    %5880 = vmatpush1.bf16.msra.mxu0 0
    %5881 = vmatprep.subr.bf16.mxu0 0
    %5882 = vmatpush1.bf16.msra.mxu0 0
    %5883 = vmatprep.subr.bf16.mxu0 0
    %5884 = vmatpush1.bf16.msra.mxu0 0
    %5885 = vmatprep.subr.bf16.mxu0 0
    %5886 = vmatpush1.bf16.msra.mxu0 0
    %5887 = vmatprep.subr.bf16.mxu0 0
    %5888 = vmatpush1.bf16.msra.mxu0 0
    %5889 = vmatprep.subr.bf16.mxu0 0
    %5890 = vmatpush1.bf16.msra.mxu0 0
    %5891 = vmatprep.subr.bf16.mxu0 0
    %5892 = vmatpush1.bf16.msra.mxu0 %v5875
    %5893 = vmatprep.subr.bf16.mxu0 0
    %5894 = vmatpush2.bf16.msra.mxu0 0
    %5895 = vmatprep.subr.bf16.mxu0 0
    %5896 = vmatpush2.bf16.msra.mxu0 0
    %5897 = vmatprep.subr.bf16.mxu0 0
    %5898 = vmatpush2.bf16.msra.mxu0 0
    %5899 = vmatprep.subr.bf16.mxu0 0
    %5900 = vmatpush2.bf16.msra.mxu0 0
    %5901 = vmatprep.subr.bf16.mxu0 0
    %5902 = vmatpush2.bf16.msra.mxu0 0
    %5903 = vmatprep.subr.bf16.mxu0 0
    %5904 = vmatpush2.bf16.msra.mxu0 0
    %5905 = vmatprep.subr.bf16.mxu0 0
    %5906 = vmatpush2.bf16.msra.mxu0 0
    %5907 = vmatprep.subr.bf16.mxu0 0
    %5908 = vmatpush2.bf16.msra.mxu0 0
    %5909 = vmatprep.mubr.bf16.mxu0 0
    %5910 = vmatmul.mubr.bf16.gmra.mxu0 %v5872
    %v5911 = vpop.f32.mrf.mxu0
    %v5912 = vadd.f32 0.0, %v5911
    %v5913 = vpop.f32.mrf.mxu0
    %v5914 = vpop.f32.mrf.mxu0
    %v5915 = vpop.f32.mrf.mxu0
    %5916 = vdwg.mxu0
    %5917 = vrot.lane.b32.xlu0 %v5742, 64
    %v5918 = vpop.permute.xlu0 %5917
    %v5920 = vsel %vm271, %v5868, 0
    %v5923 = vsel %vm400, %v5918, 0
    %5925 = vmatprep.subr.bf16.mxu0 0
    %5926 = vmatpush1.bf16.msra.mxu0 0
    %5927 = vmatprep.subr.bf16.mxu0 0
    %5928 = vmatpush1.bf16.msra.mxu0 0
    %5929 = vmatprep.subr.bf16.mxu0 0
    %5930 = vmatpush1.bf16.msra.mxu0 0
    %5931 = vmatprep.subr.bf16.mxu0 0
    %5932 = vmatpush1.bf16.msra.mxu0 0
    %5933 = vmatprep.subr.bf16.mxu0 0
    %5934 = vmatpush1.bf16.msra.mxu0 0
    %5935 = vmatprep.subr.bf16.mxu0 0
    %5936 = vmatpush1.bf16.msra.mxu0 0
    %5937 = vmatprep.subr.bf16.mxu0 0
    %5938 = vmatpush1.bf16.msra.mxu0 0
    %5939 = vmatprep.subr.bf16.mxu0 0
    %5940 = vmatpush1.bf16.msra.mxu0 %v5923
    %5941 = vmatprep.subr.bf16.mxu0 0
    %5942 = vmatpush2.bf16.msra.mxu0 0
    %5943 = vmatprep.subr.bf16.mxu0 0
    %5944 = vmatpush2.bf16.msra.mxu0 0
    %5945 = vmatprep.subr.bf16.mxu0 0
    %5946 = vmatpush2.bf16.msra.mxu0 0
    %5947 = vmatprep.subr.bf16.mxu0 0
    %5948 = vmatpush2.bf16.msra.mxu0 0
    %5949 = vmatprep.subr.bf16.mxu0 0
    %5950 = vmatpush2.bf16.msra.mxu0 0
    %5951 = vmatprep.subr.bf16.mxu0 0
    %5952 = vmatpush2.bf16.msra.mxu0 0
    %5953 = vmatprep.subr.bf16.mxu0 0
    %5954 = vmatpush2.bf16.msra.mxu0 0
    %5955 = vmatprep.subr.bf16.mxu0 0
    %5956 = vmatpush2.bf16.msra.mxu0 0
    %5957 = vmatprep.mubr.bf16.mxu0 0
    %5958 = vmatmul.mubr.bf16.gmra.mxu0 %v5920
    %v5959 = vpop.f32.mrf.mxu0
    %v5960 = vadd.f32 0.0, %v5959
    %v5961 = vpop.f32.mrf.mxu0
    %v5962 = vpop.f32.mrf.mxu0
    %v5963 = vpop.f32.mrf.mxu0
    %5964 = vdwg.mxu0
    %v5965 = vpack.c.bf16 %v5960, %v5912
    %v5966 = vpack.c.bf16 %v5631, %v5631
    %5967 = vrot.lane.b32.xlu0 %v5741, 120
    %v5968 = vpop.permute.xlu0 %5967
    %5969 = vrot.lane.b32.xlu0 %v5741, 88
    %v5970 = vpop.permute.xlu0 %5969
    %v5972 = vsel %vm271, %v5968, 0
    %v5975 = vsel %vm271, %v5970, 0
    %5977 = vmatprep.subr.bf16.mxu0 0
    %5978 = vmatpush1.bf16.xpose.msra.mxu0 0
    %5979 = vmatprep.subr.bf16.mxu0 0
    %5980 = vmatpush1.bf16.xpose.msra.mxu0 0
    %5981 = vmatprep.subr.bf16.mxu0 0
    %5982 = vmatpush1.bf16.xpose.msra.mxu0 0
    %5983 = vmatprep.subr.bf16.mxu0 0
    %5984 = vmatpush1.bf16.xpose.msra.mxu0 0
    %5985 = vmatprep.subr.bf16.mxu0 0
    %5986 = vmatpush1.bf16.xpose.msra.mxu0 0
    %5987 = vmatprep.subr.bf16.mxu0 0
    %5988 = vmatpush1.bf16.xpose.msra.mxu0 0
    %5989 = vmatprep.subr.bf16.mxu0 0
    %5990 = vmatpush1.bf16.xpose.msra.mxu0 0
    %5991 = vmatprep.subr.bf16.mxu0 0
    %5992 = vmatpush1.bf16.xpose.msra.mxu0 %v5975
    %5993 = vmatprep.subr.bf16.mxu0 0
    %5994 = vmatpush2.bf16.xpose.msra.mxu0 0
    %5995 = vmatprep.subr.bf16.mxu0 0
    %5996 = vmatpush2.bf16.xpose.msra.mxu0 0
    %5997 = vmatprep.subr.bf16.mxu0 0
    %5998 = vmatpush2.bf16.xpose.msra.mxu0 0
    %5999 = vmatprep.subr.bf16.mxu0 0
    %6000 = vmatpush2.bf16.xpose.msra.mxu0 0
    %6001 = vmatprep.subr.bf16.mxu0 0
    %6002 = vmatpush2.bf16.xpose.msra.mxu0 0
    %6003 = vmatprep.subr.bf16.mxu0 0
    %6004 = vmatpush2.bf16.xpose.msra.mxu0 0
    %6005 = vmatprep.subr.bf16.mxu0 0
    %6006 = vmatpush2.bf16.xpose.msra.mxu0 0
    %6007 = vmatprep.subr.bf16.mxu0 0
    %6008 = vmatpush2.bf16.xpose.msra.mxu0 0
    %6009 = vmatprep.mubr.bf16.mxu0 0
    %6010 = vmatmul.mubr.bf16.gmra.mxu0 %v5972
    %v6011 = vpop.f32.mrf.mxu0
    %v6012 = vadd.f32 0.0, %v6011
    %v6013 = vpop.f32.mrf.mxu0
    %v6014 = vpop.f32.mrf.mxu0
    %v6015 = vpop.f32.mrf.mxu0
    %6016 = vdwg.mxu0
    %6017 = vrot.lane.b32.xlu0 %v5742, 120
    %v6018 = vpop.permute.xlu0 %6017
    %6019 = vrot.lane.b32.xlu0 %v5742, 88
    %v6020 = vpop.permute.xlu0 %6019
    %v6022 = vsel %vm271, %v6018, 0
    %v6025 = vsel %vm271, %v6020, 0
    %6027 = vmatprep.subr.bf16.mxu0 0
    %6028 = vmatpush1.bf16.xpose.msra.mxu0 0
    %6029 = vmatprep.subr.bf16.mxu0 0
    %6030 = vmatpush1.bf16.xpose.msra.mxu0 0
    %6031 = vmatprep.subr.bf16.mxu0 0
    %6032 = vmatpush1.bf16.xpose.msra.mxu0 0
    %6033 = vmatprep.subr.bf16.mxu0 0
    %6034 = vmatpush1.bf16.xpose.msra.mxu0 0
    %6035 = vmatprep.subr.bf16.mxu0 0
    %6036 = vmatpush1.bf16.xpose.msra.mxu0 0
    %6037 = vmatprep.subr.bf16.mxu0 0
    %6038 = vmatpush1.bf16.xpose.msra.mxu0 0
    %6039 = vmatprep.subr.bf16.mxu0 0
    %6040 = vmatpush1.bf16.xpose.msra.mxu0 0
    %6041 = vmatprep.subr.bf16.mxu0 0
    %6042 = vmatpush1.bf16.xpose.msra.mxu0 %v6025
    %6043 = vmatprep.subr.bf16.mxu0 0
    %6044 = vmatpush2.bf16.xpose.msra.mxu0 0
    %6045 = vmatprep.subr.bf16.mxu0 0
    %6046 = vmatpush2.bf16.xpose.msra.mxu0 0
    %6047 = vmatprep.subr.bf16.mxu0 0
    %6048 = vmatpush2.bf16.xpose.msra.mxu0 0
    %6049 = vmatprep.subr.bf16.mxu0 0
    %6050 = vmatpush2.bf16.xpose.msra.mxu0 0
    %6051 = vmatprep.subr.bf16.mxu0 0
    %6052 = vmatpush2.bf16.xpose.msra.mxu0 0
    %6053 = vmatprep.subr.bf16.mxu0 0
    %6054 = vmatpush2.bf16.xpose.msra.mxu0 0
    %6055 = vmatprep.subr.bf16.mxu0 0
    %6056 = vmatpush2.bf16.xpose.msra.mxu0 0
    %6057 = vmatprep.subr.bf16.mxu0 0
    %6058 = vmatpush2.bf16.xpose.msra.mxu0 0
    %6059 = vmatprep.mubr.bf16.mxu0 0
    %6060 = vmatmul.mubr.bf16.gmra.mxu0 %v6022
    %v6061 = vpop.f32.mrf.mxu0
    %v6062 = vadd.f32 0.0, %v6061
    %v6063 = vpop.f32.mrf.mxu0
    %v6064 = vpop.f32.mrf.mxu0
    %v6065 = vpop.f32.mrf.mxu0
    %6066 = vdwg.mxu0
    %v6067 = vmul.f32 %v6012, 0.35355338
    %v6068 = vmul.f32 %v6062, 0.35355338
    %v6069 = vadd.f32 %v6067, %v181
    %v6070 = vadd.f32 %v6068, %v181
    %v6071 = vsel %vm271, %v6069, -inf
    %6072 = vmax.xlane.f32.xlu0 %v6071
    %v6073 = vpop.xlane.xlu0 %6072
    %v6074 = vsel %vm271, %v6070, -inf
    %6075 = vmax.xlane.f32.xlu0 %v6074
    %v6076 = vpop.xlane.xlu0 %6075
    %v6077 = vsub.f32 %v6069, %v6073
    %v6078 = vsub.f32 %v6070, %v6076
    %v6079 = vmul.f32 %v6077, 1.442695
    %v6080 = vpow.pop %v6079
    %v6081 = vmul.f32 %v6078, 1.442695
    %v6082 = vpow.pop %v6081
    %v6083 = vsel %vm271, %v6080, 0.0
    %6084 = vadd.xlane.f32.xlu0 %v6083
    %v6085 = vpop.xlane.xlu0 %6084
    %v6086 = vsel %vm271, %v6082, 0.0
    %6087 = vadd.xlane.f32.xlu0 %v6086
    %v6088 = vpop.xlane.xlu0 %6087
    %v6089 = vrcp.pop %v6085
    %v6090 = vrcp.pop %v6088
    %v6091 = vmul.f32 %v6080, %v6089
    %v6092 = vmul.f32 %v6082, %v6090
    %v6093 = vpack.c.bf16 %v6091, %v6091
    %v6094 = vpack.c.bf16 %v6092, %v6092
    %6095 = vrot.lane.b32.xlu0 %v5741, 56
    %v6096 = vpop.permute.xlu0 %6095
    %v6098 = vsel %vm271, %v6093, 0
    %v6101 = vsel %vm400, %v6096, 0
    %6103 = vmatprep.subr.bf16.mxu0 0
    %6104 = vmatpush1.bf16.msra.mxu0 0
    %6105 = vmatprep.subr.bf16.mxu0 0
    %6106 = vmatpush1.bf16.msra.mxu0 0
    %6107 = vmatprep.subr.bf16.mxu0 0
    %6108 = vmatpush1.bf16.msra.mxu0 0
    %6109 = vmatprep.subr.bf16.mxu0 0
    %6110 = vmatpush1.bf16.msra.mxu0 0
    %6111 = vmatprep.subr.bf16.mxu0 0
    %6112 = vmatpush1.bf16.msra.mxu0 0
    %6113 = vmatprep.subr.bf16.mxu0 0
    %6114 = vmatpush1.bf16.msra.mxu0 0
    %6115 = vmatprep.subr.bf16.mxu0 0
    %6116 = vmatpush1.bf16.msra.mxu0 0
    %6117 = vmatprep.subr.bf16.mxu0 0
    %6118 = vmatpush1.bf16.msra.mxu0 %v6101
    %6119 = vmatprep.subr.bf16.mxu0 0
    %6120 = vmatpush2.bf16.msra.mxu0 0
    %6121 = vmatprep.subr.bf16.mxu0 0
    %6122 = vmatpush2.bf16.msra.mxu0 0
    %6123 = vmatprep.subr.bf16.mxu0 0
    %6124 = vmatpush2.bf16.msra.mxu0 0
    %6125 = vmatprep.subr.bf16.mxu0 0
    %6126 = vmatpush2.bf16.msra.mxu0 0
    %6127 = vmatprep.subr.bf16.mxu0 0
    %6128 = vmatpush2.bf16.msra.mxu0 0
    %6129 = vmatprep.subr.bf16.mxu0 0
    %6130 = vmatpush2.bf16.msra.mxu0 0
    %6131 = vmatprep.subr.bf16.mxu0 0
    %6132 = vmatpush2.bf16.msra.mxu0 0
    %6133 = vmatprep.subr.bf16.mxu0 0
    %6134 = vmatpush2.bf16.msra.mxu0 0
    %6135 = vmatprep.mubr.bf16.mxu0 0
    %6136 = vmatmul.mubr.bf16.gmra.mxu0 %v6098
    %v6137 = vpop.f32.mrf.mxu0
    %v6138 = vadd.f32 0.0, %v6137
    %v6139 = vpop.f32.mrf.mxu0
    %v6140 = vpop.f32.mrf.mxu0
    %v6141 = vpop.f32.mrf.mxu0
    %6142 = vdwg.mxu0
    %6143 = vrot.lane.b32.xlu0 %v5742, 56
    %v6144 = vpop.permute.xlu0 %6143
    %v6146 = vsel %vm271, %v6094, 0
    %v6149 = vsel %vm400, %v6144, 0
    %6151 = vmatprep.subr.bf16.mxu0 0
    %6152 = vmatpush1.bf16.msra.mxu0 0
    %6153 = vmatprep.subr.bf16.mxu0 0
    %6154 = vmatpush1.bf16.msra.mxu0 0
    %6155 = vmatprep.subr.bf16.mxu0 0
    %6156 = vmatpush1.bf16.msra.mxu0 0
    %6157 = vmatprep.subr.bf16.mxu0 0
    %6158 = vmatpush1.bf16.msra.mxu0 0
    %6159 = vmatprep.subr.bf16.mxu0 0
    %6160 = vmatpush1.bf16.msra.mxu0 0
    %6161 = vmatprep.subr.bf16.mxu0 0
    %6162 = vmatpush1.bf16.msra.mxu0 0
    %6163 = vmatprep.subr.bf16.mxu0 0
    %6164 = vmatpush1.bf16.msra.mxu0 0
    %6165 = vmatprep.subr.bf16.mxu0 0
    %6166 = vmatpush1.bf16.msra.mxu0 %v6149
    %6167 = vmatprep.subr.bf16.mxu0 0
    %6168 = vmatpush2.bf16.msra.mxu0 0
    %6169 = vmatprep.subr.bf16.mxu0 0
    %6170 = vmatpush2.bf16.msra.mxu0 0
    %6171 = vmatprep.subr.bf16.mxu0 0
    %6172 = vmatpush2.bf16.msra.mxu0 0
    %6173 = vmatprep.subr.bf16.mxu0 0
    %6174 = vmatpush2.bf16.msra.mxu0 0
    %6175 = vmatprep.subr.bf16.mxu0 0
    %6176 = vmatpush2.bf16.msra.mxu0 0
    %6177 = vmatprep.subr.bf16.mxu0 0
    %6178 = vmatpush2.bf16.msra.mxu0 0
    %6179 = vmatprep.subr.bf16.mxu0 0
    %6180 = vmatpush2.bf16.msra.mxu0 0
    %6181 = vmatprep.subr.bf16.mxu0 0
    %6182 = vmatpush2.bf16.msra.mxu0 0
    %6183 = vmatprep.mubr.bf16.mxu0 0
    %6184 = vmatmul.mubr.bf16.gmra.mxu0 %v6146
    %v6185 = vpop.f32.mrf.mxu0
    %v6186 = vadd.f32 0.0, %v6185
    %v6187 = vpop.f32.mrf.mxu0
    %v6188 = vpop.f32.mrf.mxu0
    %v6189 = vpop.f32.mrf.mxu0
    %6190 = vdwg.mxu0
    %v6191 = vpack.c.bf16 %v6186, %v6138
    %v6192 = vpack.c.bf16 %v5632, %v5632
    %v6194 = vsel %vm271, %v6191, 0
    %v6197 = vsel %vm400, %v6192, 0
    %6199 = vmatprep.subr.bf16.mxu0 0
    %6200 = vmatpush1.bf16.msra.mxu0 0
    %6201 = vmatprep.subr.bf16.mxu0 0
    %6202 = vmatpush1.bf16.msra.mxu0 0
    %6203 = vmatprep.subr.bf16.mxu0 0
    %6204 = vmatpush1.bf16.msra.mxu0 0
    %6205 = vmatprep.subr.bf16.mxu0 0
    %6206 = vmatpush1.bf16.msra.mxu0 0
    %6207 = vmatprep.subr.bf16.mxu0 0
    %6208 = vmatpush1.bf16.msra.mxu0 0
    %6209 = vmatprep.subr.bf16.mxu0 0
    %6210 = vmatpush1.bf16.msra.mxu0 0
    %6211 = vmatprep.subr.bf16.mxu0 0
    %6212 = vmatpush1.bf16.msra.mxu0 0
    %6213 = vmatprep.subr.bf16.mxu0 0
    %6214 = vmatpush1.bf16.msra.mxu0 %v6197
    %6215 = vmatprep.subr.bf16.mxu0 0
    %6216 = vmatpush2.bf16.msra.mxu0 0
    %6217 = vmatprep.subr.bf16.mxu0 0
    %6218 = vmatpush2.bf16.msra.mxu0 0
    %6219 = vmatprep.subr.bf16.mxu0 0
    %6220 = vmatpush2.bf16.msra.mxu0 0
    %6221 = vmatprep.subr.bf16.mxu0 0
    %6222 = vmatpush2.bf16.msra.mxu0 0
    %6223 = vmatprep.subr.bf16.mxu0 0
    %6224 = vmatpush2.bf16.msra.mxu0 0
    %6225 = vmatprep.subr.bf16.mxu0 0
    %6226 = vmatpush2.bf16.msra.mxu0 0
    %6227 = vmatprep.subr.bf16.mxu0 0
    %6228 = vmatpush2.bf16.msra.mxu0 0
    %6229 = vmatprep.subr.bf16.mxu0 0
    %6230 = vmatpush2.bf16.msra.mxu0 0
    %6231 = vmatprep.mubr.bf16.mxu0 0
    %6232 = vmatmul.mubr.bf16.gmra.mxu0 %v6194
    %v6233 = vpop.f32.mrf.mxu0
    %v6234 = vadd.f32 0.0, %v6233
    %v6235 = vpop.f32.mrf.mxu0
    %v6236 = vpop.f32.mrf.mxu0
    %v6237 = vadd.f32 0.0, %v6236
    %v6238 = vpop.f32.mrf.mxu0
    %6239 = vdwg.mxu0
    %v6241 = vsel %vm271, %v5965, 0
    %v6244 = vsel %vm400, %v5966, 0
    %6246 = vmatprep.subr.bf16.mxu0 0
    %6247 = vmatpush1.bf16.msra.mxu0 0
    %6248 = vmatprep.subr.bf16.mxu0 0
    %6249 = vmatpush1.bf16.msra.mxu0 0
    %6250 = vmatprep.subr.bf16.mxu0 0
    %6251 = vmatpush1.bf16.msra.mxu0 0
    %6252 = vmatprep.subr.bf16.mxu0 0
    %6253 = vmatpush1.bf16.msra.mxu0 0
    %6254 = vmatprep.subr.bf16.mxu0 0
    %6255 = vmatpush1.bf16.msra.mxu0 0
    %6256 = vmatprep.subr.bf16.mxu0 0
    %6257 = vmatpush1.bf16.msra.mxu0 0
    %6258 = vmatprep.subr.bf16.mxu0 0
    %6259 = vmatpush1.bf16.msra.mxu0 0
    %6260 = vmatprep.subr.bf16.mxu0 0
    %6261 = vmatpush1.bf16.msra.mxu0 %v6244
    %6262 = vmatprep.subr.bf16.mxu0 0
    %6263 = vmatpush2.bf16.msra.mxu0 0
    %6264 = vmatprep.subr.bf16.mxu0 0
    %6265 = vmatpush2.bf16.msra.mxu0 0
    %6266 = vmatprep.subr.bf16.mxu0 0
    %6267 = vmatpush2.bf16.msra.mxu0 0
    %6268 = vmatprep.subr.bf16.mxu0 0
    %6269 = vmatpush2.bf16.msra.mxu0 0
    %6270 = vmatprep.subr.bf16.mxu0 0
    %6271 = vmatpush2.bf16.msra.mxu0 0
    %6272 = vmatprep.subr.bf16.mxu0 0
    %6273 = vmatpush2.bf16.msra.mxu0 0
    %6274 = vmatprep.subr.bf16.mxu0 0
    %6275 = vmatpush2.bf16.msra.mxu0 0
    %6276 = vmatprep.subr.bf16.mxu0 0
    %6277 = vmatpush2.bf16.msra.mxu0 0
    %6278 = vmatprep.mubr.bf16.mxu0 0
    %6279 = vmatmul.mubr.bf16.gmra.mxu0 %v6241
    %v6280 = vpop.f32.mrf.mxu0
    %v6281 = vadd.f32 %v6234, %v6280
    %v6282 = vpop.f32.mrf.mxu0
    %v6283 = vpop.f32.mrf.mxu0
    %v6284 = vadd.f32 %v6237, %v6283
    %v6285 = vpop.f32.mrf.mxu0
    %6286 = vdwg.mxu0
    %6287 = vrot.lane.b32.xlu0 %v5741, 112
    %v6288 = vpop.permute.xlu0 %6287
    %6289 = vrot.lane.b32.xlu0 %v5741, 80
    %v6290 = vpop.permute.xlu0 %6289
    %v6292 = vsel %vm271, %v6288, 0
    %v6295 = vsel %vm271, %v6290, 0
    %6297 = vmatprep.subr.bf16.mxu0 0
    %6298 = vmatpush1.bf16.xpose.msra.mxu0 0
    %6299 = vmatprep.subr.bf16.mxu0 0
    %6300 = vmatpush1.bf16.xpose.msra.mxu0 0
    %6301 = vmatprep.subr.bf16.mxu0 0
    %6302 = vmatpush1.bf16.xpose.msra.mxu0 0
    %6303 = vmatprep.subr.bf16.mxu0 0
    %6304 = vmatpush1.bf16.xpose.msra.mxu0 0
    %6305 = vmatprep.subr.bf16.mxu0 0
    %6306 = vmatpush1.bf16.xpose.msra.mxu0 0
    %6307 = vmatprep.subr.bf16.mxu0 0
    %6308 = vmatpush1.bf16.xpose.msra.mxu0 0
    %6309 = vmatprep.subr.bf16.mxu0 0
    %6310 = vmatpush1.bf16.xpose.msra.mxu0 0
    %6311 = vmatprep.subr.bf16.mxu0 0
    %6312 = vmatpush1.bf16.xpose.msra.mxu0 %v6295
    %6313 = vmatprep.subr.bf16.mxu0 0
    %6314 = vmatpush2.bf16.xpose.msra.mxu0 0
    %6315 = vmatprep.subr.bf16.mxu0 0
    %6316 = vmatpush2.bf16.xpose.msra.mxu0 0
    %6317 = vmatprep.subr.bf16.mxu0 0
    %6318 = vmatpush2.bf16.xpose.msra.mxu0 0
    %6319 = vmatprep.subr.bf16.mxu0 0
    %6320 = vmatpush2.bf16.xpose.msra.mxu0 0
    %6321 = vmatprep.subr.bf16.mxu0 0
    %6322 = vmatpush2.bf16.xpose.msra.mxu0 0
    %6323 = vmatprep.subr.bf16.mxu0 0
    %6324 = vmatpush2.bf16.xpose.msra.mxu0 0
    %6325 = vmatprep.subr.bf16.mxu0 0
    %6326 = vmatpush2.bf16.xpose.msra.mxu0 0
    %6327 = vmatprep.subr.bf16.mxu0 0
    %6328 = vmatpush2.bf16.xpose.msra.mxu0 0
    %6329 = vmatprep.mubr.bf16.mxu0 0
    %6330 = vmatmul.mubr.bf16.gmra.mxu0 %v6292
    %v6331 = vpop.f32.mrf.mxu0
    %v6332 = vadd.f32 0.0, %v6331
    %v6333 = vpop.f32.mrf.mxu0
    %v6334 = vpop.f32.mrf.mxu0
    %v6335 = vpop.f32.mrf.mxu0
    %6336 = vdwg.mxu0
    %6337 = vrot.lane.b32.xlu0 %v5742, 112
    %v6338 = vpop.permute.xlu0 %6337
    %6339 = vrot.lane.b32.xlu0 %v5742, 80
    %v6340 = vpop.permute.xlu0 %6339
    %v6342 = vsel %vm271, %v6338, 0
    %v6345 = vsel %vm271, %v6340, 0
    %6347 = vmatprep.subr.bf16.mxu0 0
    %6348 = vmatpush1.bf16.xpose.msra.mxu0 0
    %6349 = vmatprep.subr.bf16.mxu0 0
    %6350 = vmatpush1.bf16.xpose.msra.mxu0 0
    %6351 = vmatprep.subr.bf16.mxu0 0
    %6352 = vmatpush1.bf16.xpose.msra.mxu0 0
    %6353 = vmatprep.subr.bf16.mxu0 0
    %6354 = vmatpush1.bf16.xpose.msra.mxu0 0
    %6355 = vmatprep.subr.bf16.mxu0 0
    %6356 = vmatpush1.bf16.xpose.msra.mxu0 0
    %6357 = vmatprep.subr.bf16.mxu0 0
    %6358 = vmatpush1.bf16.xpose.msra.mxu0 0
    %6359 = vmatprep.subr.bf16.mxu0 0
    %6360 = vmatpush1.bf16.xpose.msra.mxu0 0
    %6361 = vmatprep.subr.bf16.mxu0 0
    %6362 = vmatpush1.bf16.xpose.msra.mxu0 %v6345
    %6363 = vmatprep.subr.bf16.mxu0 0
    %6364 = vmatpush2.bf16.xpose.msra.mxu0 0
    %6365 = vmatprep.subr.bf16.mxu0 0
    %6366 = vmatpush2.bf16.xpose.msra.mxu0 0
    %6367 = vmatprep.subr.bf16.mxu0 0
    %6368 = vmatpush2.bf16.xpose.msra.mxu0 0
    %6369 = vmatprep.subr.bf16.mxu0 0
    %6370 = vmatpush2.bf16.xpose.msra.mxu0 0
    %6371 = vmatprep.subr.bf16.mxu0 0
    %6372 = vmatpush2.bf16.xpose.msra.mxu0 0
    %6373 = vmatprep.subr.bf16.mxu0 0
    %6374 = vmatpush2.bf16.xpose.msra.mxu0 0
    %6375 = vmatprep.subr.bf16.mxu0 0
    %6376 = vmatpush2.bf16.xpose.msra.mxu0 0
    %6377 = vmatprep.subr.bf16.mxu0 0
    %6378 = vmatpush2.bf16.xpose.msra.mxu0 0
    %6379 = vmatprep.mubr.bf16.mxu0 0
    %6380 = vmatmul.mubr.bf16.gmra.mxu0 %v6342
    %v6381 = vpop.f32.mrf.mxu0
    %v6382 = vadd.f32 0.0, %v6381
    %v6383 = vpop.f32.mrf.mxu0
    %v6384 = vpop.f32.mrf.mxu0
    %v6385 = vpop.f32.mrf.mxu0
    %6386 = vdwg.mxu0
    %v6387 = vmul.f32 %v6332, 0.35355338
    %v6388 = vmul.f32 %v6382, 0.35355338
    %v6389 = vadd.f32 %v6387, %v181
    %v6390 = vadd.f32 %v6388, %v181
    %v6391 = vsel %vm271, %v6389, -inf
    %6392 = vmax.xlane.f32.xlu0 %v6391
    %v6393 = vpop.xlane.xlu0 %6392
    %v6394 = vsel %vm271, %v6390, -inf
    %6395 = vmax.xlane.f32.xlu0 %v6394
    %v6396 = vpop.xlane.xlu0 %6395
    %v6397 = vsub.f32 %v6389, %v6393
    %v6398 = vsub.f32 %v6390, %v6396
    %v6399 = vmul.f32 %v6397, 1.442695
    %v6400 = vpow.pop %v6399
    %v6401 = vmul.f32 %v6398, 1.442695
    %v6402 = vpow.pop %v6401
    %v6403 = vsel %vm271, %v6400, 0.0
    %6404 = vadd.xlane.f32.xlu0 %v6403
    %v6405 = vpop.xlane.xlu0 %6404
    %v6406 = vsel %vm271, %v6402, 0.0
    %6407 = vadd.xlane.f32.xlu0 %v6406
    %v6408 = vpop.xlane.xlu0 %6407
    %v6409 = vrcp.pop %v6405
    %v6410 = vrcp.pop %v6408
    %v6411 = vmul.f32 %v6400, %v6409
    %v6412 = vmul.f32 %v6402, %v6410
    %v6413 = vpack.c.bf16 %v6411, %v6411
    %v6414 = vpack.c.bf16 %v6412, %v6412
    %6415 = vrot.lane.b32.xlu0 %v5741, 48
    %v6416 = vpop.permute.xlu0 %6415
    %v6418 = vsel %vm271, %v6413, 0
    %v6421 = vsel %vm400, %v6416, 0
    %6423 = vmatprep.subr.bf16.mxu0 0
    %6424 = vmatpush1.bf16.msra.mxu0 0
    %6425 = vmatprep.subr.bf16.mxu0 0
    %6426 = vmatpush1.bf16.msra.mxu0 0
    %6427 = vmatprep.subr.bf16.mxu0 0
    %6428 = vmatpush1.bf16.msra.mxu0 0
    %6429 = vmatprep.subr.bf16.mxu0 0
    %6430 = vmatpush1.bf16.msra.mxu0 0
    %6431 = vmatprep.subr.bf16.mxu0 0
    %6432 = vmatpush1.bf16.msra.mxu0 0
    %6433 = vmatprep.subr.bf16.mxu0 0
    %6434 = vmatpush1.bf16.msra.mxu0 0
    %6435 = vmatprep.subr.bf16.mxu0 0
    %6436 = vmatpush1.bf16.msra.mxu0 0
    %6437 = vmatprep.subr.bf16.mxu0 0
    %6438 = vmatpush1.bf16.msra.mxu0 %v6421
    %6439 = vmatprep.subr.bf16.mxu0 0
    %6440 = vmatpush2.bf16.msra.mxu0 0
    %6441 = vmatprep.subr.bf16.mxu0 0
    %6442 = vmatpush2.bf16.msra.mxu0 0
    %6443 = vmatprep.subr.bf16.mxu0 0
    %6444 = vmatpush2.bf16.msra.mxu0 0
    %6445 = vmatprep.subr.bf16.mxu0 0
    %6446 = vmatpush2.bf16.msra.mxu0 0
    %6447 = vmatprep.subr.bf16.mxu0 0
    %6448 = vmatpush2.bf16.msra.mxu0 0
    %6449 = vmatprep.subr.bf16.mxu0 0
    %6450 = vmatpush2.bf16.msra.mxu0 0
    %6451 = vmatprep.subr.bf16.mxu0 0
    %6452 = vmatpush2.bf16.msra.mxu0 0
    %6453 = vmatprep.subr.bf16.mxu0 0
    %6454 = vmatpush2.bf16.msra.mxu0 0
    %6455 = vmatprep.mubr.bf16.mxu0 0
    %6456 = vmatmul.mubr.bf16.gmra.mxu0 %v6418
    %v6457 = vpop.f32.mrf.mxu0
    %v6458 = vadd.f32 0.0, %v6457
    %v6459 = vpop.f32.mrf.mxu0
    %v6460 = vpop.f32.mrf.mxu0
    %v6461 = vpop.f32.mrf.mxu0
    %6462 = vdwg.mxu0
    %6463 = vrot.lane.b32.xlu0 %v5742, 48
    %v6464 = vpop.permute.xlu0 %6463
    %v6466 = vsel %vm271, %v6414, 0
    %v6469 = vsel %vm400, %v6464, 0
    %6471 = vmatprep.subr.bf16.mxu0 0
    %6472 = vmatpush1.bf16.msra.mxu0 0
    %6473 = vmatprep.subr.bf16.mxu0 0
    %6474 = vmatpush1.bf16.msra.mxu0 0
    %6475 = vmatprep.subr.bf16.mxu0 0
    %6476 = vmatpush1.bf16.msra.mxu0 0
    %6477 = vmatprep.subr.bf16.mxu0 0
    %6478 = vmatpush1.bf16.msra.mxu0 0
    %6479 = vmatprep.subr.bf16.mxu0 0
    %6480 = vmatpush1.bf16.msra.mxu0 0
    %6481 = vmatprep.subr.bf16.mxu0 0
    %6482 = vmatpush1.bf16.msra.mxu0 0
    %6483 = vmatprep.subr.bf16.mxu0 0
    %6484 = vmatpush1.bf16.msra.mxu0 0
    %6485 = vmatprep.subr.bf16.mxu0 0
    %6486 = vmatpush1.bf16.msra.mxu0 %v6469
    %6487 = vmatprep.subr.bf16.mxu0 0
    %6488 = vmatpush2.bf16.msra.mxu0 0
    %6489 = vmatprep.subr.bf16.mxu0 0
    %6490 = vmatpush2.bf16.msra.mxu0 0
    %6491 = vmatprep.subr.bf16.mxu0 0
    %6492 = vmatpush2.bf16.msra.mxu0 0
    %6493 = vmatprep.subr.bf16.mxu0 0
    %6494 = vmatpush2.bf16.msra.mxu0 0
    %6495 = vmatprep.subr.bf16.mxu0 0
    %6496 = vmatpush2.bf16.msra.mxu0 0
    %6497 = vmatprep.subr.bf16.mxu0 0
    %6498 = vmatpush2.bf16.msra.mxu0 0
    %6499 = vmatprep.subr.bf16.mxu0 0
    %6500 = vmatpush2.bf16.msra.mxu0 0
    %6501 = vmatprep.subr.bf16.mxu0 0
    %6502 = vmatpush2.bf16.msra.mxu0 0
    %6503 = vmatprep.mubr.bf16.mxu0 0
    %6504 = vmatmul.mubr.bf16.gmra.mxu0 %v6466
    %v6505 = vpop.f32.mrf.mxu0
    %v6506 = vadd.f32 0.0, %v6505
    %v6507 = vpop.f32.mrf.mxu0
    %v6508 = vpop.f32.mrf.mxu0
    %v6509 = vpop.f32.mrf.mxu0
    %6510 = vdwg.mxu0
    %v6511 = vpack.c.bf16 %v6506, %v6458
    %v6512 = vpack.c.bf16 %v5633, %v5633
    %v6514 = vsel %vm271, %v6511, 0
    %v6517 = vsel %vm400, %v6512, 0
    %6519 = vmatprep.subr.bf16.mxu0 0
    %6520 = vmatpush1.bf16.msra.mxu0 0
    %6521 = vmatprep.subr.bf16.mxu0 0
    %6522 = vmatpush1.bf16.msra.mxu0 0
    %6523 = vmatprep.subr.bf16.mxu0 0
    %6524 = vmatpush1.bf16.msra.mxu0 0
    %6525 = vmatprep.subr.bf16.mxu0 0
    %6526 = vmatpush1.bf16.msra.mxu0 0
    %6527 = vmatprep.subr.bf16.mxu0 0
    %6528 = vmatpush1.bf16.msra.mxu0 0
    %6529 = vmatprep.subr.bf16.mxu0 0
    %6530 = vmatpush1.bf16.msra.mxu0 0
    %6531 = vmatprep.subr.bf16.mxu0 0
    %6532 = vmatpush1.bf16.msra.mxu0 0
    %6533 = vmatprep.subr.bf16.mxu0 0
    %6534 = vmatpush1.bf16.msra.mxu0 %v6517
    %6535 = vmatprep.subr.bf16.mxu0 0
    %6536 = vmatpush2.bf16.msra.mxu0 0
    %6537 = vmatprep.subr.bf16.mxu0 0
    %6538 = vmatpush2.bf16.msra.mxu0 0
    %6539 = vmatprep.subr.bf16.mxu0 0
    %6540 = vmatpush2.bf16.msra.mxu0 0
    %6541 = vmatprep.subr.bf16.mxu0 0
    %6542 = vmatpush2.bf16.msra.mxu0 0
    %6543 = vmatprep.subr.bf16.mxu0 0
    %6544 = vmatpush2.bf16.msra.mxu0 0
    %6545 = vmatprep.subr.bf16.mxu0 0
    %6546 = vmatpush2.bf16.msra.mxu0 0
    %6547 = vmatprep.subr.bf16.mxu0 0
    %6548 = vmatpush2.bf16.msra.mxu0 0
    %6549 = vmatprep.subr.bf16.mxu0 0
    %6550 = vmatpush2.bf16.msra.mxu0 0
    %6551 = vmatprep.mubr.bf16.mxu0 0
    %6552 = vmatmul.mubr.bf16.gmra.mxu0 %v6514
    %v6553 = vpop.f32.mrf.mxu0
    %v6554 = vadd.f32 0.0, %v6553
    %v6555 = vpop.f32.mrf.mxu0
    %v6556 = vpop.f32.mrf.mxu0
    %v6557 = vadd.f32 0.0, %v6556
    %v6558 = vpop.f32.mrf.mxu0
    %6559 = vdwg.mxu0
    %v6560 = vadd.f32 %v6281, %v6554
    %v6561 = vadd.f32 %v6284, %v6557
    %6562 = vrot.lane.b32.xlu0 %v5741, 104
    %v6563 = vpop.permute.xlu0 %6562
    %6564 = vrot.lane.b32.xlu0 %v5741, 72
    %v6565 = vpop.permute.xlu0 %6564
    %v6567 = vsel %vm271, %v6563, 0
    %v6570 = vsel %vm271, %v6565, 0
    %6572 = vmatprep.subr.bf16.mxu0 0
    %6573 = vmatpush1.bf16.xpose.msra.mxu0 0
    %6574 = vmatprep.subr.bf16.mxu0 0
    %6575 = vmatpush1.bf16.xpose.msra.mxu0 0
    %6576 = vmatprep.subr.bf16.mxu0 0
    %6577 = vmatpush1.bf16.xpose.msra.mxu0 0
    %6578 = vmatprep.subr.bf16.mxu0 0
    %6579 = vmatpush1.bf16.xpose.msra.mxu0 0
    %6580 = vmatprep.subr.bf16.mxu0 0
    %6581 = vmatpush1.bf16.xpose.msra.mxu0 0
    %6582 = vmatprep.subr.bf16.mxu0 0
    %6583 = vmatpush1.bf16.xpose.msra.mxu0 0
    %6584 = vmatprep.subr.bf16.mxu0 0
    %6585 = vmatpush1.bf16.xpose.msra.mxu0 0
    %6586 = vmatprep.subr.bf16.mxu0 0
    %6587 = vmatpush1.bf16.xpose.msra.mxu0 %v6570
    %6588 = vmatprep.subr.bf16.mxu0 0
    %6589 = vmatpush2.bf16.xpose.msra.mxu0 0
    %6590 = vmatprep.subr.bf16.mxu0 0
    %6591 = vmatpush2.bf16.xpose.msra.mxu0 0
    %6592 = vmatprep.subr.bf16.mxu0 0
    %6593 = vmatpush2.bf16.xpose.msra.mxu0 0
    %6594 = vmatprep.subr.bf16.mxu0 0
    %6595 = vmatpush2.bf16.xpose.msra.mxu0 0
    %6596 = vmatprep.subr.bf16.mxu0 0
    %6597 = vmatpush2.bf16.xpose.msra.mxu0 0
    %6598 = vmatprep.subr.bf16.mxu0 0
    %6599 = vmatpush2.bf16.xpose.msra.mxu0 0
    %6600 = vmatprep.subr.bf16.mxu0 0
    %6601 = vmatpush2.bf16.xpose.msra.mxu0 0
    %6602 = vmatprep.subr.bf16.mxu0 0
    %6603 = vmatpush2.bf16.xpose.msra.mxu0 0
    %6604 = vmatprep.mubr.bf16.mxu0 0
    %6605 = vmatmul.mubr.bf16.gmra.mxu0 %v6567
    %v6606 = vpop.f32.mrf.mxu0
    %v6607 = vadd.f32 0.0, %v6606
    %v6608 = vpop.f32.mrf.mxu0
    %v6609 = vpop.f32.mrf.mxu0
    %v6610 = vpop.f32.mrf.mxu0
    %6611 = vdwg.mxu0
    %6612 = vrot.lane.b32.xlu0 %v5742, 104
    %v6613 = vpop.permute.xlu0 %6612
    %6614 = vrot.lane.b32.xlu0 %v5742, 72
    %v6615 = vpop.permute.xlu0 %6614
    %v6617 = vsel %vm271, %v6613, 0
    %v6620 = vsel %vm271, %v6615, 0
    %6622 = vmatprep.subr.bf16.mxu0 0
    %6623 = vmatpush1.bf16.xpose.msra.mxu0 0
    %6624 = vmatprep.subr.bf16.mxu0 0
    %6625 = vmatpush1.bf16.xpose.msra.mxu0 0
    %6626 = vmatprep.subr.bf16.mxu0 0
    %6627 = vmatpush1.bf16.xpose.msra.mxu0 0
    %6628 = vmatprep.subr.bf16.mxu0 0
    %6629 = vmatpush1.bf16.xpose.msra.mxu0 0
    %6630 = vmatprep.subr.bf16.mxu0 0
    %6631 = vmatpush1.bf16.xpose.msra.mxu0 0
    %6632 = vmatprep.subr.bf16.mxu0 0
    %6633 = vmatpush1.bf16.xpose.msra.mxu0 0
    %6634 = vmatprep.subr.bf16.mxu0 0
    %6635 = vmatpush1.bf16.xpose.msra.mxu0 0
    %6636 = vmatprep.subr.bf16.mxu0 0
    %6637 = vmatpush1.bf16.xpose.msra.mxu0 %v6620
    %6638 = vmatprep.subr.bf16.mxu0 0
    %6639 = vmatpush2.bf16.xpose.msra.mxu0 0
    %6640 = vmatprep.subr.bf16.mxu0 0
    %6641 = vmatpush2.bf16.xpose.msra.mxu0 0
    %6642 = vmatprep.subr.bf16.mxu0 0
    %6643 = vmatpush2.bf16.xpose.msra.mxu0 0
    %6644 = vmatprep.subr.bf16.mxu0 0
    %6645 = vmatpush2.bf16.xpose.msra.mxu0 0
    %6646 = vmatprep.subr.bf16.mxu0 0
    %6647 = vmatpush2.bf16.xpose.msra.mxu0 0
    %6648 = vmatprep.subr.bf16.mxu0 0
    %6649 = vmatpush2.bf16.xpose.msra.mxu0 0
    %6650 = vmatprep.subr.bf16.mxu0 0
    %6651 = vmatpush2.bf16.xpose.msra.mxu0 0
    %6652 = vmatprep.subr.bf16.mxu0 0
    %6653 = vmatpush2.bf16.xpose.msra.mxu0 0
    %6654 = vmatprep.mubr.bf16.mxu0 0
    %6655 = vmatmul.mubr.bf16.gmra.mxu0 %v6617
    %v6656 = vpop.f32.mrf.mxu0
    %v6657 = vadd.f32 0.0, %v6656
    %v6658 = vpop.f32.mrf.mxu0
    %v6659 = vpop.f32.mrf.mxu0
    %v6660 = vpop.f32.mrf.mxu0
    %6661 = vdwg.mxu0
    %v6662 = vmul.f32 %v6607, 0.35355338
    %v6663 = vmul.f32 %v6657, 0.35355338
    %v6664 = vadd.f32 %v6662, %v181
    %v6665 = vadd.f32 %v6663, %v181
    %v6666 = vsel %vm271, %v6664, -inf
    %6667 = vmax.xlane.f32.xlu0 %v6666
    %v6668 = vpop.xlane.xlu0 %6667
    %v6669 = vsel %vm271, %v6665, -inf
    %6670 = vmax.xlane.f32.xlu0 %v6669
    %v6671 = vpop.xlane.xlu0 %6670
    %v6672 = vsub.f32 %v6664, %v6668
    %v6673 = vsub.f32 %v6665, %v6671
    %v6674 = vmul.f32 %v6672, 1.442695
    %v6675 = vpow.pop %v6674
    %v6676 = vmul.f32 %v6673, 1.442695
    %v6677 = vpow.pop %v6676
    %v6678 = vsel %vm271, %v6675, 0.0
    %6679 = vadd.xlane.f32.xlu0 %v6678
    %v6680 = vpop.xlane.xlu0 %6679
    %v6681 = vsel %vm271, %v6677, 0.0
    %6682 = vadd.xlane.f32.xlu0 %v6681
    %v6683 = vpop.xlane.xlu0 %6682
    %v6684 = vrcp.pop %v6680
    %v6685 = vrcp.pop %v6683
    %v6686 = vmul.f32 %v6675, %v6684
    %v6687 = vmul.f32 %v6677, %v6685
    %v6688 = vpack.c.bf16 %v6686, %v6686
    %v6689 = vpack.c.bf16 %v6687, %v6687
    %6690 = vrot.lane.b32.xlu0 %v5741, 40
    %v6691 = vpop.permute.xlu0 %6690
    %v6693 = vsel %vm271, %v6688, 0
    %v6696 = vsel %vm400, %v6691, 0
    %6698 = vmatprep.subr.bf16.mxu0 0
    %6699 = vmatpush1.bf16.msra.mxu0 0
    %6700 = vmatprep.subr.bf16.mxu0 0
    %6701 = vmatpush1.bf16.msra.mxu0 0
    %6702 = vmatprep.subr.bf16.mxu0 0
    %6703 = vmatpush1.bf16.msra.mxu0 0
    %6704 = vmatprep.subr.bf16.mxu0 0
    %6705 = vmatpush1.bf16.msra.mxu0 0
    %6706 = vmatprep.subr.bf16.mxu0 0
    %6707 = vmatpush1.bf16.msra.mxu0 0
    %6708 = vmatprep.subr.bf16.mxu0 0
    %6709 = vmatpush1.bf16.msra.mxu0 0
    %6710 = vmatprep.subr.bf16.mxu0 0
    %6711 = vmatpush1.bf16.msra.mxu0 0
    %6712 = vmatprep.subr.bf16.mxu0 0
    %6713 = vmatpush1.bf16.msra.mxu0 %v6696
    %6714 = vmatprep.subr.bf16.mxu0 0
    %6715 = vmatpush2.bf16.msra.mxu0 0
    %6716 = vmatprep.subr.bf16.mxu0 0
    %6717 = vmatpush2.bf16.msra.mxu0 0
    %6718 = vmatprep.subr.bf16.mxu0 0
    %6719 = vmatpush2.bf16.msra.mxu0 0
    %6720 = vmatprep.subr.bf16.mxu0 0
    %6721 = vmatpush2.bf16.msra.mxu0 0
    %6722 = vmatprep.subr.bf16.mxu0 0
    %6723 = vmatpush2.bf16.msra.mxu0 0
    %6724 = vmatprep.subr.bf16.mxu0 0
    %6725 = vmatpush2.bf16.msra.mxu0 0
    %6726 = vmatprep.subr.bf16.mxu0 0
    %6727 = vmatpush2.bf16.msra.mxu0 0
    %6728 = vmatprep.subr.bf16.mxu0 0
    %6729 = vmatpush2.bf16.msra.mxu0 0
    %6730 = vmatprep.mubr.bf16.mxu0 0
    %6731 = vmatmul.mubr.bf16.gmra.mxu0 %v6693
    %v6732 = vpop.f32.mrf.mxu0
    %v6733 = vadd.f32 0.0, %v6732
    %v6734 = vpop.f32.mrf.mxu0
    %v6735 = vpop.f32.mrf.mxu0
    %v6736 = vpop.f32.mrf.mxu0
    %6737 = vdwg.mxu0
    %6738 = vrot.lane.b32.xlu0 %v5742, 40
    %v6739 = vpop.permute.xlu0 %6738
    %v6741 = vsel %vm271, %v6689, 0
    %v6744 = vsel %vm400, %v6739, 0
    %6746 = vmatprep.subr.bf16.mxu0 0
    %6747 = vmatpush1.bf16.msra.mxu0 0
    %6748 = vmatprep.subr.bf16.mxu0 0
    %6749 = vmatpush1.bf16.msra.mxu0 0
    %6750 = vmatprep.subr.bf16.mxu0 0
    %6751 = vmatpush1.bf16.msra.mxu0 0
    %6752 = vmatprep.subr.bf16.mxu0 0
    %6753 = vmatpush1.bf16.msra.mxu0 0
    %6754 = vmatprep.subr.bf16.mxu0 0
    %6755 = vmatpush1.bf16.msra.mxu0 0
    %6756 = vmatprep.subr.bf16.mxu0 0
    %6757 = vmatpush1.bf16.msra.mxu0 0
    %6758 = vmatprep.subr.bf16.mxu0 0
    %6759 = vmatpush1.bf16.msra.mxu0 0
    %6760 = vmatprep.subr.bf16.mxu0 0
    %6761 = vmatpush1.bf16.msra.mxu0 %v6744
    %6762 = vmatprep.subr.bf16.mxu0 0
    %6763 = vmatpush2.bf16.msra.mxu0 0
    %6764 = vmatprep.subr.bf16.mxu0 0
    %6765 = vmatpush2.bf16.msra.mxu0 0
    %6766 = vmatprep.subr.bf16.mxu0 0
    %6767 = vmatpush2.bf16.msra.mxu0 0
    %6768 = vmatprep.subr.bf16.mxu0 0
    %6769 = vmatpush2.bf16.msra.mxu0 0
    %6770 = vmatprep.subr.bf16.mxu0 0
    %6771 = vmatpush2.bf16.msra.mxu0 0
    %6772 = vmatprep.subr.bf16.mxu0 0
    %6773 = vmatpush2.bf16.msra.mxu0 0
    %6774 = vmatprep.subr.bf16.mxu0 0
    %6775 = vmatpush2.bf16.msra.mxu0 0
    %6776 = vmatprep.subr.bf16.mxu0 0
    %6777 = vmatpush2.bf16.msra.mxu0 0
    %6778 = vmatprep.mubr.bf16.mxu0 0
    %6779 = vmatmul.mubr.bf16.gmra.mxu0 %v6741
    %v6780 = vpop.f32.mrf.mxu0
    %v6781 = vadd.f32 0.0, %v6780
    %v6782 = vpop.f32.mrf.mxu0
    %v6783 = vpop.f32.mrf.mxu0
    %v6784 = vpop.f32.mrf.mxu0
    %6785 = vdwg.mxu0
    %v6786 = vpack.c.bf16 %v6781, %v6733
    %v6787 = vpack.c.bf16 %v5634, %v5634
    %v6789 = vsel %vm271, %v6786, 0
    %v6792 = vsel %vm400, %v6787, 0
    %6794 = vmatprep.subr.bf16.mxu0 0
    %6795 = vmatpush1.bf16.msra.mxu0 0
    %6796 = vmatprep.subr.bf16.mxu0 0
    %6797 = vmatpush1.bf16.msra.mxu0 0
    %6798 = vmatprep.subr.bf16.mxu0 0
    %6799 = vmatpush1.bf16.msra.mxu0 0
    %6800 = vmatprep.subr.bf16.mxu0 0
    %6801 = vmatpush1.bf16.msra.mxu0 0
    %6802 = vmatprep.subr.bf16.mxu0 0
    %6803 = vmatpush1.bf16.msra.mxu0 0
    %6804 = vmatprep.subr.bf16.mxu0 0
    %6805 = vmatpush1.bf16.msra.mxu0 0
    %6806 = vmatprep.subr.bf16.mxu0 0
    %6807 = vmatpush1.bf16.msra.mxu0 0
    %6808 = vmatprep.subr.bf16.mxu0 0
    %6809 = vmatpush1.bf16.msra.mxu0 %v6792
    %6810 = vmatprep.subr.bf16.mxu0 0
    %6811 = vmatpush2.bf16.msra.mxu0 0
    %6812 = vmatprep.subr.bf16.mxu0 0
    %6813 = vmatpush2.bf16.msra.mxu0 0
    %6814 = vmatprep.subr.bf16.mxu0 0
    %6815 = vmatpush2.bf16.msra.mxu0 0
    %6816 = vmatprep.subr.bf16.mxu0 0
    %6817 = vmatpush2.bf16.msra.mxu0 0
    %6818 = vmatprep.subr.bf16.mxu0 0
    %6819 = vmatpush2.bf16.msra.mxu0 0
    %6820 = vmatprep.subr.bf16.mxu0 0
    %6821 = vmatpush2.bf16.msra.mxu0 0
    %6822 = vmatprep.subr.bf16.mxu0 0
    %6823 = vmatpush2.bf16.msra.mxu0 0
    %6824 = vmatprep.subr.bf16.mxu0 0
    %6825 = vmatpush2.bf16.msra.mxu0 0
    %6826 = vmatprep.mubr.bf16.mxu0 0
    %6827 = vmatmul.mubr.bf16.gmra.mxu0 %v6789
    %v6828 = vpop.f32.mrf.mxu0
    %v6829 = vadd.f32 0.0, %v6828
    %v6830 = vpop.f32.mrf.mxu0
    %v6831 = vpop.f32.mrf.mxu0
    %v6832 = vadd.f32 0.0, %v6831
    %v6833 = vpop.f32.mrf.mxu0
    %6834 = vdwg.mxu0
    %v6835 = vadd.f32 %v6560, %v6829
    %v6836 = vadd.f32 %v6561, %v6832
    %v6838 = vlaneseq
    %v6839 = vshrl.u32 %v6838, 7
    %v6840 = vsub.s32 0, %v6839
    %v6841 = vrot.slane %v5636, %v6840
    %v6843 = vadd.f32 %v6835, %v6841
    %v6844 = vadd.f32 %v6836, %v6841
    %v6845 = vadd.f32 %v5621, %v6843
    %v6846 = vadd.f32 %v5622, %v6844
    %v6847 = vsel %vm221, %v6845, 0.0
    %6848 = vadd.xlane.f32.xlu0 %v6847
    %v6849 = vpop.xlane.xlu0 %6848
    %v6850 = vsel %vm221, %v6846, 0.0
    %6851 = vadd.xlane.f32.xlu0 %v6850
    %v6852 = vpop.xlane.xlu0 %6851
    %v6853 = vmul.f32 %v6849, %v1380
    %v6854 = vmul.f32 %v6852, %v1380
    %v6855 = vsub.f32 %v6845, %v6853
    %v6856 = vsub.f32 %v6846, %v6854
    %v6857 = vmul.f32 %v6855, %v6855
    %v6858 = vmul.f32 %v6856, %v6856
    %v6859 = vsel %vm221, %v6857, 0.0
    %6860 = vadd.xlane.f32.xlu0 %v6859
    %v6861 = vpop.xlane.xlu0 %6860
    %v6862 = vsel %vm221, %v6858, 0.0
    %6863 = vadd.xlane.f32.xlu0 %v6862
    %v6864 = vpop.xlane.xlu0 %6863
    %v6865 = vmul.f32 %v6861, %v1380
    %v6866 = vmul.f32 %v6864, %v1380
    %v6867 = vadd.f32 %v6865, 1e-05
    %v6868 = vadd.f32 %v6866, 1e-05
    %v6869 = vrsqrt.pop %v6867
    %v6870 = vrsqrt.pop %v6868
    %v6871 = vmul.f32 %v6855, %v6869
    %v6872 = vmul.f32 %v6856, %v6870
    %v6874 = vlaneseq
    %v6875 = vshrl.u32 %v6874, 7
    %v6876 = vsub.s32 0, %v6875
    %v6877 = vrot.slane %v5638, %v6876
    %v6879 = vmul.f32 %v6871, %v6877
    %v6880 = vmul.f32 %v6872, %v6877
    %v6882 = vlaneseq
    %v6883 = vshrl.u32 %v6882, 7
    %v6884 = vsub.s32 0, %v6883
    %v6885 = vrot.slane %v5640, %v6884
    %v6887 = vadd.f32 %v6879, %v6885
    %v6888 = vadd.f32 %v6880, %v6885
    %v6889 = vpack.c.bf16 %v6888, %v6887
    %v6890 = vpack.c.bf16 %v5643, %v5642
    %v6891 = vpack.c.bf16 %v5645, %v5644
    %v6893 = vlaneseq
    %v6894 = vshrl.u32 %v6893, 7
    %v6895 = vsub.s32 0, %v6894
    %v6896 = vrot.slane %v5647, %v6895
    %v6899 = vsel %vm221, %v6889, 0
    %6901 = vmatprep.subr.bf16.mxu0 0
    %6902 = vmatpush1.bf16.msra.mxu0 0
    %6903 = vmatprep.subr.bf16.mxu0 0
    %6904 = vmatpush1.bf16.msra.mxu0 0
    %6905 = vmatprep.subr.bf16.mxu0 0
    %6906 = vmatpush1.bf16.msra.mxu0 0
    %6907 = vmatprep.subr.bf16.mxu0 0
    %6908 = vmatpush1.bf16.msra.mxu0 0
    %6909 = vmatprep.subr.bf16.mxu0 0
    %6910 = vmatpush1.bf16.msra.mxu0 0
    %6911 = vmatprep.subr.bf16.mxu0 0
    %6912 = vmatpush1.bf16.msra.mxu0 0
    %6913 = vmatprep.subr.bf16.mxu0 0
    %6914 = vmatpush1.bf16.msra.mxu0 %v6891
    %6915 = vmatprep.subr.bf16.mxu0 0
    %6916 = vmatpush1.bf16.msra.mxu0 %v6890
    %6917 = vmatprep.subr.bf16.mxu0 0
    %6918 = vmatpush2.bf16.msra.mxu0 0
    %6919 = vmatprep.subr.bf16.mxu0 0
    %6920 = vmatpush2.bf16.msra.mxu0 0
    %6921 = vmatprep.subr.bf16.mxu0 0
    %6922 = vmatpush2.bf16.msra.mxu0 0
    %6923 = vmatprep.subr.bf16.mxu0 0
    %6924 = vmatpush2.bf16.msra.mxu0 0
    %6925 = vmatprep.subr.bf16.mxu0 0
    %6926 = vmatpush2.bf16.msra.mxu0 0
    %6927 = vmatprep.subr.bf16.mxu0 0
    %6928 = vmatpush2.bf16.msra.mxu0 0
    %6929 = vmatprep.subr.bf16.mxu0 0
    %6930 = vmatpush2.bf16.msra.mxu0 0
    %6931 = vmatprep.subr.bf16.mxu0 0
    %6932 = vmatpush2.bf16.msra.mxu0 0
    %6933 = vmatprep.mubr.bf16.mxu0 0
    %6934 = vmatmul.mubr.bf16.gmra.mxu0 %v6899
    %v6935 = vpop.f32.mrf.mxu0
    %v6936 = vadd.f32 %v6896, %v6935
    %v6937 = vpop.f32.mrf.mxu0
    %v6938 = vpop.f32.mrf.mxu0
    %v6939 = vadd.f32 %v6896, %v6938
    %v6940 = vpop.f32.mrf.mxu0
    %6941 = vdwg.mxu0
    %v6942 = vpack.c.bf16 %v5650, %v5649
    %v6943 = vpack.c.bf16 %v5652, %v5651
    %v6945 = vlaneseq
    %v6946 = vshrl.u32 %v6945, 7
    %v6947 = vsub.s32 0, %v6946
    %v6948 = vrot.slane %v5654, %v6947
    %6950 = vmatprep.subr.bf16.mxu0 0
    %6951 = vmatpush1.bf16.msra.mxu0 0
    %6952 = vmatprep.subr.bf16.mxu0 0
    %6953 = vmatpush1.bf16.msra.mxu0 0
    %6954 = vmatprep.subr.bf16.mxu0 0
    %6955 = vmatpush1.bf16.msra.mxu0 0
    %6956 = vmatprep.subr.bf16.mxu0 0
    %6957 = vmatpush1.bf16.msra.mxu0 0
    %6958 = vmatprep.subr.bf16.mxu0 0
    %6959 = vmatpush1.bf16.msra.mxu0 0
    %6960 = vmatprep.subr.bf16.mxu0 0
    %6961 = vmatpush1.bf16.msra.mxu0 0
    %6962 = vmatprep.subr.bf16.mxu0 0
    %6963 = vmatpush1.bf16.msra.mxu0 %v6943
    %6964 = vmatprep.subr.bf16.mxu0 0
    %6965 = vmatpush1.bf16.msra.mxu0 %v6942
    %6966 = vmatprep.subr.bf16.mxu0 0
    %6967 = vmatpush2.bf16.msra.mxu0 0
    %6968 = vmatprep.subr.bf16.mxu0 0
    %6969 = vmatpush2.bf16.msra.mxu0 0
    %6970 = vmatprep.subr.bf16.mxu0 0
    %6971 = vmatpush2.bf16.msra.mxu0 0
    %6972 = vmatprep.subr.bf16.mxu0 0
    %6973 = vmatpush2.bf16.msra.mxu0 0
    %6974 = vmatprep.subr.bf16.mxu0 0
    %6975 = vmatpush2.bf16.msra.mxu0 0
    %6976 = vmatprep.subr.bf16.mxu0 0
    %6977 = vmatpush2.bf16.msra.mxu0 0
    %6978 = vmatprep.subr.bf16.mxu0 0
    %6979 = vmatpush2.bf16.msra.mxu0 0
    %6980 = vmatprep.subr.bf16.mxu0 0
    %6981 = vmatpush2.bf16.msra.mxu0 0
    %6982 = vmatprep.mubr.bf16.mxu0 0
    %6983 = vmatmul.mubr.bf16.gmra.mxu0 %v4278
    %v6984 = vpop.f32.mrf.mxu0
    %v6985 = vadd.f32 %v6948, %v6984
    %v6986 = vpop.f32.mrf.mxu0
    %v6987 = vpop.f32.mrf.mxu0
    %v6988 = vadd.f32 %v6948, %v6987
    %v6989 = vpop.f32.mrf.mxu0
    %6990 = vdwg.mxu0
    %v6991 = vpack.c.bf16 %v6936, %v6936
    %v6992 = vpack.c.bf16 %v6939, %v6939
    %v6993 = vpack.c.bf16 %v6985, %v6985
    %v6994 = vpack.c.bf16 %v6988, %v6988
    %v6996 = vsel %vm271, %v6991, 0
    %v6999 = vsel %vm271, %v6993, 0
    %7001 = vmatprep.subr.bf16.mxu0 0
    %7002 = vmatpush1.bf16.xpose.msra.mxu0 0
    %7003 = vmatprep.subr.bf16.mxu0 0
    %7004 = vmatpush1.bf16.xpose.msra.mxu0 0
    %7005 = vmatprep.subr.bf16.mxu0 0
    %7006 = vmatpush1.bf16.xpose.msra.mxu0 0
    %7007 = vmatprep.subr.bf16.mxu0 0
    %7008 = vmatpush1.bf16.xpose.msra.mxu0 0
    %7009 = vmatprep.subr.bf16.mxu0 0
    %7010 = vmatpush1.bf16.xpose.msra.mxu0 0
    %7011 = vmatprep.subr.bf16.mxu0 0
    %7012 = vmatpush1.bf16.xpose.msra.mxu0 0
    %7013 = vmatprep.subr.bf16.mxu0 0
    %7014 = vmatpush1.bf16.xpose.msra.mxu0 0
    %7015 = vmatprep.subr.bf16.mxu0 0
    %7016 = vmatpush1.bf16.xpose.msra.mxu0 %v6999
    %7017 = vmatprep.subr.bf16.mxu0 0
    %7018 = vmatpush2.bf16.xpose.msra.mxu0 0
    %7019 = vmatprep.subr.bf16.mxu0 0
    %7020 = vmatpush2.bf16.xpose.msra.mxu0 0
    %7021 = vmatprep.subr.bf16.mxu0 0
    %7022 = vmatpush2.bf16.xpose.msra.mxu0 0
    %7023 = vmatprep.subr.bf16.mxu0 0
    %7024 = vmatpush2.bf16.xpose.msra.mxu0 0
    %7025 = vmatprep.subr.bf16.mxu0 0
    %7026 = vmatpush2.bf16.xpose.msra.mxu0 0
    %7027 = vmatprep.subr.bf16.mxu0 0
    %7028 = vmatpush2.bf16.xpose.msra.mxu0 0
    %7029 = vmatprep.subr.bf16.mxu0 0
    %7030 = vmatpush2.bf16.xpose.msra.mxu0 0
    %7031 = vmatprep.subr.bf16.mxu0 0
    %7032 = vmatpush2.bf16.xpose.msra.mxu0 0
    %7033 = vmatprep.mubr.bf16.mxu0 0
    %7034 = vmatmul.mubr.bf16.gmra.mxu0 %v6996
    %v7035 = vpop.f32.mrf.mxu0
    %v7036 = vadd.f32 0.0, %v7035
    %v7037 = vpop.f32.mrf.mxu0
    %v7038 = vpop.f32.mrf.mxu0
    %v7039 = vpop.f32.mrf.mxu0
    %7040 = vdwg.mxu0
    %v7042 = vsel %vm271, %v6992, 0
    %v7045 = vsel %vm271, %v6994, 0
    %7047 = vmatprep.subr.bf16.mxu0 0
    %7048 = vmatpush1.bf16.xpose.msra.mxu0 0
    %7049 = vmatprep.subr.bf16.mxu0 0
    %7050 = vmatpush1.bf16.xpose.msra.mxu0 0
    %7051 = vmatprep.subr.bf16.mxu0 0
    %7052 = vmatpush1.bf16.xpose.msra.mxu0 0
    %7053 = vmatprep.subr.bf16.mxu0 0
    %7054 = vmatpush1.bf16.xpose.msra.mxu0 0
    %7055 = vmatprep.subr.bf16.mxu0 0
    %7056 = vmatpush1.bf16.xpose.msra.mxu0 0
    %7057 = vmatprep.subr.bf16.mxu0 0
    %7058 = vmatpush1.bf16.xpose.msra.mxu0 0
    %7059 = vmatprep.subr.bf16.mxu0 0
    %7060 = vmatpush1.bf16.xpose.msra.mxu0 0
    %7061 = vmatprep.subr.bf16.mxu0 0
    %7062 = vmatpush1.bf16.xpose.msra.mxu0 %v7045
    %7063 = vmatprep.subr.bf16.mxu0 0
    %7064 = vmatpush2.bf16.xpose.msra.mxu0 0
    %7065 = vmatprep.subr.bf16.mxu0 0
    %7066 = vmatpush2.bf16.xpose.msra.mxu0 0
    %7067 = vmatprep.subr.bf16.mxu0 0
    %7068 = vmatpush2.bf16.xpose.msra.mxu0 0
    %7069 = vmatprep.subr.bf16.mxu0 0
    %7070 = vmatpush2.bf16.xpose.msra.mxu0 0
    %7071 = vmatprep.subr.bf16.mxu0 0
    %7072 = vmatpush2.bf16.xpose.msra.mxu0 0
    %7073 = vmatprep.subr.bf16.mxu0 0
    %7074 = vmatpush2.bf16.xpose.msra.mxu0 0
    %7075 = vmatprep.subr.bf16.mxu0 0
    %7076 = vmatpush2.bf16.xpose.msra.mxu0 0
    %7077 = vmatprep.subr.bf16.mxu0 0
    %7078 = vmatpush2.bf16.xpose.msra.mxu0 0
    %7079 = vmatprep.mubr.bf16.mxu0 0
    %7080 = vmatmul.mubr.bf16.gmra.mxu0 %v7042
    %v7081 = vpop.f32.mrf.mxu0
    %v7082 = vadd.f32 0.0, %v7081
    %v7083 = vpop.f32.mrf.mxu0
    %v7084 = vpop.f32.mrf.mxu0
    %v7085 = vpop.f32.mrf.mxu0
    %7086 = vdwg.mxu0
    %v7087 = vmul.f32 %v7036, 0.35355338
    %v7088 = vmul.f32 %v7082, 0.35355338
    %v7089 = vadd.f32 %v7087, %v176
    %v7090 = vadd.f32 %v7088, %v177
    %v7091 = vsel %vm271, %v7089, -inf
    %7092 = vmax.xlane.f32.xlu0 %v7091
    %v7093 = vpop.xlane.xlu0 %7092
    %v7094 = vsel %vm271, %v7090, -inf
    %7095 = vmax.xlane.f32.xlu0 %v7094
    %v7096 = vpop.xlane.xlu0 %7095
    %v7097 = vsub.f32 %v7089, %v7093
    %v7098 = vsub.f32 %v7090, %v7096
    %v7099 = vmul.f32 %v7097, 1.442695
    %v7100 = vpow.pop %v7099
    %v7101 = vmul.f32 %v7098, 1.442695
    %v7102 = vpow.pop %v7101
    %v7103 = vsel %vm271, %v7100, 0.0
    %7104 = vadd.xlane.f32.xlu0 %v7103
    %v7105 = vpop.xlane.xlu0 %7104
    %v7106 = vsel %vm271, %v7102, 0.0
    %7107 = vadd.xlane.f32.xlu0 %v7106
    %v7108 = vpop.xlane.xlu0 %7107
    %v7109 = vrcp.pop %v7105
    %v7110 = vrcp.pop %v7108
    %v7111 = vmul.f32 %v7100, %v7109
    %v7112 = vmul.f32 %v7102, %v7110
    %v7113 = vpack.c.bf16 %v7111, %v7111
    %v7114 = vpack.c.bf16 %v7112, %v7112
    %7116 = vrot.lane.b32.xlu0 %v6993, 96
    %v7117 = vpop.permute.xlu0 %7116
    %v7119 = vsel %vm271, %v7113, 0
    %v7122 = vsel %vm400, %v7117, 0
    %7124 = vmatprep.subr.bf16.mxu0 0
    %7125 = vmatpush1.bf16.msra.mxu0 0
    %7126 = vmatprep.subr.bf16.mxu0 0
    %7127 = vmatpush1.bf16.msra.mxu0 0
    %7128 = vmatprep.subr.bf16.mxu0 0
    %7129 = vmatpush1.bf16.msra.mxu0 0
    %7130 = vmatprep.subr.bf16.mxu0 0
    %7131 = vmatpush1.bf16.msra.mxu0 0
    %7132 = vmatprep.subr.bf16.mxu0 0
    %7133 = vmatpush1.bf16.msra.mxu0 0
    %7134 = vmatprep.subr.bf16.mxu0 0
    %7135 = vmatpush1.bf16.msra.mxu0 0
    %7136 = vmatprep.subr.bf16.mxu0 0
    %7137 = vmatpush1.bf16.msra.mxu0 0
    %7138 = vmatprep.subr.bf16.mxu0 0
    %7139 = vmatpush1.bf16.msra.mxu0 %v7122
    %7140 = vmatprep.subr.bf16.mxu0 0
    %7141 = vmatpush2.bf16.msra.mxu0 0
    %7142 = vmatprep.subr.bf16.mxu0 0
    %7143 = vmatpush2.bf16.msra.mxu0 0
    %7144 = vmatprep.subr.bf16.mxu0 0
    %7145 = vmatpush2.bf16.msra.mxu0 0
    %7146 = vmatprep.subr.bf16.mxu0 0
    %7147 = vmatpush2.bf16.msra.mxu0 0
    %7148 = vmatprep.subr.bf16.mxu0 0
    %7149 = vmatpush2.bf16.msra.mxu0 0
    %7150 = vmatprep.subr.bf16.mxu0 0
    %7151 = vmatpush2.bf16.msra.mxu0 0
    %7152 = vmatprep.subr.bf16.mxu0 0
    %7153 = vmatpush2.bf16.msra.mxu0 0
    %7154 = vmatprep.subr.bf16.mxu0 0
    %7155 = vmatpush2.bf16.msra.mxu0 0
    %7156 = vmatprep.mubr.bf16.mxu0 0
    %7157 = vmatmul.mubr.bf16.gmra.mxu0 %v7119
    %v7158 = vpop.f32.mrf.mxu0
    %v7159 = vadd.f32 0.0, %v7158
    %v7160 = vpop.f32.mrf.mxu0
    %v7161 = vpop.f32.mrf.mxu0
    %v7162 = vpop.f32.mrf.mxu0
    %7163 = vdwg.mxu0
    %7165 = vrot.lane.b32.xlu0 %v6994, 96
    %v7166 = vpop.permute.xlu0 %7165
    %v7168 = vsel %vm271, %v7114, 0
    %v7171 = vsel %vm400, %v7166, 0
    %7173 = vmatprep.subr.bf16.mxu0 0
    %7174 = vmatpush1.bf16.msra.mxu0 0
    %7175 = vmatprep.subr.bf16.mxu0 0
    %7176 = vmatpush1.bf16.msra.mxu0 0
    %7177 = vmatprep.subr.bf16.mxu0 0
    %7178 = vmatpush1.bf16.msra.mxu0 0
    %7179 = vmatprep.subr.bf16.mxu0 0
    %7180 = vmatpush1.bf16.msra.mxu0 0
    %7181 = vmatprep.subr.bf16.mxu0 0
    %7182 = vmatpush1.bf16.msra.mxu0 0
    %7183 = vmatprep.subr.bf16.mxu0 0
    %7184 = vmatpush1.bf16.msra.mxu0 0
    %7185 = vmatprep.subr.bf16.mxu0 0
    %7186 = vmatpush1.bf16.msra.mxu0 0
    %7187 = vmatprep.subr.bf16.mxu0 0
    %7188 = vmatpush1.bf16.msra.mxu0 %v7171
    %7189 = vmatprep.subr.bf16.mxu0 0
    %7190 = vmatpush2.bf16.msra.mxu0 0
    %7191 = vmatprep.subr.bf16.mxu0 0
    %7192 = vmatpush2.bf16.msra.mxu0 0
    %7193 = vmatprep.subr.bf16.mxu0 0
    %7194 = vmatpush2.bf16.msra.mxu0 0
    %7195 = vmatprep.subr.bf16.mxu0 0
    %7196 = vmatpush2.bf16.msra.mxu0 0
    %7197 = vmatprep.subr.bf16.mxu0 0
    %7198 = vmatpush2.bf16.msra.mxu0 0
    %7199 = vmatprep.subr.bf16.mxu0 0
    %7200 = vmatpush2.bf16.msra.mxu0 0
    %7201 = vmatprep.subr.bf16.mxu0 0
    %7202 = vmatpush2.bf16.msra.mxu0 0
    %7203 = vmatprep.subr.bf16.mxu0 0
    %7204 = vmatpush2.bf16.msra.mxu0 0
    %7205 = vmatprep.mubr.bf16.mxu0 0
    %7206 = vmatmul.mubr.bf16.gmra.mxu0 %v7168
    %v7207 = vpop.f32.mrf.mxu0
    %v7208 = vadd.f32 0.0, %v7207
    %v7209 = vpop.f32.mrf.mxu0
    %v7210 = vpop.f32.mrf.mxu0
    %v7211 = vpop.f32.mrf.mxu0
    %7212 = vdwg.mxu0
    %v7213 = vpack.c.bf16 %v7208, %v7159
    %v7214 = vpack.c.bf16 %v5656, %v5656
    %7216 = vrot.lane.b32.xlu0 %v6991, 120
    %v7217 = vpop.permute.xlu0 %7216
    %7218 = vrot.lane.b32.xlu0 %v6993, 120
    %v7219 = vpop.permute.xlu0 %7218
    %v7221 = vsel %vm271, %v7217, 0
    %v7224 = vsel %vm271, %v7219, 0
    %7226 = vmatprep.subr.bf16.mxu0 0
    %7227 = vmatpush1.bf16.xpose.msra.mxu0 0
    %7228 = vmatprep.subr.bf16.mxu0 0
    %7229 = vmatpush1.bf16.xpose.msra.mxu0 0
    %7230 = vmatprep.subr.bf16.mxu0 0
    %7231 = vmatpush1.bf16.xpose.msra.mxu0 0
    %7232 = vmatprep.subr.bf16.mxu0 0
    %7233 = vmatpush1.bf16.xpose.msra.mxu0 0
    %7234 = vmatprep.subr.bf16.mxu0 0
    %7235 = vmatpush1.bf16.xpose.msra.mxu0 0
    %7236 = vmatprep.subr.bf16.mxu0 0
    %7237 = vmatpush1.bf16.xpose.msra.mxu0 0
    %7238 = vmatprep.subr.bf16.mxu0 0
    %7239 = vmatpush1.bf16.xpose.msra.mxu0 0
    %7240 = vmatprep.subr.bf16.mxu0 0
    %7241 = vmatpush1.bf16.xpose.msra.mxu0 %v7224
    %7242 = vmatprep.subr.bf16.mxu0 0
    %7243 = vmatpush2.bf16.xpose.msra.mxu0 0
    %7244 = vmatprep.subr.bf16.mxu0 0
    %7245 = vmatpush2.bf16.xpose.msra.mxu0 0
    %7246 = vmatprep.subr.bf16.mxu0 0
    %7247 = vmatpush2.bf16.xpose.msra.mxu0 0
    %7248 = vmatprep.subr.bf16.mxu0 0
    %7249 = vmatpush2.bf16.xpose.msra.mxu0 0
    %7250 = vmatprep.subr.bf16.mxu0 0
    %7251 = vmatpush2.bf16.xpose.msra.mxu0 0
    %7252 = vmatprep.subr.bf16.mxu0 0
    %7253 = vmatpush2.bf16.xpose.msra.mxu0 0
    %7254 = vmatprep.subr.bf16.mxu0 0
    %7255 = vmatpush2.bf16.xpose.msra.mxu0 0
    %7256 = vmatprep.subr.bf16.mxu0 0
    %7257 = vmatpush2.bf16.xpose.msra.mxu0 0
    %7258 = vmatprep.mubr.bf16.mxu0 0
    %7259 = vmatmul.mubr.bf16.gmra.mxu0 %v7221
    %v7260 = vpop.f32.mrf.mxu0
    %v7261 = vadd.f32 0.0, %v7260
    %v7262 = vpop.f32.mrf.mxu0
    %v7263 = vpop.f32.mrf.mxu0
    %v7264 = vpop.f32.mrf.mxu0
    %7265 = vdwg.mxu0
    %7267 = vrot.lane.b32.xlu0 %v6992, 120
    %v7268 = vpop.permute.xlu0 %7267
    %7269 = vrot.lane.b32.xlu0 %v6994, 120
    %v7270 = vpop.permute.xlu0 %7269
    %v7272 = vsel %vm271, %v7268, 0
    %v7275 = vsel %vm271, %v7270, 0
    %7277 = vmatprep.subr.bf16.mxu0 0
    %7278 = vmatpush1.bf16.xpose.msra.mxu0 0
    %7279 = vmatprep.subr.bf16.mxu0 0
    %7280 = vmatpush1.bf16.xpose.msra.mxu0 0
    %7281 = vmatprep.subr.bf16.mxu0 0
    %7282 = vmatpush1.bf16.xpose.msra.mxu0 0
    %7283 = vmatprep.subr.bf16.mxu0 0
    %7284 = vmatpush1.bf16.xpose.msra.mxu0 0
    %7285 = vmatprep.subr.bf16.mxu0 0
    %7286 = vmatpush1.bf16.xpose.msra.mxu0 0
    %7287 = vmatprep.subr.bf16.mxu0 0
    %7288 = vmatpush1.bf16.xpose.msra.mxu0 0
    %7289 = vmatprep.subr.bf16.mxu0 0
    %7290 = vmatpush1.bf16.xpose.msra.mxu0 0
    %7291 = vmatprep.subr.bf16.mxu0 0
    %7292 = vmatpush1.bf16.xpose.msra.mxu0 %v7275
    %7293 = vmatprep.subr.bf16.mxu0 0
    %7294 = vmatpush2.bf16.xpose.msra.mxu0 0
    %7295 = vmatprep.subr.bf16.mxu0 0
    %7296 = vmatpush2.bf16.xpose.msra.mxu0 0
    %7297 = vmatprep.subr.bf16.mxu0 0
    %7298 = vmatpush2.bf16.xpose.msra.mxu0 0
    %7299 = vmatprep.subr.bf16.mxu0 0
    %7300 = vmatpush2.bf16.xpose.msra.mxu0 0
    %7301 = vmatprep.subr.bf16.mxu0 0
    %7302 = vmatpush2.bf16.xpose.msra.mxu0 0
    %7303 = vmatprep.subr.bf16.mxu0 0
    %7304 = vmatpush2.bf16.xpose.msra.mxu0 0
    %7305 = vmatprep.subr.bf16.mxu0 0
    %7306 = vmatpush2.bf16.xpose.msra.mxu0 0
    %7307 = vmatprep.subr.bf16.mxu0 0
    %7308 = vmatpush2.bf16.xpose.msra.mxu0 0
    %7309 = vmatprep.mubr.bf16.mxu0 0
    %7310 = vmatmul.mubr.bf16.gmra.mxu0 %v7272
    %v7311 = vpop.f32.mrf.mxu0
    %v7312 = vadd.f32 0.0, %v7311
    %v7313 = vpop.f32.mrf.mxu0
    %v7314 = vpop.f32.mrf.mxu0
    %v7315 = vpop.f32.mrf.mxu0
    %7316 = vdwg.mxu0
    %v7317 = vmul.f32 %v7261, 0.35355338
    %v7318 = vmul.f32 %v7312, 0.35355338
    %v7319 = vadd.f32 %v7317, %v176
    %v7320 = vadd.f32 %v7318, %v177
    %v7321 = vsel %vm271, %v7319, -inf
    %7322 = vmax.xlane.f32.xlu0 %v7321
    %v7323 = vpop.xlane.xlu0 %7322
    %v7324 = vsel %vm271, %v7320, -inf
    %7325 = vmax.xlane.f32.xlu0 %v7324
    %v7326 = vpop.xlane.xlu0 %7325
    %v7327 = vsub.f32 %v7319, %v7323
    %v7328 = vsub.f32 %v7320, %v7326
    %v7329 = vmul.f32 %v7327, 1.442695
    %v7330 = vpow.pop %v7329
    %v7331 = vmul.f32 %v7328, 1.442695
    %v7332 = vpow.pop %v7331
    %v7333 = vsel %vm271, %v7330, 0.0
    %7334 = vadd.xlane.f32.xlu0 %v7333
    %v7335 = vpop.xlane.xlu0 %7334
    %v7336 = vsel %vm271, %v7332, 0.0
    %7337 = vadd.xlane.f32.xlu0 %v7336
    %v7338 = vpop.xlane.xlu0 %7337
    %v7339 = vrcp.pop %v7335
    %v7340 = vrcp.pop %v7338
    %v7341 = vmul.f32 %v7330, %v7339
    %v7342 = vmul.f32 %v7332, %v7340
    %v7343 = vpack.c.bf16 %v7341, %v7341
    %v7344 = vpack.c.bf16 %v7342, %v7342
    %7345 = vrot.lane.b32.xlu0 %v6993, 88
    %v7346 = vpop.permute.xlu0 %7345
    %v7348 = vsel %vm271, %v7343, 0
    %v7351 = vsel %vm400, %v7346, 0
    %7353 = vmatprep.subr.bf16.mxu0 0
    %7354 = vmatpush1.bf16.msra.mxu0 0
    %7355 = vmatprep.subr.bf16.mxu0 0
    %7356 = vmatpush1.bf16.msra.mxu0 0
    %7357 = vmatprep.subr.bf16.mxu0 0
    %7358 = vmatpush1.bf16.msra.mxu0 0
    %7359 = vmatprep.subr.bf16.mxu0 0
    %7360 = vmatpush1.bf16.msra.mxu0 0
    %7361 = vmatprep.subr.bf16.mxu0 0
    %7362 = vmatpush1.bf16.msra.mxu0 0
    %7363 = vmatprep.subr.bf16.mxu0 0
    %7364 = vmatpush1.bf16.msra.mxu0 0
    %7365 = vmatprep.subr.bf16.mxu0 0
    %7366 = vmatpush1.bf16.msra.mxu0 0
    %7367 = vmatprep.subr.bf16.mxu0 0
    %7368 = vmatpush1.bf16.msra.mxu0 %v7351
    %7369 = vmatprep.subr.bf16.mxu0 0
    %7370 = vmatpush2.bf16.msra.mxu0 0
    %7371 = vmatprep.subr.bf16.mxu0 0
    %7372 = vmatpush2.bf16.msra.mxu0 0
    %7373 = vmatprep.subr.bf16.mxu0 0
    %7374 = vmatpush2.bf16.msra.mxu0 0
    %7375 = vmatprep.subr.bf16.mxu0 0
    %7376 = vmatpush2.bf16.msra.mxu0 0
    %7377 = vmatprep.subr.bf16.mxu0 0
    %7378 = vmatpush2.bf16.msra.mxu0 0
    %7379 = vmatprep.subr.bf16.mxu0 0
    %7380 = vmatpush2.bf16.msra.mxu0 0
    %7381 = vmatprep.subr.bf16.mxu0 0
    %7382 = vmatpush2.bf16.msra.mxu0 0
    %7383 = vmatprep.subr.bf16.mxu0 0
    %7384 = vmatpush2.bf16.msra.mxu0 0
    %7385 = vmatprep.mubr.bf16.mxu0 0
    %7386 = vmatmul.mubr.bf16.gmra.mxu0 %v7348
    %v7387 = vpop.f32.mrf.mxu0
    %v7388 = vadd.f32 0.0, %v7387
    %v7389 = vpop.f32.mrf.mxu0
    %v7390 = vpop.f32.mrf.mxu0
    %v7391 = vpop.f32.mrf.mxu0
    %7392 = vdwg.mxu0
    %7393 = vrot.lane.b32.xlu0 %v6994, 88
    %v7394 = vpop.permute.xlu0 %7393
    %v7396 = vsel %vm271, %v7344, 0
    %v7399 = vsel %vm400, %v7394, 0
    %7401 = vmatprep.subr.bf16.mxu0 0
    %7402 = vmatpush1.bf16.msra.mxu0 0
    %7403 = vmatprep.subr.bf16.mxu0 0
    %7404 = vmatpush1.bf16.msra.mxu0 0
    %7405 = vmatprep.subr.bf16.mxu0 0
    %7406 = vmatpush1.bf16.msra.mxu0 0
    %7407 = vmatprep.subr.bf16.mxu0 0
    %7408 = vmatpush1.bf16.msra.mxu0 0
    %7409 = vmatprep.subr.bf16.mxu0 0
    %7410 = vmatpush1.bf16.msra.mxu0 0
    %7411 = vmatprep.subr.bf16.mxu0 0
    %7412 = vmatpush1.bf16.msra.mxu0 0
    %7413 = vmatprep.subr.bf16.mxu0 0
    %7414 = vmatpush1.bf16.msra.mxu0 0
    %7415 = vmatprep.subr.bf16.mxu0 0
    %7416 = vmatpush1.bf16.msra.mxu0 %v7399
    %7417 = vmatprep.subr.bf16.mxu0 0
    %7418 = vmatpush2.bf16.msra.mxu0 0
    %7419 = vmatprep.subr.bf16.mxu0 0
    %7420 = vmatpush2.bf16.msra.mxu0 0
    %7421 = vmatprep.subr.bf16.mxu0 0
    %7422 = vmatpush2.bf16.msra.mxu0 0
    %7423 = vmatprep.subr.bf16.mxu0 0
    %7424 = vmatpush2.bf16.msra.mxu0 0
    %7425 = vmatprep.subr.bf16.mxu0 0
    %7426 = vmatpush2.bf16.msra.mxu0 0
    %7427 = vmatprep.subr.bf16.mxu0 0
    %7428 = vmatpush2.bf16.msra.mxu0 0
    %7429 = vmatprep.subr.bf16.mxu0 0
    %7430 = vmatpush2.bf16.msra.mxu0 0
    %7431 = vmatprep.subr.bf16.mxu0 0
    %7432 = vmatpush2.bf16.msra.mxu0 0
    %7433 = vmatprep.mubr.bf16.mxu0 0
    %7434 = vmatmul.mubr.bf16.gmra.mxu0 %v7396
    %v7435 = vpop.f32.mrf.mxu0
    %v7436 = vadd.f32 0.0, %v7435
    %v7437 = vpop.f32.mrf.mxu0
    %v7438 = vpop.f32.mrf.mxu0
    %v7439 = vpop.f32.mrf.mxu0
    %7440 = vdwg.mxu0
    %v7441 = vpack.c.bf16 %v7436, %v7388
    %v7442 = vpack.c.bf16 %v5657, %v5657
    %v7444 = vsel %vm271, %v7441, 0
    %v7447 = vsel %vm400, %v7442, 0
    %7449 = vmatprep.subr.bf16.mxu0 0
    %7450 = vmatpush1.bf16.msra.mxu0 0
    %7451 = vmatprep.subr.bf16.mxu0 0
    %7452 = vmatpush1.bf16.msra.mxu0 0
    %7453 = vmatprep.subr.bf16.mxu0 0
    %7454 = vmatpush1.bf16.msra.mxu0 0
    %7455 = vmatprep.subr.bf16.mxu0 0
    %7456 = vmatpush1.bf16.msra.mxu0 0
    %7457 = vmatprep.subr.bf16.mxu0 0
    %7458 = vmatpush1.bf16.msra.mxu0 0
    %7459 = vmatprep.subr.bf16.mxu0 0
    %7460 = vmatpush1.bf16.msra.mxu0 0
    %7461 = vmatprep.subr.bf16.mxu0 0
    %7462 = vmatpush1.bf16.msra.mxu0 0
    %7463 = vmatprep.subr.bf16.mxu0 0
    %7464 = vmatpush1.bf16.msra.mxu0 %v7447
    %7465 = vmatprep.subr.bf16.mxu0 0
    %7466 = vmatpush2.bf16.msra.mxu0 0
    %7467 = vmatprep.subr.bf16.mxu0 0
    %7468 = vmatpush2.bf16.msra.mxu0 0
    %7469 = vmatprep.subr.bf16.mxu0 0
    %7470 = vmatpush2.bf16.msra.mxu0 0
    %7471 = vmatprep.subr.bf16.mxu0 0
    %7472 = vmatpush2.bf16.msra.mxu0 0
    %7473 = vmatprep.subr.bf16.mxu0 0
    %7474 = vmatpush2.bf16.msra.mxu0 0
    %7475 = vmatprep.subr.bf16.mxu0 0
    %7476 = vmatpush2.bf16.msra.mxu0 0
    %7477 = vmatprep.subr.bf16.mxu0 0
    %7478 = vmatpush2.bf16.msra.mxu0 0
    %7479 = vmatprep.subr.bf16.mxu0 0
    %7480 = vmatpush2.bf16.msra.mxu0 0
    %7481 = vmatprep.mubr.bf16.mxu0 0
    %7482 = vmatmul.mubr.bf16.gmra.mxu0 %v7444
    %v7483 = vpop.f32.mrf.mxu0
    %v7484 = vadd.f32 0.0, %v7483
    %v7485 = vpop.f32.mrf.mxu0
    %v7486 = vpop.f32.mrf.mxu0
    %v7487 = vadd.f32 0.0, %v7486
    %v7488 = vpop.f32.mrf.mxu0
    %7489 = vdwg.mxu0
    %v7491 = vsel %vm271, %v7213, 0
    %v7494 = vsel %vm400, %v7214, 0
    %7496 = vmatprep.subr.bf16.mxu0 0
    %7497 = vmatpush1.bf16.msra.mxu0 0
    %7498 = vmatprep.subr.bf16.mxu0 0
    %7499 = vmatpush1.bf16.msra.mxu0 0
    %7500 = vmatprep.subr.bf16.mxu0 0
    %7501 = vmatpush1.bf16.msra.mxu0 0
    %7502 = vmatprep.subr.bf16.mxu0 0
    %7503 = vmatpush1.bf16.msra.mxu0 0
    %7504 = vmatprep.subr.bf16.mxu0 0
    %7505 = vmatpush1.bf16.msra.mxu0 0
    %7506 = vmatprep.subr.bf16.mxu0 0
    %7507 = vmatpush1.bf16.msra.mxu0 0
    %7508 = vmatprep.subr.bf16.mxu0 0
    %7509 = vmatpush1.bf16.msra.mxu0 0
    %7510 = vmatprep.subr.bf16.mxu0 0
    %7511 = vmatpush1.bf16.msra.mxu0 %v7494
    %7512 = vmatprep.subr.bf16.mxu0 0
    %7513 = vmatpush2.bf16.msra.mxu0 0
    %7514 = vmatprep.subr.bf16.mxu0 0
    %7515 = vmatpush2.bf16.msra.mxu0 0
    %7516 = vmatprep.subr.bf16.mxu0 0
    %7517 = vmatpush2.bf16.msra.mxu0 0
    %7518 = vmatprep.subr.bf16.mxu0 0
    %7519 = vmatpush2.bf16.msra.mxu0 0
    %7520 = vmatprep.subr.bf16.mxu0 0
    %7521 = vmatpush2.bf16.msra.mxu0 0
    %7522 = vmatprep.subr.bf16.mxu0 0
    %7523 = vmatpush2.bf16.msra.mxu0 0
    %7524 = vmatprep.subr.bf16.mxu0 0
    %7525 = vmatpush2.bf16.msra.mxu0 0
    %7526 = vmatprep.subr.bf16.mxu0 0
    %7527 = vmatpush2.bf16.msra.mxu0 0
    %7528 = vmatprep.mubr.bf16.mxu0 0
    %7529 = vmatmul.mubr.bf16.gmra.mxu0 %v7491
    %v7530 = vpop.f32.mrf.mxu0
    %v7531 = vadd.f32 %v7484, %v7530
    %v7532 = vpop.f32.mrf.mxu0
    %v7533 = vpop.f32.mrf.mxu0
    %v7534 = vadd.f32 %v7487, %v7533
    %v7535 = vpop.f32.mrf.mxu0
    %7536 = vdwg.mxu0
    %7537 = vrot.lane.b32.xlu0 %v6991, 112
    %v7538 = vpop.permute.xlu0 %7537
    %7539 = vrot.lane.b32.xlu0 %v6993, 112
    %v7540 = vpop.permute.xlu0 %7539
    %v7542 = vsel %vm271, %v7538, 0
    %v7545 = vsel %vm271, %v7540, 0
    %7547 = vmatprep.subr.bf16.mxu0 0
    %7548 = vmatpush1.bf16.xpose.msra.mxu0 0
    %7549 = vmatprep.subr.bf16.mxu0 0
    %7550 = vmatpush1.bf16.xpose.msra.mxu0 0
    %7551 = vmatprep.subr.bf16.mxu0 0
    %7552 = vmatpush1.bf16.xpose.msra.mxu0 0
    %7553 = vmatprep.subr.bf16.mxu0 0
    %7554 = vmatpush1.bf16.xpose.msra.mxu0 0
    %7555 = vmatprep.subr.bf16.mxu0 0
    %7556 = vmatpush1.bf16.xpose.msra.mxu0 0
    %7557 = vmatprep.subr.bf16.mxu0 0
    %7558 = vmatpush1.bf16.xpose.msra.mxu0 0
    %7559 = vmatprep.subr.bf16.mxu0 0
    %7560 = vmatpush1.bf16.xpose.msra.mxu0 0
    %7561 = vmatprep.subr.bf16.mxu0 0
    %7562 = vmatpush1.bf16.xpose.msra.mxu0 %v7545
    %7563 = vmatprep.subr.bf16.mxu0 0
    %7564 = vmatpush2.bf16.xpose.msra.mxu0 0
    %7565 = vmatprep.subr.bf16.mxu0 0
    %7566 = vmatpush2.bf16.xpose.msra.mxu0 0
    %7567 = vmatprep.subr.bf16.mxu0 0
    %7568 = vmatpush2.bf16.xpose.msra.mxu0 0
    %7569 = vmatprep.subr.bf16.mxu0 0
    %7570 = vmatpush2.bf16.xpose.msra.mxu0 0
    %7571 = vmatprep.subr.bf16.mxu0 0
    %7572 = vmatpush2.bf16.xpose.msra.mxu0 0
    %7573 = vmatprep.subr.bf16.mxu0 0
    %7574 = vmatpush2.bf16.xpose.msra.mxu0 0
    %7575 = vmatprep.subr.bf16.mxu0 0
    %7576 = vmatpush2.bf16.xpose.msra.mxu0 0
    %7577 = vmatprep.subr.bf16.mxu0 0
    %7578 = vmatpush2.bf16.xpose.msra.mxu0 0
    %7579 = vmatprep.mubr.bf16.mxu0 0
    %7580 = vmatmul.mubr.bf16.gmra.mxu0 %v7542
    %v7581 = vpop.f32.mrf.mxu0
    %v7582 = vadd.f32 0.0, %v7581
    %v7583 = vpop.f32.mrf.mxu0
    %v7584 = vpop.f32.mrf.mxu0
    %v7585 = vpop.f32.mrf.mxu0
    %7586 = vdwg.mxu0
    %7587 = vrot.lane.b32.xlu0 %v6992, 112
    %v7588 = vpop.permute.xlu0 %7587
    %7589 = vrot.lane.b32.xlu0 %v6994, 112
    %v7590 = vpop.permute.xlu0 %7589
    %v7592 = vsel %vm271, %v7588, 0
    %v7595 = vsel %vm271, %v7590, 0
    %7597 = vmatprep.subr.bf16.mxu0 0
    %7598 = vmatpush1.bf16.xpose.msra.mxu0 0
    %7599 = vmatprep.subr.bf16.mxu0 0
    %7600 = vmatpush1.bf16.xpose.msra.mxu0 0
    %7601 = vmatprep.subr.bf16.mxu0 0
    %7602 = vmatpush1.bf16.xpose.msra.mxu0 0
    %7603 = vmatprep.subr.bf16.mxu0 0
    %7604 = vmatpush1.bf16.xpose.msra.mxu0 0
    %7605 = vmatprep.subr.bf16.mxu0 0
    %7606 = vmatpush1.bf16.xpose.msra.mxu0 0
    %7607 = vmatprep.subr.bf16.mxu0 0
    %7608 = vmatpush1.bf16.xpose.msra.mxu0 0
    %7609 = vmatprep.subr.bf16.mxu0 0
    %7610 = vmatpush1.bf16.xpose.msra.mxu0 0
    %7611 = vmatprep.subr.bf16.mxu0 0
    %7612 = vmatpush1.bf16.xpose.msra.mxu0 %v7595
    %7613 = vmatprep.subr.bf16.mxu0 0
    %7614 = vmatpush2.bf16.xpose.msra.mxu0 0
    %7615 = vmatprep.subr.bf16.mxu0 0
    %7616 = vmatpush2.bf16.xpose.msra.mxu0 0
    %7617 = vmatprep.subr.bf16.mxu0 0
    %7618 = vmatpush2.bf16.xpose.msra.mxu0 0
    %7619 = vmatprep.subr.bf16.mxu0 0
    %7620 = vmatpush2.bf16.xpose.msra.mxu0 0
    %7621 = vmatprep.subr.bf16.mxu0 0
    %7622 = vmatpush2.bf16.xpose.msra.mxu0 0
    %7623 = vmatprep.subr.bf16.mxu0 0
    %7624 = vmatpush2.bf16.xpose.msra.mxu0 0
    %7625 = vmatprep.subr.bf16.mxu0 0
    %7626 = vmatpush2.bf16.xpose.msra.mxu0 0
    %7627 = vmatprep.subr.bf16.mxu0 0
    %7628 = vmatpush2.bf16.xpose.msra.mxu0 0
    %7629 = vmatprep.mubr.bf16.mxu0 0
    %7630 = vmatmul.mubr.bf16.gmra.mxu0 %v7592
    %v7631 = vpop.f32.mrf.mxu0
    %v7632 = vadd.f32 0.0, %v7631
    %v7633 = vpop.f32.mrf.mxu0
    %v7634 = vpop.f32.mrf.mxu0
    %v7635 = vpop.f32.mrf.mxu0
    %7636 = vdwg.mxu0
    %v7637 = vmul.f32 %v7582, 0.35355338
    %v7638 = vmul.f32 %v7632, 0.35355338
    %v7639 = vadd.f32 %v7637, %v176
    %v7640 = vadd.f32 %v7638, %v177
    %v7641 = vsel %vm271, %v7639, -inf
    %7642 = vmax.xlane.f32.xlu0 %v7641
    %v7643 = vpop.xlane.xlu0 %7642
    %v7644 = vsel %vm271, %v7640, -inf
    %7645 = vmax.xlane.f32.xlu0 %v7644
    %v7646 = vpop.xlane.xlu0 %7645
    %v7647 = vsub.f32 %v7639, %v7643
    %v7648 = vsub.f32 %v7640, %v7646
    %v7649 = vmul.f32 %v7647, 1.442695
    %v7650 = vpow.pop %v7649
    %v7651 = vmul.f32 %v7648, 1.442695
    %v7652 = vpow.pop %v7651
    %v7653 = vsel %vm271, %v7650, 0.0
    %7654 = vadd.xlane.f32.xlu0 %v7653
    %v7655 = vpop.xlane.xlu0 %7654
    %v7656 = vsel %vm271, %v7652, 0.0
    %7657 = vadd.xlane.f32.xlu0 %v7656
    %v7658 = vpop.xlane.xlu0 %7657
    %v7659 = vrcp.pop %v7655
    %v7660 = vrcp.pop %v7658
    %v7661 = vmul.f32 %v7650, %v7659
    %v7662 = vmul.f32 %v7652, %v7660
    %v7663 = vpack.c.bf16 %v7661, %v7661
    %v7664 = vpack.c.bf16 %v7662, %v7662
    %7665 = vrot.lane.b32.xlu0 %v6993, 80
    %v7666 = vpop.permute.xlu0 %7665
    %v7668 = vsel %vm271, %v7663, 0
    %v7671 = vsel %vm400, %v7666, 0
    %7673 = vmatprep.subr.bf16.mxu0 0
    %7674 = vmatpush1.bf16.msra.mxu0 0
    %7675 = vmatprep.subr.bf16.mxu0 0
    %7676 = vmatpush1.bf16.msra.mxu0 0
    %7677 = vmatprep.subr.bf16.mxu0 0
    %7678 = vmatpush1.bf16.msra.mxu0 0
    %7679 = vmatprep.subr.bf16.mxu0 0
    %7680 = vmatpush1.bf16.msra.mxu0 0
    %7681 = vmatprep.subr.bf16.mxu0 0
    %7682 = vmatpush1.bf16.msra.mxu0 0
    %7683 = vmatprep.subr.bf16.mxu0 0
    %7684 = vmatpush1.bf16.msra.mxu0 0
    %7685 = vmatprep.subr.bf16.mxu0 0
    %7686 = vmatpush1.bf16.msra.mxu0 0
    %7687 = vmatprep.subr.bf16.mxu0 0
    %7688 = vmatpush1.bf16.msra.mxu0 %v7671
    %7689 = vmatprep.subr.bf16.mxu0 0
    %7690 = vmatpush2.bf16.msra.mxu0 0
    %7691 = vmatprep.subr.bf16.mxu0 0
    %7692 = vmatpush2.bf16.msra.mxu0 0
    %7693 = vmatprep.subr.bf16.mxu0 0
    %7694 = vmatpush2.bf16.msra.mxu0 0
    %7695 = vmatprep.subr.bf16.mxu0 0
    %7696 = vmatpush2.bf16.msra.mxu0 0
    %7697 = vmatprep.subr.bf16.mxu0 0
    %7698 = vmatpush2.bf16.msra.mxu0 0
    %7699 = vmatprep.subr.bf16.mxu0 0
    %7700 = vmatpush2.bf16.msra.mxu0 0
    %7701 = vmatprep.subr.bf16.mxu0 0
    %7702 = vmatpush2.bf16.msra.mxu0 0
    %7703 = vmatprep.subr.bf16.mxu0 0
    %7704 = vmatpush2.bf16.msra.mxu0 0
    %7705 = vmatprep.mubr.bf16.mxu0 0
    %7706 = vmatmul.mubr.bf16.gmra.mxu0 %v7668
    %v7707 = vpop.f32.mrf.mxu0
    %v7708 = vadd.f32 0.0, %v7707
    %v7709 = vpop.f32.mrf.mxu0
    %v7710 = vpop.f32.mrf.mxu0
    %v7711 = vpop.f32.mrf.mxu0
    %7712 = vdwg.mxu0
    %7713 = vrot.lane.b32.xlu0 %v6994, 80
    %v7714 = vpop.permute.xlu0 %7713
    %v7716 = vsel %vm271, %v7664, 0
    %v7719 = vsel %vm400, %v7714, 0
    %7721 = vmatprep.subr.bf16.mxu0 0
    %7722 = vmatpush1.bf16.msra.mxu0 0
    %7723 = vmatprep.subr.bf16.mxu0 0
    %7724 = vmatpush1.bf16.msra.mxu0 0
    %7725 = vmatprep.subr.bf16.mxu0 0
    %7726 = vmatpush1.bf16.msra.mxu0 0
    %7727 = vmatprep.subr.bf16.mxu0 0
    %7728 = vmatpush1.bf16.msra.mxu0 0
    %7729 = vmatprep.subr.bf16.mxu0 0
    %7730 = vmatpush1.bf16.msra.mxu0 0
    %7731 = vmatprep.subr.bf16.mxu0 0
    %7732 = vmatpush1.bf16.msra.mxu0 0
    %7733 = vmatprep.subr.bf16.mxu0 0
    %7734 = vmatpush1.bf16.msra.mxu0 0
    %7735 = vmatprep.subr.bf16.mxu0 0
    %7736 = vmatpush1.bf16.msra.mxu0 %v7719
    %7737 = vmatprep.subr.bf16.mxu0 0
    %7738 = vmatpush2.bf16.msra.mxu0 0
    %7739 = vmatprep.subr.bf16.mxu0 0
    %7740 = vmatpush2.bf16.msra.mxu0 0
    %7741 = vmatprep.subr.bf16.mxu0 0
    %7742 = vmatpush2.bf16.msra.mxu0 0
    %7743 = vmatprep.subr.bf16.mxu0 0
    %7744 = vmatpush2.bf16.msra.mxu0 0
    %7745 = vmatprep.subr.bf16.mxu0 0
    %7746 = vmatpush2.bf16.msra.mxu0 0
    %7747 = vmatprep.subr.bf16.mxu0 0
    %7748 = vmatpush2.bf16.msra.mxu0 0
    %7749 = vmatprep.subr.bf16.mxu0 0
    %7750 = vmatpush2.bf16.msra.mxu0 0
    %7751 = vmatprep.subr.bf16.mxu0 0
    %7752 = vmatpush2.bf16.msra.mxu0 0
    %7753 = vmatprep.mubr.bf16.mxu0 0
    %7754 = vmatmul.mubr.bf16.gmra.mxu0 %v7716
    %v7755 = vpop.f32.mrf.mxu0
    %v7756 = vadd.f32 0.0, %v7755
    %v7757 = vpop.f32.mrf.mxu0
    %v7758 = vpop.f32.mrf.mxu0
    %v7759 = vpop.f32.mrf.mxu0
    %7760 = vdwg.mxu0
    %v7761 = vpack.c.bf16 %v7756, %v7708
    %v7762 = vpack.c.bf16 %v5658, %v5658
    %v7764 = vsel %vm271, %v7761, 0
    %v7767 = vsel %vm400, %v7762, 0
    %7769 = vmatprep.subr.bf16.mxu0 0
    %7770 = vmatpush1.bf16.msra.mxu0 0
    %7771 = vmatprep.subr.bf16.mxu0 0
    %7772 = vmatpush1.bf16.msra.mxu0 0
    %7773 = vmatprep.subr.bf16.mxu0 0
    %7774 = vmatpush1.bf16.msra.mxu0 0
    %7775 = vmatprep.subr.bf16.mxu0 0
    %7776 = vmatpush1.bf16.msra.mxu0 0
    %7777 = vmatprep.subr.bf16.mxu0 0
    %7778 = vmatpush1.bf16.msra.mxu0 0
    %7779 = vmatprep.subr.bf16.mxu0 0
    %7780 = vmatpush1.bf16.msra.mxu0 0
    %7781 = vmatprep.subr.bf16.mxu0 0
    %7782 = vmatpush1.bf16.msra.mxu0 0
    %7783 = vmatprep.subr.bf16.mxu0 0
    %7784 = vmatpush1.bf16.msra.mxu0 %v7767
    %7785 = vmatprep.subr.bf16.mxu0 0
    %7786 = vmatpush2.bf16.msra.mxu0 0
    %7787 = vmatprep.subr.bf16.mxu0 0
    %7788 = vmatpush2.bf16.msra.mxu0 0
    %7789 = vmatprep.subr.bf16.mxu0 0
    %7790 = vmatpush2.bf16.msra.mxu0 0
    %7791 = vmatprep.subr.bf16.mxu0 0
    %7792 = vmatpush2.bf16.msra.mxu0 0
    %7793 = vmatprep.subr.bf16.mxu0 0
    %7794 = vmatpush2.bf16.msra.mxu0 0
    %7795 = vmatprep.subr.bf16.mxu0 0
    %7796 = vmatpush2.bf16.msra.mxu0 0
    %7797 = vmatprep.subr.bf16.mxu0 0
    %7798 = vmatpush2.bf16.msra.mxu0 0
    %7799 = vmatprep.subr.bf16.mxu0 0
    %7800 = vmatpush2.bf16.msra.mxu0 0
    %7801 = vmatprep.mubr.bf16.mxu0 0
    %7802 = vmatmul.mubr.bf16.gmra.mxu0 %v7764
    %v7803 = vpop.f32.mrf.mxu0
    %v7804 = vadd.f32 0.0, %v7803
    %v7805 = vpop.f32.mrf.mxu0
    %v7806 = vpop.f32.mrf.mxu0
    %v7807 = vadd.f32 0.0, %v7806
    %v7808 = vpop.f32.mrf.mxu0
    %7809 = vdwg.mxu0
    %v7810 = vadd.f32 %v7531, %v7804
    %v7811 = vadd.f32 %v7534, %v7807
    %7812 = vrot.lane.b32.xlu0 %v6991, 104
    %v7813 = vpop.permute.xlu0 %7812
    %7814 = vrot.lane.b32.xlu0 %v6993, 104
    %v7815 = vpop.permute.xlu0 %7814
    %v7817 = vsel %vm271, %v7813, 0
    %v7820 = vsel %vm271, %v7815, 0
    %7822 = vmatprep.subr.bf16.mxu0 0
    %7823 = vmatpush1.bf16.xpose.msra.mxu0 0
    %7824 = vmatprep.subr.bf16.mxu0 0
    %7825 = vmatpush1.bf16.xpose.msra.mxu0 0
    %7826 = vmatprep.subr.bf16.mxu0 0
    %7827 = vmatpush1.bf16.xpose.msra.mxu0 0
    %7828 = vmatprep.subr.bf16.mxu0 0
    %7829 = vmatpush1.bf16.xpose.msra.mxu0 0
    %7830 = vmatprep.subr.bf16.mxu0 0
    %7831 = vmatpush1.bf16.xpose.msra.mxu0 0
    %7832 = vmatprep.subr.bf16.mxu0 0
    %7833 = vmatpush1.bf16.xpose.msra.mxu0 0
    %7834 = vmatprep.subr.bf16.mxu0 0
    %7835 = vmatpush1.bf16.xpose.msra.mxu0 0
    %7836 = vmatprep.subr.bf16.mxu0 0
    %7837 = vmatpush1.bf16.xpose.msra.mxu0 %v7820
    %7838 = vmatprep.subr.bf16.mxu0 0
    %7839 = vmatpush2.bf16.xpose.msra.mxu0 0
    %7840 = vmatprep.subr.bf16.mxu0 0
    %7841 = vmatpush2.bf16.xpose.msra.mxu0 0
    %7842 = vmatprep.subr.bf16.mxu0 0
    %7843 = vmatpush2.bf16.xpose.msra.mxu0 0
    %7844 = vmatprep.subr.bf16.mxu0 0
    %7845 = vmatpush2.bf16.xpose.msra.mxu0 0
    %7846 = vmatprep.subr.bf16.mxu0 0
    %7847 = vmatpush2.bf16.xpose.msra.mxu0 0
    %7848 = vmatprep.subr.bf16.mxu0 0
    %7849 = vmatpush2.bf16.xpose.msra.mxu0 0
    %7850 = vmatprep.subr.bf16.mxu0 0
    %7851 = vmatpush2.bf16.xpose.msra.mxu0 0
    %7852 = vmatprep.subr.bf16.mxu0 0
    %7853 = vmatpush2.bf16.xpose.msra.mxu0 0
    %7854 = vmatprep.mubr.bf16.mxu0 0
    %7855 = vmatmul.mubr.bf16.gmra.mxu0 %v7817
    %v7856 = vpop.f32.mrf.mxu0
    %v7857 = vadd.f32 0.0, %v7856
    %v7858 = vpop.f32.mrf.mxu0
    %v7859 = vpop.f32.mrf.mxu0
    %v7860 = vpop.f32.mrf.mxu0
    %7861 = vdwg.mxu0
    %7862 = vrot.lane.b32.xlu0 %v6992, 104
    %v7863 = vpop.permute.xlu0 %7862
    %7864 = vrot.lane.b32.xlu0 %v6994, 104
    %v7865 = vpop.permute.xlu0 %7864
    %v7867 = vsel %vm271, %v7863, 0
    %v7870 = vsel %vm271, %v7865, 0
    %7872 = vmatprep.subr.bf16.mxu0 0
    %7873 = vmatpush1.bf16.xpose.msra.mxu0 0
    %7874 = vmatprep.subr.bf16.mxu0 0
    %7875 = vmatpush1.bf16.xpose.msra.mxu0 0
    %7876 = vmatprep.subr.bf16.mxu0 0
    %7877 = vmatpush1.bf16.xpose.msra.mxu0 0
    %7878 = vmatprep.subr.bf16.mxu0 0
    %7879 = vmatpush1.bf16.xpose.msra.mxu0 0
    %7880 = vmatprep.subr.bf16.mxu0 0
    %7881 = vmatpush1.bf16.xpose.msra.mxu0 0
    %7882 = vmatprep.subr.bf16.mxu0 0
    %7883 = vmatpush1.bf16.xpose.msra.mxu0 0
    %7884 = vmatprep.subr.bf16.mxu0 0
    %7885 = vmatpush1.bf16.xpose.msra.mxu0 0
    %7886 = vmatprep.subr.bf16.mxu0 0
    %7887 = vmatpush1.bf16.xpose.msra.mxu0 %v7870
    %7888 = vmatprep.subr.bf16.mxu0 0
    %7889 = vmatpush2.bf16.xpose.msra.mxu0 0
    %7890 = vmatprep.subr.bf16.mxu0 0
    %7891 = vmatpush2.bf16.xpose.msra.mxu0 0
    %7892 = vmatprep.subr.bf16.mxu0 0
    %7893 = vmatpush2.bf16.xpose.msra.mxu0 0
    %7894 = vmatprep.subr.bf16.mxu0 0
    %7895 = vmatpush2.bf16.xpose.msra.mxu0 0
    %7896 = vmatprep.subr.bf16.mxu0 0
    %7897 = vmatpush2.bf16.xpose.msra.mxu0 0
    %7898 = vmatprep.subr.bf16.mxu0 0
    %7899 = vmatpush2.bf16.xpose.msra.mxu0 0
    %7900 = vmatprep.subr.bf16.mxu0 0
    %7901 = vmatpush2.bf16.xpose.msra.mxu0 0
    %7902 = vmatprep.subr.bf16.mxu0 0
    %7903 = vmatpush2.bf16.xpose.msra.mxu0 0
    %7904 = vmatprep.mubr.bf16.mxu0 0
    %7905 = vmatmul.mubr.bf16.gmra.mxu0 %v7867
    %v7906 = vpop.f32.mrf.mxu0
    %v7907 = vadd.f32 0.0, %v7906
    %v7908 = vpop.f32.mrf.mxu0
    %v7909 = vpop.f32.mrf.mxu0
    %v7910 = vpop.f32.mrf.mxu0
    %7911 = vdwg.mxu0
    %v7912 = vmul.f32 %v7857, 0.35355338
    %v7913 = vmul.f32 %v7907, 0.35355338
    %v7914 = vadd.f32 %v7912, %v176
    %v7915 = vadd.f32 %v7913, %v177
    %v7916 = vsel %vm271, %v7914, -inf
    %7917 = vmax.xlane.f32.xlu0 %v7916
    %v7918 = vpop.xlane.xlu0 %7917
    %v7919 = vsel %vm271, %v7915, -inf
    %7920 = vmax.xlane.f32.xlu0 %v7919
    %v7921 = vpop.xlane.xlu0 %7920
    %v7922 = vsub.f32 %v7914, %v7918
    %v7923 = vsub.f32 %v7915, %v7921
    %v7924 = vmul.f32 %v7922, 1.442695
    %v7925 = vpow.pop %v7924
    %v7926 = vmul.f32 %v7923, 1.442695
    %v7927 = vpow.pop %v7926
    %v7928 = vsel %vm271, %v7925, 0.0
    %7929 = vadd.xlane.f32.xlu0 %v7928
    %v7930 = vpop.xlane.xlu0 %7929
    %v7931 = vsel %vm271, %v7927, 0.0
    %7932 = vadd.xlane.f32.xlu0 %v7931
    %v7933 = vpop.xlane.xlu0 %7932
    %v7934 = vrcp.pop %v7930
    %v7935 = vrcp.pop %v7933
    %v7936 = vmul.f32 %v7925, %v7934
    %v7937 = vmul.f32 %v7927, %v7935
    %v7938 = vpack.c.bf16 %v7936, %v7936
    %v7939 = vpack.c.bf16 %v7937, %v7937
    %7940 = vrot.lane.b32.xlu0 %v6993, 72
    %v7941 = vpop.permute.xlu0 %7940
    %v7943 = vsel %vm271, %v7938, 0
    %v7946 = vsel %vm400, %v7941, 0
    %7948 = vmatprep.subr.bf16.mxu0 0
    %7949 = vmatpush1.bf16.msra.mxu0 0
    %7950 = vmatprep.subr.bf16.mxu0 0
    %7951 = vmatpush1.bf16.msra.mxu0 0
    %7952 = vmatprep.subr.bf16.mxu0 0
    %7953 = vmatpush1.bf16.msra.mxu0 0
    %7954 = vmatprep.subr.bf16.mxu0 0
    %7955 = vmatpush1.bf16.msra.mxu0 0
    %7956 = vmatprep.subr.bf16.mxu0 0
    %7957 = vmatpush1.bf16.msra.mxu0 0
    %7958 = vmatprep.subr.bf16.mxu0 0
    %7959 = vmatpush1.bf16.msra.mxu0 0
    %7960 = vmatprep.subr.bf16.mxu0 0
    %7961 = vmatpush1.bf16.msra.mxu0 0
    %7962 = vmatprep.subr.bf16.mxu0 0
    %7963 = vmatpush1.bf16.msra.mxu0 %v7946
    %7964 = vmatprep.subr.bf16.mxu0 0
    %7965 = vmatpush2.bf16.msra.mxu0 0
    %7966 = vmatprep.subr.bf16.mxu0 0
    %7967 = vmatpush2.bf16.msra.mxu0 0
    %7968 = vmatprep.subr.bf16.mxu0 0
    %7969 = vmatpush2.bf16.msra.mxu0 0
    %7970 = vmatprep.subr.bf16.mxu0 0
    %7971 = vmatpush2.bf16.msra.mxu0 0
    %7972 = vmatprep.subr.bf16.mxu0 0
    %7973 = vmatpush2.bf16.msra.mxu0 0
    %7974 = vmatprep.subr.bf16.mxu0 0
    %7975 = vmatpush2.bf16.msra.mxu0 0
    %7976 = vmatprep.subr.bf16.mxu0 0
    %7977 = vmatpush2.bf16.msra.mxu0 0
    %7978 = vmatprep.subr.bf16.mxu0 0
    %7979 = vmatpush2.bf16.msra.mxu0 0
    %7980 = vmatprep.mubr.bf16.mxu0 0
    %7981 = vmatmul.mubr.bf16.gmra.mxu0 %v7943
    %v7982 = vpop.f32.mrf.mxu0
    %v7983 = vadd.f32 0.0, %v7982
    %v7984 = vpop.f32.mrf.mxu0
    %v7985 = vpop.f32.mrf.mxu0
    %v7986 = vpop.f32.mrf.mxu0
    %7987 = vdwg.mxu0
    %7988 = vrot.lane.b32.xlu0 %v6994, 72
    %v7989 = vpop.permute.xlu0 %7988
    %v7991 = vsel %vm271, %v7939, 0
    %v7994 = vsel %vm400, %v7989, 0
    %7996 = vmatprep.subr.bf16.mxu0 0
    %7997 = vmatpush1.bf16.msra.mxu0 0
    %7998 = vmatprep.subr.bf16.mxu0 0
    %7999 = vmatpush1.bf16.msra.mxu0 0
    %8000 = vmatprep.subr.bf16.mxu0 0
    %8001 = vmatpush1.bf16.msra.mxu0 0
    %8002 = vmatprep.subr.bf16.mxu0 0
    %8003 = vmatpush1.bf16.msra.mxu0 0
    %8004 = vmatprep.subr.bf16.mxu0 0
    %8005 = vmatpush1.bf16.msra.mxu0 0
    %8006 = vmatprep.subr.bf16.mxu0 0
    %8007 = vmatpush1.bf16.msra.mxu0 0
    %8008 = vmatprep.subr.bf16.mxu0 0
    %8009 = vmatpush1.bf16.msra.mxu0 0
    %8010 = vmatprep.subr.bf16.mxu0 0
    %8011 = vmatpush1.bf16.msra.mxu0 %v7994
    %8012 = vmatprep.subr.bf16.mxu0 0
    %8013 = vmatpush2.bf16.msra.mxu0 0
    %8014 = vmatprep.subr.bf16.mxu0 0
    %8015 = vmatpush2.bf16.msra.mxu0 0
    %8016 = vmatprep.subr.bf16.mxu0 0
    %8017 = vmatpush2.bf16.msra.mxu0 0
    %8018 = vmatprep.subr.bf16.mxu0 0
    %8019 = vmatpush2.bf16.msra.mxu0 0
    %8020 = vmatprep.subr.bf16.mxu0 0
    %8021 = vmatpush2.bf16.msra.mxu0 0
    %8022 = vmatprep.subr.bf16.mxu0 0
    %8023 = vmatpush2.bf16.msra.mxu0 0
    %8024 = vmatprep.subr.bf16.mxu0 0
    %8025 = vmatpush2.bf16.msra.mxu0 0
    %8026 = vmatprep.subr.bf16.mxu0 0
    %8027 = vmatpush2.bf16.msra.mxu0 0
    %8028 = vmatprep.mubr.bf16.mxu0 0
    %8029 = vmatmul.mubr.bf16.gmra.mxu0 %v7991
    %v8030 = vpop.f32.mrf.mxu0
    %v8031 = vadd.f32 0.0, %v8030
    %v8032 = vpop.f32.mrf.mxu0
    %v8033 = vpop.f32.mrf.mxu0
    %v8034 = vpop.f32.mrf.mxu0
    %8035 = vdwg.mxu0
    %v8036 = vpack.c.bf16 %v8031, %v7983
    %v8037 = vpack.c.bf16 %v5659, %v5659
    %v8039 = vsel %vm271, %v8036, 0
    %v8042 = vsel %vm400, %v8037, 0
    %8044 = vmatprep.subr.bf16.mxu0 0
    %8045 = vmatpush1.bf16.msra.mxu0 0
    %8046 = vmatprep.subr.bf16.mxu0 0
    %8047 = vmatpush1.bf16.msra.mxu0 0
    %8048 = vmatprep.subr.bf16.mxu0 0
    %8049 = vmatpush1.bf16.msra.mxu0 0
    %8050 = vmatprep.subr.bf16.mxu0 0
    %8051 = vmatpush1.bf16.msra.mxu0 0
    %8052 = vmatprep.subr.bf16.mxu0 0
    %8053 = vmatpush1.bf16.msra.mxu0 0
    %8054 = vmatprep.subr.bf16.mxu0 0
    %8055 = vmatpush1.bf16.msra.mxu0 0
    %8056 = vmatprep.subr.bf16.mxu0 0
    %8057 = vmatpush1.bf16.msra.mxu0 0
    %8058 = vmatprep.subr.bf16.mxu0 0
    %8059 = vmatpush1.bf16.msra.mxu0 %v8042
    %8060 = vmatprep.subr.bf16.mxu0 0
    %8061 = vmatpush2.bf16.msra.mxu0 0
    %8062 = vmatprep.subr.bf16.mxu0 0
    %8063 = vmatpush2.bf16.msra.mxu0 0
    %8064 = vmatprep.subr.bf16.mxu0 0
    %8065 = vmatpush2.bf16.msra.mxu0 0
    %8066 = vmatprep.subr.bf16.mxu0 0
    %8067 = vmatpush2.bf16.msra.mxu0 0
    %8068 = vmatprep.subr.bf16.mxu0 0
    %8069 = vmatpush2.bf16.msra.mxu0 0
    %8070 = vmatprep.subr.bf16.mxu0 0
    %8071 = vmatpush2.bf16.msra.mxu0 0
    %8072 = vmatprep.subr.bf16.mxu0 0
    %8073 = vmatpush2.bf16.msra.mxu0 0
    %8074 = vmatprep.subr.bf16.mxu0 0
    %8075 = vmatpush2.bf16.msra.mxu0 0
    %8076 = vmatprep.mubr.bf16.mxu0 0
    %8077 = vmatmul.mubr.bf16.gmra.mxu0 %v8039
    %v8078 = vpop.f32.mrf.mxu0
    %v8079 = vadd.f32 0.0, %v8078
    %v8080 = vpop.f32.mrf.mxu0
    %v8081 = vpop.f32.mrf.mxu0
    %v8082 = vadd.f32 0.0, %v8081
    %v8083 = vpop.f32.mrf.mxu0
    %8084 = vdwg.mxu0
    %v8085 = vadd.f32 %v7810, %v8079
    %v8086 = vadd.f32 %v7811, %v8082
    %v8088 = vlaneseq
    %v8089 = vshrl.u32 %v8088, 7
    %v8090 = vsub.s32 0, %v8089
    %v8091 = vrot.slane %v5661, %v8090
    %v8093 = vadd.f32 %v8085, %v8091
    %v8094 = vadd.f32 %v8086, %v8091
    %v8095 = vadd.f32 %v6887, %v8093
    %v8096 = vadd.f32 %v6888, %v8094
    %v8097 = vsel %vm221, %v8095, 0.0
    %8098 = vadd.xlane.f32.xlu0 %v8097
    %v8099 = vpop.xlane.xlu0 %8098
    %v8100 = vsel %vm221, %v8096, 0.0
    %8101 = vadd.xlane.f32.xlu0 %v8100
    %v8102 = vpop.xlane.xlu0 %8101
    %v8103 = vmul.f32 %v8099, %v1380
    %v8104 = vmul.f32 %v8102, %v1380
    %v8105 = vsub.f32 %v8095, %v8103
    %v8106 = vsub.f32 %v8096, %v8104
    %v8107 = vmul.f32 %v8105, %v8105
    %v8108 = vmul.f32 %v8106, %v8106
    %v8109 = vsel %vm221, %v8107, 0.0
    %8110 = vadd.xlane.f32.xlu0 %v8109
    %v8111 = vpop.xlane.xlu0 %8110
    %v8112 = vsel %vm221, %v8108, 0.0
    %8113 = vadd.xlane.f32.xlu0 %v8112
    %v8114 = vpop.xlane.xlu0 %8113
    %v8115 = vmul.f32 %v8111, %v1380
    %v8116 = vmul.f32 %v8114, %v1380
    %v8117 = vadd.f32 %v8115, 1e-05
    %v8118 = vadd.f32 %v8116, 1e-05
    %v8119 = vrsqrt.pop %v8117
    %v8120 = vrsqrt.pop %v8118
    %v8121 = vmul.f32 %v8105, %v8119
    %v8122 = vmul.f32 %v8106, %v8120
    %v8124 = vlaneseq
    %v8125 = vshrl.u32 %v8124, 7
    %v8126 = vsub.s32 0, %v8125
    %v8127 = vrot.slane %v5663, %v8126
    %v8129 = vmul.f32 %v8121, %v8127
    %v8130 = vmul.f32 %v8122, %v8127
    %v8132 = vlaneseq
    %v8133 = vshrl.u32 %v8132, 7
    %v8134 = vsub.s32 0, %v8133
    %v8135 = vrot.slane %v5665, %v8134
    %v8137 = vadd.f32 %v8129, %v8135
    %v8138 = vadd.f32 %v8130, %v8135
    %v8139 = vpack.c.bf16 %v8138, %v8137
    %v8140 = vpack.c.bf16 %v5668, %v5667
    %v8141 = vpack.c.bf16 %v5670, %v5669
    %v8143 = vlaneseq
    %v8144 = vshrl.u32 %v8143, 7
    %v8145 = vsub.s32 0, %v8144
    %v8146 = vrot.slane %v5672, %v8145
    %v8149 = vsel %vm221, %v8139, 0
    %8151 = vmatprep.subr.bf16.mxu0 0
    %8152 = vmatpush1.bf16.msra.mxu0 0
    %8153 = vmatprep.subr.bf16.mxu0 0
    %8154 = vmatpush1.bf16.msra.mxu0 0
    %8155 = vmatprep.subr.bf16.mxu0 0
    %8156 = vmatpush1.bf16.msra.mxu0 0
    %8157 = vmatprep.subr.bf16.mxu0 0
    %8158 = vmatpush1.bf16.msra.mxu0 0
    %8159 = vmatprep.subr.bf16.mxu0 0
    %8160 = vmatpush1.bf16.msra.mxu0 0
    %8161 = vmatprep.subr.bf16.mxu0 0
    %8162 = vmatpush1.bf16.msra.mxu0 0
    %8163 = vmatprep.subr.bf16.mxu0 0
    %8164 = vmatpush1.bf16.msra.mxu0 %v8141
    %8165 = vmatprep.subr.bf16.mxu0 0
    %8166 = vmatpush1.bf16.msra.mxu0 %v8140
    %8167 = vmatprep.subr.bf16.mxu0 0
    %8168 = vmatpush2.bf16.msra.mxu0 0
    %8169 = vmatprep.subr.bf16.mxu0 0
    %8170 = vmatpush2.bf16.msra.mxu0 0
    %8171 = vmatprep.subr.bf16.mxu0 0
    %8172 = vmatpush2.bf16.msra.mxu0 0
    %8173 = vmatprep.subr.bf16.mxu0 0
    %8174 = vmatpush2.bf16.msra.mxu0 0
    %8175 = vmatprep.subr.bf16.mxu0 0
    %8176 = vmatpush2.bf16.msra.mxu0 0
    %8177 = vmatprep.subr.bf16.mxu0 0
    %8178 = vmatpush2.bf16.msra.mxu0 0
    %8179 = vmatprep.subr.bf16.mxu0 0
    %8180 = vmatpush2.bf16.msra.mxu0 0
    %8181 = vmatprep.subr.bf16.mxu0 0
    %8182 = vmatpush2.bf16.msra.mxu0 0
    %8183 = vmatprep.mubr.bf16.mxu0 0
    %8184 = vmatmul.mubr.bf16.gmra.mxu0 %v8149
    %v8185 = vpop.f32.mrf.mxu0
    %v8186 = vadd.f32 %v8146, %v8185
    %v8187 = vpop.f32.mrf.mxu0
    %v8188 = vpop.f32.mrf.mxu0
    %v8189 = vadd.f32 %v8146, %v8188
    %v8190 = vpop.f32.mrf.mxu0
    %8191 = vdwg.mxu0
    %v8192 = vmax.f32 %v8186, 0.0
    %v8193 = vmax.f32 %v8189, 0.0
    %v8194 = vpack.c.bf16 %v8193, %v8192
    %v8195 = vpack.c.bf16 %v5675, %v5674
    %v8196 = vpack.c.bf16 %v5677, %v5676
    %v8197 = vpack.c.bf16 %v5679, %v5678
    %v8198 = vpack.c.bf16 %v5681, %v5680
    %v8200 = vlaneseq
    %v8201 = vshrl.u32 %v8200, 7
    %v8202 = vsub.s32 0, %v8201
    %v8203 = vrot.slane %v5683, %v8202
    %v8206 = vsel %vm1483, %v8194, 0
    %8208 = vmatprep.subr.bf16.mxu0 0
    %8209 = vmatpush1.bf16.msra.mxu0 0
    %8210 = vmatprep.subr.bf16.mxu0 0
    %8211 = vmatpush1.bf16.msra.mxu0 0
    %8212 = vmatprep.subr.bf16.mxu0 0
    %8213 = vmatpush1.bf16.msra.mxu0 0
    %8214 = vmatprep.subr.bf16.mxu0 0
    %8215 = vmatpush1.bf16.msra.mxu0 0
    %8216 = vmatprep.subr.bf16.mxu0 0
    %8217 = vmatpush1.bf16.msra.mxu0 %v8198
    %8218 = vmatprep.subr.bf16.mxu0 0
    %8219 = vmatpush1.bf16.msra.mxu0 %v8197
    %8220 = vmatprep.subr.bf16.mxu0 0
    %8221 = vmatpush1.bf16.msra.mxu0 %v8196
    %8222 = vmatprep.subr.bf16.mxu0 0
    %8223 = vmatpush1.bf16.msra.mxu0 %v8195
    %8224 = vmatprep.subr.bf16.mxu0 0
    %8225 = vmatpush2.bf16.msra.mxu0 0
    %8226 = vmatprep.subr.bf16.mxu0 0
    %8227 = vmatpush2.bf16.msra.mxu0 0
    %8228 = vmatprep.subr.bf16.mxu0 0
    %8229 = vmatpush2.bf16.msra.mxu0 0
    %8230 = vmatprep.subr.bf16.mxu0 0
    %8231 = vmatpush2.bf16.msra.mxu0 0
    %8232 = vmatprep.subr.bf16.mxu0 0
    %8233 = vmatpush2.bf16.msra.mxu0 0
    %8234 = vmatprep.subr.bf16.mxu0 0
    %8235 = vmatpush2.bf16.msra.mxu0 0
    %8236 = vmatprep.subr.bf16.mxu0 0
    %8237 = vmatpush2.bf16.msra.mxu0 0
    %8238 = vmatprep.subr.bf16.mxu0 0
    %8239 = vmatpush2.bf16.msra.mxu0 0
    %8240 = vmatprep.mubr.bf16.mxu0 0
    %8241 = vmatmul.mubr.bf16.gmra.mxu0 %v8206
    %v8242 = vpop.f32.mrf.mxu0
    %v8243 = vadd.f32 %v8203, %v8242
    %v8244 = vpop.f32.mrf.mxu0
    %v8245 = vpop.f32.mrf.mxu0
    %v8246 = vadd.f32 %v8203, %v8245
    %v8247 = vpop.f32.mrf.mxu0
    %8248 = vdwg.mxu0
    %v8249 = vadd.f32 %v8137, %v8243
    %v8250 = vadd.f32 %v8138, %v8246
    %v8251 = vsel %vm221, %v8249, 0.0
    %8252 = vadd.xlane.f32.xlu0 %v8251
    %v8253 = vpop.xlane.xlu0 %8252
    %v8254 = vsel %vm221, %v8250, 0.0
    %8255 = vadd.xlane.f32.xlu0 %v8254
    %v8256 = vpop.xlane.xlu0 %8255
    %v8257 = vmul.f32 %v8253, %v1380
    %v8258 = vmul.f32 %v8256, %v1380
    %v8259 = vsub.f32 %v8249, %v8257
    %v8260 = vsub.f32 %v8250, %v8258
    %v8261 = vmul.f32 %v8259, %v8259
    %v8262 = vmul.f32 %v8260, %v8260
    %v8263 = vsel %vm221, %v8261, 0.0
    %8264 = vadd.xlane.f32.xlu0 %v8263
    %v8265 = vpop.xlane.xlu0 %8264
    %v8266 = vsel %vm221, %v8262, 0.0
    %8267 = vadd.xlane.f32.xlu0 %v8266
    %v8268 = vpop.xlane.xlu0 %8267
    %v8269 = vmul.f32 %v8265, %v1380
    %v8270 = vmul.f32 %v8268, %v1380
    %v8271 = vadd.f32 %v8269, 1e-05
    %v8272 = vadd.f32 %v8270, 1e-05
    %v8273 = vrsqrt.pop %v8271
    %v8274 = vrsqrt.pop %v8272
    %v8275 = vmul.f32 %v8259, %v8273
    %v8276 = vmul.f32 %v8260, %v8274
    %v8278 = vlaneseq
    %v8279 = vshrl.u32 %v8278, 7
    %v8280 = vsub.s32 0, %v8279
    %v8281 = vrot.slane %v5685, %v8280
    %v8283 = vmul.f32 %v8275, %v8281
    %v8284 = vmul.f32 %v8276, %v8281
    %v8286 = vlaneseq
    %v8287 = vshrl.u32 %v8286, 7
    %v8288 = vsub.s32 0, %v8287
    %v8289 = vrot.slane %v5687, %v8288
    %v8291 = vadd.f32 %v8283, %v8289
    %v8292 = vadd.f32 %v8284, %v8289
    %v8293 = vld [vmem:[%s71] sm:$0xff]
    %v8294 = vld [vmem:[%s71 + $0x8] sm:$0xff]
    %v8295 = vld [vmem:[%s71 + $0x10] sm:$0xff]
    %v8296 = vld [vmem:[%s71 + $0x18] sm:$0xff]
    %v8297 = vpack.c.bf16 %v8292, %v8291
    %v8298 = vpack.c.bf16 %v8294, %v8293
    %v8299 = vpack.c.bf16 %v8296, %v8295
    %v8300 = vld [vmem:[%s73] sm:$0x1]
    %v8302 = vlaneseq
    %v8303 = vshrl.u32 %v8302, 7
    %v8304 = vsub.s32 0, %v8303
    %v8305 = vrot.slane %v8300, %v8304
    %v8308 = vsel %vm221, %v8297, 0
    %8310 = vmatprep.subr.bf16.mxu0 0
    %8311 = vmatpush1.bf16.msra.mxu0 0
    %8312 = vmatprep.subr.bf16.mxu0 0
    %8313 = vmatpush1.bf16.msra.mxu0 0
    %8314 = vmatprep.subr.bf16.mxu0 0
    %8315 = vmatpush1.bf16.msra.mxu0 0
    %8316 = vmatprep.subr.bf16.mxu0 0
    %8317 = vmatpush1.bf16.msra.mxu0 0
    %8318 = vmatprep.subr.bf16.mxu0 0
    %8319 = vmatpush1.bf16.msra.mxu0 0
    %8320 = vmatprep.subr.bf16.mxu0 0
    %8321 = vmatpush1.bf16.msra.mxu0 0
    %8322 = vmatprep.subr.bf16.mxu0 0
    %8323 = vmatpush1.bf16.msra.mxu0 %v8299
    %8324 = vmatprep.subr.bf16.mxu0 0
    %8325 = vmatpush1.bf16.msra.mxu0 %v8298
    %8326 = vmatprep.subr.bf16.mxu0 0
    %8327 = vmatpush2.bf16.msra.mxu0 0
    %8328 = vmatprep.subr.bf16.mxu0 0
    %8329 = vmatpush2.bf16.msra.mxu0 0
    %8330 = vmatprep.subr.bf16.mxu0 0
    %8331 = vmatpush2.bf16.msra.mxu0 0
    %8332 = vmatprep.subr.bf16.mxu0 0
    %8333 = vmatpush2.bf16.msra.mxu0 0
    %8334 = vmatprep.subr.bf16.mxu0 0
    %8335 = vmatpush2.bf16.msra.mxu0 0
    %8336 = vmatprep.subr.bf16.mxu0 0
    %8337 = vmatpush2.bf16.msra.mxu0 0
    %8338 = vmatprep.subr.bf16.mxu0 0
    %8339 = vmatpush2.bf16.msra.mxu0 0
    %8340 = vmatprep.subr.bf16.mxu0 0
    %8341 = vmatpush2.bf16.msra.mxu0 0
    %8342 = vmatprep.mubr.bf16.mxu0 0
    %8343 = vmatmul.mubr.bf16.gmra.mxu0 %v8308
    %v8344 = vpop.f32.mrf.mxu0
    %v8345 = vadd.f32 %v8305, %v8344
    %v8346 = vpop.f32.mrf.mxu0
    %v8347 = vpop.f32.mrf.mxu0
    %v8348 = vadd.f32 %v8305, %v8347
    %v8349 = vpop.f32.mrf.mxu0
    %8350 = vdwg.mxu0
    %vm8351 = vcmask 97280
    %8352 = vst.msk [vmem:[#allocation2] sm:$0xff] %vm8351, %v8345
    %8353 = vst.msk [vmem:[#allocation2 + $0x8] sm:$0xff] %vm8351, %v8348
    // Predicated region
    $region150: #{encoder_decoder_forward.1} parent=1 // pred_check
      _
    $region151: #{encoder_decoder_forward.1} parent=1 // pred_check_branch
      %8355 = sbr.rel (0) target = $region153
    $region152: #{encoder_decoder_forward.1} parent=1 // pred_region
      %s8357 = ssub.s32 256, 256
      %8358 = vsyncadd [#allocation3], %s8357
      %s8359 = sshll.u32 [#allocation2], 4
      %s8360 = int_to_ptr.vmem [resolvable:$true] %s8359
      %8365 = dma.vmem_to_hbm [thread:$0]  %s8360, 256, %s75, [#allocation3], 128, 128, 8
    $region153: #{encoder_decoder_forward.1} parent=1 // pred_fallthru
      _
    // Predicated region
    $region154: #{encoder_decoder_forward.1} parent=1 // pred_check
      _
    $region155: #{encoder_decoder_forward.1} parent=1 // pred_check_branch
      %8367 = sbr.rel (0) target = $region157
    $region156: #{encoder_decoder_forward.1} parent=1 // pred_region
      %8368 = dma.done [#allocation3], 256
    $region157: #{encoder_decoder_forward.1} parent=1 // pred_fallthru
      _
    %8369 = vsyncpa [#allocation3], 1

</llo_original>
